<compile_context>
chip_gen: v6e
topology: v6e:2x2x1
jax: 0.10.0
libtpu: 0.0.40
codegen_flags: <defaults>
</compile_context>

<pallas_src>
import numpy as np

import jax
import jax.numpy as jnp
from jax import lax
from jax.experimental import pallas as pl
from jax.experimental.pallas import tpu as pltpu


# Sub-pixel phase taps for ConvTranspose2d(k=4, stride=2, pad=1):
# output row 2m+py receives input rows m+dy with kernel tap ky for
# (dy, ky) in _PHASE_TAPS[py] (identically for columns with px/dx/kx).
_PHASE_TAPS = (((0, 1), (-1, 3)),   # py == 0 -> ky in {1, 3}
               ((0, 2), (1, 0)))    # py == 1 -> ky in {2, 0}


# ---------------------------------------------------------------------------
# Weight preparation (pure XLA, tiny; in a real deployment precompute once).
# ---------------------------------------------------------------------------
def _fold_bn(gamma, beta, mean, var, eps=1e-5):
    scale = gamma / jnp.sqrt(var + eps)
    shift = beta - mean * scale
    return scale, shift


def _stem_weight(w, scale, shift):
    """L0 on a 1x1 input == matmul: (nz,) @ (nz, 16*C) with BN folded."""
    nz, C = w.shape[0], w.shape[1]
    w_mat = jnp.transpose(w, (0, 2, 3, 1)).reshape(nz, 16 * C)   # (ic,(ky,kx,oc))
    w_mat = w_mat * jnp.tile(scale, 16)[None, :]
    bias = jnp.tile(shift, 16).reshape(1, 16 * C).astype(jnp.float32)
    return w_mat.astype(jnp.bfloat16), bias


def _row_weight(w, scale, Win):
    """Dense-ified per-output-row weight for ConvTranspose2d(Cin,Cout,4,2,1).

    Returns (4, (Win+2)*Cin, 2*Win*Cout) bf16.  Entry [2*py + t] maps one
    padded, channel-flattened input row (shifted by dy_t of _PHASE_TAPS[py])
    to one full output row 2m+py in (2n+px, oc) order; BN scale is folded in.
    """
    Cin, Cout = w.shape[0], w.shape[1]
    Wp = Win + 2
    ws = w * scale[None, :, None, None]
    # sel[kx, j, n, px] = 1 iff padded input column j (== n+dx+1) feeds output
    # column phase px through the (dx, kx) tap.
    sel = np.zeros((4, Wp, Win, 2), np.float32)
    for px in range(2):
        for dx, kx in _PHASE_TAPS[px]:
            for n in range(Win):
                sel[kx, n + dx + 1, n, px] = 1.0
    sel = jnp.asarray(sel)
    mats = []
    for py in range(2):
        for _t, (_dy, ky) in enumerate(_PHASE_TAPS[py]):
            m = jnp.einsum("kjnp,iok->jinpo", sel, ws[:, :, ky, :])
            mats.append(m.reshape(Wp * Cin, 2 * Win * Cout))
    return jnp.stack(mats, axis=0).astype(jnp.bfloat16)


def _row_bias(shift, Win):
    Cout = shift.shape[0]
    return jnp.tile(shift, 2 * Win).reshape(1, 2 * Win * Cout).astype(jnp.float32)


# ---------------------------------------------------------------------------
# Fused generator kernel: one grid step == one sample, all layers.
# ---------------------------------------------------------------------------
def _dcgan_kernel(x_ref, w0_ref, b0_ref, w1_ref, b1_ref, w2_ref, b2_ref,
                  w3_ref, b3_ref, w4_ref, out_ref, a0, a1, a2, a3):
    # Scratch layouts (bf16):
    #   a0: (6,   6*C0)   padded 4x4xC0
    #   a1: (10, 10*C1)   padded 8x8xC1
    #   a2: (18, 18*C2)   padded 16x16xC2
    #   a3: (34, 34*C3)   padded 32x32xC3
    C0 = a0.shape[1] // 6
    C1 = a1.shape[1] // 10
    C2 = a2.shape[1] // 18
    C3 = a3.shape[1] // 34

    # Zero the padded scratch (only the 1-pixel border matters; interior is
    # always overwritten).  ~40 KB of bf16 writes per step.
    for a in (a0, a1, a2, a3):
        a[...] = jnp.zeros_like(a)

    # ---- L0: stem matmul + BN + ReLU, written into a0's interior ----------
    y0 = jnp.dot(x_ref[...], w0_ref[...], preferred_element_type=jnp.float32)
    y0 = jnp.maximum(y0 + b0_ref[...], 0.0).astype(a0.dtype)     # (1, 16*C0)
    for h in range(4):
        a0[1 + h:2 + h, C0:5 * C0] = y0[:, h * 4 * C0:(h + 1) * 4 * C0]

    # ---- Up-layers: 2 MXU dots per output-row-phase, lane-dense rows -------
    def up_layer(src, store, w_ref, b_ref, Hin, act):
        for py in range(2):
            z = None
            for t, (dy, _ky) in enumerate(_PHASE_TAPS[py]):
                lhs = src[1 + dy:1 + dy + Hin, :]          # (Hin, (Win+2)*Cin)
                part = jnp.dot(lhs, w_ref[2 * py + t],
                               preferred_element_type=jnp.float32)
                z = part if z is None else z + part        # (Hin, 2*Win*Cout)
            if b_ref is not None:
                z = z + b_ref[...]
            z = jnp.maximum(z, 0.0) if act == "relu" else jnp.tanh(z)
            store(py, z)

    def store_to_act(dst, Cout, N):
        # Row 2m+py of the output goes to padded row 2m+py+1, interior columns.
        def store(py, z):
            zb = z.astype(dst.dtype)
            for m in range(z.shape[0]):
                dst[2 * m + py + 1:2 * m + py + 2, Cout:Cout + N] = zb[m:m + 1, :]
        return store

    def store_to_out(py, z):                              # phase-blocked output
        out_ref[py] = z.astype(out_ref.dtype)

    up_layer(a0, store_to_act(a1, C1, 8 * C1),  w1_ref, b1_ref, 4,  "relu")
    up_layer(a1, store_to_act(a2, C2, 16 * C2), w2_ref, b2_ref, 8,  "relu")
    up_layer(a2, store_to_act(a3, C3, 32 * C3), w3_ref, b3_ref, 16, "relu")
    up_layer(a3, store_to_out,                  w4_ref, None,   32, "tanh")


# ---------------------------------------------------------------------------
# Full forward
# ---------------------------------------------------------------------------
def generator_dcgan_forward(x, params):
    """GeneratorDCGAN.forward. x: (B, nz, 1, 1) NCHW -> (B, nc, 64, 64) NCHW.

    params: list of 5 tuples (weight, bn); weight in torch ConvTranspose2d
    layout (C_in, C_out, 4, 4); bn = (gamma, beta, running_mean, running_var)
    for layers 0..3, bn = None for layer 4.
    """
    B, nz = x.shape[0], x.shape[1]
    (w0, bn0), (w1, bn1), (w2, bn2), (w3, bn3), (w4, _) = params
    s0, h0 = _fold_bn(*bn0)
    s1, h1 = _fold_bn(*bn1)
    s2, h2 = _fold_bn(*bn2)
    s3, h3 = _fold_bn(*bn3)

    C0, C1, C2, C3 = w0.shape[1], w1.shape[1], w2.shape[1], w3.shape[1]
    nc = w4.shape[1]
    N4 = 2 * 32 * nc

    # Pre-folded bf16 weights (BN scale folded in; BN shift as f32 bias rows).
    w0m, b0v = _stem_weight(w0, s0, h0)
    w1m, b1v = _row_weight(w1, s1, 4), _row_bias(h1, 4)
    w2m, b2v = _row_weight(w2, s2, 8), _row_bias(h2, 8)
    w3m, b3v = _row_weight(w3, s3, 16), _row_bias(h3, 16)
    w4m = _row_weight(w4, jnp.ones((nc,), jnp.float32), 32)

    x3 = x.reshape(B, 1, nz).astype(jnp.bfloat16)

    # Cost estimate (per-phase dense-ified matmuls + stem).
    layer_dims = ((4, 6 * C0, 8 * C1), (8, 10 * C1, 16 * C2),
                  (16, 18 * C2, 32 * C3), (32, 34 * C3, N4))
    flops = 2 * B * nz * 16 * C0
    for Hin, K, N in layer_dims:
        flops += 2 * B * 4 * Hin * K * N
    weight_bytes = sum(int(a.size) * a.dtype.itemsize
                       for a in (w0m, b0v, w1m, b1v, w2m, b2v, w3m, b3v, w4m))
    bytes_accessed = weight_bytes + int(x3.size) * 2 + B * 2 * 32 * N4 * 4

    in_specs = [
        pl.BlockSpec((None, 1, nz), lambda b: (b, 0, 0)),      # latent (per step)
        pl.BlockSpec(w0m.shape, lambda b: (0, 0)),             # resident weights
        pl.BlockSpec(b0v.shape, lambda b: (0, 0)),
        pl.BlockSpec(w1m.shape, lambda b: (0, 0, 0)),
        pl.BlockSpec(b1v.shape, lambda b: (0, 0)),
        pl.BlockSpec(w2m.shape, lambda b: (0, 0, 0)),
        pl.BlockSpec(b2v.shape, lambda b: (0, 0)),
        pl.BlockSpec(w3m.shape, lambda b: (0, 0, 0)),
        pl.BlockSpec(b3v.shape, lambda b: (0, 0)),
        pl.BlockSpec(w4m.shape, lambda b: (0, 0, 0)),
    ]
    out_specs = pl.BlockSpec((None, 2, 32, N4), lambda b: (b, 0, 0, 0))
    scratch_shapes = [
        pltpu.VMEM((6, 6 * C0), jnp.bfloat16),
        pltpu.VMEM((10, 10 * C1), jnp.bfloat16),
        pltpu.VMEM((18, 18 * C2), jnp.bfloat16),
        pltpu.VMEM((34, 34 * C3), jnp.bfloat16),
    ]

    out = pl.pallas_call(
        _dcgan_kernel,
        out_shape=jax.ShapeDtypeStruct((B, 2, 32, N4), jnp.float32),
        grid_spec=pltpu.PrefetchScalarGridSpec(
            num_scalar_prefetch=0,
            grid=(B,),
            in_specs=in_specs,
            out_specs=out_specs,
            scratch_shapes=scratch_shapes,
        ),
        compiler_params=pltpu.CompilerParams(
            dimension_semantics=("parallel",),
            vmem_limit_bytes=32 * 1024 * 1024,
        ),
        cost_estimate=pl.CostEstimate(
            flops=int(flops),
            transcendentals=int(B * 2 * 32 * N4),
            bytes_accessed=int(bytes_accessed),
        ),
    )(x3, w0m, b0v, w1m, b1v, w2m, b2v, w3m, b3v, w4m)

    # out[b, py, m, (2n+px)*nc + o] = img[b, 2m+py, 2n+px, o]
    # Single XLA interleave + NCHW transpose on the final 64x64 output only.
    out = out.reshape(B, 2, 32, 64, nc)
    out = jnp.transpose(out, (0, 4, 2, 1, 3)).reshape(B, nc, 64, 64)
    return out


# ---------------------------------------------------------------------------
# Pure-JAX reference (definitional transposed conv) for validation.
# ---------------------------------------------------------------------------
def conv_transpose_ref(x, w, stride, pad):
    # x: (B, C_in, H, W); w: (C_in, C_out, K, K)
    B, C_in, H, W = x.shape
    C_out, K = w.shape[1], w.shape[2]
    contrib = jnp.einsum("bihw,iokl->bohwkl", x, w, precision=lax.Precision.HIGHEST)
    Hf, Wf = (H - 1) * stride + K, (W - 1) * stride + K
    out = jnp.zeros((B, C_out, Hf, Wf), jnp.float32)
    for ky in range(K):
        for kx in range(K):
            out = out.at[:, :,
                         ky:ky + (H - 1) * stride + 1:stride,
                         kx:kx + (W - 1) * stride + 1:stride].add(contrib[..., ky, kx])
    Ho, Wo = (H - 1) * stride - 2 * pad + K, (W - 1) * stride - 2 * pad + K
    return out[:, :, pad:pad + Ho, pad:pad + Wo]


def generator_ref(x, params):
    y = x
    for li, (w, bn) in enumerate(params):
        stride, pad = (1, 0) if li == 0 else (2, 1)
        y = conv_transpose_ref(y, w, stride, pad)
        if bn is not None:
            s, h = _fold_bn(*bn)
            y = jnp.maximum(y * s[None, :, None, None] + h[None, :, None, None], 0.0)
        else:
            y = jnp.tanh(y)
    return y


if __name__ == "__main__":
    nz, ngf, nc, B = 16, 8, 3, 2
    chans = [nz, ngf * 8, ngf * 4, ngf * 2, ngf, nc]

    key = jax.random.PRNGKey(0)
    params = []
    for li in range(5):
        c_in, c_out = chans[li], chans[li + 1]
        key, kw, kg, kb, km, kv = jax.random.split(key, 6)
        w = jax.random.normal(kw, (c_in, c_out, 4, 4), jnp.float32) / jnp.sqrt(c_in * 16.0)
        if li < 4:
            gamma = 1.0 + 0.1 * jax.random.normal(kg, (c_out,), jnp.float32)
            beta = 0.1 * jax.random.normal(kb, (c_out,), jnp.float32)
            mean = 0.1 * jax.random.normal(km, (c_out,), jnp.float32)
            var = jax.random.uniform(kv, (c_out,), jnp.float32, 0.5, 1.5)
            bn = (gamma, beta, mean, var)
        else:
            bn = None
        params.append((w, bn))

    key, kx = jax.random.split(key)
    x = jax.random.normal(kx, (B, nz, 1, 1), jnp.float32)

    fwd = jax.jit(generator_dcgan_forward)
    out = jax.block_until_ready(fwd(x, params))
    assert out.shape == (B, nc, 64, 64), out.shape

    ref = jax.block_until_ready(generator_ref(x, params))
    max_err = float(jnp.max(jnp.abs(out - ref)))
    assert jnp.allclose(out, ref, atol=2e-2, rtol=2e-2), f"max_err={max_err}"

    print("KERNEL_OK")
</pallas_src>

<mosaic_0001>
module attributes {stable_mosaic.version = 11 : i64} {
  func.func @_dcgan_kernel(%arg0: i32, %arg1: memref<1x1x16xbf16, #tpu.memory_space<vmem>>, %arg2: memref<16x1024xbf16, #tpu.memory_space<vmem>>, %arg3: memref<1x1024xf32, #tpu.memory_space<vmem>>, %arg4: memref<4x384x256xbf16, #tpu.memory_space<vmem>>, %arg5: memref<1x256xf32, #tpu.memory_space<vmem>>, %arg6: memref<4x320x256xbf16, #tpu.memory_space<vmem>>, %arg7: memref<1x256xf32, #tpu.memory_space<vmem>>, %arg8: memref<4x288x256xbf16, #tpu.memory_space<vmem>>, %arg9: memref<1x256xf32, #tpu.memory_space<vmem>>, %arg10: memref<4x272x192xbf16, #tpu.memory_space<vmem>>, %arg11: memref<1x2x32x192xf32, #tpu.memory_space<vmem>>, %arg12: memref<6x384xbf16, #tpu.memory_space<vmem>>, %arg13: memref<10x320xbf16, #tpu.memory_space<vmem>>, %arg14: memref<18x288xbf16, #tpu.memory_space<vmem>>, %arg15: memref<34x272xbf16, #tpu.memory_space<vmem>>) attributes {dimension_semantics = [#tpu.dimension_semantics<parallel>], iteration_bounds = array<i64: 2>, scalar_prefetch = 0 : i64, scratch_operands = 4 : i64, tpu.core_type = #tpu.core_type<tc>, window_params = [{transform_indices = @transform_0, window_bounds = array<i64: 1, 1, 16>}, {pipeline_mode = #tpu.pipeline_mode<synchronous>, transform_indices = @transform_1, window_bounds = array<i64: 16, 1024>}, {pipeline_mode = #tpu.pipeline_mode<synchronous>, transform_indices = @transform_2, window_bounds = array<i64: 1, 1024>}, {pipeline_mode = #tpu.pipeline_mode<synchronous>, transform_indices = @transform_3, window_bounds = array<i64: 4, 384, 256>}, {pipeline_mode = #tpu.pipeline_mode<synchronous>, transform_indices = @transform_4, window_bounds = array<i64: 1, 256>}, {pipeline_mode = #tpu.pipeline_mode<synchronous>, transform_indices = @transform_5, window_bounds = array<i64: 4, 320, 256>}, {pipeline_mode = #tpu.pipeline_mode<synchronous>, transform_indices = @transform_6, window_bounds = array<i64: 1, 256>}, {pipeline_mode = #tpu.pipeline_mode<synchronous>, transform_indices = @transform_7, window_bounds = array<i64: 4, 288, 256>}, {pipeline_mode = #tpu.pipeline_mode<synchronous>, transform_indices = @transform_8, window_bounds = array<i64: 1, 256>}, {pipeline_mode = #tpu.pipeline_mode<synchronous>, transform_indices = @transform_9, window_bounds = array<i64: 4, 272, 192>}, {transform_indices = @transform_10, window_bounds = array<i64: 1, 2, 32, 192>}]} {
    %cst = arith.constant 0.000000e+00 : bf16
    %0 = vector.broadcast %cst : bf16 to vector<6x384xbf16>
    %c0 = arith.constant 0 : index
    %c0_0 = arith.constant 0 : index
    %1 = vector.load %arg12[%c0, %c0_0] : memref<6x384xbf16, #tpu.memory_space<vmem>>, vector<6x384xbf16>
    tpu.vector_store %arg12[%c0, %c0_0], %0 {strides = array<i32>} : memref<6x384xbf16, #tpu.memory_space<vmem>>, vector<6x384xbf16>,
    %cst_1 = arith.constant 0.000000e+00 : bf16
    %2 = vector.broadcast %cst_1 : bf16 to vector<10x320xbf16>
    %c0_2 = arith.constant 0 : index
    %c0_3 = arith.constant 0 : index
    %3 = vector.load %arg13[%c0_2, %c0_3] : memref<10x320xbf16, #tpu.memory_space<vmem>>, vector<10x320xbf16>
    tpu.vector_store %arg13[%c0_2, %c0_3], %2 {strides = array<i32>} : memref<10x320xbf16, #tpu.memory_space<vmem>>, vector<10x320xbf16>,
    %cst_4 = arith.constant 0.000000e+00 : bf16
    %4 = vector.broadcast %cst_4 : bf16 to vector<18x288xbf16>
    %c0_5 = arith.constant 0 : index
    %c0_6 = arith.constant 0 : index
    %5 = vector.load %arg14[%c0_5, %c0_6] : memref<18x288xbf16, #tpu.memory_space<vmem>>, vector<18x288xbf16>
    tpu.vector_store %arg14[%c0_5, %c0_6], %4 {strides = array<i32>} : memref<18x288xbf16, #tpu.memory_space<vmem>>, vector<18x288xbf16>,
    %cst_7 = arith.constant 0.000000e+00 : bf16
    %6 = vector.broadcast %cst_7 : bf16 to vector<34x272xbf16>
    %c0_8 = arith.constant 0 : index
    %c0_9 = arith.constant 0 : index
    %7 = vector.load %arg15[%c0_8, %c0_9] : memref<34x272xbf16, #tpu.memory_space<vmem>>, vector<34x272xbf16>
    tpu.vector_store %arg15[%c0_8, %c0_9], %6 {strides = array<i32>} : memref<34x272xbf16, #tpu.memory_space<vmem>>, vector<34x272xbf16>,
    %c0_10 = arith.constant 0 : index
    %c0_11 = arith.constant 0 : index
    %c0_12 = arith.constant 0 : index
    %8 = vector.load %arg1[%c0_10, %c0_11, %c0_12] : memref<1x1x16xbf16, #tpu.memory_space<vmem>>, vector<1x1x16xbf16>
    %9 = vector.shape_cast %8 : vector<1x1x16xbf16> to vector<1x16xbf16>
    %c0_13 = arith.constant 0 : index
    %c0_14 = arith.constant 0 : index
    %10 = vector.load %arg2[%c0_13, %c0_14] : memref<16x1024xbf16, #tpu.memory_space<vmem>>, vector<16x1024xbf16>
    %cst_15 = arith.constant dense<0.000000e+00> : vector<1x1024xf32>
    %11 = tpu.matmul %9, %10, %cst_15 {dimension_numbers = #tpu.dot_dimension_numbers<[1], [0], [0], [1], [0, 0, 1, 1], [], []>} : vector<1x16xbf16>, vector<16x1024xbf16>, vector<1x1024xf32> -> vector<1x1024xf32>
    %c0_16 = arith.constant 0 : index
    %c0_17 = arith.constant 0 : index
    %12 = vector.load %arg3[%c0_16, %c0_17] : memref<1x1024xf32, #tpu.memory_space<vmem>>, vector<1x1024xf32>
    %13 = arith.addf %11, %12 : vector<1x1024xf32>
    %cst_18 = arith.constant 0.000000e+00 : f32
    %14 = vector.broadcast %cst_18 : f32 to vector<1x1024xf32>
    %15 = arith.maximumf %13, %14 : vector<1x1024xf32>
    %16 = arith.truncf %15 : vector<1x1024xf32> to vector<1x1024xbf16>
    %17 = vector.extract_strided_slice %16 {offsets = [0, 0], sizes = [1, 256], strides = [1, 1]} : vector<1x1024xbf16> to vector<1x256xbf16>
    %c1 = arith.constant 1 : index
    %c64 = arith.constant 64 : index
    %18 = vector.load %arg12[%c1, %c64] : memref<6x384xbf16, #tpu.memory_space<vmem>>, vector<1x256xbf16>
    tpu.vector_store %arg12[%c1, %c64], %17 {strides = array<i32>} : memref<6x384xbf16, #tpu.memory_space<vmem>>, vector<1x256xbf16>,
    %19 = vector.extract_strided_slice %16 {offsets = [0, 256], sizes = [1, 256], strides = [1, 1]} : vector<1x1024xbf16> to vector<1x256xbf16>
    %c2 = arith.constant 2 : index
    %c64_19 = arith.constant 64 : index
    %20 = vector.load %arg12[%c2, %c64_19] : memref<6x384xbf16, #tpu.memory_space<vmem>>, vector<1x256xbf16>
    tpu.vector_store %arg12[%c2, %c64_19], %19 {strides = array<i32>} : memref<6x384xbf16, #tpu.memory_space<vmem>>, vector<1x256xbf16>,
    %21 = vector.extract_strided_slice %16 {offsets = [0, 512], sizes = [1, 256], strides = [1, 1]} : vector<1x1024xbf16> to vector<1x256xbf16>
    %c3 = arith.constant 3 : index
    %c64_20 = arith.constant 64 : index
    %22 = vector.load %arg12[%c3, %c64_20] : memref<6x384xbf16, #tpu.memory_space<vmem>>, vector<1x256xbf16>
    tpu.vector_store %arg12[%c3, %c64_20], %21 {strides = array<i32>} : memref<6x384xbf16, #tpu.memory_space<vmem>>, vector<1x256xbf16>,
    %23 = vector.extract_strided_slice %16 {offsets = [0, 768], sizes = [1, 256], strides = [1, 1]} : vector<1x1024xbf16> to vector<1x256xbf16>
    %c4 = arith.constant 4 : index
    %c64_21 = arith.constant 64 : index
    %24 = vector.load %arg12[%c4, %c64_21] : memref<6x384xbf16, #tpu.memory_space<vmem>>, vector<1x256xbf16>
    tpu.vector_store %arg12[%c4, %c64_21], %23 {strides = array<i32>} : memref<6x384xbf16, #tpu.memory_space<vmem>>, vector<1x256xbf16>,
    %c1_22 = arith.constant 1 : index
    %c0_23 = arith.constant 0 : index
    %25 = vector.load %arg12[%c1_22, %c0_23] : memref<6x384xbf16, #tpu.memory_space<vmem>>, vector<4x384xbf16>
    %c0_24 = arith.constant 0 : index
    %c0_25 = arith.constant 0 : index
    %c0_26 = arith.constant 0 : index
    %26 = vector.load %arg4[%c0_24, %c0_25, %c0_26] : memref<4x384x256xbf16, #tpu.memory_space<vmem>>, vector<1x384x256xbf16>
    %27 = vector.shape_cast %26 : vector<1x384x256xbf16> to vector<384x256xbf16>
    %cst_27 = arith.constant dense<0.000000e+00> : vector<4x256xf32>
    %28 = tpu.matmul %25, %27, %cst_27 {dimension_numbers = #tpu.dot_dimension_numbers<[1], [0], [0], [1], [0, 0, 1, 1], [], []>} : vector<4x384xbf16>, vector<384x256xbf16>, vector<4x256xf32> -> vector<4x256xf32>
    %c0_28 = arith.constant 0 : index
    %c0_29 = arith.constant 0 : index
    %29 = vector.load %arg12[%c0_28, %c0_29] : memref<6x384xbf16, #tpu.memory_space<vmem>>, vector<4x384xbf16>
    %c1_30 = arith.constant 1 : index
    %c0_31 = arith.constant 0 : index
    %c0_32 = arith.constant 0 : index
    %30 = vector.load %arg4[%c1_30, %c0_31, %c0_32] : memref<4x384x256xbf16, #tpu.memory_space<vmem>>, vector<1x384x256xbf16>
    %31 = vector.shape_cast %30 : vector<1x384x256xbf16> to vector<384x256xbf16>
    %cst_33 = arith.constant dense<0.000000e+00> : vector<4x256xf32>
    %32 = tpu.matmul %29, %31, %cst_33 {dimension_numbers = #tpu.dot_dimension_numbers<[1], [0], [0], [1], [0, 0, 1, 1], [], []>} : vector<4x384xbf16>, vector<384x256xbf16>, vector<4x256xf32> -> vector<4x256xf32>
    %33 = arith.addf %28, %32 : vector<4x256xf32>
    %c0_34 = arith.constant 0 : index
    %c0_35 = arith.constant 0 : index
    %34 = vector.load %arg5[%c0_34, %c0_35] : memref<1x256xf32, #tpu.memory_space<vmem>>, vector<1x256xf32>
    %35 = vector.broadcast %34 : vector<1x256xf32> to vector<4x256xf32>
    %36 = arith.addf %33, %35 : vector<4x256xf32>
    %cst_36 = arith.constant 0.000000e+00 : f32
    %37 = vector.broadcast %cst_36 : f32 to vector<4x256xf32>
    %38 = arith.maximumf %36, %37 : vector<4x256xf32>
    %39 = arith.truncf %38 : vector<4x256xf32> to vector<4x256xbf16>
    %40 = vector.extract_strided_slice %39 {offsets = [0, 0], sizes = [1, 256], strides = [1, 1]} : vector<4x256xbf16> to vector<1x256xbf16>
    %c1_37 = arith.constant 1 : index
    %c32 = arith.constant 32 : index
    %41 = vector.load %arg13[%c1_37, %c32] : memref<10x320xbf16, #tpu.memory_space<vmem>>, vector<1x256xbf16>
    tpu.vector_store %arg13[%c1_37, %c32], %40 {strides = array<i32>} : memref<10x320xbf16, #tpu.memory_space<vmem>>, vector<1x256xbf16>,
    %42 = vector.extract_strided_slice %39 {offsets = [1, 0], sizes = [1, 256], strides = [1, 1]} : vector<4x256xbf16> to vector<1x256xbf16>
    %c3_38 = arith.constant 3 : index
    %c32_39 = arith.constant 32 : index
    %43 = vector.load %arg13[%c3_38, %c32_39] : memref<10x320xbf16, #tpu.memory_space<vmem>>, vector<1x256xbf16>
    tpu.vector_store %arg13[%c3_38, %c32_39], %42 {strides = array<i32>} : memref<10x320xbf16, #tpu.memory_space<vmem>>, vector<1x256xbf16>,
    %44 = vector.extract_strided_slice %39 {offsets = [2, 0], sizes = [1, 256], strides = [1, 1]} : vector<4x256xbf16> to vector<1x256xbf16>
    %c5 = arith.constant 5 : index
    %c32_40 = arith.constant 32 : index
    %45 = vector.load %arg13[%c5, %c32_40] : memref<10x320xbf16, #tpu.memory_space<vmem>>, vector<1x256xbf16>
    tpu.vector_store %arg13[%c5, %c32_40], %44 {strides = array<i32>} : memref<10x320xbf16, #tpu.memory_space<vmem>>, vector<1x256xbf16>,
    %46 = vector.extract_strided_slice %39 {offsets = [3, 0], sizes = [1, 256], strides = [1, 1]} : vector<4x256xbf16> to vector<1x256xbf16>
    %c7 = arith.constant 7 : index
    %c32_41 = arith.constant 32 : index
    %47 = vector.load %arg13[%c7, %c32_41] : memref<10x320xbf16, #tpu.memory_space<vmem>>, vector<1x256xbf16>
    tpu.vector_store %arg13[%c7, %c32_41], %46 {strides = array<i32>} : memref<10x320xbf16, #tpu.memory_space<vmem>>, vector<1x256xbf16>,
    %c1_42 = arith.constant 1 : index
    %c0_43 = arith.constant 0 : index
    %48 = vector.load %arg12[%c1_42, %c0_43] : memref<6x384xbf16, #tpu.memory_space<vmem>>, vector<4x384xbf16>
    %c2_44 = arith.constant 2 : index
    %c0_45 = arith.constant 0 : index
    %c0_46 = arith.constant 0 : index
    %49 = vector.load %arg4[%c2_44, %c0_45, %c0_46] : memref<4x384x256xbf16, #tpu.memory_space<vmem>>, vector<1x384x256xbf16>
    %50 = vector.shape_cast %49 : vector<1x384x256xbf16> to vector<384x256xbf16>
    %cst_47 = arith.constant dense<0.000000e+00> : vector<4x256xf32>
    %51 = tpu.matmul %48, %50, %cst_47 {dimension_numbers = #tpu.dot_dimension_numbers<[1], [0], [0], [1], [0, 0, 1, 1], [], []>} : vector<4x384xbf16>, vector<384x256xbf16>, vector<4x256xf32> -> vector<4x256xf32>
    %c2_48 = arith.constant 2 : index
    %c0_49 = arith.constant 0 : index
    %52 = vector.load %arg12[%c2_48, %c0_49] : memref<6x384xbf16, #tpu.memory_space<vmem>>, vector<4x384xbf16>
    %c3_50 = arith.constant 3 : index
    %c0_51 = arith.constant 0 : index
    %c0_52 = arith.constant 0 : index
    %53 = vector.load %arg4[%c3_50, %c0_51, %c0_52] : memref<4x384x256xbf16, #tpu.memory_space<vmem>>, vector<1x384x256xbf16>
    %54 = vector.shape_cast %53 : vector<1x384x256xbf16> to vector<384x256xbf16>
    %cst_53 = arith.constant dense<0.000000e+00> : vector<4x256xf32>
    %55 = tpu.matmul %52, %54, %cst_53 {dimension_numbers = #tpu.dot_dimension_numbers<[1], [0], [0], [1], [0, 0, 1, 1], [], []>} : vector<4x384xbf16>, vector<384x256xbf16>, vector<4x256xf32> -> vector<4x256xf32>
    %56 = arith.addf %51, %55 : vector<4x256xf32>
    %c0_54 = arith.constant 0 : index
    %c0_55 = arith.constant 0 : index
    %57 = vector.load %arg5[%c0_54, %c0_55] : memref<1x256xf32, #tpu.memory_space<vmem>>, vector<1x256xf32>
    %58 = vector.broadcast %57 : vector<1x256xf32> to vector<4x256xf32>
    %59 = arith.addf %56, %58 : vector<4x256xf32>
    %cst_56 = arith.constant 0.000000e+00 : f32
    %60 = vector.broadcast %cst_56 : f32 to vector<4x256xf32>
    %61 = arith.maximumf %59, %60 : vector<4x256xf32>
    %62 = arith.truncf %61 : vector<4x256xf32> to vector<4x256xbf16>
    %63 = vector.extract_strided_slice %62 {offsets = [0, 0], sizes = [1, 256], strides = [1, 1]} : vector<4x256xbf16> to vector<1x256xbf16>
    %c2_57 = arith.constant 2 : index
    %c32_58 = arith.constant 32 : index
    %64 = vector.load %arg13[%c2_57, %c32_58] : memref<10x320xbf16, #tpu.memory_space<vmem>>, vector<1x256xbf16>
    tpu.vector_store %arg13[%c2_57, %c32_58], %63 {strides = array<i32>} : memref<10x320xbf16, #tpu.memory_space<vmem>>, vector<1x256xbf16>,
    %65 = vector.extract_strided_slice %62 {offsets = [1, 0], sizes = [1, 256], strides = [1, 1]} : vector<4x256xbf16> to vector<1x256xbf16>
    %c4_59 = arith.constant 4 : index
    %c32_60 = arith.constant 32 : index
    %66 = vector.load %arg13[%c4_59, %c32_60] : memref<10x320xbf16, #tpu.memory_space<vmem>>, vector<1x256xbf16>
    tpu.vector_store %arg13[%c4_59, %c32_60], %65 {strides = array<i32>} : memref<10x320xbf16, #tpu.memory_space<vmem>>, vector<1x256xbf16>,
    %67 = vector.extract_strided_slice %62 {offsets = [2, 0], sizes = [1, 256], strides = [1, 1]} : vector<4x256xbf16> to vector<1x256xbf16>
    %c6 = arith.constant 6 : index
    %c32_61 = arith.constant 32 : index
    %68 = vector.load %arg13[%c6, %c32_61] : memref<10x320xbf16, #tpu.memory_space<vmem>>, vector<1x256xbf16>
    tpu.vector_store %arg13[%c6, %c32_61], %67 {strides = array<i32>} : memref<10x320xbf16, #tpu.memory_space<vmem>>, vector<1x256xbf16>,
    %69 = vector.extract_strided_slice %62 {offsets = [3, 0], sizes = [1, 256], strides = [1, 1]} : vector<4x256xbf16> to vector<1x256xbf16>
    %c8 = arith.constant 8 : index
    %c32_62 = arith.constant 32 : index
    %70 = vector.load %arg13[%c8, %c32_62] : memref<10x320xbf16, #tpu.memory_space<vmem>>, vector<1x256xbf16>
    tpu.vector_store %arg13[%c8, %c32_62], %69 {strides = array<i32>} : memref<10x320xbf16, #tpu.memory_space<vmem>>, vector<1x256xbf16>,
    %c1_63 = arith.constant 1 : index
    %c0_64 = arith.constant 0 : index
    %71 = vector.load %arg13[%c1_63, %c0_64] : memref<10x320xbf16, #tpu.memory_space<vmem>>, vector<8x320xbf16>
    %c0_65 = arith.constant 0 : index
    %c0_66 = arith.constant 0 : index
    %c0_67 = arith.constant 0 : index
    %72 = vector.load %arg6[%c0_65, %c0_66, %c0_67] : memref<4x320x256xbf16, #tpu.memory_space<vmem>>, vector<1x320x256xbf16>
    %73 = vector.shape_cast %72 : vector<1x320x256xbf16> to vector<320x256xbf16>
    %cst_68 = arith.constant dense<0.000000e+00> : vector<8x256xf32>
    %74 = tpu.matmul %71, %73, %cst_68 {dimension_numbers = #tpu.dot_dimension_numbers<[1], [0], [0], [1], [0, 0, 1, 1], [], []>} : vector<8x320xbf16>, vector<320x256xbf16>, vector<8x256xf32> -> vector<8x256xf32>
    %c0_69 = arith.constant 0 : index
    %c0_70 = arith.constant 0 : index
    %75 = vector.load %arg13[%c0_69, %c0_70] : memref<10x320xbf16, #tpu.memory_space<vmem>>, vector<8x320xbf16>
    %c1_71 = arith.constant 1 : index
    %c0_72 = arith.constant 0 : index
    %c0_73 = arith.constant 0 : index
    %76 = vector.load %arg6[%c1_71, %c0_72, %c0_73] : memref<4x320x256xbf16, #tpu.memory_space<vmem>>, vector<1x320x256xbf16>
    %77 = vector.shape_cast %76 : vector<1x320x256xbf16> to vector<320x256xbf16>
    %cst_74 = arith.constant dense<0.000000e+00> : vector<8x256xf32>
    %78 = tpu.matmul %75, %77, %cst_74 {dimension_numbers = #tpu.dot_dimension_numbers<[1], [0], [0], [1], [0, 0, 1, 1], [], []>} : vector<8x320xbf16>, vector<320x256xbf16>, vector<8x256xf32> -> vector<8x256xf32>
    %79 = arith.addf %74, %78 : vector<8x256xf32>
    %c0_75 = arith.constant 0 : index
    %c0_76 = arith.constant 0 : index
    %80 = vector.load %arg7[%c0_75, %c0_76] : memref<1x256xf32, #tpu.memory_space<vmem>>, vector<1x256xf32>
    %81 = vector.broadcast %80 : vector<1x256xf32> to vector<8x256xf32>
    %82 = arith.addf %79, %81 : vector<8x256xf32>
    %cst_77 = arith.constant 0.000000e+00 : f32
    %83 = vector.broadcast %cst_77 : f32 to vector<8x256xf32>
    %84 = arith.maximumf %82, %83 : vector<8x256xf32>
    %85 = arith.truncf %84 : vector<8x256xf32> to vector<8x256xbf16>
    %86 = vector.extract_strided_slice %85 {offsets = [0, 0], sizes = [1, 256], strides = [1, 1]} : vector<8x256xbf16> to vector<1x256xbf16>
    %c1_78 = arith.constant 1 : index
    %c16 = arith.constant 16 : index
    %87 = vector.load %arg14[%c1_78, %c16] : memref<18x288xbf16, #tpu.memory_space<vmem>>, vector<1x256xbf16>
    tpu.vector_store %arg14[%c1_78, %c16], %86 {strides = array<i32>} : memref<18x288xbf16, #tpu.memory_space<vmem>>, vector<1x256xbf16>,
    %88 = vector.extract_strided_slice %85 {offsets = [1, 0], sizes = [1, 256], strides = [1, 1]} : vector<8x256xbf16> to vector<1x256xbf16>
    %c3_79 = arith.constant 3 : index
    %c16_80 = arith.constant 16 : index
    %89 = vector.load %arg14[%c3_79, %c16_80] : memref<18x288xbf16, #tpu.memory_space<vmem>>, vector<1x256xbf16>
    tpu.vector_store %arg14[%c3_79, %c16_80], %88 {strides = array<i32>} : memref<18x288xbf16, #tpu.memory_space<vmem>>, vector<1x256xbf16>,
    %90 = vector.extract_strided_slice %85 {offsets = [2, 0], sizes = [1, 256], strides = [1, 1]} : vector<8x256xbf16> to vector<1x256xbf16>
    %c5_81 = arith.constant 5 : index
    %c16_82 = arith.constant 16 : index
    %91 = vector.load %arg14[%c5_81, %c16_82] : memref<18x288xbf16, #tpu.memory_space<vmem>>, vector<1x256xbf16>
    tpu.vector_store %arg14[%c5_81, %c16_82], %90 {strides = array<i32>} : memref<18x288xbf16, #tpu.memory_space<vmem>>, vector<1x256xbf16>,
    %92 = vector.extract_strided_slice %85 {offsets = [3, 0], sizes = [1, 256], strides = [1, 1]} : vector<8x256xbf16> to vector<1x256xbf16>
    %c7_83 = arith.constant 7 : index
    %c16_84 = arith.constant 16 : index
    %93 = vector.load %arg14[%c7_83, %c16_84] : memref<18x288xbf16, #tpu.memory_space<vmem>>, vector<1x256xbf16>
    tpu.vector_store %arg14[%c7_83, %c16_84], %92 {strides = array<i32>} : memref<18x288xbf16, #tpu.memory_space<vmem>>, vector<1x256xbf16>,
    %94 = vector.extract_strided_slice %85 {offsets = [4, 0], sizes = [1, 256], strides = [1, 1]} : vector<8x256xbf16> to vector<1x256xbf16>
    %c9 = arith.constant 9 : index
    %c16_85 = arith.constant 16 : index
    %95 = vector.load %arg14[%c9, %c16_85] : memref<18x288xbf16, #tpu.memory_space<vmem>>, vector<1x256xbf16>
    tpu.vector_store %arg14[%c9, %c16_85], %94 {strides = array<i32>} : memref<18x288xbf16, #tpu.memory_space<vmem>>, vector<1x256xbf16>,
    %96 = vector.extract_strided_slice %85 {offsets = [5, 0], sizes = [1, 256], strides = [1, 1]} : vector<8x256xbf16> to vector<1x256xbf16>
    %c11 = arith.constant 11 : index
    %c16_86 = arith.constant 16 : index
    %97 = vector.load %arg14[%c11, %c16_86] : memref<18x288xbf16, #tpu.memory_space<vmem>>, vector<1x256xbf16>
    tpu.vector_store %arg14[%c11, %c16_86], %96 {strides = array<i32>} : memref<18x288xbf16, #tpu.memory_space<vmem>>, vector<1x256xbf16>,
    %98 = vector.extract_strided_slice %85 {offsets = [6, 0], sizes = [1, 256], strides = [1, 1]} : vector<8x256xbf16> to vector<1x256xbf16>
    %c13 = arith.constant 13 : index
    %c16_87 = arith.constant 16 : index
    %99 = vector.load %arg14[%c13, %c16_87] : memref<18x288xbf16, #tpu.memory_space<vmem>>, vector<1x256xbf16>
    tpu.vector_store %arg14[%c13, %c16_87], %98 {strides = array<i32>} : memref<18x288xbf16, #tpu.memory_space<vmem>>, vector<1x256xbf16>,
    %100 = vector.extract_strided_slice %85 {offsets = [7, 0], sizes = [1, 256], strides = [1, 1]} : vector<8x256xbf16> to vector<1x256xbf16>
    %c15 = arith.constant 15 : index
    %c16_88 = arith.constant 16 : index
    %101 = vector.load %arg14[%c15, %c16_88] : memref<18x288xbf16, #tpu.memory_space<vmem>>, vector<1x256xbf16>
    tpu.vector_store %arg14[%c15, %c16_88], %100 {strides = array<i32>} : memref<18x288xbf16, #tpu.memory_space<vmem>>, vector<1x256xbf16>,
    %c1_89 = arith.constant 1 : index
    %c0_90 = arith.constant 0 : index
    %102 = vector.load %arg13[%c1_89, %c0_90] : memref<10x320xbf16, #tpu.memory_space<vmem>>, vector<8x320xbf16>
    %c2_91 = arith.constant 2 : index
    %c0_92 = arith.constant 0 : index
    %c0_93 = arith.constant 0 : index
    %103 = vector.load %arg6[%c2_91, %c0_92, %c0_93] : memref<4x320x256xbf16, #tpu.memory_space<vmem>>, vector<1x320x256xbf16>
    %104 = vector.shape_cast %103 : vector<1x320x256xbf16> to vector<320x256xbf16>
    %cst_94 = arith.constant dense<0.000000e+00> : vector<8x256xf32>
    %105 = tpu.matmul %102, %104, %cst_94 {dimension_numbers = #tpu.dot_dimension_numbers<[1], [0], [0], [1], [0, 0, 1, 1], [], []>} : vector<8x320xbf16>, vector<320x256xbf16>, vector<8x256xf32> -> vector<8x256xf32>
    %c2_95 = arith.constant 2 : index
    %c0_96 = arith.constant 0 : index
    %106 = vector.load %arg13[%c2_95, %c0_96] : memref<10x320xbf16, #tpu.memory_space<vmem>>, vector<8x320xbf16>
    %c3_97 = arith.constant 3 : index
    %c0_98 = arith.constant 0 : index
    %c0_99 = arith.constant 0 : index
    %107 = vector.load %arg6[%c3_97, %c0_98, %c0_99] : memref<4x320x256xbf16, #tpu.memory_space<vmem>>, vector<1x320x256xbf16>
    %108 = vector.shape_cast %107 : vector<1x320x256xbf16> to vector<320x256xbf16>
    %cst_100 = arith.constant dense<0.000000e+00> : vector<8x256xf32>
    %109 = tpu.matmul %106, %108, %cst_100 {dimension_numbers = #tpu.dot_dimension_numbers<[1], [0], [0], [1], [0, 0, 1, 1], [], []>} : vector<8x320xbf16>, vector<320x256xbf16>, vector<8x256xf32> -> vector<8x256xf32>
    %110 = arith.addf %105, %109 : vector<8x256xf32>
    %c0_101 = arith.constant 0 : index
    %c0_102 = arith.constant 0 : index
    %111 = vector.load %arg7[%c0_101, %c0_102] : memref<1x256xf32, #tpu.memory_space<vmem>>, vector<1x256xf32>
    %112 = vector.broadcast %111 : vector<1x256xf32> to vector<8x256xf32>
    %113 = arith.addf %110, %112 : vector<8x256xf32>
    %cst_103 = arith.constant 0.000000e+00 : f32
    %114 = vector.broadcast %cst_103 : f32 to vector<8x256xf32>
    %115 = arith.maximumf %113, %114 : vector<8x256xf32>
    %116 = arith.truncf %115 : vector<8x256xf32> to vector<8x256xbf16>
    %117 = vector.extract_strided_slice %116 {offsets = [0, 0], sizes = [1, 256], strides = [1, 1]} : vector<8x256xbf16> to vector<1x256xbf16>
    %c2_104 = arith.constant 2 : index
    %c16_105 = arith.constant 16 : index
    %118 = vector.load %arg14[%c2_104, %c16_105] : memref<18x288xbf16, #tpu.memory_space<vmem>>, vector<1x256xbf16>
    tpu.vector_store %arg14[%c2_104, %c16_105], %117 {strides = array<i32>} : memref<18x288xbf16, #tpu.memory_space<vmem>>, vector<1x256xbf16>,
    %119 = vector.extract_strided_slice %116 {offsets = [1, 0], sizes = [1, 256], strides = [1, 1]} : vector<8x256xbf16> to vector<1x256xbf16>
    %c4_106 = arith.constant 4 : index
    %c16_107 = arith.constant 16 : index
    %120 = vector.load %arg14[%c4_106, %c16_107] : memref<18x288xbf16, #tpu.memory_space<vmem>>, vector<1x256xbf16>
    tpu.vector_store %arg14[%c4_106, %c16_107], %119 {strides = array<i32>} : memref<18x288xbf16, #tpu.memory_space<vmem>>, vector<1x256xbf16>,
    %121 = vector.extract_strided_slice %116 {offsets = [2, 0], sizes = [1, 256], strides = [1, 1]} : vector<8x256xbf16> to vector<1x256xbf16>
    %c6_108 = arith.constant 6 : index
    %c16_109 = arith.constant 16 : index
    %122 = vector.load %arg14[%c6_108, %c16_109] : memref<18x288xbf16, #tpu.memory_space<vmem>>, vector<1x256xbf16>
    tpu.vector_store %arg14[%c6_108, %c16_109], %121 {strides = array<i32>} : memref<18x288xbf16, #tpu.memory_space<vmem>>, vector<1x256xbf16>,
    %123 = vector.extract_strided_slice %116 {offsets = [3, 0], sizes = [1, 256], strides = [1, 1]} : vector<8x256xbf16> to vector<1x256xbf16>
    %c8_110 = arith.constant 8 : index
    %c16_111 = arith.constant 16 : index
    %124 = vector.load %arg14[%c8_110, %c16_111] : memref<18x288xbf16, #tpu.memory_space<vmem>>, vector<1x256xbf16>
    tpu.vector_store %arg14[%c8_110, %c16_111], %123 {strides = array<i32>} : memref<18x288xbf16, #tpu.memory_space<vmem>>, vector<1x256xbf16>,
    %125 = vector.extract_strided_slice %116 {offsets = [4, 0], sizes = [1, 256], strides = [1, 1]} : vector<8x256xbf16> to vector<1x256xbf16>
    %c10 = arith.constant 10 : index
    %c16_112 = arith.constant 16 : index
    %126 = vector.load %arg14[%c10, %c16_112] : memref<18x288xbf16, #tpu.memory_space<vmem>>, vector<1x256xbf16>
    tpu.vector_store %arg14[%c10, %c16_112], %125 {strides = array<i32>} : memref<18x288xbf16, #tpu.memory_space<vmem>>, vector<1x256xbf16>,
    %127 = vector.extract_strided_slice %116 {offsets = [5, 0], sizes = [1, 256], strides = [1, 1]} : vector<8x256xbf16> to vector<1x256xbf16>
    %c12 = arith.constant 12 : index
    %c16_113 = arith.constant 16 : index
    %128 = vector.load %arg14[%c12, %c16_113] : memref<18x288xbf16, #tpu.memory_space<vmem>>, vector<1x256xbf16>
    tpu.vector_store %arg14[%c12, %c16_113], %127 {strides = array<i32>} : memref<18x288xbf16, #tpu.memory_space<vmem>>, vector<1x256xbf16>,
    %129 = vector.extract_strided_slice %116 {offsets = [6, 0], sizes = [1, 256], strides = [1, 1]} : vector<8x256xbf16> to vector<1x256xbf16>
    %c14 = arith.constant 14 : index
    %c16_114 = arith.constant 16 : index
    %130 = vector.load %arg14[%c14, %c16_114] : memref<18x288xbf16, #tpu.memory_space<vmem>>, vector<1x256xbf16>
    tpu.vector_store %arg14[%c14, %c16_114], %129 {strides = array<i32>} : memref<18x288xbf16, #tpu.memory_space<vmem>>, vector<1x256xbf16>,
    %131 = vector.extract_strided_slice %116 {offsets = [7, 0], sizes = [1, 256], strides = [1, 1]} : vector<8x256xbf16> to vector<1x256xbf16>
    %c16_115 = arith.constant 16 : index
    %c16_116 = arith.constant 16 : index
    %132 = vector.load %arg14[%c16_115, %c16_116] : memref<18x288xbf16, #tpu.memory_space<vmem>>, vector<1x256xbf16>
    tpu.vector_store %arg14[%c16_115, %c16_116], %131 {strides = array<i32>} : memref<18x288xbf16, #tpu.memory_space<vmem>>, vector<1x256xbf16>,
    %c1_117 = arith.constant 1 : index
    %c0_118 = arith.constant 0 : index
    %133 = vector.load %arg14[%c1_117, %c0_118] : memref<18x288xbf16, #tpu.memory_space<vmem>>, vector<16x288xbf16>
    %c0_119 = arith.constant 0 : index
    %c0_120 = arith.constant 0 : index
    %c0_121 = arith.constant 0 : index
    %134 = vector.load %arg8[%c0_119, %c0_120, %c0_121] : memref<4x288x256xbf16, #tpu.memory_space<vmem>>, vector<1x288x256xbf16>
    %135 = vector.shape_cast %134 : vector<1x288x256xbf16> to vector<288x256xbf16>
    %cst_122 = arith.constant dense<0.000000e+00> : vector<16x256xf32>
    %136 = tpu.matmul %133, %135, %cst_122 {dimension_numbers = #tpu.dot_dimension_numbers<[1], [0], [0], [1], [0, 0, 1, 1], [], []>} : vector<16x288xbf16>, vector<288x256xbf16>, vector<16x256xf32> -> vector<16x256xf32>
    %c0_123 = arith.constant 0 : index
    %c0_124 = arith.constant 0 : index
    %137 = vector.load %arg14[%c0_123, %c0_124] : memref<18x288xbf16, #tpu.memory_space<vmem>>, vector<16x288xbf16>
    %c1_125 = arith.constant 1 : index
    %c0_126 = arith.constant 0 : index
    %c0_127 = arith.constant 0 : index
    %138 = vector.load %arg8[%c1_125, %c0_126, %c0_127] : memref<4x288x256xbf16, #tpu.memory_space<vmem>>, vector<1x288x256xbf16>
    %139 = vector.shape_cast %138 : vector<1x288x256xbf16> to vector<288x256xbf16>
    %cst_128 = arith.constant dense<0.000000e+00> : vector<16x256xf32>
    %140 = tpu.matmul %137, %139, %cst_128 {dimension_numbers = #tpu.dot_dimension_numbers<[1], [0], [0], [1], [0, 0, 1, 1], [], []>} : vector<16x288xbf16>, vector<288x256xbf16>, vector<16x256xf32> -> vector<16x256xf32>
    %141 = arith.addf %136, %140 : vector<16x256xf32>
    %c0_129 = arith.constant 0 : index
    %c0_130 = arith.constant 0 : index
    %142 = vector.load %arg9[%c0_129, %c0_130] : memref<1x256xf32, #tpu.memory_space<vmem>>, vector<1x256xf32>
    %143 = vector.broadcast %142 : vector<1x256xf32> to vector<16x256xf32>
    %144 = arith.addf %141, %143 : vector<16x256xf32>
    %cst_131 = arith.constant 0.000000e+00 : f32
    %145 = vector.broadcast %cst_131 : f32 to vector<16x256xf32>
    %146 = arith.maximumf %144, %145 : vector<16x256xf32>
    %147 = arith.truncf %146 : vector<16x256xf32> to vector<16x256xbf16>
    %148 = vector.extract_strided_slice %147 {offsets = [0, 0], sizes = [1, 256], strides = [1, 1]} : vector<16x256xbf16> to vector<1x256xbf16>
    %c1_132 = arith.constant 1 : index
    %c8_133 = arith.constant 8 : index
    %149 = vector.load %arg15[%c1_132, %c8_133] : memref<34x272xbf16, #tpu.memory_space<vmem>>, vector<1x256xbf16>
    tpu.vector_store %arg15[%c1_132, %c8_133], %148 {strides = array<i32>} : memref<34x272xbf16, #tpu.memory_space<vmem>>, vector<1x256xbf16>,
    %150 = vector.extract_strided_slice %147 {offsets = [1, 0], sizes = [1, 256], strides = [1, 1]} : vector<16x256xbf16> to vector<1x256xbf16>
    %c3_134 = arith.constant 3 : index
    %c8_135 = arith.constant 8 : index
    %151 = vector.load %arg15[%c3_134, %c8_135] : memref<34x272xbf16, #tpu.memory_space<vmem>>, vector<1x256xbf16>
    tpu.vector_store %arg15[%c3_134, %c8_135], %150 {strides = array<i32>} : memref<34x272xbf16, #tpu.memory_space<vmem>>, vector<1x256xbf16>,
    %152 = vector.extract_strided_slice %147 {offsets = [2, 0], sizes = [1, 256], strides = [1, 1]} : vector<16x256xbf16> to vector<1x256xbf16>
    %c5_136 = arith.constant 5 : index
    %c8_137 = arith.constant 8 : index
    %153 = vector.load %arg15[%c5_136, %c8_137] : memref<34x272xbf16, #tpu.memory_space<vmem>>, vector<1x256xbf16>
    tpu.vector_store %arg15[%c5_136, %c8_137], %152 {strides = array<i32>} : memref<34x272xbf16, #tpu.memory_space<vmem>>, vector<1x256xbf16>,
    %154 = vector.extract_strided_slice %147 {offsets = [3, 0], sizes = [1, 256], strides = [1, 1]} : vector<16x256xbf16> to vector<1x256xbf16>
    %c7_138 = arith.constant 7 : index
    %c8_139 = arith.constant 8 : index
    %155 = vector.load %arg15[%c7_138, %c8_139] : memref<34x272xbf16, #tpu.memory_space<vmem>>, vector<1x256xbf16>
    tpu.vector_store %arg15[%c7_138, %c8_139], %154 {strides = array<i32>} : memref<34x272xbf16, #tpu.memory_space<vmem>>, vector<1x256xbf16>,
    %156 = vector.extract_strided_slice %147 {offsets = [4, 0], sizes = [1, 256], strides = [1, 1]} : vector<16x256xbf16> to vector<1x256xbf16>
    %c9_140 = arith.constant 9 : index
    %c8_141 = arith.constant 8 : index
    %157 = vector.load %arg15[%c9_140, %c8_141] : memref<34x272xbf16, #tpu.memory_space<vmem>>, vector<1x256xbf16>
    tpu.vector_store %arg15[%c9_140, %c8_141], %156 {strides = array<i32>} : memref<34x272xbf16, #tpu.memory_space<vmem>>, vector<1x256xbf16>,
    %158 = vector.extract_strided_slice %147 {offsets = [5, 0], sizes = [1, 256], strides = [1, 1]} : vector<16x256xbf16> to vector<1x256xbf16>
    %c11_142 = arith.constant 11 : index
    %c8_143 = arith.constant 8 : index
    %159 = vector.load %arg15[%c11_142, %c8_143] : memref<34x272xbf16, #tpu.memory_space<vmem>>, vector<1x256xbf16>
    tpu.vector_store %arg15[%c11_142, %c8_143], %158 {strides = array<i32>} : memref<34x272xbf16, #tpu.memory_space<vmem>>, vector<1x256xbf16>,
    %160 = vector.extract_strided_slice %147 {offsets = [6, 0], sizes = [1, 256], strides = [1, 1]} : vector<16x256xbf16> to vector<1x256xbf16>
    %c13_144 = arith.constant 13 : index
    %c8_145 = arith.constant 8 : index
    %161 = vector.load %arg15[%c13_144, %c8_145] : memref<34x272xbf16, #tpu.memory_space<vmem>>, vector<1x256xbf16>
    tpu.vector_store %arg15[%c13_144, %c8_145], %160 {strides = array<i32>} : memref<34x272xbf16, #tpu.memory_space<vmem>>, vector<1x256xbf16>,
    %162 = vector.extract_strided_slice %147 {offsets = [7, 0], sizes = [1, 256], strides = [1, 1]} : vector<16x256xbf16> to vector<1x256xbf16>
    %c15_146 = arith.constant 15 : index
    %c8_147 = arith.constant 8 : index
    %163 = vector.load %arg15[%c15_146, %c8_147] : memref<34x272xbf16, #tpu.memory_space<vmem>>, vector<1x256xbf16>
    tpu.vector_store %arg15[%c15_146, %c8_147], %162 {strides = array<i32>} : memref<34x272xbf16, #tpu.memory_space<vmem>>, vector<1x256xbf16>,
    %164 = vector.extract_strided_slice %147 {offsets = [8, 0], sizes = [1, 256], strides = [1, 1]} : vector<16x256xbf16> to vector<1x256xbf16>
    %c17 = arith.constant 17 : index
    %c8_148 = arith.constant 8 : index
    %165 = vector.load %arg15[%c17, %c8_148] : memref<34x272xbf16, #tpu.memory_space<vmem>>, vector<1x256xbf16>
    tpu.vector_store %arg15[%c17, %c8_148], %164 {strides = array<i32>} : memref<34x272xbf16, #tpu.memory_space<vmem>>, vector<1x256xbf16>,
    %166 = vector.extract_strided_slice %147 {offsets = [9, 0], sizes = [1, 256], strides = [1, 1]} : vector<16x256xbf16> to vector<1x256xbf16>
    %c19 = arith.constant 19 : index
    %c8_149 = arith.constant 8 : index
    %167 = vector.load %arg15[%c19, %c8_149] : memref<34x272xbf16, #tpu.memory_space<vmem>>, vector<1x256xbf16>
    tpu.vector_store %arg15[%c19, %c8_149], %166 {strides = array<i32>} : memref<34x272xbf16, #tpu.memory_space<vmem>>, vector<1x256xbf16>,
    %168 = vector.extract_strided_slice %147 {offsets = [10, 0], sizes = [1, 256], strides = [1, 1]} : vector<16x256xbf16> to vector<1x256xbf16>
    %c21 = arith.constant 21 : index
    %c8_150 = arith.constant 8 : index
    %169 = vector.load %arg15[%c21, %c8_150] : memref<34x272xbf16, #tpu.memory_space<vmem>>, vector<1x256xbf16>
    tpu.vector_store %arg15[%c21, %c8_150], %168 {strides = array<i32>} : memref<34x272xbf16, #tpu.memory_space<vmem>>, vector<1x256xbf16>,
    %170 = vector.extract_strided_slice %147 {offsets = [11, 0], sizes = [1, 256], strides = [1, 1]} : vector<16x256xbf16> to vector<1x256xbf16>
    %c23 = arith.constant 23 : index
    %c8_151 = arith.constant 8 : index
    %171 = vector.load %arg15[%c23, %c8_151] : memref<34x272xbf16, #tpu.memory_space<vmem>>, vector<1x256xbf16>
    tpu.vector_store %arg15[%c23, %c8_151], %170 {strides = array<i32>} : memref<34x272xbf16, #tpu.memory_space<vmem>>, vector<1x256xbf16>,
    %172 = vector.extract_strided_slice %147 {offsets = [12, 0], sizes = [1, 256], strides = [1, 1]} : vector<16x256xbf16> to vector<1x256xbf16>
    %c25 = arith.constant 25 : index
    %c8_152 = arith.constant 8 : index
    %173 = vector.load %arg15[%c25, %c8_152] : memref<34x272xbf16, #tpu.memory_space<vmem>>, vector<1x256xbf16>
    tpu.vector_store %arg15[%c25, %c8_152], %172 {strides = array<i32>} : memref<34x272xbf16, #tpu.memory_space<vmem>>, vector<1x256xbf16>,
    %174 = vector.extract_strided_slice %147 {offsets = [13, 0], sizes = [1, 256], strides = [1, 1]} : vector<16x256xbf16> to vector<1x256xbf16>
    %c27 = arith.constant 27 : index
    %c8_153 = arith.constant 8 : index
    %175 = vector.load %arg15[%c27, %c8_153] : memref<34x272xbf16, #tpu.memory_space<vmem>>, vector<1x256xbf16>
    tpu.vector_store %arg15[%c27, %c8_153], %174 {strides = array<i32>} : memref<34x272xbf16, #tpu.memory_space<vmem>>, vector<1x256xbf16>,
    %176 = vector.extract_strided_slice %147 {offsets = [14, 0], sizes = [1, 256], strides = [1, 1]} : vector<16x256xbf16> to vector<1x256xbf16>
    %c29 = arith.constant 29 : index
    %c8_154 = arith.constant 8 : index
    %177 = vector.load %arg15[%c29, %c8_154] : memref<34x272xbf16, #tpu.memory_space<vmem>>, vector<1x256xbf16>
    tpu.vector_store %arg15[%c29, %c8_154], %176 {strides = array<i32>} : memref<34x272xbf16, #tpu.memory_space<vmem>>, vector<1x256xbf16>,
    %178 = vector.extract_strided_slice %147 {offsets = [15, 0], sizes = [1, 256], strides = [1, 1]} : vector<16x256xbf16> to vector<1x256xbf16>
    %c31 = arith.constant 31 : index
    %c8_155 = arith.constant 8 : index
    %179 = vector.load %arg15[%c31, %c8_155] : memref<34x272xbf16, #tpu.memory_space<vmem>>, vector<1x256xbf16>
    tpu.vector_store %arg15[%c31, %c8_155], %178 {strides = array<i32>} : memref<34x272xbf16, #tpu.memory_space<vmem>>, vector<1x256xbf16>,
    %c1_156 = arith.constant 1 : index
    %c0_157 = arith.constant 0 : index
    %180 = vector.load %arg14[%c1_156, %c0_157] : memref<18x288xbf16, #tpu.memory_space<vmem>>, vector<16x288xbf16>
    %c2_158 = arith.constant 2 : index
    %c0_159 = arith.constant 0 : index
    %c0_160 = arith.constant 0 : index
    %181 = vector.load %arg8[%c2_158, %c0_159, %c0_160] : memref<4x288x256xbf16, #tpu.memory_space<vmem>>, vector<1x288x256xbf16>
    %182 = vector.shape_cast %181 : vector<1x288x256xbf16> to vector<288x256xbf16>
    %cst_161 = arith.constant dense<0.000000e+00> : vector<16x256xf32>
    %183 = tpu.matmul %180, %182, %cst_161 {dimension_numbers = #tpu.dot_dimension_numbers<[1], [0], [0], [1], [0, 0, 1, 1], [], []>} : vector<16x288xbf16>, vector<288x256xbf16>, vector<16x256xf32> -> vector<16x256xf32>
    %c2_162 = arith.constant 2 : index
    %c0_163 = arith.constant 0 : index
    %184 = vector.load %arg14[%c2_162, %c0_163] : memref<18x288xbf16, #tpu.memory_space<vmem>>, vector<16x288xbf16>
    %c3_164 = arith.constant 3 : index
    %c0_165 = arith.constant 0 : index
    %c0_166 = arith.constant 0 : index
    %185 = vector.load %arg8[%c3_164, %c0_165, %c0_166] : memref<4x288x256xbf16, #tpu.memory_space<vmem>>, vector<1x288x256xbf16>
    %186 = vector.shape_cast %185 : vector<1x288x256xbf16> to vector<288x256xbf16>
    %cst_167 = arith.constant dense<0.000000e+00> : vector<16x256xf32>
    %187 = tpu.matmul %184, %186, %cst_167 {dimension_numbers = #tpu.dot_dimension_numbers<[1], [0], [0], [1], [0, 0, 1, 1], [], []>} : vector<16x288xbf16>, vector<288x256xbf16>, vector<16x256xf32> -> vector<16x256xf32>
    %188 = arith.addf %183, %187 : vector<16x256xf32>
    %c0_168 = arith.constant 0 : index
    %c0_169 = arith.constant 0 : index
    %189 = vector.load %arg9[%c0_168, %c0_169] : memref<1x256xf32, #tpu.memory_space<vmem>>, vector<1x256xf32>
    %190 = vector.broadcast %189 : vector<1x256xf32> to vector<16x256xf32>
    %191 = arith.addf %188, %190 : vector<16x256xf32>
    %cst_170 = arith.constant 0.000000e+00 : f32
    %192 = vector.broadcast %cst_170 : f32 to vector<16x256xf32>
    %193 = arith.maximumf %191, %192 : vector<16x256xf32>
    %194 = arith.truncf %193 : vector<16x256xf32> to vector<16x256xbf16>
    %195 = vector.extract_strided_slice %194 {offsets = [0, 0], sizes = [1, 256], strides = [1, 1]} : vector<16x256xbf16> to vector<1x256xbf16>
    %c2_171 = arith.constant 2 : index
    %c8_172 = arith.constant 8 : index
    %196 = vector.load %arg15[%c2_171, %c8_172] : memref<34x272xbf16, #tpu.memory_space<vmem>>, vector<1x256xbf16>
    tpu.vector_store %arg15[%c2_171, %c8_172], %195 {strides = array<i32>} : memref<34x272xbf16, #tpu.memory_space<vmem>>, vector<1x256xbf16>,
    %197 = vector.extract_strided_slice %194 {offsets = [1, 0], sizes = [1, 256], strides = [1, 1]} : vector<16x256xbf16> to vector<1x256xbf16>
    %c4_173 = arith.constant 4 : index
    %c8_174 = arith.constant 8 : index
    %198 = vector.load %arg15[%c4_173, %c8_174] : memref<34x272xbf16, #tpu.memory_space<vmem>>, vector<1x256xbf16>
    tpu.vector_store %arg15[%c4_173, %c8_174], %197 {strides = array<i32>} : memref<34x272xbf16, #tpu.memory_space<vmem>>, vector<1x256xbf16>,
    %199 = vector.extract_strided_slice %194 {offsets = [2, 0], sizes = [1, 256], strides = [1, 1]} : vector<16x256xbf16> to vector<1x256xbf16>
    %c6_175 = arith.constant 6 : index
    %c8_176 = arith.constant 8 : index
    %200 = vector.load %arg15[%c6_175, %c8_176] : memref<34x272xbf16, #tpu.memory_space<vmem>>, vector<1x256xbf16>
    tpu.vector_store %arg15[%c6_175, %c8_176], %199 {strides = array<i32>} : memref<34x272xbf16, #tpu.memory_space<vmem>>, vector<1x256xbf16>,
    %201 = vector.extract_strided_slice %194 {offsets = [3, 0], sizes = [1, 256], strides = [1, 1]} : vector<16x256xbf16> to vector<1x256xbf16>
    %c8_177 = arith.constant 8 : index
    %c8_178 = arith.constant 8 : index
    %202 = vector.load %arg15[%c8_177, %c8_178] : memref<34x272xbf16, #tpu.memory_space<vmem>>, vector<1x256xbf16>
    tpu.vector_store %arg15[%c8_177, %c8_178], %201 {strides = array<i32>} : memref<34x272xbf16, #tpu.memory_space<vmem>>, vector<1x256xbf16>,
    %203 = vector.extract_strided_slice %194 {offsets = [4, 0], sizes = [1, 256], strides = [1, 1]} : vector<16x256xbf16> to vector<1x256xbf16>
    %c10_179 = arith.constant 10 : index
    %c8_180 = arith.constant 8 : index
    %204 = vector.load %arg15[%c10_179, %c8_180] : memref<34x272xbf16, #tpu.memory_space<vmem>>, vector<1x256xbf16>
    tpu.vector_store %arg15[%c10_179, %c8_180], %203 {strides = array<i32>} : memref<34x272xbf16, #tpu.memory_space<vmem>>, vector<1x256xbf16>,
    %205 = vector.extract_strided_slice %194 {offsets = [5, 0], sizes = [1, 256], strides = [1, 1]} : vector<16x256xbf16> to vector<1x256xbf16>
    %c12_181 = arith.constant 12 : index
    %c8_182 = arith.constant 8 : index
    %206 = vector.load %arg15[%c12_181, %c8_182] : memref<34x272xbf16, #tpu.memory_space<vmem>>, vector<1x256xbf16>
    tpu.vector_store %arg15[%c12_181, %c8_182], %205 {strides = array<i32>} : memref<34x272xbf16, #tpu.memory_space<vmem>>, vector<1x256xbf16>,
    %207 = vector.extract_strided_slice %194 {offsets = [6, 0], sizes = [1, 256], strides = [1, 1]} : vector<16x256xbf16> to vector<1x256xbf16>
    %c14_183 = arith.constant 14 : index
    %c8_184 = arith.constant 8 : index
    %208 = vector.load %arg15[%c14_183, %c8_184] : memref<34x272xbf16, #tpu.memory_space<vmem>>, vector<1x256xbf16>
    tpu.vector_store %arg15[%c14_183, %c8_184], %207 {strides = array<i32>} : memref<34x272xbf16, #tpu.memory_space<vmem>>, vector<1x256xbf16>,
    %209 = vector.extract_strided_slice %194 {offsets = [7, 0], sizes = [1, 256], strides = [1, 1]} : vector<16x256xbf16> to vector<1x256xbf16>
    %c16_185 = arith.constant 16 : index
    %c8_186 = arith.constant 8 : index
    %210 = vector.load %arg15[%c16_185, %c8_186] : memref<34x272xbf16, #tpu.memory_space<vmem>>, vector<1x256xbf16>
    tpu.vector_store %arg15[%c16_185, %c8_186], %209 {strides = array<i32>} : memref<34x272xbf16, #tpu.memory_space<vmem>>, vector<1x256xbf16>,
    %211 = vector.extract_strided_slice %194 {offsets = [8, 0], sizes = [1, 256], strides = [1, 1]} : vector<16x256xbf16> to vector<1x256xbf16>
    %c18 = arith.constant 18 : index
    %c8_187 = arith.constant 8 : index
    %212 = vector.load %arg15[%c18, %c8_187] : memref<34x272xbf16, #tpu.memory_space<vmem>>, vector<1x256xbf16>
    tpu.vector_store %arg15[%c18, %c8_187], %211 {strides = array<i32>} : memref<34x272xbf16, #tpu.memory_space<vmem>>, vector<1x256xbf16>,
    %213 = vector.extract_strided_slice %194 {offsets = [9, 0], sizes = [1, 256], strides = [1, 1]} : vector<16x256xbf16> to vector<1x256xbf16>
    %c20 = arith.constant 20 : index
    %c8_188 = arith.constant 8 : index
    %214 = vector.load %arg15[%c20, %c8_188] : memref<34x272xbf16, #tpu.memory_space<vmem>>, vector<1x256xbf16>
    tpu.vector_store %arg15[%c20, %c8_188], %213 {strides = array<i32>} : memref<34x272xbf16, #tpu.memory_space<vmem>>, vector<1x256xbf16>,
    %215 = vector.extract_strided_slice %194 {offsets = [10, 0], sizes = [1, 256], strides = [1, 1]} : vector<16x256xbf16> to vector<1x256xbf16>
    %c22 = arith.constant 22 : index
    %c8_189 = arith.constant 8 : index
    %216 = vector.load %arg15[%c22, %c8_189] : memref<34x272xbf16, #tpu.memory_space<vmem>>, vector<1x256xbf16>
    tpu.vector_store %arg15[%c22, %c8_189], %215 {strides = array<i32>} : memref<34x272xbf16, #tpu.memory_space<vmem>>, vector<1x256xbf16>,
    %217 = vector.extract_strided_slice %194 {offsets = [11, 0], sizes = [1, 256], strides = [1, 1]} : vector<16x256xbf16> to vector<1x256xbf16>
    %c24 = arith.constant 24 : index
    %c8_190 = arith.constant 8 : index
    %218 = vector.load %arg15[%c24, %c8_190] : memref<34x272xbf16, #tpu.memory_space<vmem>>, vector<1x256xbf16>
    tpu.vector_store %arg15[%c24, %c8_190], %217 {strides = array<i32>} : memref<34x272xbf16, #tpu.memory_space<vmem>>, vector<1x256xbf16>,
    %219 = vector.extract_strided_slice %194 {offsets = [12, 0], sizes = [1, 256], strides = [1, 1]} : vector<16x256xbf16> to vector<1x256xbf16>
    %c26 = arith.constant 26 : index
    %c8_191 = arith.constant 8 : index
    %220 = vector.load %arg15[%c26, %c8_191] : memref<34x272xbf16, #tpu.memory_space<vmem>>, vector<1x256xbf16>
    tpu.vector_store %arg15[%c26, %c8_191], %219 {strides = array<i32>} : memref<34x272xbf16, #tpu.memory_space<vmem>>, vector<1x256xbf16>,
    %221 = vector.extract_strided_slice %194 {offsets = [13, 0], sizes = [1, 256], strides = [1, 1]} : vector<16x256xbf16> to vector<1x256xbf16>
    %c28 = arith.constant 28 : index
    %c8_192 = arith.constant 8 : index
    %222 = vector.load %arg15[%c28, %c8_192] : memref<34x272xbf16, #tpu.memory_space<vmem>>, vector<1x256xbf16>
    tpu.vector_store %arg15[%c28, %c8_192], %221 {strides = array<i32>} : memref<34x272xbf16, #tpu.memory_space<vmem>>, vector<1x256xbf16>,
    %223 = vector.extract_strided_slice %194 {offsets = [14, 0], sizes = [1, 256], strides = [1, 1]} : vector<16x256xbf16> to vector<1x256xbf16>
    %c30 = arith.constant 30 : index
    %c8_193 = arith.constant 8 : index
    %224 = vector.load %arg15[%c30, %c8_193] : memref<34x272xbf16, #tpu.memory_space<vmem>>, vector<1x256xbf16>
    tpu.vector_store %arg15[%c30, %c8_193], %223 {strides = array<i32>} : memref<34x272xbf16, #tpu.memory_space<vmem>>, vector<1x256xbf16>,
    %225 = vector.extract_strided_slice %194 {offsets = [15, 0], sizes = [1, 256], strides = [1, 1]} : vector<16x256xbf16> to vector<1x256xbf16>
    %c32_194 = arith.constant 32 : index
    %c8_195 = arith.constant 8 : index
    %226 = vector.load %arg15[%c32_194, %c8_195] : memref<34x272xbf16, #tpu.memory_space<vmem>>, vector<1x256xbf16>
    tpu.vector_store %arg15[%c32_194, %c8_195], %225 {strides = array<i32>} : memref<34x272xbf16, #tpu.memory_space<vmem>>, vector<1x256xbf16>,
    %c1_196 = arith.constant 1 : index
    %c0_197 = arith.constant 0 : index
    %227 = vector.load %arg15[%c1_196, %c0_197] : memref<34x272xbf16, #tpu.memory_space<vmem>>, vector<32x272xbf16>
    %c0_198 = arith.constant 0 : index
    %c0_199 = arith.constant 0 : index
    %c0_200 = arith.constant 0 : index
    %228 = vector.load %arg10[%c0_198, %c0_199, %c0_200] : memref<4x272x192xbf16, #tpu.memory_space<vmem>>, vector<1x272x192xbf16>
    %229 = vector.shape_cast %228 : vector<1x272x192xbf16> to vector<272x192xbf16>
    %cst_201 = arith.constant dense<0.000000e+00> : vector<32x192xf32>
    %230 = tpu.matmul %227, %229, %cst_201 {dimension_numbers = #tpu.dot_dimension_numbers<[1], [0], [0], [1], [0, 0, 1, 1], [], []>} : vector<32x272xbf16>, vector<272x192xbf16>, vector<32x192xf32> -> vector<32x192xf32>
    %c0_202 = arith.constant 0 : index
    %c0_203 = arith.constant 0 : index
    %231 = vector.load %arg15[%c0_202, %c0_203] : memref<34x272xbf16, #tpu.memory_space<vmem>>, vector<32x272xbf16>
    %c1_204 = arith.constant 1 : index
    %c0_205 = arith.constant 0 : index
    %c0_206 = arith.constant 0 : index
    %232 = vector.load %arg10[%c1_204, %c0_205, %c0_206] : memref<4x272x192xbf16, #tpu.memory_space<vmem>>, vector<1x272x192xbf16>
    %233 = vector.shape_cast %232 : vector<1x272x192xbf16> to vector<272x192xbf16>
    %cst_207 = arith.constant dense<0.000000e+00> : vector<32x192xf32>
    %234 = tpu.matmul %231, %233, %cst_207 {dimension_numbers = #tpu.dot_dimension_numbers<[1], [0], [0], [1], [0, 0, 1, 1], [], []>} : vector<32x272xbf16>, vector<272x192xbf16>, vector<32x192xf32> -> vector<32x192xf32>
    %235 = arith.addf %230, %234 : vector<32x192xf32>
    %236 = math.tanh %235 : vector<32x192xf32>
    %c0_208 = arith.constant 0 : index
    %c0_209 = arith.constant 0 : index
    %c0_210 = arith.constant 0 : index
    %c0_211 = arith.constant 0 : index
    %237 = vector.load %arg11[%c0_208, %c0_209, %c0_210, %c0_211] : memref<1x2x32x192xf32, #tpu.memory_space<vmem>>, vector<1x1x32x192xf32>
    %238 = vector.shape_cast %237 : vector<1x1x32x192xf32> to vector<32x192xf32>
    %239 = vector.shape_cast %236 : vector<32x192xf32> to vector<1x1x32x192xf32>
    tpu.vector_store %arg11[%c0_208, %c0_209, %c0_210, %c0_211], %239 {strides = array<i32>} : memref<1x2x32x192xf32, #tpu.memory_space<vmem>>, vector<1x1x32x192xf32>,
    %c1_212 = arith.constant 1 : index
    %c0_213 = arith.constant 0 : index
    %240 = vector.load %arg15[%c1_212, %c0_213] : memref<34x272xbf16, #tpu.memory_space<vmem>>, vector<32x272xbf16>
    %c2_214 = arith.constant 2 : index
    %c0_215 = arith.constant 0 : index
    %c0_216 = arith.constant 0 : index
    %241 = vector.load %arg10[%c2_214, %c0_215, %c0_216] : memref<4x272x192xbf16, #tpu.memory_space<vmem>>, vector<1x272x192xbf16>
    %242 = vector.shape_cast %241 : vector<1x272x192xbf16> to vector<272x192xbf16>
    %cst_217 = arith.constant dense<0.000000e+00> : vector<32x192xf32>
    %243 = tpu.matmul %240, %242, %cst_217 {dimension_numbers = #tpu.dot_dimension_numbers<[1], [0], [0], [1], [0, 0, 1, 1], [], []>} : vector<32x272xbf16>, vector<272x192xbf16>, vector<32x192xf32> -> vector<32x192xf32>
    %c2_218 = arith.constant 2 : index
    %c0_219 = arith.constant 0 : index
    %244 = vector.load %arg15[%c2_218, %c0_219] : memref<34x272xbf16, #tpu.memory_space<vmem>>, vector<32x272xbf16>
    %c3_220 = arith.constant 3 : index
    %c0_221 = arith.constant 0 : index
    %c0_222 = arith.constant 0 : index
    %245 = vector.load %arg10[%c3_220, %c0_221, %c0_222] : memref<4x272x192xbf16, #tpu.memory_space<vmem>>, vector<1x272x192xbf16>
    %246 = vector.shape_cast %245 : vector<1x272x192xbf16> to vector<272x192xbf16>
    %cst_223 = arith.constant dense<0.000000e+00> : vector<32x192xf32>
    %247 = tpu.matmul %244, %246, %cst_223 {dimension_numbers = #tpu.dot_dimension_numbers<[1], [0], [0], [1], [0, 0, 1, 1], [], []>} : vector<32x272xbf16>, vector<272x192xbf16>, vector<32x192xf32> -> vector<32x192xf32>
    %248 = arith.addf %243, %247 : vector<32x192xf32>
    %249 = math.tanh %248 : vector<32x192xf32>
    %c0_224 = arith.constant 0 : index
    %c1_225 = arith.constant 1 : index
    %c0_226 = arith.constant 0 : index
    %c0_227 = arith.constant 0 : index
    %250 = vector.load %arg11[%c0_224, %c1_225, %c0_226, %c0_227] : memref<1x2x32x192xf32, #tpu.memory_space<vmem>>, vector<1x1x32x192xf32>
    %251 = vector.shape_cast %250 : vector<1x1x32x192xf32> to vector<32x192xf32>
    %252 = vector.shape_cast %249 : vector<32x192xf32> to vector<1x1x32x192xf32>
    tpu.vector_store %arg11[%c0_224, %c1_225, %c0_226, %c0_227], %252 {strides = array<i32>} : memref<1x2x32x192xf32, #tpu.memory_space<vmem>>, vector<1x1x32x192xf32>,
    return
  }
  func.func @transform_0(%arg0: i32) -> (i32, i32, i32) {
    %c0_i32 = arith.constant 0 : i32
    %c0_i32_0 = arith.constant 0 : i32
    %c0_i32_1 = arith.constant 0 : i32
    return %arg0, %c0_i32, %c0_i32_0 : i32, i32, i32
  }
  func.func @transform_1(%arg0: i32) -> (i32, i32) {
    %c0_i32 = arith.constant 0 : i32
    %c0_i32_0 = arith.constant 0 : i32
    %c0_i32_1 = arith.constant 0 : i32
    return %c0_i32, %c0_i32_0 : i32, i32
  }
  func.func @transform_2(%arg0: i32) -> (i32, i32) {
    %c0_i32 = arith.constant 0 : i32
    %c0_i32_0 = arith.constant 0 : i32
    %c0_i32_1 = arith.constant 0 : i32
    return %c0_i32, %c0_i32_0 : i32, i32
  }
  func.func @transform_3(%arg0: i32) -> (i32, i32, i32) {
    %c0_i32 = arith.constant 0 : i32
    %c0_i32_0 = arith.constant 0 : i32
    %c0_i32_1 = arith.constant 0 : i32
    %c0_i32_2 = arith.constant 0 : i32
    return %c0_i32, %c0_i32_0, %c0_i32_1 : i32, i32, i32
  }
  func.func @transform_4(%arg0: i32) -> (i32, i32) {
    %c0_i32 = arith.constant 0 : i32
    %c0_i32_0 = arith.constant 0 : i32
    %c0_i32_1 = arith.constant 0 : i32
    return %c0_i32, %c0_i32_0 : i32, i32
  }
  func.func @transform_5(%arg0: i32) -> (i32, i32, i32) {
    %c0_i32 = arith.constant 0 : i32
    %c0_i32_0 = arith.constant 0 : i32
    %c0_i32_1 = arith.constant 0 : i32
    %c0_i32_2 = arith.constant 0 : i32
    return %c0_i32, %c0_i32_0, %c0_i32_1 : i32, i32, i32
  }
  func.func @transform_6(%arg0: i32) -> (i32, i32) {
    %c0_i32 = arith.constant 0 : i32
    %c0_i32_0 = arith.constant 0 : i32
    %c0_i32_1 = arith.constant 0 : i32
    return %c0_i32, %c0_i32_0 : i32, i32
  }
  func.func @transform_7(%arg0: i32) -> (i32, i32, i32) {
    %c0_i32 = arith.constant 0 : i32
    %c0_i32_0 = arith.constant 0 : i32
    %c0_i32_1 = arith.constant 0 : i32
    %c0_i32_2 = arith.constant 0 : i32
    return %c0_i32, %c0_i32_0, %c0_i32_1 : i32, i32, i32
  }
  func.func @transform_8(%arg0: i32) -> (i32, i32) {
    %c0_i32 = arith.constant 0 : i32
    %c0_i32_0 = arith.constant 0 : i32
    %c0_i32_1 = arith.constant 0 : i32
    return %c0_i32, %c0_i32_0 : i32, i32
  }
  func.func @transform_9(%arg0: i32) -> (i32, i32, i32) {
    %c0_i32 = arith.constant 0 : i32
    %c0_i32_0 = arith.constant 0 : i32
    %c0_i32_1 = arith.constant 0 : i32
    %c0_i32_2 = arith.constant 0 : i32
    return %c0_i32, %c0_i32_0, %c0_i32_1 : i32, i32, i32
  }
  func.func @transform_10(%arg0: i32) -> (i32, i32, i32, i32) {
    %c0_i32 = arith.constant 0 : i32
    %c0_i32_0 = arith.constant 0 : i32
    %c0_i32_1 = arith.constant 0 : i32
    %c0_i32_2 = arith.constant 0 : i32
    return %arg0, %c0_i32, %c0_i32_0, %c0_i32_1 : i32, i32, i32, i32
  }
}

</mosaic_0001>

<llo_original>
// kernel: tile.28
$region0: #{tile.28}
  #allocation0 [shape = 's32[1]{0}', space=sflag, size = 0x4, scoped, tag = 'scoped memory for tile.28']
  %s0 = inlined_call_operand.vmem [shape: f32[64], index: 0, kind: input, shape index: {}]
  %s1 = inlined_call_operand.vmem [shape: f32[16,64], index: 1, kind: output, shape index: {}]
  // Predicated region
  $region2: #{tile.28} parent=0 // pred_check
    _
  $region3: #{tile.28} parent=0 // pred_check_branch
    %3 = sbr.rel (0) target = $region5
  $region4: #{tile.28} parent=0 // pred_region
    _
  $region5: #{tile.28} parent=0 // pred_fallthru
    _
  %v4 = vld [vmem:[%s0] ss:$0 sm:$0xff]
  %5 = vst [vmem:[%s1] sm:$0xff] %v4
  %s6 = scalar_lea.vmem %s1, 8
  %7 = vst [vmem:[%s6] sm:$0xff] %v4

// kernel: mul.25
$region0: #{mul.25}
  %s0 = inlined_call_operand.vmem [shape: f32[16,64], index: 0, kind: input, shape index: {}]
  %s1 = inlined_call_operand.vmem [shape: f32[1024], index: 1, kind: output, shape index: {}]
  %v2 = vld [vmem:[%s0] ss:$2 sm:$0xff]
  %vm3 = vcmask 523264
  %4 = vst.msk [vmem:[%s1] sm:$0xff] %vm3, %v2
  %s5 = scalar_lea.vmem %s0, 1
  %v6 = vld [vmem:[%s5] ss:$2 sm:$0xff]
  %7 = vrot.lane.b32.xlu0 %v6, 64
  %v8 = vpop.permute.xlu0 %7
  %vm9 = vcmask 1048064
  %10 = vst.msk [vmem:[%s1] sm:$0xff] %vm9, %v8

// kernel: tile.48
$region0: #{tile.48}
  #allocation0 [shape = 's32[1]{0}', space=sflag, size = 0x4, scoped, tag = 'scoped memory for tile.48']
  %s0 = inlined_call_operand.vmem [shape: f32[8], index: 0, kind: input, shape index: {}]
  %s1 = inlined_call_operand.vmem [shape: f32[32,8], index: 1, kind: output, shape index: {}]
  // Predicated region
  $region2: #{tile.48} parent=0 // pred_check
    _
  $region3: #{tile.48} parent=0 // pred_check_branch
    %3 = sbr.rel (0) target = $region5
  $region4: #{tile.48} parent=0 // pred_region
    _
  $region5: #{tile.48} parent=0 // pred_fallthru
    _
  %v4 = vld [vmem:[%s0] ss:$0 sm:$0xff]
  %5 = vst [vmem:[%s1] sm:$0xff] %v4
  %s6 = scalar_lea.vmem %s1, 8
  %7 = vst [vmem:[%s6] sm:$0xff] %v4
  %s8 = scalar_lea.vmem %s1, 16
  %9 = vst [vmem:[%s8] sm:$0xff] %v4
  %s10 = scalar_lea.vmem %s1, 24
  %11 = vst [vmem:[%s10] sm:$0xff] %v4

// kernel: tile.49
$region0: #{tile.49}
  %s0 = inlined_call_operand.vmem [shape: f32[32,8], index: 0, kind: input, shape index: {}]
  %s1 = inlined_call_operand.vmem [shape: f32[1,256], index: 1, kind: output, shape index: {}]
  $region1: #{tile.49} parent=0
    #allocation0 [shape = 'u8[8192]{0}', space=vmem, size = 0x2000, scoped, tag = 'scoped mem for output reshape']
    %s2 = smov 3
    %v3 = vld [vmem:[%s0] ss:$16 sm:%s2]
    %vm4 = vcmask 64512
    %5 = vst.msk [vmem:[#allocation0] ss:$8 sm:$0x3] %vm4, %v3
    %s6 = scalar_lea.vmem %s0, 15
    %s7 = smov 3
    %v8 = vld [vmem:[%s6] ss:$16 sm:%s7]
    %9 = vrot.lane.b32.xlu0 %v8, 120
    %v10 = vpop.permute.xlu0 %9
    %vm11 = vcmask 1048512
    %12 = vst.msk [vmem:[#allocation0] ss:$8 sm:$0x3] %vm11, %v10
    %s13 = scalar_lea.vmem %s0, 14
    %s14 = smov 3
    %v15 = vld [vmem:[%s13] ss:$16 sm:%s14]
    %16 = vrot.lane.b32.xlu0 %v15, 112
    %v17 = vpop.permute.xlu0 %16
    %vm18 = vcmask 982912
    %19 = vst.msk [vmem:[#allocation0] ss:$8 sm:$0x3] %vm18, %v17
    %s20 = scalar_lea.vmem %s0, 13
    %s21 = smov 3
    %v22 = vld [vmem:[%s20] ss:$16 sm:%s21]
    %23 = vrot.lane.b32.xlu0 %v22, 104
    %v24 = vpop.permute.xlu0 %23
    %vm25 = vcmask 917312
    %26 = vst.msk [vmem:[#allocation0] ss:$8 sm:$0x3] %vm25, %v24
    %s27 = scalar_lea.vmem %s0, 12
    %s28 = smov 3
    %v29 = vld [vmem:[%s27] ss:$16 sm:%s28]
    %30 = vrot.lane.b32.xlu0 %v29, 96
    %v31 = vpop.permute.xlu0 %30
    %vm32 = vcmask 851712
    %33 = vst.msk [vmem:[#allocation0] ss:$8 sm:$0x3] %vm32, %v31
    %s34 = scalar_lea.vmem %s0, 11
    %s35 = smov 3
    %v36 = vld [vmem:[%s34] ss:$16 sm:%s35]
    %37 = vrot.lane.b32.xlu0 %v36, 88
    %v38 = vpop.permute.xlu0 %37
    %vm39 = vcmask 786112
    %40 = vst.msk [vmem:[#allocation0] ss:$8 sm:$0x3] %vm39, %v38
    %s41 = scalar_lea.vmem %s0, 10
    %s42 = smov 3
    %v43 = vld [vmem:[%s41] ss:$16 sm:%s42]
    %44 = vrot.lane.b32.xlu0 %v43, 80
    %v45 = vpop.permute.xlu0 %44
    %vm46 = vcmask 720512
    %47 = vst.msk [vmem:[#allocation0] ss:$8 sm:$0x3] %vm46, %v45
    %s48 = scalar_lea.vmem %s0, 9
    %s49 = smov 3
    %v50 = vld [vmem:[%s48] ss:$16 sm:%s49]
    %51 = vrot.lane.b32.xlu0 %v50, 72
    %v52 = vpop.permute.xlu0 %51
    %vm53 = vcmask 654912
    %54 = vst.msk [vmem:[#allocation0] ss:$8 sm:$0x3] %vm53, %v52
    %s55 = scalar_lea.vmem %s0, 8
    %s56 = smov 3
    %v57 = vld [vmem:[%s55] ss:$16 sm:%s56]
    %58 = vrot.lane.b32.xlu0 %v57, 64
    %v59 = vpop.permute.xlu0 %58
    %vm60 = vcmask 589312
    %61 = vst.msk [vmem:[#allocation0] ss:$8 sm:$0x3] %vm60, %v59
    %s62 = scalar_lea.vmem %s0, 7
    %s63 = smov 3
    %v64 = vld [vmem:[%s62] ss:$16 sm:%s63]
    %65 = vrot.lane.b32.xlu0 %v64, 56
    %v66 = vpop.permute.xlu0 %65
    %vm67 = vcmask 523712
    %68 = vst.msk [vmem:[#allocation0] ss:$8 sm:$0x3] %vm67, %v66
    %s69 = scalar_lea.vmem %s0, 6
    %s70 = smov 3
    %v71 = vld [vmem:[%s69] ss:$16 sm:%s70]
    %72 = vrot.lane.b32.xlu0 %v71, 48
    %v73 = vpop.permute.xlu0 %72
    %vm74 = vcmask 458112
    %75 = vst.msk [vmem:[#allocation0] ss:$8 sm:$0x3] %vm74, %v73
    %s76 = scalar_lea.vmem %s0, 5
    %s77 = smov 3
    %v78 = vld [vmem:[%s76] ss:$16 sm:%s77]
    %79 = vrot.lane.b32.xlu0 %v78, 40
    %v80 = vpop.permute.xlu0 %79
    %vm81 = vcmask 392512
    %82 = vst.msk [vmem:[#allocation0] ss:$8 sm:$0x3] %vm81, %v80
    %s83 = scalar_lea.vmem %s0, 4
    %s84 = smov 3
    %v85 = vld [vmem:[%s83] ss:$16 sm:%s84]
    %86 = vrot.lane.b32.xlu0 %v85, 32
    %v87 = vpop.permute.xlu0 %86
    %vm88 = vcmask 326912
    %89 = vst.msk [vmem:[#allocation0] ss:$8 sm:$0x3] %vm88, %v87
    %s90 = scalar_lea.vmem %s0, 3
    %s91 = smov 3
    %v92 = vld [vmem:[%s90] ss:$16 sm:%s91]
    %93 = vrot.lane.b32.xlu0 %v92, 24
    %v94 = vpop.permute.xlu0 %93
    %vm95 = vcmask 261312
    %96 = vst.msk [vmem:[#allocation0] ss:$8 sm:$0x3] %vm95, %v94
    %s97 = scalar_lea.vmem %s0, 2
    %s98 = smov 3
    %v99 = vld [vmem:[%s97] ss:$16 sm:%s98]
    %100 = vrot.lane.b32.xlu0 %v99, 16
    %v101 = vpop.permute.xlu0 %100
    %vm102 = vcmask 195712
    %103 = vst.msk [vmem:[#allocation0] ss:$8 sm:$0x3] %vm102, %v101
    %s104 = scalar_lea.vmem %s0, 1
    %s105 = smov 3
    %v106 = vld [vmem:[%s104] ss:$16 sm:%s105]
    %107 = vrot.lane.b32.xlu0 %v106, 8
    %v108 = vpop.permute.xlu0 %107
    %vm109 = vcmask 130112
    %110 = vst.msk [vmem:[#allocation0] ss:$8 sm:$0x3] %vm109, %v108
    %s112 = sshll.u32 1, 1
    %s113 = ssub.s32 %s112, 1
    %v115 = vld [vmem:[#allocation0] sm:%s113]
    %s116 = sshll.u32 1, 1
    %s117 = ssub.s32 %s116, 1
    %118 = vst [vmem:[%s1] sm:%s117] %v115
    %s119 = scalar_lea.vmem [#allocation0], 8
    %v120 = vld [vmem:[%s119] sm:%s113]
    %s121 = sshll.u32 1, 1
    %s122 = ssub.s32 %s121, 1
    %s123 = scalar_lea.vmem %s1, 1
    %124 = vst [vmem:[%s123] sm:%s122] %v120

// kernel: tile.34
$region0: #{tile.34}
  %s0 = inlined_call_operand.vmem [shape: f32[16,64], index: 0, kind: input, shape index: {}]
  %s1 = inlined_call_operand.vmem [shape: f32[1,1024], index: 1, kind: output, shape index: {}]
  $region1: #{tile.34} parent=0
    #allocation0 [shape = 'u8[32768]{0}', space=vmem, size = 0x8000, scoped, tag = 'scoped mem for output reshape']
    %v2 = vld [vmem:[%s0] ss:$2 sm:$0xff]
    %vm3 = vcmask 523264
    %4 = vst.msk [vmem:[#allocation0] ss:$8 sm:$0xf] %vm3, %v2
    %5 = vst.msk [vmem:[#allocation0] ss:$8 sm:$0xf0] %vm3, %v2
    %s6 = scalar_lea.vmem %s0, 1
    %v7 = vld [vmem:[%s6] ss:$2 sm:$0xff]
    %8 = vrot.lane.b32.xlu0 %v7, 64
    %v9 = vpop.permute.xlu0 %8
    %vm10 = vcmask 1048064
    %11 = vst.msk [vmem:[#allocation0] ss:$8 sm:$0xf] %vm10, %v9
    %12 = vst.msk [vmem:[#allocation0] ss:$8 sm:$0xf0] %vm10, %v9
    %s14 = sshll.u32 1, 1
    %s15 = ssub.s32 %s14, 1
    %v17 = vld [vmem:[#allocation0] sm:%s15]
    %s18 = sshll.u32 1, 1
    %s19 = ssub.s32 %s18, 1
    %20 = vst [vmem:[%s1] sm:%s19] %v17
    %s21 = scalar_lea.vmem [#allocation0], 8
    %v22 = vld [vmem:[%s21] sm:%s15]
    %s23 = sshll.u32 1, 1
    %s24 = ssub.s32 %s23, 1
    %s25 = scalar_lea.vmem %s1, 1
    %26 = vst [vmem:[%s25] sm:%s24] %v22
    %s27 = scalar_lea.vmem [#allocation0], 16
    %v28 = vld [vmem:[%s27] sm:%s15]
    %s29 = sshll.u32 1, 1
    %s30 = ssub.s32 %s29, 1
    %s31 = smul.addr 1, 2
    %s32 = scalar_lea.vmem %s1, %s31
    %33 = vst [vmem:[%s32] sm:%s30] %v28
    %s34 = scalar_lea.vmem [#allocation0], 24
    %v35 = vld [vmem:[%s34] sm:%s15]
    %s36 = sshll.u32 1, 1
    %s37 = ssub.s32 %s36, 1
    %s38 = smul.addr 1, 3
    %s39 = scalar_lea.vmem %s1, %s38
    %40 = vst [vmem:[%s39] sm:%s37] %v35
    %s41 = scalar_lea.vmem [#allocation0], 32
    %v42 = vld [vmem:[%s41] sm:%s15]
    %s43 = sshll.u32 1, 1
    %s44 = ssub.s32 %s43, 1
    %s45 = smul.addr 1, 4
    %s46 = scalar_lea.vmem %s1, %s45
    %47 = vst [vmem:[%s46] sm:%s44] %v42
    %s48 = scalar_lea.vmem [#allocation0], 40
    %v49 = vld [vmem:[%s48] sm:%s15]
    %s50 = sshll.u32 1, 1
    %s51 = ssub.s32 %s50, 1
    %s52 = smul.addr 1, 5
    %s53 = scalar_lea.vmem %s1, %s52
    %54 = vst [vmem:[%s53] sm:%s51] %v49
    %s55 = scalar_lea.vmem [#allocation0], 48
    %v56 = vld [vmem:[%s55] sm:%s15]
    %s57 = sshll.u32 1, 1
    %s58 = ssub.s32 %s57, 1
    %s59 = smul.addr 1, 6
    %s60 = scalar_lea.vmem %s1, %s59
    %61 = vst [vmem:[%s60] sm:%s58] %v56
    %s62 = scalar_lea.vmem [#allocation0], 56
    %v63 = vld [vmem:[%s62] sm:%s15]
    %s64 = sshll.u32 1, 1
    %s65 = ssub.s32 %s64, 1
    %s66 = smul.addr 1, 7
    %s67 = scalar_lea.vmem %s1, %s66
    %68 = vst [vmem:[%s67] sm:%s65] %v63

// kernel: tile.43
$region0: #{tile.43}
  #allocation0 [shape = 's32[1]{0}', space=sflag, size = 0x4, scoped, tag = 'scoped memory for tile.43']
  %s0 = inlined_call_operand.vmem [shape: f32[16], index: 0, kind: input, shape index: {}]
  %s1 = inlined_call_operand.vmem [shape: f32[16,16], index: 1, kind: output, shape index: {}]
  // Predicated region
  $region2: #{tile.43} parent=0 // pred_check
    _
  $region3: #{tile.43} parent=0 // pred_check_branch
    %3 = sbr.rel (0) target = $region5
  $region4: #{tile.43} parent=0 // pred_region
    _
  $region5: #{tile.43} parent=0 // pred_fallthru
    _
  %v4 = vld [vmem:[%s0] ss:$0 sm:$0xff]
  %5 = vst [vmem:[%s1] sm:$0xff] %v4
  %s6 = scalar_lea.vmem %s1, 8
  %7 = vst [vmem:[%s6] sm:$0xff] %v4

// kernel: tile.44
$region0: #{tile.44}
  %s0 = inlined_call_operand.vmem [shape: f32[16,16], index: 0, kind: input, shape index: {}]
  %s1 = inlined_call_operand.vmem [shape: f32[1,256], index: 1, kind: output, shape index: {}]
  $region1: #{tile.44} parent=0
    #allocation0 [shape = 'u8[8192]{0}', space=vmem, size = 0x2000, scoped, tag = 'scoped mem for output reshape']
    %s2 = smov 3
    %v3 = vld [vmem:[%s0] ss:$8 sm:%s2]
    %vm4 = vcmask 130048
    %5 = vst.msk [vmem:[#allocation0] ss:$8 sm:$0x3] %vm4, %v3
    %s6 = scalar_lea.vmem %s0, 7
    %s7 = smov 3
    %v8 = vld [vmem:[%s6] ss:$8 sm:%s7]
    %9 = vrot.lane.b32.xlu0 %v8, 112
    %v10 = vpop.permute.xlu0 %9
    %vm11 = vcmask 1048448
    %12 = vst.msk [vmem:[#allocation0] ss:$8 sm:$0x3] %vm11, %v10
    %s13 = scalar_lea.vmem %s0, 6
    %s14 = smov 3
    %v15 = vld [vmem:[%s13] ss:$8 sm:%s14]
    %16 = vrot.lane.b32.xlu0 %v15, 96
    %v17 = vpop.permute.xlu0 %16
    %vm18 = vcmask 917248
    %19 = vst.msk [vmem:[#allocation0] ss:$8 sm:$0x3] %vm18, %v17
    %s20 = scalar_lea.vmem %s0, 5
    %s21 = smov 3
    %v22 = vld [vmem:[%s20] ss:$8 sm:%s21]
    %23 = vrot.lane.b32.xlu0 %v22, 80
    %v24 = vpop.permute.xlu0 %23
    %vm25 = vcmask 786048
    %26 = vst.msk [vmem:[#allocation0] ss:$8 sm:$0x3] %vm25, %v24
    %s27 = scalar_lea.vmem %s0, 4
    %s28 = smov 3
    %v29 = vld [vmem:[%s27] ss:$8 sm:%s28]
    %30 = vrot.lane.b32.xlu0 %v29, 64
    %v31 = vpop.permute.xlu0 %30
    %vm32 = vcmask 654848
    %33 = vst.msk [vmem:[#allocation0] ss:$8 sm:$0x3] %vm32, %v31
    %s34 = scalar_lea.vmem %s0, 3
    %s35 = smov 3
    %v36 = vld [vmem:[%s34] ss:$8 sm:%s35]
    %37 = vrot.lane.b32.xlu0 %v36, 48
    %v38 = vpop.permute.xlu0 %37
    %vm39 = vcmask 523648
    %40 = vst.msk [vmem:[#allocation0] ss:$8 sm:$0x3] %vm39, %v38
    %s41 = scalar_lea.vmem %s0, 2
    %s42 = smov 3
    %v43 = vld [vmem:[%s41] ss:$8 sm:%s42]
    %44 = vrot.lane.b32.xlu0 %v43, 32
    %v45 = vpop.permute.xlu0 %44
    %vm46 = vcmask 392448
    %47 = vst.msk [vmem:[#allocation0] ss:$8 sm:$0x3] %vm46, %v45
    %s48 = scalar_lea.vmem %s0, 1
    %s49 = smov 3
    %v50 = vld [vmem:[%s48] ss:$8 sm:%s49]
    %51 = vrot.lane.b32.xlu0 %v50, 16
    %v52 = vpop.permute.xlu0 %51
    %vm53 = vcmask 261248
    %54 = vst.msk [vmem:[#allocation0] ss:$8 sm:$0x3] %vm53, %v52
    %s56 = sshll.u32 1, 1
    %s57 = ssub.s32 %s56, 1
    %v59 = vld [vmem:[#allocation0] sm:%s57]
    %s60 = sshll.u32 1, 1
    %s61 = ssub.s32 %s60, 1
    %62 = vst [vmem:[%s1] sm:%s61] %v59
    %s63 = scalar_lea.vmem [#allocation0], 8
    %v64 = vld [vmem:[%s63] sm:%s57]
    %s65 = sshll.u32 1, 1
    %s66 = ssub.s32 %s65, 1
    %s67 = scalar_lea.vmem %s1, 1
    %68 = vst [vmem:[%s67] sm:%s66] %v64

// kernel: tile.38
$region0: #{tile.38}
  #allocation0 [shape = 's32[1]{0}', space=sflag, size = 0x4, scoped, tag = 'scoped memory for tile.38']
  %s0 = inlined_call_operand.vmem [shape: f32[32], index: 0, kind: input, shape index: {}]
  %s1 = inlined_call_operand.vmem [shape: f32[8,32], index: 1, kind: output, shape index: {}]
  // Predicated region
  $region2: #{tile.38} parent=0 // pred_check
    _
  $region3: #{tile.38} parent=0 // pred_check_branch
    %3 = sbr.rel (0) target = $region5
  $region4: #{tile.38} parent=0 // pred_region
    _
  $region5: #{tile.38} parent=0 // pred_fallthru
    _
  %v4 = vld [vmem:[%s0] ss:$0 sm:$0xff]
  %5 = vst [vmem:[%s1] sm:$0xff] %v4

// kernel: tile.39
$region0: #{tile.39}
  %s0 = inlined_call_operand.vmem [shape: f32[8,32], index: 0, kind: input, shape index: {}]
  %s1 = inlined_call_operand.vmem [shape: f32[1,256], index: 1, kind: output, shape index: {}]
  $region1: #{tile.39} parent=0
    #allocation0 [shape = 'u8[8192]{0}', space=vmem, size = 0x2000, scoped, tag = 'scoped mem for output reshape']
    %s2 = smov 3
    %v3 = vld [vmem:[%s0] ss:$4 sm:%s2]
    %vm4 = vcmask 261120
    %5 = vst.msk [vmem:[#allocation0] ss:$8 sm:$0x3] %vm4, %v3
    %s6 = scalar_lea.vmem %s0, 3
    %s7 = smov 3
    %v8 = vld [vmem:[%s6] ss:$4 sm:%s7]
    %9 = vrot.lane.b32.xlu0 %v8, 96
    %v10 = vpop.permute.xlu0 %9
    %vm11 = vcmask 1048320
    %12 = vst.msk [vmem:[#allocation0] ss:$8 sm:$0x3] %vm11, %v10
    %s13 = scalar_lea.vmem %s0, 2
    %s14 = smov 3
    %v15 = vld [vmem:[%s13] ss:$4 sm:%s14]
    %16 = vrot.lane.b32.xlu0 %v15, 64
    %v17 = vpop.permute.xlu0 %16
    %vm18 = vcmask 785920
    %19 = vst.msk [vmem:[#allocation0] ss:$8 sm:$0x3] %vm18, %v17
    %s20 = scalar_lea.vmem %s0, 1
    %s21 = smov 3
    %v22 = vld [vmem:[%s20] ss:$4 sm:%s21]
    %23 = vrot.lane.b32.xlu0 %v22, 32
    %v24 = vpop.permute.xlu0 %23
    %vm25 = vcmask 523520
    %26 = vst.msk [vmem:[#allocation0] ss:$8 sm:$0x3] %vm25, %v24
    %s28 = sshll.u32 1, 1
    %s29 = ssub.s32 %s28, 1
    %v31 = vld [vmem:[#allocation0] sm:%s29]
    %s32 = sshll.u32 1, 1
    %s33 = ssub.s32 %s32, 1
    %34 = vst [vmem:[%s1] sm:%s33] %v31
    %s35 = scalar_lea.vmem [#allocation0], 8
    %v36 = vld [vmem:[%s35] sm:%s29]
    %s37 = sshll.u32 1, 1
    %s38 = ssub.s32 %s37, 1
    %s39 = scalar_lea.vmem %s1, 1
    %40 = vst [vmem:[%s39] sm:%s38] %v36

// kernel: generator_dcgan_forward.1
$region0: #{generator_dcgan_forward.1}
  #allocation0 [shape = 'u32[]', space=smem, size = 0x4, offset = 0x4, fixed_abs, tag = 'smem constant byte address 0x4 - core index']
  #allocation1 [shape = 'u32[144,128]{1,0:T(1,128)}', space=vmem, size = 0x12000, scoped, tag = 'internal scratch']
  #allocation2 [shape = 'bf16[6,384]{1,0:T(8,128)(2,1)}', space=vmem, size = 0x1800, scoped, tag = 'scratch operand']
  #allocation3 [shape = 'bf16[10,320]{1,0:T(8,128)(2,1)}', space=vmem, size = 0x3000, scoped, tag = 'scratch operand']
  #allocation4 [shape = 'bf16[18,288]{1,0:T(8,128)(2,1)}', space=vmem, size = 0x4800, scoped, tag = 'scratch operand']
  #allocation5 [shape = 'bf16[34,272]{1,0:T(8,128)(2,1)}', space=vmem, size = 0x7800, scoped, tag = 'scratch operand']
  %s0 = inlined_call_operand.vmem [shape: bf16[2,1,16], index: 0, kind: input, shape index: {}]
  %s1 = inlined_call_operand.vmem [shape: bf16[16,1024], index: 1, kind: input, shape index: {}]
  %s2 = inlined_call_operand.vmem [shape: f32[1,1024], index: 2, kind: input, shape index: {}]
  %s3 = inlined_call_operand.vmem [shape: bf16[4,384,256], index: 3, kind: input, shape index: {}]
  %s4 = inlined_call_operand.vmem [shape: f32[1,256], index: 4, kind: input, shape index: {}]
  %s5 = inlined_call_operand.vmem [shape: bf16[4,320,256], index: 5, kind: input, shape index: {}]
  %s6 = inlined_call_operand.vmem [shape: f32[1,256], index: 6, kind: input, shape index: {}]
  %s7 = inlined_call_operand.vmem [shape: bf16[4,288,256], index: 7, kind: input, shape index: {}]
  %s8 = inlined_call_operand.vmem [shape: f32[1,256], index: 8, kind: input, shape index: {}]
  %s9 = inlined_call_operand.vmem [shape: bf16[4,272,192], index: 9, kind: input, shape index: {}]
  %s10 = inlined_call_operand.vmem [shape: f32[2,2,32,192], index: 10, kind: output, shape index: {}]
  %s11 = sld [smem:[#allocation0]]
  $region73: #{generator_dcgan_forward.1} parent=0
    _
  %s13 = ssub.s32 1, %s11
  %s14 = scalar_select 0, %s13, %s11
  loop: start=0, step=1, limit=4
  $region2: #{generator_dcgan_forward.1} parent=0 // loop_pre_header
    _
  $region3: #{generator_dcgan_forward.1} parent=0 // loop_header
    %s16 = sphi 0, %s20
    %p17 = scmp.ge.s32.totalorder %s16, 4
    %s26 = sphi 0, %s28
    %s29 = sphi 0, %s26
    %s30 = sphi 0, %s29
    %s46 = sphi 0, %s30
    %s50 = sphi 0, %s50
    %s52 = sphi 0, %s50
    %s53 = sphi 0, %s52
    %s67 = sphi 0, %s53
    %s71 = sphi 0, %s71
    %s73 = sphi 0, %s71
    %s74 = sphi 0, %s73
    %s88 = sphi 0, %s74
    %s92 = sphi 0, %s92
    %s94 = sphi 0, %s92
    %s95 = sphi 0, %s94
    %s109 = sphi 0, %s95
    %s113 = sphi 0, %s113
    %s115 = sphi 0, %s113
    %s116 = sphi 0, %s115
    %s130 = sphi 0, %s116
    %s134 = sphi 0, %s134
    %s136 = sphi 0, %s134
    %s137 = sphi 0, %s136
    %s151 = sphi 0, %s137
    %s155 = sphi 0, %s155
    %s157 = sphi 0, %s155
    %s158 = sphi 0, %s157
    %s172 = sphi 0, %s158
    %s176 = sphi 0, %s176
    %s178 = sphi 0, %s176
    %s179 = sphi 0, %s178
    %s193 = sphi 0, %s179
    %s197 = sphi 0, %s197
    %s199 = sphi 0, %s197
    %s200 = sphi 0, %s199
    %s214 = sphi 0, %s200
    %s218 = sphi 0, %s218
    %s220 = sphi 0, %s218
    %s221 = sphi 0, %s220
    %s235 = sphi 0, %s221
    %s241 = sphi 0, %s243
    %s244 = sphi 0, %s241
    %s245 = sphi 0, %s244
    %s261 = sphi 0, %s245
  $region4: #{generator_dcgan_forward.1} parent=0 // loop_header_branch
    %19 = sbr.rel (%p17) target = $region8
  $region5: #{generator_dcgan_forward.1} parent=0 // loop_body
    %s21 = ssub.s32 %s16, 1
    %s22 = ssub.s32 %s16, 2
    %s23 = sadd.s32 %s16, 1
    %s24 = ssub.s32 %s16, %s23
    %p25 = scmp.eq.s32.totalorder %s24, 0
    %s27 = sadd.s32 %s26, 1
    %s28 = scalar_select %p25, %s26, %s27
    %p31 = pneg %p25
    %p32 = scmp.eq.s32.totalorder %s16, 1
    %p33 = por %p31, %p32
    %p34 = scmp.ne.s32.totalorder %s26, %s29
    %p35 = scmp.eq.s32.totalorder %s16, 0
    %p36 = por %p34, %p35
    %p37 = scmp.ne.s32.totalorder %s26, %s29
    %p38 = scmp.eq.s32.totalorder %s21, 1
    %p39 = por %p37, %p38
    %p40 = scmp.ne.s32.totalorder %s29, %s30
    %p41 = scmp.eq.s32.totalorder %s21, 0
    %p42 = por %p40, %p41
    %p43 = scmp.ne.s32.totalorder %s29, %s30
    %p44 = scmp.eq.s32.totalorder %s22, 1
    %p45 = por %p43, %p44
    %p47 = scmp.ne.s32.totalorder %s30, %s46
    %p48 = scmp.eq.s32.totalorder %s22, 0
    %p49 = por %p47, %p48
    %s51 = sadd.s32 %s50, 1
    %p54 = scmp.eq.s32.totalorder %s16, 1
    %p55 = scmp.ne.s32.totalorder %s50, %s52
    %p56 = scmp.eq.s32.totalorder %s16, 0
    %p57 = por %p55, %p56
    %p58 = scmp.ne.s32.totalorder %s50, %s52
    %p59 = scmp.eq.s32.totalorder %s21, 1
    %p60 = por %p58, %p59
    %p61 = scmp.ne.s32.totalorder %s52, %s53
    %p62 = scmp.eq.s32.totalorder %s21, 0
    %p63 = por %p61, %p62
    %p64 = scmp.ne.s32.totalorder %s52, %s53
    %p65 = scmp.eq.s32.totalorder %s22, 1
    %p66 = por %p64, %p65
    %p68 = scmp.ne.s32.totalorder %s53, %s67
    %p69 = scmp.eq.s32.totalorder %s22, 0
    %p70 = por %p68, %p69
    %s72 = sadd.s32 %s71, 1
    %p75 = scmp.eq.s32.totalorder %s16, 1
    %p76 = scmp.ne.s32.totalorder %s71, %s73
    %p77 = scmp.eq.s32.totalorder %s16, 0
    %p78 = por %p76, %p77
    %p79 = scmp.ne.s32.totalorder %s71, %s73
    %p80 = scmp.eq.s32.totalorder %s21, 1
    %p81 = por %p79, %p80
    %p82 = scmp.ne.s32.totalorder %s73, %s74
    %p83 = scmp.eq.s32.totalorder %s21, 0
    %p84 = por %p82, %p83
    %p85 = scmp.ne.s32.totalorder %s73, %s74
    %p86 = scmp.eq.s32.totalorder %s22, 1
    %p87 = por %p85, %p86
    %p89 = scmp.ne.s32.totalorder %s74, %s88
    %p90 = scmp.eq.s32.totalorder %s22, 0
    %p91 = por %p89, %p90
    %s93 = sadd.s32 %s92, 1
    %p96 = scmp.eq.s32.totalorder %s16, 1
    %p97 = scmp.ne.s32.totalorder %s92, %s94
    %p98 = scmp.eq.s32.totalorder %s16, 0
    %p99 = por %p97, %p98
    %p100 = scmp.ne.s32.totalorder %s92, %s94
    %p101 = scmp.eq.s32.totalorder %s21, 1
    %p102 = por %p100, %p101
    %p103 = scmp.ne.s32.totalorder %s94, %s95
    %p104 = scmp.eq.s32.totalorder %s21, 0
    %p105 = por %p103, %p104
    %p106 = scmp.ne.s32.totalorder %s94, %s95
    %p107 = scmp.eq.s32.totalorder %s22, 1
    %p108 = por %p106, %p107
    %p110 = scmp.ne.s32.totalorder %s95, %s109
    %p111 = scmp.eq.s32.totalorder %s22, 0
    %p112 = por %p110, %p111
    %s114 = sadd.s32 %s113, 1
    %p117 = scmp.eq.s32.totalorder %s16, 1
    %p118 = scmp.ne.s32.totalorder %s113, %s115
    %p119 = scmp.eq.s32.totalorder %s16, 0
    %p120 = por %p118, %p119
    %p121 = scmp.ne.s32.totalorder %s113, %s115
    %p122 = scmp.eq.s32.totalorder %s21, 1
    %p123 = por %p121, %p122
    %p124 = scmp.ne.s32.totalorder %s115, %s116
    %p125 = scmp.eq.s32.totalorder %s21, 0
    %p126 = por %p124, %p125
    %p127 = scmp.ne.s32.totalorder %s115, %s116
    %p128 = scmp.eq.s32.totalorder %s22, 1
    %p129 = por %p127, %p128
    %p131 = scmp.ne.s32.totalorder %s116, %s130
    %p132 = scmp.eq.s32.totalorder %s22, 0
    %p133 = por %p131, %p132
    %s135 = sadd.s32 %s134, 1
    %p138 = scmp.eq.s32.totalorder %s16, 1
    %p139 = scmp.ne.s32.totalorder %s134, %s136
    %p140 = scmp.eq.s32.totalorder %s16, 0
    %p141 = por %p139, %p140
    %p142 = scmp.ne.s32.totalorder %s134, %s136
    %p143 = scmp.eq.s32.totalorder %s21, 1
    %p144 = por %p142, %p143
    %p145 = scmp.ne.s32.totalorder %s136, %s137
    %p146 = scmp.eq.s32.totalorder %s21, 0
    %p147 = por %p145, %p146
    %p148 = scmp.ne.s32.totalorder %s136, %s137
    %p149 = scmp.eq.s32.totalorder %s22, 1
    %p150 = por %p148, %p149
    %p152 = scmp.ne.s32.totalorder %s137, %s151
    %p153 = scmp.eq.s32.totalorder %s22, 0
    %p154 = por %p152, %p153
    %s156 = sadd.s32 %s155, 1
    %p159 = scmp.eq.s32.totalorder %s16, 1
    %p160 = scmp.ne.s32.totalorder %s155, %s157
    %p161 = scmp.eq.s32.totalorder %s16, 0
    %p162 = por %p160, %p161
    %p163 = scmp.ne.s32.totalorder %s155, %s157
    %p164 = scmp.eq.s32.totalorder %s21, 1
    %p165 = por %p163, %p164
    %p166 = scmp.ne.s32.totalorder %s157, %s158
    %p167 = scmp.eq.s32.totalorder %s21, 0
    %p168 = por %p166, %p167
    %p169 = scmp.ne.s32.totalorder %s157, %s158
    %p170 = scmp.eq.s32.totalorder %s22, 1
    %p171 = por %p169, %p170
    %p173 = scmp.ne.s32.totalorder %s158, %s172
    %p174 = scmp.eq.s32.totalorder %s22, 0
    %p175 = por %p173, %p174
    %s177 = sadd.s32 %s176, 1
    %p180 = scmp.eq.s32.totalorder %s16, 1
    %p181 = scmp.ne.s32.totalorder %s176, %s178
    %p182 = scmp.eq.s32.totalorder %s16, 0
    %p183 = por %p181, %p182
    %p184 = scmp.ne.s32.totalorder %s176, %s178
    %p185 = scmp.eq.s32.totalorder %s21, 1
    %p186 = por %p184, %p185
    %p187 = scmp.ne.s32.totalorder %s178, %s179
    %p188 = scmp.eq.s32.totalorder %s21, 0
    %p189 = por %p187, %p188
    %p190 = scmp.ne.s32.totalorder %s178, %s179
    %p191 = scmp.eq.s32.totalorder %s22, 1
    %p192 = por %p190, %p191
    %p194 = scmp.ne.s32.totalorder %s179, %s193
    %p195 = scmp.eq.s32.totalorder %s22, 0
    %p196 = por %p194, %p195
    %s198 = sadd.s32 %s197, 1
    %p201 = scmp.eq.s32.totalorder %s16, 1
    %p202 = scmp.ne.s32.totalorder %s197, %s199
    %p203 = scmp.eq.s32.totalorder %s16, 0
    %p204 = por %p202, %p203
    %p205 = scmp.ne.s32.totalorder %s197, %s199
    %p206 = scmp.eq.s32.totalorder %s21, 1
    %p207 = por %p205, %p206
    %p208 = scmp.ne.s32.totalorder %s199, %s200
    %p209 = scmp.eq.s32.totalorder %s21, 0
    %p210 = por %p208, %p209
    %p211 = scmp.ne.s32.totalorder %s199, %s200
    %p212 = scmp.eq.s32.totalorder %s22, 1
    %p213 = por %p211, %p212
    %p215 = scmp.ne.s32.totalorder %s200, %s214
    %p216 = scmp.eq.s32.totalorder %s22, 0
    %p217 = por %p215, %p216
    %s219 = sadd.s32 %s218, 1
    %p222 = scmp.eq.s32.totalorder %s16, 1
    %p223 = scmp.ne.s32.totalorder %s218, %s220
    %p224 = scmp.eq.s32.totalorder %s16, 0
    %p225 = por %p223, %p224
    %p226 = scmp.ne.s32.totalorder %s218, %s220
    %p227 = scmp.eq.s32.totalorder %s21, 1
    %p228 = por %p226, %p227
    %p229 = scmp.ne.s32.totalorder %s220, %s221
    %p230 = scmp.eq.s32.totalorder %s21, 0
    %p231 = por %p229, %p230
    %p232 = scmp.ne.s32.totalorder %s220, %s221
    %p233 = scmp.eq.s32.totalorder %s22, 1
    %p234 = por %p232, %p233
    %p236 = scmp.ne.s32.totalorder %s221, %s235
    %p237 = scmp.eq.s32.totalorder %s22, 0
    %p238 = por %p236, %p237
    %s239 = ssub.s32 %s16, %s23
    %p240 = scmp.eq.s32.totalorder %s239, 0
    %s242 = sadd.s32 %s241, 1
    %s243 = scalar_select %p240, %s241, %s242
    %p246 = pneg %p240
    %p247 = scmp.eq.s32.totalorder %s16, 1
    %p248 = por %p246, %p247
    %p249 = scmp.ne.s32.totalorder %s241, %s244
    %p250 = scmp.eq.s32.totalorder %s16, 0
    %p251 = por %p249, %p250
    %p252 = scmp.ne.s32.totalorder %s241, %s244
    %p253 = scmp.eq.s32.totalorder %s21, 1
    %p254 = por %p252, %p253
    %p255 = scmp.ne.s32.totalorder %s244, %s245
    %p256 = scmp.eq.s32.totalorder %s21, 0
    %p257 = por %p255, %p256
    %p258 = scmp.ne.s32.totalorder %s244, %s245
    %p259 = scmp.eq.s32.totalorder %s22, 1
    %p260 = por %p258, %p259
    %p262 = scmp.ne.s32.totalorder %s245, %s261
    %p263 = scmp.eq.s32.totalorder %s22, 0
    %p264 = por %p262, %p263
    %p265 = scmp.le.s32.totalorder 1, %s16
    %p266 = scmp.lt.s32.totalorder %s16, 3
    %p267 = pnand %p265, %p266
    %p268 = pneg %p267
    // Predicated region
    $region9: #{generator_dcgan_forward.1} parent=5 // pred_check
      _
    $region10: #{generator_dcgan_forward.1} parent=5 // pred_check_branch
      %270 = sbr.rel (%p267) target = $region12
    $region11: #{generator_dcgan_forward.1} parent=5 // pred_region
      %s271 = ssub.s32 %s16, 1
      // Predicated region
      $region13: #{generator_dcgan_forward.1} parent=11 // pred_check
        %p272 = pneg %p63
      $region14: #{generator_dcgan_forward.1} parent=11 // pred_check_branch
        %274 = sbr.rel (%p272) target = $region16
      $region15: #{generator_dcgan_forward.1} parent=11 // pred_region
        _
      $region16: #{generator_dcgan_forward.1} parent=11 // pred_fallthru
        _
      // Predicated region
      $region17: #{generator_dcgan_forward.1} parent=11 // pred_check
        %p275 = pneg %p84
      $region18: #{generator_dcgan_forward.1} parent=11 // pred_check_branch
        %277 = sbr.rel (%p275) target = $region20
      $region19: #{generator_dcgan_forward.1} parent=11 // pred_region
        _
      $region20: #{generator_dcgan_forward.1} parent=11 // pred_fallthru
        _
      // Predicated region
      $region21: #{generator_dcgan_forward.1} parent=11 // pred_check
        %p278 = pneg %p105
      $region22: #{generator_dcgan_forward.1} parent=11 // pred_check_branch
        %280 = sbr.rel (%p278) target = $region24
      $region23: #{generator_dcgan_forward.1} parent=11 // pred_region
        _
      $region24: #{generator_dcgan_forward.1} parent=11 // pred_fallthru
        _
      // Predicated region
      $region25: #{generator_dcgan_forward.1} parent=11 // pred_check
        %p281 = pneg %p126
      $region26: #{generator_dcgan_forward.1} parent=11 // pred_check_branch
        %283 = sbr.rel (%p281) target = $region28
      $region27: #{generator_dcgan_forward.1} parent=11 // pred_region
        _
      $region28: #{generator_dcgan_forward.1} parent=11 // pred_fallthru
        _
      // Predicated region
      $region29: #{generator_dcgan_forward.1} parent=11 // pred_check
        %p284 = pneg %p147
      $region30: #{generator_dcgan_forward.1} parent=11 // pred_check_branch
        %286 = sbr.rel (%p284) target = $region32
      $region31: #{generator_dcgan_forward.1} parent=11 // pred_region
        _
      $region32: #{generator_dcgan_forward.1} parent=11 // pred_fallthru
        _
      // Predicated region
      $region33: #{generator_dcgan_forward.1} parent=11 // pred_check
        %p287 = pneg %p168
      $region34: #{generator_dcgan_forward.1} parent=11 // pred_check_branch
        %289 = sbr.rel (%p287) target = $region36
      $region35: #{generator_dcgan_forward.1} parent=11 // pred_region
        _
      $region36: #{generator_dcgan_forward.1} parent=11 // pred_fallthru
        _
      // Predicated region
      $region37: #{generator_dcgan_forward.1} parent=11 // pred_check
        %p290 = pneg %p189
      $region38: #{generator_dcgan_forward.1} parent=11 // pred_check_branch
        %292 = sbr.rel (%p290) target = $region40
      $region39: #{generator_dcgan_forward.1} parent=11 // pred_region
        _
      $region40: #{generator_dcgan_forward.1} parent=11 // pred_fallthru
        _
      // Predicated region
      $region41: #{generator_dcgan_forward.1} parent=11 // pred_check
        %p293 = pneg %p210
      $region42: #{generator_dcgan_forward.1} parent=11 // pred_check_branch
        %295 = sbr.rel (%p293) target = $region44
      $region43: #{generator_dcgan_forward.1} parent=11 // pred_region
        _
      $region44: #{generator_dcgan_forward.1} parent=11 // pred_fallthru
        _
      // Predicated region
      $region45: #{generator_dcgan_forward.1} parent=11 // pred_check
        %p296 = pneg %p231
      $region46: #{generator_dcgan_forward.1} parent=11 // pred_check_branch
        %298 = sbr.rel (%p296) target = $region48
      $region47: #{generator_dcgan_forward.1} parent=11 // pred_region
        _
      $region48: #{generator_dcgan_forward.1} parent=11 // pred_fallthru
        _
    $region12: #{generator_dcgan_forward.1} parent=5 // pred_fallthru
      _
    %p299 = scmp.lt.s32.totalorder %s16, 2
    // Predicated region
    $region49: #{generator_dcgan_forward.1} parent=5 // pred_check
      %p300 = pneg %p299
    $region50: #{generator_dcgan_forward.1} parent=5 // pred_check_branch
      %302 = sbr.rel (%p300) target = $region52
    $region51: #{generator_dcgan_forward.1} parent=5 // pred_region
      // Predicated region
      $region53: #{generator_dcgan_forward.1} parent=51 // pred_check
        %p303 = pneg %p36
      $region54: #{generator_dcgan_forward.1} parent=51 // pred_check_branch
        %305 = sbr.rel (%p303) target = $region56
      $region55: #{generator_dcgan_forward.1} parent=51 // pred_region
        %p306 = scmp.lt.s32.totalorder %s16, 1
        %s307 = scalar_select %p306, %s16, 1
        %s308 = scalar_lea.vmem %s0, %s307
      $region56: #{generator_dcgan_forward.1} parent=51 // pred_fallthru
        _
    $region52: #{generator_dcgan_forward.1} parent=5 // pred_fallthru
      _
    %p309 = scmp.le.s32.totalorder 1, %s16
    %p310 = scmp.lt.s32.totalorder %s16, 3
    %p311 = pnand %p309, %p310
    %p312 = pneg %p311
    // Predicated region
    $region57: #{generator_dcgan_forward.1} parent=5 // pred_check
      _
    $region58: #{generator_dcgan_forward.1} parent=5 // pred_check_branch
      %314 = sbr.rel (%p311) target = $region60
    $region59: #{generator_dcgan_forward.1} parent=5 // pred_region
      %s315 = ssub.s32 %s16, 1
      %p316 = scmp.lt.s32.totalorder %s21, 1
      %s317 = scalar_select %p316, %s21, 1
      %s318 = scalar_lea.vmem %s0, %s317
      %p319 = pneg %p42
      %p320 = pneg %p39
      %p321 = pneg %p63
      %p322 = pneg %p60
      %p323 = pneg %p84
      %p324 = pneg %p81
      %p325 = pneg %p105
      %p326 = pneg %p102
      %p327 = pneg %p126
      %p328 = pneg %p123
      %p329 = pneg %p147
      %p330 = pneg %p144
      %p331 = pneg %p168
      %p332 = pneg %p165
      %p333 = pneg %p189
      %p334 = pneg %p186
      %p335 = pneg %p210
      %p336 = pneg %p207
      %p337 = pneg %p231
      %p338 = pneg %p228
      %p339 = pneg %p257
      %p340 = pneg %p254
      %p341 = scmp.lt.s32.totalorder %s21, 1
      %s342 = scalar_select %p341, %s21, 1
      %s343 = smul.addr %s342, 16
      %s344 = smul.addr %s343, 8
      %s345 = scalar_lea.vmem %s10, %s344
      %p346 = scmp.lt.s32.totalorder %s21, 1
      %s347 = scalar_select %p346, %s21, 1
      %s348 = scalar_lea.vmem %s0, %s347
      %p349 = scmp.lt.s32.totalorder %s21, 1
      %s350 = scalar_select %p349, %s21, 1
      %s351 = smul.addr %s350, 16
      %s352 = smul.addr %s351, 8
      %s353 = scalar_lea.vmem %s10, %s352
      %355 = vst [vmem:[#allocation2] sm:$0x77] 0
      %356 = vst [vmem:[#allocation2 + $0x8] sm:$0x7] 0
      %357 = vst [vmem:[#allocation3] sm:$0xff] 0
      %vm358 = vcmask 519168
      %359 = vst.msk [vmem:[#allocation3 + $0x8] sm:$0xf] %vm358, 0
      %360 = vst [vmem:[#allocation3 + $0xc] sm:$0x11] 0
      %vm361 = vcmask 516096
      %362 = vst.msk [vmem:[#allocation3 + $0x14] sm:$0x1] %vm361, 0
      %363 = vst [vmem:[#allocation4] sm:$0xff] 0
      %vm364 = vcmask 257024
      %365 = vst.msk [vmem:[#allocation4 + $0x8] sm:$0xf] %vm364, 0
      %366 = vst [vmem:[#allocation4 + $0xc] sm:$0xff] 0
      %367 = vst.msk [vmem:[#allocation4 + $0x14] sm:$0xf] %vm364, 0
      %368 = vst [vmem:[#allocation4 + $0x18] sm:$0x11] 0
      %vm369 = vcmask 253952
      %370 = vst.msk [vmem:[#allocation4 + $0x20] sm:$0x1] %vm369, 0
      %371 = vst [vmem:[#allocation5] sm:$0xff] 0
      %vm372 = vcmask 125952
      %373 = vst.msk [vmem:[#allocation5 + $0x8] sm:$0xf] %vm372, 0
      %374 = vst [vmem:[#allocation5 + $0xc] sm:$0xff] 0
      %375 = vst.msk [vmem:[#allocation5 + $0x14] sm:$0xf] %vm372, 0
      %376 = vst [vmem:[#allocation5 + $0x18] sm:$0xff] 0
      %377 = vst.msk [vmem:[#allocation5 + $0x20] sm:$0xf] %vm372, 0
      %378 = vst [vmem:[#allocation5 + $0x24] sm:$0xff] 0
      %379 = vst.msk [vmem:[#allocation5 + $0x2c] sm:$0xf] %vm372, 0
      %380 = vst [vmem:[#allocation5 + $0x30] sm:$0x11] 0
      %vm381 = vcmask 122880
      %382 = vst.msk [vmem:[#allocation5 + $0x38] sm:$0x1] %vm381, 0
      %v383 = vld [vmem:[%s348] sm:$0x1]
      %v384 = vld [vmem:[%s1] sm:$0xff]
      %v385 = vld [vmem:[%s1 + $0x8] sm:$0xff]
      %v386 = vld [vmem:[%s1 + $0x10] sm:$0xff]
      %v387 = vld [vmem:[%s1 + $0x18] sm:$0xff]
      %v388 = vld [vmem:[%s1 + $0x20] sm:$0xff]
      %v389 = vld [vmem:[%s1 + $0x28] sm:$0xff]
      %v390 = vld [vmem:[%s1 + $0x30] sm:$0xff]
      %v391 = vld [vmem:[%s1 + $0x38] sm:$0xff]
      %v392 = vld [vmem:[%s2] sm:$0xff]
      %v401 = vunpack.c.l.b16 %v384
      %v402 = vunpack.c.h.b16 %v384
      %v403 = vunpack.c.l.b16 %v385
      %v404 = vunpack.c.h.b16 %v385
      %v405 = vunpack.c.l.b16 %v386
      %v406 = vunpack.c.h.b16 %v386
      %v407 = vunpack.c.l.b16 %v387
      %v408 = vunpack.c.h.b16 %v387
      %v409 = vunpack.c.l.b16 %v388
      %v410 = vunpack.c.h.b16 %v388
      %v411 = vunpack.c.l.b16 %v389
      %v412 = vunpack.c.h.b16 %v389
      %v413 = vunpack.c.l.b16 %v390
      %v414 = vunpack.c.h.b16 %v390
      %v415 = vunpack.c.l.b16 %v391
      %v416 = vunpack.c.h.b16 %v391
      %v417 = vpack.c.b16 %v409, %v401
      %v418 = vpack.c.b16 %v410, %v402
      %v419 = vpack.c.b16 %v411, %v403
      %v420 = vpack.c.b16 %v412, %v404
      %v421 = vpack.c.b16 %v413, %v405
      %v422 = vpack.c.b16 %v414, %v406
      %v423 = vpack.c.b16 %v415, %v407
      %v424 = vpack.c.b16 %v416, %v408
      %v434 = vlaneseq
      %v435 = vshrl.u32 %v434, 7
      %v436 = vsub.s32 0, %v435
      %v437 = vrot.slane %v392, %v436
      %v438 = vlaneseq
      %v439 = vshrl.u32 %v438, 7
      %v440 = vsub.s32 1, %v439
      %v441 = vrot.slane %v392, %v440
      %v442 = vlaneseq
      %v443 = vshrl.u32 %v442, 7
      %v444 = vsub.s32 2, %v443
      %v445 = vrot.slane %v392, %v444
      %v446 = vlaneseq
      %v447 = vshrl.u32 %v446, 7
      %v448 = vsub.s32 3, %v447
      %v449 = vrot.slane %v392, %v448
      %v450 = vlaneseq
      %v451 = vshrl.u32 %v450, 7
      %v452 = vsub.s32 4, %v451
      %v453 = vrot.slane %v392, %v452
      %v454 = vlaneseq
      %v455 = vshrl.u32 %v454, 7
      %v456 = vsub.s32 5, %v455
      %v457 = vrot.slane %v392, %v456
      %v458 = vlaneseq
      %v459 = vshrl.u32 %v458, 7
      %v460 = vsub.s32 6, %v459
      %v461 = vrot.slane %v392, %v460
      %v462 = vlaneseq
      %v463 = vshrl.u32 %v462, 7
      %v464 = vsub.s32 7, %v463
      %v465 = vrot.slane %v392, %v464
      %vm474 = vcmask 130048
      %v476 = vsel %vm474, %v383, 0
      %478 = vmatprep.subr.bf16.mxu0 0
      %479 = vmatpush1.bf16.msra.mxu0 0
      %480 = vmatprep.subr.bf16.mxu0 0
      %481 = vmatpush1.bf16.msra.mxu0 0
      %482 = vmatprep.subr.bf16.mxu0 0
      %483 = vmatpush1.bf16.msra.mxu0 0
      %484 = vmatprep.subr.bf16.mxu0 0
      %485 = vmatpush1.bf16.msra.mxu0 0
      %486 = vmatprep.subr.bf16.mxu0 0
      %487 = vmatpush1.bf16.msra.mxu0 0
      %488 = vmatprep.subr.bf16.mxu0 0
      %489 = vmatpush1.bf16.msra.mxu0 0
      %490 = vmatprep.subr.bf16.mxu0 0
      %491 = vmatpush1.bf16.msra.mxu0 0
      %492 = vmatprep.subr.bf16.mxu0 %v418
      %493 = vmatpush1.bf16.msra.mxu0 %v417
      %494 = vmatprep.subr.bf16.mxu0 0
      %495 = vmatpush2.bf16.msra.mxu0 0
      %496 = vmatprep.subr.bf16.mxu0 0
      %497 = vmatpush2.bf16.msra.mxu0 0
      %498 = vmatprep.subr.bf16.mxu0 0
      %499 = vmatpush2.bf16.msra.mxu0 0
      %500 = vmatprep.subr.bf16.mxu0 0
      %501 = vmatpush2.bf16.msra.mxu0 0
      %502 = vmatprep.subr.bf16.mxu0 0
      %503 = vmatpush2.bf16.msra.mxu0 0
      %504 = vmatprep.subr.bf16.mxu0 0
      %505 = vmatpush2.bf16.msra.mxu0 0
      %506 = vmatprep.subr.bf16.mxu0 0
      %507 = vmatpush2.bf16.msra.mxu0 0
      %508 = vmatprep.subr.bf16.mxu0 0
      %509 = vmatpush2.bf16.msra.mxu0 0
      %510 = vmatprep.mubr.bf16.mxu0 0
      %511 = vmatmul.mubr.bf16.gmra.mxu0 %v476
      %v512 = vpop.f32.mrf.mxu0
      %v513 = vadd.f32 %v437, %v512
      %v514 = vpop.f32.mrf.mxu0
      %v515 = vadd.f32 %v441, %v514
      %v516 = vpop.f32.mrf.mxu0
      %v517 = vpop.f32.mrf.mxu0
      %518 = vdwg.mxu0
      %519 = vmatprep.subr.bf16.mxu0 0
      %520 = vmatpush1.bf16.msra.mxu0 0
      %521 = vmatprep.subr.bf16.mxu0 0
      %522 = vmatpush1.bf16.msra.mxu0 0
      %523 = vmatprep.subr.bf16.mxu0 0
      %524 = vmatpush1.bf16.msra.mxu0 0
      %525 = vmatprep.subr.bf16.mxu0 0
      %526 = vmatpush1.bf16.msra.mxu0 0
      %527 = vmatprep.subr.bf16.mxu0 0
      %528 = vmatpush1.bf16.msra.mxu0 0
      %529 = vmatprep.subr.bf16.mxu0 0
      %530 = vmatpush1.bf16.msra.mxu0 0
      %531 = vmatprep.subr.bf16.mxu0 0
      %532 = vmatpush1.bf16.msra.mxu0 0
      %533 = vmatprep.subr.bf16.mxu0 %v420
      %534 = vmatpush1.bf16.msra.mxu0 %v419
      %535 = vmatprep.subr.bf16.mxu0 0
      %536 = vmatpush2.bf16.msra.mxu0 0
      %537 = vmatprep.subr.bf16.mxu0 0
      %538 = vmatpush2.bf16.msra.mxu0 0
      %539 = vmatprep.subr.bf16.mxu0 0
      %540 = vmatpush2.bf16.msra.mxu0 0
      %541 = vmatprep.subr.bf16.mxu0 0
      %542 = vmatpush2.bf16.msra.mxu0 0
      %543 = vmatprep.subr.bf16.mxu0 0
      %544 = vmatpush2.bf16.msra.mxu0 0
      %545 = vmatprep.subr.bf16.mxu0 0
      %546 = vmatpush2.bf16.msra.mxu0 0
      %547 = vmatprep.subr.bf16.mxu0 0
      %548 = vmatpush2.bf16.msra.mxu0 0
      %549 = vmatprep.subr.bf16.mxu0 0
      %550 = vmatpush2.bf16.msra.mxu0 0
      %551 = vmatprep.mubr.bf16.mxu0 0
      %552 = vmatmul.mubr.bf16.gmra.mxu0 %v476
      %v553 = vpop.f32.mrf.mxu0
      %v554 = vadd.f32 %v445, %v553
      %v555 = vpop.f32.mrf.mxu0
      %v556 = vadd.f32 %v449, %v555
      %v557 = vpop.f32.mrf.mxu0
      %v558 = vpop.f32.mrf.mxu0
      %559 = vdwg.mxu0
      %560 = vmatprep.subr.bf16.mxu0 0
      %561 = vmatpush1.bf16.msra.mxu0 0
      %562 = vmatprep.subr.bf16.mxu0 0
      %563 = vmatpush1.bf16.msra.mxu0 0
      %564 = vmatprep.subr.bf16.mxu0 0
      %565 = vmatpush1.bf16.msra.mxu0 0
      %566 = vmatprep.subr.bf16.mxu0 0
      %567 = vmatpush1.bf16.msra.mxu0 0
      %568 = vmatprep.subr.bf16.mxu0 0
      %569 = vmatpush1.bf16.msra.mxu0 0
      %570 = vmatprep.subr.bf16.mxu0 0
      %571 = vmatpush1.bf16.msra.mxu0 0
      %572 = vmatprep.subr.bf16.mxu0 0
      %573 = vmatpush1.bf16.msra.mxu0 0
      %574 = vmatprep.subr.bf16.mxu0 %v422
      %575 = vmatpush1.bf16.msra.mxu0 %v421
      %576 = vmatprep.subr.bf16.mxu0 0
      %577 = vmatpush2.bf16.msra.mxu0 0
      %578 = vmatprep.subr.bf16.mxu0 0
      %579 = vmatpush2.bf16.msra.mxu0 0
      %580 = vmatprep.subr.bf16.mxu0 0
      %581 = vmatpush2.bf16.msra.mxu0 0
      %582 = vmatprep.subr.bf16.mxu0 0
      %583 = vmatpush2.bf16.msra.mxu0 0
      %584 = vmatprep.subr.bf16.mxu0 0
      %585 = vmatpush2.bf16.msra.mxu0 0
      %586 = vmatprep.subr.bf16.mxu0 0
      %587 = vmatpush2.bf16.msra.mxu0 0
      %588 = vmatprep.subr.bf16.mxu0 0
      %589 = vmatpush2.bf16.msra.mxu0 0
      %590 = vmatprep.subr.bf16.mxu0 0
      %591 = vmatpush2.bf16.msra.mxu0 0
      %592 = vmatprep.mubr.bf16.mxu0 0
      %593 = vmatmul.mubr.bf16.gmra.mxu0 %v476
      %v594 = vpop.f32.mrf.mxu0
      %v595 = vadd.f32 %v453, %v594
      %v596 = vpop.f32.mrf.mxu0
      %v597 = vadd.f32 %v457, %v596
      %v598 = vpop.f32.mrf.mxu0
      %v599 = vpop.f32.mrf.mxu0
      %600 = vdwg.mxu0
      %601 = vmatprep.subr.bf16.mxu0 0
      %602 = vmatpush1.bf16.msra.mxu0 0
      %603 = vmatprep.subr.bf16.mxu0 0
      %604 = vmatpush1.bf16.msra.mxu0 0
      %605 = vmatprep.subr.bf16.mxu0 0
      %606 = vmatpush1.bf16.msra.mxu0 0
      %607 = vmatprep.subr.bf16.mxu0 0
      %608 = vmatpush1.bf16.msra.mxu0 0
      %609 = vmatprep.subr.bf16.mxu0 0
      %610 = vmatpush1.bf16.msra.mxu0 0
      %611 = vmatprep.subr.bf16.mxu0 0
      %612 = vmatpush1.bf16.msra.mxu0 0
      %613 = vmatprep.subr.bf16.mxu0 0
      %614 = vmatpush1.bf16.msra.mxu0 0
      %615 = vmatprep.subr.bf16.mxu0 %v424
      %616 = vmatpush1.bf16.msra.mxu0 %v423
      %617 = vmatprep.subr.bf16.mxu0 0
      %618 = vmatpush2.bf16.msra.mxu0 0
      %619 = vmatprep.subr.bf16.mxu0 0
      %620 = vmatpush2.bf16.msra.mxu0 0
      %621 = vmatprep.subr.bf16.mxu0 0
      %622 = vmatpush2.bf16.msra.mxu0 0
      %623 = vmatprep.subr.bf16.mxu0 0
      %624 = vmatpush2.bf16.msra.mxu0 0
      %625 = vmatprep.subr.bf16.mxu0 0
      %626 = vmatpush2.bf16.msra.mxu0 0
      %627 = vmatprep.subr.bf16.mxu0 0
      %628 = vmatpush2.bf16.msra.mxu0 0
      %629 = vmatprep.subr.bf16.mxu0 0
      %630 = vmatpush2.bf16.msra.mxu0 0
      %631 = vmatprep.subr.bf16.mxu0 0
      %632 = vmatpush2.bf16.msra.mxu0 0
      %633 = vmatprep.mubr.bf16.mxu0 0
      %634 = vmatmul.mubr.bf16.gmra.mxu0 %v476
      %v635 = vpop.f32.mrf.mxu0
      %v636 = vadd.f32 %v461, %v635
      %v637 = vpop.f32.mrf.mxu0
      %v638 = vadd.f32 %v465, %v637
      %v639 = vpop.f32.mrf.mxu0
      %v640 = vpop.f32.mrf.mxu0
      %641 = vdwg.mxu0
      %v642 = vmax.f32 %v513, 0.0
      %v643 = vmax.f32 %v515, 0.0
      %v644 = vmax.f32 %v554, 0.0
      %v645 = vmax.f32 %v556, 0.0
      %v646 = vmax.f32 %v595, 0.0
      %v647 = vmax.f32 %v597, 0.0
      %v648 = vmax.f32 %v636, 0.0
      %v649 = vmax.f32 %v638, 0.0
      %v650 = vpack.c.bf16 %v642, %v642
      %v651 = vpack.c.bf16 %v643, %v643
      %v652 = vpack.c.bf16 %v644, %v644
      %v653 = vpack.c.bf16 %v645, %v645
      %v654 = vpack.c.bf16 %v646, %v646
      %v655 = vpack.c.bf16 %v647, %v647
      %v656 = vpack.c.bf16 %v648, %v648
      %v657 = vpack.c.bf16 %v649, %v649
      %v660 = vunpack.c.l.b16 %v650
      %v661 = vunpack.c.l.b16 %v651
      %v662 = vpack.c.b16 %v661, %v660
      %v664 = vshll.u32 %v662, 16
      %666 = vrot.lane.b32.xlu0 %v664, 64
      %v667 = vpop.permute.xlu0 %666
      %v668 = vrot.slane %v667, 4
      %vm669 = vcmask 523264
      %v670 = vsel %vm669, %v668, %v667
      %vm673 = vcmask 1040896
      %vm674 = vsmask.f32 7938
      %vm675 = vmand %vm673, %vm674
      %vm676 = vcmask 1044484
      %vm677 = vsmask.f32 7954
      %vm678 = vmand %vm676, %vm677
      %vm679 = vmor %vm678, %vm675
      %v680 = vld [vmem:[#allocation2] sm:$0x11]
      %v681 = vsel %vm679, %v670, %v680
      %682 = vst [vmem:[#allocation2] sm:$0x11] %v681
      %vm683 = vcmask 516096
      %vm684 = vmand %vm683, %vm674
      %v685 = vld [vmem:[#allocation2 + $0x8] sm:$0x1]
      %v686 = vsel %vm684, %v668, %v685
      %687 = vst [vmem:[#allocation2 + $0x8] sm:$0x1] %v686
      %v690 = vunpack.c.l.b16 %v652
      %v691 = vunpack.c.l.b16 %v653
      %v692 = vpack.c.b16 %v691, %v690
      %v693 = vrot.slane %v692, 7
      %694 = vrot.lane.b32.xlu0 %v693, 64
      %v695 = vpop.permute.xlu0 %694
      %v696 = vrot.slane %v695, 4
      %v697 = vsel %vm669, %v696, %v695
      %vm700 = vcmask 1041921
      %vm701 = vsmask.f32 1280
      %vm702 = vmand %vm700, %vm701
      %vm703 = vcmask 1045509
      %vm704 = vsmask.f32 5376
      %vm705 = vmand %vm703, %vm704
      %vm706 = vmor %vm705, %vm702
      %v707 = vld [vmem:[#allocation2] sm:$0x22]
      %v708 = vsel %vm706, %v697, %v707
      %709 = vst [vmem:[#allocation2] sm:$0x22] %v708
      %vm710 = vcmask 517121
      %vm711 = vmand %vm710, %vm701
      %v712 = vld [vmem:[#allocation2 + $0x8] sm:$0x2]
      %v713 = vsel %vm711, %v696, %v712
      %714 = vst [vmem:[#allocation2 + $0x8] sm:$0x2] %v713
      %v717 = vunpack.c.l.b16 %v654
      %v718 = vunpack.c.l.b16 %v655
      %v719 = vpack.c.b16 %v718, %v717
      %v721 = vshll.u32 %v719, 16
      %v723 = vrot.slane %v721, 7
      %724 = vrot.lane.b32.xlu0 %v723, 64
      %v725 = vpop.permute.xlu0 %724
      %v726 = vrot.slane %v725, 4
      %v727 = vsel %vm669, %v726, %v725
      %vm730 = vsmask.f32 7942
      %vm731 = vmand %vm700, %vm730
      %vm732 = vsmask.f32 7958
      %vm733 = vmand %vm703, %vm732
      %vm734 = vmor %vm733, %vm731
      %v735 = vld [vmem:[#allocation2] sm:$0x22]
      %v736 = vsel %vm734, %v727, %v735
      %737 = vst [vmem:[#allocation2] sm:$0x22] %v736
      %vm738 = vmand %vm710, %vm730
      %v739 = vld [vmem:[#allocation2 + $0x8] sm:$0x2]
      %v740 = vsel %vm738, %v726, %v739
      %741 = vst [vmem:[#allocation2 + $0x8] sm:$0x2] %v740
      %v744 = vunpack.c.l.b16 %v656
      %v745 = vunpack.c.l.b16 %v657
      %v746 = vpack.c.b16 %v745, %v744
      %v747 = vrot.slane %v746, 6
      %748 = vrot.lane.b32.xlu0 %v747, 64
      %v749 = vpop.permute.xlu0 %748
      %v750 = vrot.slane %v749, 4
      %v751 = vsel %vm669, %v750, %v749
      %vm754 = vcmask 1042946
      %vm755 = vsmask.f32 2304
      %vm756 = vmand %vm754, %vm755
      %vm757 = vcmask 1046534
      %vm758 = vsmask.f32 6400
      %vm759 = vmand %vm757, %vm758
      %vm760 = vmor %vm759, %vm756
      %v761 = vld [vmem:[#allocation2] sm:$0x44]
      %v762 = vsel %vm760, %v751, %v761
      %763 = vst [vmem:[#allocation2] sm:$0x44] %v762
      %vm764 = vcmask 518146
      %vm765 = vmand %vm764, %vm755
      %v766 = vld [vmem:[#allocation2 + $0x8] sm:$0x4]
      %v767 = vsel %vm765, %v750, %v766
      %768 = vst [vmem:[#allocation2 + $0x8] sm:$0x4] %v767
      %v769 = vld [vmem:[#allocation2] sm:$0x77]
      %v770 = vld [vmem:[#allocation2 + $0x8] sm:$0x7]
      %v771 = vld [vmem:[%s3] sm:$0xff]
      %v772 = vld [vmem:[%s3 + $0x8] sm:$0xff]
      %v773 = vld [vmem:[%s3 + $0x10] sm:$0xff]
      %v774 = vld [vmem:[%s3 + $0x18] sm:$0xff]
      %v775 = vld [vmem:[%s3 + $0x20] sm:$0xff]
      %v776 = vld [vmem:[%s3 + $0x28] sm:$0xff]
      %v777 = vld [vmem:[%s3 + $0x30] sm:$0xff]
      %v778 = vld [vmem:[%s3 + $0x38] sm:$0xff]
      %v779 = vld [vmem:[%s3 + $0x40] sm:$0xff]
      %v780 = vld [vmem:[%s3 + $0x48] sm:$0xff]
      %v781 = vld [vmem:[%s3 + $0x50] sm:$0xff]
      %v782 = vld [vmem:[%s3 + $0x58] sm:$0xff]
      %v783 = vld [vmem:[%s3 + $0x60] sm:$0xff]
      %v784 = vld [vmem:[%s3 + $0x68] sm:$0xff]
      %v785 = vld [vmem:[%s3 + $0x70] sm:$0xff]
      %v786 = vld [vmem:[%s3 + $0x78] sm:$0xff]
      %v787 = vld [vmem:[%s3 + $0x80] sm:$0xff]
      %v788 = vld [vmem:[%s3 + $0x88] sm:$0xff]
      %v789 = vld [vmem:[%s3 + $0x90] sm:$0xff]
      %v790 = vld [vmem:[%s3 + $0x98] sm:$0xff]
      %v791 = vld [vmem:[%s3 + $0xa0] sm:$0xff]
      %v792 = vld [vmem:[%s3 + $0xa8] sm:$0xff]
      %v793 = vld [vmem:[%s3 + $0xb0] sm:$0xff]
      %v794 = vld [vmem:[%s3 + $0xb8] sm:$0xff]
      %v795 = vld [vmem:[%s3 + $0xc0] sm:$0xff]
      %v796 = vld [vmem:[%s3 + $0xc8] sm:$0xff]
      %v797 = vld [vmem:[%s3 + $0xd0] sm:$0xff]
      %v798 = vld [vmem:[%s3 + $0xd8] sm:$0xff]
      %v799 = vld [vmem:[%s3 + $0xe0] sm:$0xff]
      %v800 = vld [vmem:[%s3 + $0xe8] sm:$0xff]
      %v801 = vld [vmem:[%s3 + $0xf0] sm:$0xff]
      %v802 = vld [vmem:[%s3 + $0xf8] sm:$0xff]
      %v803 = vld [vmem:[%s3 + $0x100] sm:$0xff]
      %v804 = vld [vmem:[%s3 + $0x108] sm:$0xff]
      %v805 = vld [vmem:[%s3 + $0x110] sm:$0xff]
      %v806 = vld [vmem:[%s3 + $0x118] sm:$0xff]
      %v807 = vld [vmem:[%s3 + $0x120] sm:$0xff]
      %v808 = vld [vmem:[%s3 + $0x128] sm:$0xff]
      %v809 = vld [vmem:[%s3 + $0x130] sm:$0xff]
      %v810 = vld [vmem:[%s3 + $0x138] sm:$0xff]
      %v811 = vld [vmem:[%s3 + $0x140] sm:$0xff]
      %v812 = vld [vmem:[%s3 + $0x148] sm:$0xff]
      %v813 = vld [vmem:[%s3 + $0x150] sm:$0xff]
      %v814 = vld [vmem:[%s3 + $0x158] sm:$0xff]
      %v815 = vld [vmem:[%s3 + $0x160] sm:$0xff]
      %v816 = vld [vmem:[%s3 + $0x168] sm:$0xff]
      %v817 = vld [vmem:[%s3 + $0x170] sm:$0xff]
      %v818 = vld [vmem:[%s3 + $0x178] sm:$0xff]
      %v819 = vld [vmem:[#allocation2] sm:$0x33]
      %v820 = vld [vmem:[#allocation2 + $0x8] sm:$0x3]
      %s821 = scalar_lea.vmem %s3, 384
      %v822 = vld [vmem:[%s821] sm:$0xff]
      %v823 = vld [vmem:[%s821 + $0x8] sm:$0xff]
      %v824 = vld [vmem:[%s821 + $0x10] sm:$0xff]
      %v825 = vld [vmem:[%s821 + $0x18] sm:$0xff]
      %v826 = vld [vmem:[%s821 + $0x20] sm:$0xff]
      %v827 = vld [vmem:[%s821 + $0x28] sm:$0xff]
      %v828 = vld [vmem:[%s821 + $0x30] sm:$0xff]
      %v829 = vld [vmem:[%s821 + $0x38] sm:$0xff]
      %v830 = vld [vmem:[%s821 + $0x40] sm:$0xff]
      %v831 = vld [vmem:[%s821 + $0x48] sm:$0xff]
      %v832 = vld [vmem:[%s821 + $0x50] sm:$0xff]
      %v833 = vld [vmem:[%s821 + $0x58] sm:$0xff]
      %v834 = vld [vmem:[%s821 + $0x60] sm:$0xff]
      %v835 = vld [vmem:[%s821 + $0x68] sm:$0xff]
      %v836 = vld [vmem:[%s821 + $0x70] sm:$0xff]
      %v837 = vld [vmem:[%s821 + $0x78] sm:$0xff]
      %v838 = vld [vmem:[%s821 + $0x80] sm:$0xff]
      %v839 = vld [vmem:[%s821 + $0x88] sm:$0xff]
      %v840 = vld [vmem:[%s821 + $0x90] sm:$0xff]
      %v841 = vld [vmem:[%s821 + $0x98] sm:$0xff]
      %v842 = vld [vmem:[%s821 + $0xa0] sm:$0xff]
      %v843 = vld [vmem:[%s821 + $0xa8] sm:$0xff]
      %v844 = vld [vmem:[%s821 + $0xb0] sm:$0xff]
      %v845 = vld [vmem:[%s821 + $0xb8] sm:$0xff]
      %v846 = vld [vmem:[%s821 + $0xc0] sm:$0xff]
      %v847 = vld [vmem:[%s821 + $0xc8] sm:$0xff]
      %v848 = vld [vmem:[%s821 + $0xd0] sm:$0xff]
      %v849 = vld [vmem:[%s821 + $0xd8] sm:$0xff]
      %v850 = vld [vmem:[%s821 + $0xe0] sm:$0xff]
      %v851 = vld [vmem:[%s821 + $0xe8] sm:$0xff]
      %v852 = vld [vmem:[%s821 + $0xf0] sm:$0xff]
      %v853 = vld [vmem:[%s821 + $0xf8] sm:$0xff]
      %v854 = vld [vmem:[%s821 + $0x100] sm:$0xff]
      %v855 = vld [vmem:[%s821 + $0x108] sm:$0xff]
      %v856 = vld [vmem:[%s821 + $0x110] sm:$0xff]
      %v857 = vld [vmem:[%s821 + $0x118] sm:$0xff]
      %v858 = vld [vmem:[%s821 + $0x120] sm:$0xff]
      %v859 = vld [vmem:[%s821 + $0x128] sm:$0xff]
      %v860 = vld [vmem:[%s821 + $0x130] sm:$0xff]
      %v861 = vld [vmem:[%s821 + $0x138] sm:$0xff]
      %v862 = vld [vmem:[%s821 + $0x140] sm:$0xff]
      %v863 = vld [vmem:[%s821 + $0x148] sm:$0xff]
      %v864 = vld [vmem:[%s821 + $0x150] sm:$0xff]
      %v865 = vld [vmem:[%s821 + $0x158] sm:$0xff]
      %v866 = vld [vmem:[%s821 + $0x160] sm:$0xff]
      %v867 = vld [vmem:[%s821 + $0x168] sm:$0xff]
      %v868 = vld [vmem:[%s821 + $0x170] sm:$0xff]
      %v869 = vld [vmem:[%s821 + $0x178] sm:$0xff]
      %v872 = vunpack.c.l.b16 %v819
      %v873 = vunpack.c.h.b16 %v819
      %v874 = vunpack.c.l.b16 %v820
      %v875 = vpack.c.b16 %v872, %v872
      %v876 = vpack.c.b16 %v873, %v873
      %v877 = vpack.c.b16 %v874, %v874
      %v929 = vunpack.c.l.b16 %v822
      %v930 = vunpack.c.h.b16 %v822
      %v931 = vunpack.c.l.b16 %v823
      %v932 = vunpack.c.h.b16 %v823
      %v933 = vunpack.c.l.b16 %v824
      %v934 = vunpack.c.h.b16 %v824
      %v935 = vunpack.c.l.b16 %v825
      %v936 = vunpack.c.h.b16 %v825
      %v937 = vunpack.c.l.b16 %v826
      %v938 = vunpack.c.h.b16 %v826
      %v939 = vunpack.c.l.b16 %v827
      %v940 = vunpack.c.h.b16 %v827
      %v941 = vunpack.c.l.b16 %v828
      %v942 = vunpack.c.h.b16 %v828
      %v943 = vunpack.c.l.b16 %v829
      %v944 = vunpack.c.h.b16 %v829
      %v945 = vunpack.c.l.b16 %v830
      %v946 = vunpack.c.h.b16 %v830
      %v947 = vunpack.c.l.b16 %v831
      %v948 = vunpack.c.h.b16 %v831
      %v949 = vunpack.c.l.b16 %v832
      %v950 = vunpack.c.h.b16 %v832
      %v951 = vunpack.c.l.b16 %v833
      %v952 = vunpack.c.h.b16 %v833
      %v953 = vunpack.c.l.b16 %v834
      %v954 = vunpack.c.h.b16 %v834
      %v955 = vunpack.c.l.b16 %v835
      %v956 = vunpack.c.h.b16 %v835
      %v957 = vunpack.c.l.b16 %v836
      %v958 = vunpack.c.h.b16 %v836
      %v959 = vunpack.c.l.b16 %v837
      %v960 = vunpack.c.h.b16 %v837
      %v961 = vunpack.c.l.b16 %v838
      %v962 = vunpack.c.h.b16 %v838
      %v963 = vunpack.c.l.b16 %v839
      %v964 = vunpack.c.h.b16 %v839
      %v965 = vunpack.c.l.b16 %v840
      %v966 = vunpack.c.h.b16 %v840
      %v967 = vunpack.c.l.b16 %v841
      %v968 = vunpack.c.h.b16 %v841
      %v969 = vunpack.c.l.b16 %v842
      %v970 = vunpack.c.h.b16 %v842
      %v971 = vunpack.c.l.b16 %v843
      %v972 = vunpack.c.h.b16 %v843
      %v973 = vunpack.c.l.b16 %v844
      %v974 = vunpack.c.h.b16 %v844
      %v975 = vunpack.c.l.b16 %v845
      %v976 = vunpack.c.h.b16 %v845
      %v977 = vunpack.c.l.b16 %v846
      %v978 = vunpack.c.h.b16 %v846
      %v979 = vunpack.c.l.b16 %v847
      %v980 = vunpack.c.h.b16 %v847
      %v981 = vunpack.c.l.b16 %v848
      %v982 = vunpack.c.h.b16 %v848
      %v983 = vunpack.c.l.b16 %v849
      %v984 = vunpack.c.h.b16 %v849
      %v985 = vunpack.c.l.b16 %v850
      %v986 = vunpack.c.h.b16 %v850
      %v987 = vunpack.c.l.b16 %v851
      %v988 = vunpack.c.h.b16 %v851
      %v989 = vunpack.c.l.b16 %v852
      %v990 = vunpack.c.h.b16 %v852
      %v991 = vunpack.c.l.b16 %v853
      %v992 = vunpack.c.h.b16 %v853
      %v993 = vunpack.c.l.b16 %v854
      %v994 = vunpack.c.h.b16 %v854
      %v995 = vunpack.c.l.b16 %v855
      %v996 = vunpack.c.h.b16 %v855
      %v997 = vunpack.c.l.b16 %v856
      %v998 = vunpack.c.h.b16 %v856
      %v999 = vunpack.c.l.b16 %v857
      %v1000 = vunpack.c.h.b16 %v857
      %v1001 = vunpack.c.l.b16 %v858
      %v1002 = vunpack.c.h.b16 %v858
      %v1003 = vunpack.c.l.b16 %v859
      %v1004 = vunpack.c.h.b16 %v859
      %v1005 = vunpack.c.l.b16 %v860
      %v1006 = vunpack.c.h.b16 %v860
      %v1007 = vunpack.c.l.b16 %v861
      %v1008 = vunpack.c.h.b16 %v861
      %v1009 = vunpack.c.l.b16 %v862
      %v1010 = vunpack.c.h.b16 %v862
      %v1011 = vunpack.c.l.b16 %v863
      %v1012 = vunpack.c.h.b16 %v863
      %v1013 = vunpack.c.l.b16 %v864
      %v1014 = vunpack.c.h.b16 %v864
      %v1015 = vunpack.c.l.b16 %v865
      %v1016 = vunpack.c.h.b16 %v865
      %v1017 = vunpack.c.l.b16 %v866
      %v1018 = vunpack.c.h.b16 %v866
      %v1019 = vunpack.c.l.b16 %v867
      %v1020 = vunpack.c.h.b16 %v867
      %v1021 = vunpack.c.l.b16 %v868
      %v1022 = vunpack.c.h.b16 %v868
      %v1023 = vunpack.c.l.b16 %v869
      %v1024 = vunpack.c.h.b16 %v869
      %v1025 = vpack.c.b16 %v931, %v929
      %v1026 = vpack.c.b16 %v932, %v930
      %v1027 = vpack.c.b16 %v935, %v933
      %v1028 = vpack.c.b16 %v936, %v934
      %v1029 = vpack.c.b16 %v939, %v937
      %v1030 = vpack.c.b16 %v940, %v938
      %v1031 = vpack.c.b16 %v943, %v941
      %v1032 = vpack.c.b16 %v944, %v942
      %v1033 = vpack.c.b16 %v947, %v945
      %v1034 = vpack.c.b16 %v948, %v946
      %v1035 = vpack.c.b16 %v951, %v949
      %v1036 = vpack.c.b16 %v952, %v950
      %v1037 = vpack.c.b16 %v955, %v953
      %v1038 = vpack.c.b16 %v956, %v954
      %v1039 = vpack.c.b16 %v959, %v957
      %v1040 = vpack.c.b16 %v960, %v958
      %v1041 = vpack.c.b16 %v963, %v961
      %v1042 = vpack.c.b16 %v964, %v962
      %v1043 = vpack.c.b16 %v967, %v965
      %v1044 = vpack.c.b16 %v968, %v966
      %v1045 = vpack.c.b16 %v971, %v969
      %v1046 = vpack.c.b16 %v972, %v970
      %v1047 = vpack.c.b16 %v975, %v973
      %v1048 = vpack.c.b16 %v976, %v974
      %v1049 = vpack.c.b16 %v979, %v977
      %v1050 = vpack.c.b16 %v980, %v978
      %v1051 = vpack.c.b16 %v983, %v981
      %v1052 = vpack.c.b16 %v984, %v982
      %v1053 = vpack.c.b16 %v987, %v985
      %v1054 = vpack.c.b16 %v988, %v986
      %v1055 = vpack.c.b16 %v991, %v989
      %v1056 = vpack.c.b16 %v992, %v990
      %v1057 = vpack.c.b16 %v995, %v993
      %v1058 = vpack.c.b16 %v996, %v994
      %v1059 = vpack.c.b16 %v999, %v997
      %v1060 = vpack.c.b16 %v1000, %v998
      %v1061 = vpack.c.b16 %v1003, %v1001
      %v1062 = vpack.c.b16 %v1004, %v1002
      %v1063 = vpack.c.b16 %v1007, %v1005
      %v1064 = vpack.c.b16 %v1008, %v1006
      %v1065 = vpack.c.b16 %v1011, %v1009
      %v1066 = vpack.c.b16 %v1012, %v1010
      %v1067 = vpack.c.b16 %v1015, %v1013
      %v1068 = vpack.c.b16 %v1016, %v1014
      %v1069 = vpack.c.b16 %v1019, %v1017
      %v1070 = vpack.c.b16 %v1020, %v1018
      %v1071 = vpack.c.b16 %v1023, %v1021
      %v1072 = vpack.c.b16 %v1024, %v1022
      %1121 = vmatprep.subr.bf16.mxu0 %v1040
      %1122 = vmatpush1.bf16.msra.mxu0 %v1039
      %1123 = vmatprep.subr.bf16.mxu0 %v1038
      %1124 = vmatpush1.bf16.msra.mxu0 %v1037
      %1125 = vmatprep.subr.bf16.mxu0 %v1036
      %1126 = vmatpush1.bf16.msra.mxu0 %v1035
      %1127 = vmatprep.subr.bf16.mxu0 %v1034
      %1128 = vmatpush1.bf16.msra.mxu0 %v1033
      %1129 = vmatprep.subr.bf16.mxu0 %v1032
      %1130 = vmatpush1.bf16.msra.mxu0 %v1031
      %1131 = vmatprep.subr.bf16.mxu0 %v1030
      %1132 = vmatpush1.bf16.msra.mxu0 %v1029
      %1133 = vmatprep.subr.bf16.mxu0 %v1028
      %1134 = vmatpush1.bf16.msra.mxu0 %v1027
      %1135 = vmatprep.subr.bf16.mxu0 %v1026
      %1136 = vmatpush1.bf16.msra.mxu0 %v1025
      %1137 = vmatprep.subr.bf16.mxu0 %v1056
      %1138 = vmatpush2.bf16.msra.mxu0 %v1055
      %1139 = vmatprep.subr.bf16.mxu0 %v1054
      %1140 = vmatpush2.bf16.msra.mxu0 %v1053
      %1141 = vmatprep.subr.bf16.mxu0 %v1052
      %1142 = vmatpush2.bf16.msra.mxu0 %v1051
      %1143 = vmatprep.subr.bf16.mxu0 %v1050
      %1144 = vmatpush2.bf16.msra.mxu0 %v1049
      %1145 = vmatprep.subr.bf16.mxu0 %v1048
      %1146 = vmatpush2.bf16.msra.mxu0 %v1047
      %1147 = vmatprep.subr.bf16.mxu0 %v1046
      %1148 = vmatpush2.bf16.msra.mxu0 %v1045
      %1149 = vmatprep.subr.bf16.mxu0 %v1044
      %1150 = vmatpush2.bf16.msra.mxu0 %v1043
      %1151 = vmatprep.subr.bf16.mxu0 %v1042
      %1152 = vmatpush2.bf16.msra.mxu0 %v1041
      %1153 = vmatprep.mubr.bf16.mxu0 %v876
      %1154 = vmatmul.mubr.bf16.gmra.mxu0 %v875
      %v1155 = vpop.f32.mrf.mxu0
      %v1156 = vadd.f32 0.0, %v1155
      %v1157 = vpop.f32.mrf.mxu0
      %v1158 = vadd.f32 0.0, %v1157
      %v1159 = vpop.f32.mrf.mxu0
      %v1160 = vpop.f32.mrf.mxu0
      %1161 = vdwg.mxu0
      %1162 = vmatprep.subr.bf16.mxu0 %v1072
      %1163 = vmatpush1.bf16.msra.mxu0 %v1071
      %1164 = vmatprep.subr.bf16.mxu0 %v1070
      %1165 = vmatpush1.bf16.msra.mxu0 %v1069
      %1166 = vmatprep.subr.bf16.mxu0 %v1068
      %1167 = vmatpush1.bf16.msra.mxu0 %v1067
      %1168 = vmatprep.subr.bf16.mxu0 %v1066
      %1169 = vmatpush1.bf16.msra.mxu0 %v1065
      %1170 = vmatprep.subr.bf16.mxu0 %v1064
      %1171 = vmatpush1.bf16.msra.mxu0 %v1063
      %1172 = vmatprep.subr.bf16.mxu0 %v1062
      %1173 = vmatpush1.bf16.msra.mxu0 %v1061
      %1174 = vmatprep.subr.bf16.mxu0 %v1060
      %1175 = vmatpush1.bf16.msra.mxu0 %v1059
      %1176 = vmatprep.subr.bf16.mxu0 %v1058
      %1177 = vmatpush1.bf16.msra.mxu0 %v1057
      %1178 = vmatprep.subr.bf16.mxu0 0
      %1179 = vmatpush2.bf16.msra.mxu0 0
      %1180 = vmatprep.subr.bf16.mxu0 0
      %1181 = vmatpush2.bf16.msra.mxu0 0
      %1182 = vmatprep.subr.bf16.mxu0 0
      %1183 = vmatpush2.bf16.msra.mxu0 0
      %1184 = vmatprep.subr.bf16.mxu0 0
      %1185 = vmatpush2.bf16.msra.mxu0 0
      %1186 = vmatprep.subr.bf16.mxu0 0
      %1187 = vmatpush2.bf16.msra.mxu0 0
      %1188 = vmatprep.subr.bf16.mxu0 0
      %1189 = vmatpush2.bf16.msra.mxu0 0
      %1190 = vmatprep.subr.bf16.mxu0 0
      %1191 = vmatpush2.bf16.msra.mxu0 0
      %1192 = vmatprep.subr.bf16.mxu0 0
      %1193 = vmatpush2.bf16.msra.mxu0 0
      %1194 = vmatprep.mubr.bf16.mxu0 0
      %1195 = vmatmul.mubr.bf16.gmra.mxu0 %v877
      %v1196 = vpop.f32.mrf.mxu0
      %v1197 = vadd.f32 %v1156, %v1196
      %v1198 = vpop.f32.mrf.mxu0
      %v1199 = vadd.f32 %v1158, %v1198
      %v1200 = vpop.f32.mrf.mxu0
      %v1201 = vpop.f32.mrf.mxu0
      %1202 = vdwg.mxu0
      %v1205 = vunpack.c.l.b16 %v769
      %v1206 = vunpack.c.h.b16 %v769
      %v1207 = vunpack.c.l.b16 %v770
      %v1208 = vpack.c.b16 %v1205, %v1205
      %v1209 = vpack.c.b16 %v1206, %v1206
      %v1210 = vpack.c.b16 %v1207, %v1207
      %v1212 = vshrl.u32 %v1208, 16
      %v1214 = vshll.u32 %v1208, 16
      %v1216 = vrot.slane %v1214, 1
      %v1217 = vor.u32 %v1212, %v1216
      %v1219 = vshrl.u32 %v1209, 16
      %v1221 = vshll.u32 %v1209, 16
      %v1223 = vrot.slane %v1221, 1
      %v1224 = vor.u32 %v1219, %v1223
      %v1226 = vshrl.u32 %v1210, 16
      %v1228 = vshll.u32 %v1210, 16
      %v1230 = vrot.slane %v1228, 1
      %v1231 = vor.u32 %v1226, %v1230
      %v1283 = vunpack.c.l.b16 %v771
      %v1284 = vunpack.c.h.b16 %v771
      %v1285 = vunpack.c.l.b16 %v772
      %v1286 = vunpack.c.h.b16 %v772
      %v1287 = vunpack.c.l.b16 %v773
      %v1288 = vunpack.c.h.b16 %v773
      %v1289 = vunpack.c.l.b16 %v774
      %v1290 = vunpack.c.h.b16 %v774
      %v1291 = vunpack.c.l.b16 %v775
      %v1292 = vunpack.c.h.b16 %v775
      %v1293 = vunpack.c.l.b16 %v776
      %v1294 = vunpack.c.h.b16 %v776
      %v1295 = vunpack.c.l.b16 %v777
      %v1296 = vunpack.c.h.b16 %v777
      %v1297 = vunpack.c.l.b16 %v778
      %v1298 = vunpack.c.h.b16 %v778
      %v1299 = vunpack.c.l.b16 %v779
      %v1300 = vunpack.c.h.b16 %v779
      %v1301 = vunpack.c.l.b16 %v780
      %v1302 = vunpack.c.h.b16 %v780
      %v1303 = vunpack.c.l.b16 %v781
      %v1304 = vunpack.c.h.b16 %v781
      %v1305 = vunpack.c.l.b16 %v782
      %v1306 = vunpack.c.h.b16 %v782
      %v1307 = vunpack.c.l.b16 %v783
      %v1308 = vunpack.c.h.b16 %v783
      %v1309 = vunpack.c.l.b16 %v784
      %v1310 = vunpack.c.h.b16 %v784
      %v1311 = vunpack.c.l.b16 %v785
      %v1312 = vunpack.c.h.b16 %v785
      %v1313 = vunpack.c.l.b16 %v786
      %v1314 = vunpack.c.h.b16 %v786
      %v1315 = vunpack.c.l.b16 %v787
      %v1316 = vunpack.c.h.b16 %v787
      %v1317 = vunpack.c.l.b16 %v788
      %v1318 = vunpack.c.h.b16 %v788
      %v1319 = vunpack.c.l.b16 %v789
      %v1320 = vunpack.c.h.b16 %v789
      %v1321 = vunpack.c.l.b16 %v790
      %v1322 = vunpack.c.h.b16 %v790
      %v1323 = vunpack.c.l.b16 %v791
      %v1324 = vunpack.c.h.b16 %v791
      %v1325 = vunpack.c.l.b16 %v792
      %v1326 = vunpack.c.h.b16 %v792
      %v1327 = vunpack.c.l.b16 %v793
      %v1328 = vunpack.c.h.b16 %v793
      %v1329 = vunpack.c.l.b16 %v794
      %v1330 = vunpack.c.h.b16 %v794
      %v1331 = vunpack.c.l.b16 %v795
      %v1332 = vunpack.c.h.b16 %v795
      %v1333 = vunpack.c.l.b16 %v796
      %v1334 = vunpack.c.h.b16 %v796
      %v1335 = vunpack.c.l.b16 %v797
      %v1336 = vunpack.c.h.b16 %v797
      %v1337 = vunpack.c.l.b16 %v798
      %v1338 = vunpack.c.h.b16 %v798
      %v1339 = vunpack.c.l.b16 %v799
      %v1340 = vunpack.c.h.b16 %v799
      %v1341 = vunpack.c.l.b16 %v800
      %v1342 = vunpack.c.h.b16 %v800
      %v1343 = vunpack.c.l.b16 %v801
      %v1344 = vunpack.c.h.b16 %v801
      %v1345 = vunpack.c.l.b16 %v802
      %v1346 = vunpack.c.h.b16 %v802
      %v1347 = vunpack.c.l.b16 %v803
      %v1348 = vunpack.c.h.b16 %v803
      %v1349 = vunpack.c.l.b16 %v804
      %v1350 = vunpack.c.h.b16 %v804
      %v1351 = vunpack.c.l.b16 %v805
      %v1352 = vunpack.c.h.b16 %v805
      %v1353 = vunpack.c.l.b16 %v806
      %v1354 = vunpack.c.h.b16 %v806
      %v1355 = vunpack.c.l.b16 %v807
      %v1356 = vunpack.c.h.b16 %v807
      %v1357 = vunpack.c.l.b16 %v808
      %v1358 = vunpack.c.h.b16 %v808
      %v1359 = vunpack.c.l.b16 %v809
      %v1360 = vunpack.c.h.b16 %v809
      %v1361 = vunpack.c.l.b16 %v810
      %v1362 = vunpack.c.h.b16 %v810
      %v1363 = vunpack.c.l.b16 %v811
      %v1364 = vunpack.c.h.b16 %v811
      %v1365 = vunpack.c.l.b16 %v812
      %v1366 = vunpack.c.h.b16 %v812
      %v1367 = vunpack.c.l.b16 %v813
      %v1368 = vunpack.c.h.b16 %v813
      %v1369 = vunpack.c.l.b16 %v814
      %v1370 = vunpack.c.h.b16 %v814
      %v1371 = vunpack.c.l.b16 %v815
      %v1372 = vunpack.c.h.b16 %v815
      %v1373 = vunpack.c.l.b16 %v816
      %v1374 = vunpack.c.h.b16 %v816
      %v1375 = vunpack.c.l.b16 %v817
      %v1376 = vunpack.c.h.b16 %v817
      %v1377 = vunpack.c.l.b16 %v818
      %v1378 = vunpack.c.h.b16 %v818
      %v1379 = vpack.c.b16 %v1285, %v1283
      %v1380 = vpack.c.b16 %v1286, %v1284
      %v1381 = vpack.c.b16 %v1289, %v1287
      %v1382 = vpack.c.b16 %v1290, %v1288
      %v1383 = vpack.c.b16 %v1293, %v1291
      %v1384 = vpack.c.b16 %v1294, %v1292
      %v1385 = vpack.c.b16 %v1297, %v1295
      %v1386 = vpack.c.b16 %v1298, %v1296
      %v1387 = vpack.c.b16 %v1301, %v1299
      %v1388 = vpack.c.b16 %v1302, %v1300
      %v1389 = vpack.c.b16 %v1305, %v1303
      %v1390 = vpack.c.b16 %v1306, %v1304
      %v1391 = vpack.c.b16 %v1309, %v1307
      %v1392 = vpack.c.b16 %v1310, %v1308
      %v1393 = vpack.c.b16 %v1313, %v1311
      %v1394 = vpack.c.b16 %v1314, %v1312
      %v1395 = vpack.c.b16 %v1317, %v1315
      %v1396 = vpack.c.b16 %v1318, %v1316
      %v1397 = vpack.c.b16 %v1321, %v1319
      %v1398 = vpack.c.b16 %v1322, %v1320
      %v1399 = vpack.c.b16 %v1325, %v1323
      %v1400 = vpack.c.b16 %v1326, %v1324
      %v1401 = vpack.c.b16 %v1329, %v1327
      %v1402 = vpack.c.b16 %v1330, %v1328
      %v1403 = vpack.c.b16 %v1333, %v1331
      %v1404 = vpack.c.b16 %v1334, %v1332
      %v1405 = vpack.c.b16 %v1337, %v1335
      %v1406 = vpack.c.b16 %v1338, %v1336
      %v1407 = vpack.c.b16 %v1341, %v1339
      %v1408 = vpack.c.b16 %v1342, %v1340
      %v1409 = vpack.c.b16 %v1345, %v1343
      %v1410 = vpack.c.b16 %v1346, %v1344
      %v1411 = vpack.c.b16 %v1349, %v1347
      %v1412 = vpack.c.b16 %v1350, %v1348
      %v1413 = vpack.c.b16 %v1353, %v1351
      %v1414 = vpack.c.b16 %v1354, %v1352
      %v1415 = vpack.c.b16 %v1357, %v1355
      %v1416 = vpack.c.b16 %v1358, %v1356
      %v1417 = vpack.c.b16 %v1361, %v1359
      %v1418 = vpack.c.b16 %v1362, %v1360
      %v1419 = vpack.c.b16 %v1365, %v1363
      %v1420 = vpack.c.b16 %v1366, %v1364
      %v1421 = vpack.c.b16 %v1369, %v1367
      %v1422 = vpack.c.b16 %v1370, %v1368
      %v1423 = vpack.c.b16 %v1373, %v1371
      %v1424 = vpack.c.b16 %v1374, %v1372
      %v1425 = vpack.c.b16 %v1377, %v1375
      %v1426 = vpack.c.b16 %v1378, %v1376
      %1475 = vmatprep.subr.bf16.mxu0 %v1394
      %1476 = vmatpush1.bf16.msra.mxu0 %v1393
      %1477 = vmatprep.subr.bf16.mxu0 %v1392
      %1478 = vmatpush1.bf16.msra.mxu0 %v1391
      %1479 = vmatprep.subr.bf16.mxu0 %v1390
      %1480 = vmatpush1.bf16.msra.mxu0 %v1389
      %1481 = vmatprep.subr.bf16.mxu0 %v1388
      %1482 = vmatpush1.bf16.msra.mxu0 %v1387
      %1483 = vmatprep.subr.bf16.mxu0 %v1386
      %1484 = vmatpush1.bf16.msra.mxu0 %v1385
      %1485 = vmatprep.subr.bf16.mxu0 %v1384
      %1486 = vmatpush1.bf16.msra.mxu0 %v1383
      %1487 = vmatprep.subr.bf16.mxu0 %v1382
      %1488 = vmatpush1.bf16.msra.mxu0 %v1381
      %1489 = vmatprep.subr.bf16.mxu0 %v1380
      %1490 = vmatpush1.bf16.msra.mxu0 %v1379
      %1491 = vmatprep.subr.bf16.mxu0 %v1410
      %1492 = vmatpush2.bf16.msra.mxu0 %v1409
      %1493 = vmatprep.subr.bf16.mxu0 %v1408
      %1494 = vmatpush2.bf16.msra.mxu0 %v1407
      %1495 = vmatprep.subr.bf16.mxu0 %v1406
      %1496 = vmatpush2.bf16.msra.mxu0 %v1405
      %1497 = vmatprep.subr.bf16.mxu0 %v1404
      %1498 = vmatpush2.bf16.msra.mxu0 %v1403
      %1499 = vmatprep.subr.bf16.mxu0 %v1402
      %1500 = vmatpush2.bf16.msra.mxu0 %v1401
      %1501 = vmatprep.subr.bf16.mxu0 %v1400
      %1502 = vmatpush2.bf16.msra.mxu0 %v1399
      %1503 = vmatprep.subr.bf16.mxu0 %v1398
      %1504 = vmatpush2.bf16.msra.mxu0 %v1397
      %1505 = vmatprep.subr.bf16.mxu0 %v1396
      %1506 = vmatpush2.bf16.msra.mxu0 %v1395
      %1507 = vmatprep.mubr.bf16.mxu0 %v1224
      %1508 = vmatmul.mubr.bf16.gmra.mxu0 %v1217
      %v1509 = vpop.f32.mrf.mxu0
      %v1510 = vadd.f32 %v1197, %v1509
      %v1511 = vpop.f32.mrf.mxu0
      %v1512 = vadd.f32 %v1199, %v1511
      %v1513 = vpop.f32.mrf.mxu0
      %v1514 = vpop.f32.mrf.mxu0
      %1515 = vdwg.mxu0
      %1516 = vmatprep.subr.bf16.mxu0 %v1426
      %1517 = vmatpush1.bf16.msra.mxu0 %v1425
      %1518 = vmatprep.subr.bf16.mxu0 %v1424
      %1519 = vmatpush1.bf16.msra.mxu0 %v1423
      %1520 = vmatprep.subr.bf16.mxu0 %v1422
      %1521 = vmatpush1.bf16.msra.mxu0 %v1421
      %1522 = vmatprep.subr.bf16.mxu0 %v1420
      %1523 = vmatpush1.bf16.msra.mxu0 %v1419
      %1524 = vmatprep.subr.bf16.mxu0 %v1418
      %1525 = vmatpush1.bf16.msra.mxu0 %v1417
      %1526 = vmatprep.subr.bf16.mxu0 %v1416
      %1527 = vmatpush1.bf16.msra.mxu0 %v1415
      %1528 = vmatprep.subr.bf16.mxu0 %v1414
      %1529 = vmatpush1.bf16.msra.mxu0 %v1413
      %1530 = vmatprep.subr.bf16.mxu0 %v1412
      %1531 = vmatpush1.bf16.msra.mxu0 %v1411
      %1532 = vmatprep.subr.bf16.mxu0 0
      %1533 = vmatpush2.bf16.msra.mxu0 0
      %1534 = vmatprep.subr.bf16.mxu0 0
      %1535 = vmatpush2.bf16.msra.mxu0 0
      %1536 = vmatprep.subr.bf16.mxu0 0
      %1537 = vmatpush2.bf16.msra.mxu0 0
      %1538 = vmatprep.subr.bf16.mxu0 0
      %1539 = vmatpush2.bf16.msra.mxu0 0
      %1540 = vmatprep.subr.bf16.mxu0 0
      %1541 = vmatpush2.bf16.msra.mxu0 0
      %1542 = vmatprep.subr.bf16.mxu0 0
      %1543 = vmatpush2.bf16.msra.mxu0 0
      %1544 = vmatprep.subr.bf16.mxu0 0
      %1545 = vmatpush2.bf16.msra.mxu0 0
      %1546 = vmatprep.subr.bf16.mxu0 0
      %1547 = vmatpush2.bf16.msra.mxu0 0
      %1548 = vmatprep.mubr.bf16.mxu0 0
      %1549 = vmatmul.mubr.bf16.gmra.mxu0 %v1231
      %v1550 = vpop.f32.mrf.mxu0
      %v1551 = vadd.f32 %v1510, %v1550
      %v1552 = vpop.f32.mrf.mxu0
      %v1553 = vadd.f32 %v1512, %v1552
      %v1554 = vpop.f32.mrf.mxu0
      %v1555 = vpop.f32.mrf.mxu0
      %1556 = vdwg.mxu0
      %v1557 = vld [vmem:[%s4] sm:$0x3]
      %v1559 = vlaneseq
      %v1560 = vshrl.u32 %v1559, 7
      %v1561 = vsub.s32 0, %v1560
      %v1562 = vrot.slane %v1557, %v1561
      %v1563 = vlaneseq
      %v1564 = vshrl.u32 %v1563, 7
      %v1565 = vsub.s32 1, %v1564
      %v1566 = vrot.slane %v1557, %v1565
      %v1569 = vadd.f32 %v1551, %v1562
      %v1570 = vadd.f32 %v1553, %v1566
      %v1571 = vmax.f32 %v1569, 0.0
      %v1572 = vmax.f32 %v1570, 0.0
      %v1573 = vpack.c.bf16 %v1571, %v1571
      %v1574 = vpack.c.bf16 %v1572, %v1572
      %v1577 = vunpack.c.l.b16 %v1573
      %v1578 = vunpack.c.l.b16 %v1574
      %v1579 = vpack.c.b16 %v1578, %v1577
      %v1581 = vshll.u32 %v1579, 16
      %1583 = vrot.lane.b32.xlu0 %v1581, 32
      %v1584 = vpop.permute.xlu0 %1583
      %v1585 = vrot.slane %v1584, 4
      %vm1586 = vcmask 261120
      %v1587 = vsel %vm1586, %v1585, %v1584
      %vm1590 = vcmask 1040640
      %vm1591 = vmand %vm1590, %vm674
      %vm1592 = vmor %vm678, %vm1591
      %v1593 = vld [vmem:[#allocation3] sm:$0x11]
      %v1594 = vsel %vm1592, %v1587, %v1593
      %1595 = vst [vmem:[#allocation3] sm:$0x11] %v1594
      %vm1596 = vcmask 253952
      %vm1597 = vmand %vm1596, %vm674
      %v1598 = vld [vmem:[#allocation3 + $0x8] sm:$0x1]
      %v1599 = vsel %vm1597, %v1585, %v1598
      %1600 = vst [vmem:[#allocation3 + $0x8] sm:$0x1] %v1599
      %v1601 = vrot.slane %v1579, 7
      %1602 = vrot.lane.b32.xlu0 %v1601, 32
      %v1603 = vpop.permute.xlu0 %1602
      %v1604 = vrot.slane %v1603, 4
      %v1605 = vsel %vm1586, %v1604, %v1603
      %vm1608 = vcmask 1041665
      %vm1609 = vmand %vm1608, %vm730
      %vm1610 = vmor %vm733, %vm1609
      %v1611 = vld [vmem:[#allocation3] sm:$0x22]
      %v1612 = vsel %vm1610, %v1605, %v1611
      %1613 = vst [vmem:[#allocation3] sm:$0x22] %v1612
      %vm1614 = vcmask 254977
      %vm1615 = vmand %vm1614, %vm730
      %v1616 = vld [vmem:[#allocation3 + $0x8] sm:$0x2]
      %v1617 = vsel %vm1615, %v1604, %v1616
      %1618 = vst [vmem:[#allocation3 + $0x8] sm:$0x2] %v1617
      %v1619 = vrot.slane %v1581, 7
      %1620 = vrot.lane.b32.xlu0 %v1619, 32
      %v1621 = vpop.permute.xlu0 %1620
      %v1622 = vrot.slane %v1621, 4
      %v1623 = vsel %vm1586, %v1622, %v1621
      %vm1626 = vcmask 1042690
      %vm1627 = vsmask.f32 7946
      %vm1628 = vmand %vm1626, %vm1627
      %vm1629 = vsmask.f32 7962
      %vm1630 = vmand %vm757, %vm1629
      %vm1631 = vmor %vm1630, %vm1628
      %v1632 = vld [vmem:[#allocation3] sm:$0x44]
      %v1633 = vsel %vm1631, %v1623, %v1632
      %1634 = vst [vmem:[#allocation3] sm:$0x44] %v1633
      %vm1635 = vcmask 256002
      %vm1636 = vmand %vm1635, %vm1627
      %v1637 = vld [vmem:[#allocation3 + $0x8] sm:$0x4]
      %v1638 = vsel %vm1636, %v1622, %v1637
      %1639 = vst [vmem:[#allocation3 + $0x8] sm:$0x4] %v1638
      %v1640 = vrot.slane %v1579, 6
      %1641 = vrot.lane.b32.xlu0 %v1640, 32
      %v1642 = vpop.permute.xlu0 %1641
      %v1643 = vrot.slane %v1642, 4
      %v1644 = vsel %vm1586, %v1643, %v1642
      %vm1647 = vcmask 1043715
      %vm1648 = vsmask.f32 7950
      %vm1649 = vmand %vm1647, %vm1648
      %vm1650 = vcmask 1047559
      %vm1651 = vsmask.f32 7966
      %vm1652 = vmand %vm1650, %vm1651
      %vm1653 = vmor %vm1652, %vm1649
      %v1654 = vld [vmem:[#allocation3] sm:$0x88]
      %v1655 = vsel %vm1653, %v1644, %v1654
      %1656 = vst [vmem:[#allocation3] sm:$0x88] %v1655
      %vm1657 = vcmask 257027
      %vm1658 = vmand %vm1657, %vm1648
      %v1659 = vld [vmem:[#allocation3 + $0x8] sm:$0x8]
      %v1660 = vsel %vm1658, %v1643, %v1659
      %1661 = vst [vmem:[#allocation3 + $0x8] sm:$0x8] %v1660
      %v1662 = vld [vmem:[#allocation2] sm:$0x77]
      %v1663 = vld [vmem:[#allocation2 + $0x8] sm:$0x7]
      %s1664 = scalar_lea.vmem %s3, 768
      %v1665 = vld [vmem:[%s1664] sm:$0xff]
      %v1666 = vld [vmem:[%s1664 + $0x8] sm:$0xff]
      %v1667 = vld [vmem:[%s1664 + $0x10] sm:$0xff]
      %v1668 = vld [vmem:[%s1664 + $0x18] sm:$0xff]
      %v1669 = vld [vmem:[%s1664 + $0x20] sm:$0xff]
      %v1670 = vld [vmem:[%s1664 + $0x28] sm:$0xff]
      %v1671 = vld [vmem:[%s1664 + $0x30] sm:$0xff]
      %v1672 = vld [vmem:[%s1664 + $0x38] sm:$0xff]
      %v1673 = vld [vmem:[%s1664 + $0x40] sm:$0xff]
      %v1674 = vld [vmem:[%s1664 + $0x48] sm:$0xff]
      %v1675 = vld [vmem:[%s1664 + $0x50] sm:$0xff]
      %v1676 = vld [vmem:[%s1664 + $0x58] sm:$0xff]
      %v1677 = vld [vmem:[%s1664 + $0x60] sm:$0xff]
      %v1678 = vld [vmem:[%s1664 + $0x68] sm:$0xff]
      %v1679 = vld [vmem:[%s1664 + $0x70] sm:$0xff]
      %v1680 = vld [vmem:[%s1664 + $0x78] sm:$0xff]
      %v1681 = vld [vmem:[%s1664 + $0x80] sm:$0xff]
      %v1682 = vld [vmem:[%s1664 + $0x88] sm:$0xff]
      %v1683 = vld [vmem:[%s1664 + $0x90] sm:$0xff]
      %v1684 = vld [vmem:[%s1664 + $0x98] sm:$0xff]
      %v1685 = vld [vmem:[%s1664 + $0xa0] sm:$0xff]
      %v1686 = vld [vmem:[%s1664 + $0xa8] sm:$0xff]
      %v1687 = vld [vmem:[%s1664 + $0xb0] sm:$0xff]
      %v1688 = vld [vmem:[%s1664 + $0xb8] sm:$0xff]
      %v1689 = vld [vmem:[%s1664 + $0xc0] sm:$0xff]
      %v1690 = vld [vmem:[%s1664 + $0xc8] sm:$0xff]
      %v1691 = vld [vmem:[%s1664 + $0xd0] sm:$0xff]
      %v1692 = vld [vmem:[%s1664 + $0xd8] sm:$0xff]
      %v1693 = vld [vmem:[%s1664 + $0xe0] sm:$0xff]
      %v1694 = vld [vmem:[%s1664 + $0xe8] sm:$0xff]
      %v1695 = vld [vmem:[%s1664 + $0xf0] sm:$0xff]
      %v1696 = vld [vmem:[%s1664 + $0xf8] sm:$0xff]
      %v1697 = vld [vmem:[%s1664 + $0x100] sm:$0xff]
      %v1698 = vld [vmem:[%s1664 + $0x108] sm:$0xff]
      %v1699 = vld [vmem:[%s1664 + $0x110] sm:$0xff]
      %v1700 = vld [vmem:[%s1664 + $0x118] sm:$0xff]
      %v1701 = vld [vmem:[%s1664 + $0x120] sm:$0xff]
      %v1702 = vld [vmem:[%s1664 + $0x128] sm:$0xff]
      %v1703 = vld [vmem:[%s1664 + $0x130] sm:$0xff]
      %v1704 = vld [vmem:[%s1664 + $0x138] sm:$0xff]
      %v1705 = vld [vmem:[%s1664 + $0x140] sm:$0xff]
      %v1706 = vld [vmem:[%s1664 + $0x148] sm:$0xff]
      %v1707 = vld [vmem:[%s1664 + $0x150] sm:$0xff]
      %v1708 = vld [vmem:[%s1664 + $0x158] sm:$0xff]
      %v1709 = vld [vmem:[%s1664 + $0x160] sm:$0xff]
      %v1710 = vld [vmem:[%s1664 + $0x168] sm:$0xff]
      %v1711 = vld [vmem:[%s1664 + $0x170] sm:$0xff]
      %v1712 = vld [vmem:[%s1664 + $0x178] sm:$0xff]
      %v1713 = vld [vmem:[#allocation2] sm:$0x66]
      %v1714 = vld [vmem:[#allocation2 + $0x8] sm:$0x6]
      %s1715 = scalar_lea.vmem %s3, 1152
      %v1716 = vld [vmem:[%s1715] sm:$0xff]
      %v1717 = vld [vmem:[%s1715 + $0x8] sm:$0xff]
      %v1718 = vld [vmem:[%s1715 + $0x10] sm:$0xff]
      %v1719 = vld [vmem:[%s1715 + $0x18] sm:$0xff]
      %v1720 = vld [vmem:[%s1715 + $0x20] sm:$0xff]
      %v1721 = vld [vmem:[%s1715 + $0x28] sm:$0xff]
      %v1722 = vld [vmem:[%s1715 + $0x30] sm:$0xff]
      %v1723 = vld [vmem:[%s1715 + $0x38] sm:$0xff]
      %v1724 = vld [vmem:[%s1715 + $0x40] sm:$0xff]
      %v1725 = vld [vmem:[%s1715 + $0x48] sm:$0xff]
      %v1726 = vld [vmem:[%s1715 + $0x50] sm:$0xff]
      %v1727 = vld [vmem:[%s1715 + $0x58] sm:$0xff]
      %v1728 = vld [vmem:[%s1715 + $0x60] sm:$0xff]
      %v1729 = vld [vmem:[%s1715 + $0x68] sm:$0xff]
      %v1730 = vld [vmem:[%s1715 + $0x70] sm:$0xff]
      %v1731 = vld [vmem:[%s1715 + $0x78] sm:$0xff]
      %v1732 = vld [vmem:[%s1715 + $0x80] sm:$0xff]
      %v1733 = vld [vmem:[%s1715 + $0x88] sm:$0xff]
      %v1734 = vld [vmem:[%s1715 + $0x90] sm:$0xff]
      %v1735 = vld [vmem:[%s1715 + $0x98] sm:$0xff]
      %v1736 = vld [vmem:[%s1715 + $0xa0] sm:$0xff]
      %v1737 = vld [vmem:[%s1715 + $0xa8] sm:$0xff]
      %v1738 = vld [vmem:[%s1715 + $0xb0] sm:$0xff]
      %v1739 = vld [vmem:[%s1715 + $0xb8] sm:$0xff]
      %v1740 = vld [vmem:[%s1715 + $0xc0] sm:$0xff]
      %v1741 = vld [vmem:[%s1715 + $0xc8] sm:$0xff]
      %v1742 = vld [vmem:[%s1715 + $0xd0] sm:$0xff]
      %v1743 = vld [vmem:[%s1715 + $0xd8] sm:$0xff]
      %v1744 = vld [vmem:[%s1715 + $0xe0] sm:$0xff]
      %v1745 = vld [vmem:[%s1715 + $0xe8] sm:$0xff]
      %v1746 = vld [vmem:[%s1715 + $0xf0] sm:$0xff]
      %v1747 = vld [vmem:[%s1715 + $0xf8] sm:$0xff]
      %v1748 = vld [vmem:[%s1715 + $0x100] sm:$0xff]
      %v1749 = vld [vmem:[%s1715 + $0x108] sm:$0xff]
      %v1750 = vld [vmem:[%s1715 + $0x110] sm:$0xff]
      %v1751 = vld [vmem:[%s1715 + $0x118] sm:$0xff]
      %v1752 = vld [vmem:[%s1715 + $0x120] sm:$0xff]
      %v1753 = vld [vmem:[%s1715 + $0x128] sm:$0xff]
      %v1754 = vld [vmem:[%s1715 + $0x130] sm:$0xff]
      %v1755 = vld [vmem:[%s1715 + $0x138] sm:$0xff]
      %v1756 = vld [vmem:[%s1715 + $0x140] sm:$0xff]
      %v1757 = vld [vmem:[%s1715 + $0x148] sm:$0xff]
      %v1758 = vld [vmem:[%s1715 + $0x150] sm:$0xff]
      %v1759 = vld [vmem:[%s1715 + $0x158] sm:$0xff]
      %v1760 = vld [vmem:[%s1715 + $0x160] sm:$0xff]
      %v1761 = vld [vmem:[%s1715 + $0x168] sm:$0xff]
      %v1762 = vld [vmem:[%s1715 + $0x170] sm:$0xff]
      %v1763 = vld [vmem:[%s1715 + $0x178] sm:$0xff]
      %v1766 = vunpack.c.l.b16 %v1713
      %v1767 = vunpack.c.h.b16 %v1713
      %v1768 = vunpack.c.l.b16 %v1714
      %v1769 = vpack.c.b16 %v1766, %v1766
      %v1770 = vpack.c.b16 %v1767, %v1767
      %v1771 = vpack.c.b16 %v1768, %v1768
      %v1772 = vrot.slane %v1769, 1
      %v1773 = vrot.slane %v1770, 1
      %v1774 = vrot.slane %v1771, 1
      %v1826 = vunpack.c.l.b16 %v1716
      %v1827 = vunpack.c.h.b16 %v1716
      %v1828 = vunpack.c.l.b16 %v1717
      %v1829 = vunpack.c.h.b16 %v1717
      %v1830 = vunpack.c.l.b16 %v1718
      %v1831 = vunpack.c.h.b16 %v1718
      %v1832 = vunpack.c.l.b16 %v1719
      %v1833 = vunpack.c.h.b16 %v1719
      %v1834 = vunpack.c.l.b16 %v1720
      %v1835 = vunpack.c.h.b16 %v1720
      %v1836 = vunpack.c.l.b16 %v1721
      %v1837 = vunpack.c.h.b16 %v1721
      %v1838 = vunpack.c.l.b16 %v1722
      %v1839 = vunpack.c.h.b16 %v1722
      %v1840 = vunpack.c.l.b16 %v1723
      %v1841 = vunpack.c.h.b16 %v1723
      %v1842 = vunpack.c.l.b16 %v1724
      %v1843 = vunpack.c.h.b16 %v1724
      %v1844 = vunpack.c.l.b16 %v1725
      %v1845 = vunpack.c.h.b16 %v1725
      %v1846 = vunpack.c.l.b16 %v1726
      %v1847 = vunpack.c.h.b16 %v1726
      %v1848 = vunpack.c.l.b16 %v1727
      %v1849 = vunpack.c.h.b16 %v1727
      %v1850 = vunpack.c.l.b16 %v1728
      %v1851 = vunpack.c.h.b16 %v1728
      %v1852 = vunpack.c.l.b16 %v1729
      %v1853 = vunpack.c.h.b16 %v1729
      %v1854 = vunpack.c.l.b16 %v1730
      %v1855 = vunpack.c.h.b16 %v1730
      %v1856 = vunpack.c.l.b16 %v1731
      %v1857 = vunpack.c.h.b16 %v1731
      %v1858 = vunpack.c.l.b16 %v1732
      %v1859 = vunpack.c.h.b16 %v1732
      %v1860 = vunpack.c.l.b16 %v1733
      %v1861 = vunpack.c.h.b16 %v1733
      %v1862 = vunpack.c.l.b16 %v1734
      %v1863 = vunpack.c.h.b16 %v1734
      %v1864 = vunpack.c.l.b16 %v1735
      %v1865 = vunpack.c.h.b16 %v1735
      %v1866 = vunpack.c.l.b16 %v1736
      %v1867 = vunpack.c.h.b16 %v1736
      %v1868 = vunpack.c.l.b16 %v1737
      %v1869 = vunpack.c.h.b16 %v1737
      %v1870 = vunpack.c.l.b16 %v1738
      %v1871 = vunpack.c.h.b16 %v1738
      %v1872 = vunpack.c.l.b16 %v1739
      %v1873 = vunpack.c.h.b16 %v1739
      %v1874 = vunpack.c.l.b16 %v1740
      %v1875 = vunpack.c.h.b16 %v1740
      %v1876 = vunpack.c.l.b16 %v1741
      %v1877 = vunpack.c.h.b16 %v1741
      %v1878 = vunpack.c.l.b16 %v1742
      %v1879 = vunpack.c.h.b16 %v1742
      %v1880 = vunpack.c.l.b16 %v1743
      %v1881 = vunpack.c.h.b16 %v1743
      %v1882 = vunpack.c.l.b16 %v1744
      %v1883 = vunpack.c.h.b16 %v1744
      %v1884 = vunpack.c.l.b16 %v1745
      %v1885 = vunpack.c.h.b16 %v1745
      %v1886 = vunpack.c.l.b16 %v1746
      %v1887 = vunpack.c.h.b16 %v1746
      %v1888 = vunpack.c.l.b16 %v1747
      %v1889 = vunpack.c.h.b16 %v1747
      %v1890 = vunpack.c.l.b16 %v1748
      %v1891 = vunpack.c.h.b16 %v1748
      %v1892 = vunpack.c.l.b16 %v1749
      %v1893 = vunpack.c.h.b16 %v1749
      %v1894 = vunpack.c.l.b16 %v1750
      %v1895 = vunpack.c.h.b16 %v1750
      %v1896 = vunpack.c.l.b16 %v1751
      %v1897 = vunpack.c.h.b16 %v1751
      %v1898 = vunpack.c.l.b16 %v1752
      %v1899 = vunpack.c.h.b16 %v1752
      %v1900 = vunpack.c.l.b16 %v1753
      %v1901 = vunpack.c.h.b16 %v1753
      %v1902 = vunpack.c.l.b16 %v1754
      %v1903 = vunpack.c.h.b16 %v1754
      %v1904 = vunpack.c.l.b16 %v1755
      %v1905 = vunpack.c.h.b16 %v1755
      %v1906 = vunpack.c.l.b16 %v1756
      %v1907 = vunpack.c.h.b16 %v1756
      %v1908 = vunpack.c.l.b16 %v1757
      %v1909 = vunpack.c.h.b16 %v1757
      %v1910 = vunpack.c.l.b16 %v1758
      %v1911 = vunpack.c.h.b16 %v1758
      %v1912 = vunpack.c.l.b16 %v1759
      %v1913 = vunpack.c.h.b16 %v1759
      %v1914 = vunpack.c.l.b16 %v1760
      %v1915 = vunpack.c.h.b16 %v1760
      %v1916 = vunpack.c.l.b16 %v1761
      %v1917 = vunpack.c.h.b16 %v1761
      %v1918 = vunpack.c.l.b16 %v1762
      %v1919 = vunpack.c.h.b16 %v1762
      %v1920 = vunpack.c.l.b16 %v1763
      %v1921 = vunpack.c.h.b16 %v1763
      %v1922 = vpack.c.b16 %v1828, %v1826
      %v1923 = vpack.c.b16 %v1829, %v1827
      %v1924 = vpack.c.b16 %v1832, %v1830
      %v1925 = vpack.c.b16 %v1833, %v1831
      %v1926 = vpack.c.b16 %v1836, %v1834
      %v1927 = vpack.c.b16 %v1837, %v1835
      %v1928 = vpack.c.b16 %v1840, %v1838
      %v1929 = vpack.c.b16 %v1841, %v1839
      %v1930 = vpack.c.b16 %v1844, %v1842
      %v1931 = vpack.c.b16 %v1845, %v1843
      %v1932 = vpack.c.b16 %v1848, %v1846
      %v1933 = vpack.c.b16 %v1849, %v1847
      %v1934 = vpack.c.b16 %v1852, %v1850
      %v1935 = vpack.c.b16 %v1853, %v1851
      %v1936 = vpack.c.b16 %v1856, %v1854
      %v1937 = vpack.c.b16 %v1857, %v1855
      %v1938 = vpack.c.b16 %v1860, %v1858
      %v1939 = vpack.c.b16 %v1861, %v1859
      %v1940 = vpack.c.b16 %v1864, %v1862
      %v1941 = vpack.c.b16 %v1865, %v1863
      %v1942 = vpack.c.b16 %v1868, %v1866
      %v1943 = vpack.c.b16 %v1869, %v1867
      %v1944 = vpack.c.b16 %v1872, %v1870
      %v1945 = vpack.c.b16 %v1873, %v1871
      %v1946 = vpack.c.b16 %v1876, %v1874
      %v1947 = vpack.c.b16 %v1877, %v1875
      %v1948 = vpack.c.b16 %v1880, %v1878
      %v1949 = vpack.c.b16 %v1881, %v1879
      %v1950 = vpack.c.b16 %v1884, %v1882
      %v1951 = vpack.c.b16 %v1885, %v1883
      %v1952 = vpack.c.b16 %v1888, %v1886
      %v1953 = vpack.c.b16 %v1889, %v1887
      %v1954 = vpack.c.b16 %v1892, %v1890
      %v1955 = vpack.c.b16 %v1893, %v1891
      %v1956 = vpack.c.b16 %v1896, %v1894
      %v1957 = vpack.c.b16 %v1897, %v1895
      %v1958 = vpack.c.b16 %v1900, %v1898
      %v1959 = vpack.c.b16 %v1901, %v1899
      %v1960 = vpack.c.b16 %v1904, %v1902
      %v1961 = vpack.c.b16 %v1905, %v1903
      %v1962 = vpack.c.b16 %v1908, %v1906
      %v1963 = vpack.c.b16 %v1909, %v1907
      %v1964 = vpack.c.b16 %v1912, %v1910
      %v1965 = vpack.c.b16 %v1913, %v1911
      %v1966 = vpack.c.b16 %v1916, %v1914
      %v1967 = vpack.c.b16 %v1917, %v1915
      %v1968 = vpack.c.b16 %v1920, %v1918
      %v1969 = vpack.c.b16 %v1921, %v1919
      %2018 = vmatprep.subr.bf16.mxu0 %v1937
      %2019 = vmatpush1.bf16.msra.mxu0 %v1936
      %2020 = vmatprep.subr.bf16.mxu0 %v1935
      %2021 = vmatpush1.bf16.msra.mxu0 %v1934
      %2022 = vmatprep.subr.bf16.mxu0 %v1933
      %2023 = vmatpush1.bf16.msra.mxu0 %v1932
      %2024 = vmatprep.subr.bf16.mxu0 %v1931
      %2025 = vmatpush1.bf16.msra.mxu0 %v1930
      %2026 = vmatprep.subr.bf16.mxu0 %v1929
      %2027 = vmatpush1.bf16.msra.mxu0 %v1928
      %2028 = vmatprep.subr.bf16.mxu0 %v1927
      %2029 = vmatpush1.bf16.msra.mxu0 %v1926
      %2030 = vmatprep.subr.bf16.mxu0 %v1925
      %2031 = vmatpush1.bf16.msra.mxu0 %v1924
      %2032 = vmatprep.subr.bf16.mxu0 %v1923
      %2033 = vmatpush1.bf16.msra.mxu0 %v1922
      %2034 = vmatprep.subr.bf16.mxu0 %v1953
      %2035 = vmatpush2.bf16.msra.mxu0 %v1952
      %2036 = vmatprep.subr.bf16.mxu0 %v1951
      %2037 = vmatpush2.bf16.msra.mxu0 %v1950
      %2038 = vmatprep.subr.bf16.mxu0 %v1949
      %2039 = vmatpush2.bf16.msra.mxu0 %v1948
      %2040 = vmatprep.subr.bf16.mxu0 %v1947
      %2041 = vmatpush2.bf16.msra.mxu0 %v1946
      %2042 = vmatprep.subr.bf16.mxu0 %v1945
      %2043 = vmatpush2.bf16.msra.mxu0 %v1944
      %2044 = vmatprep.subr.bf16.mxu0 %v1943
      %2045 = vmatpush2.bf16.msra.mxu0 %v1942
      %2046 = vmatprep.subr.bf16.mxu0 %v1941
      %2047 = vmatpush2.bf16.msra.mxu0 %v1940
      %2048 = vmatprep.subr.bf16.mxu0 %v1939
      %2049 = vmatpush2.bf16.msra.mxu0 %v1938
      %2050 = vmatprep.mubr.bf16.mxu0 %v1773
      %2051 = vmatmul.mubr.bf16.gmra.mxu0 %v1772
      %v2052 = vpop.f32.mrf.mxu0
      %v2053 = vadd.f32 0.0, %v2052
      %v2054 = vpop.f32.mrf.mxu0
      %v2055 = vadd.f32 0.0, %v2054
      %v2056 = vpop.f32.mrf.mxu0
      %v2057 = vpop.f32.mrf.mxu0
      %2058 = vdwg.mxu0
      %2059 = vmatprep.subr.bf16.mxu0 %v1969
      %2060 = vmatpush1.bf16.msra.mxu0 %v1968
      %2061 = vmatprep.subr.bf16.mxu0 %v1967
      %2062 = vmatpush1.bf16.msra.mxu0 %v1966
      %2063 = vmatprep.subr.bf16.mxu0 %v1965
      %2064 = vmatpush1.bf16.msra.mxu0 %v1964
      %2065 = vmatprep.subr.bf16.mxu0 %v1963
      %2066 = vmatpush1.bf16.msra.mxu0 %v1962
      %2067 = vmatprep.subr.bf16.mxu0 %v1961
      %2068 = vmatpush1.bf16.msra.mxu0 %v1960
      %2069 = vmatprep.subr.bf16.mxu0 %v1959
      %2070 = vmatpush1.bf16.msra.mxu0 %v1958
      %2071 = vmatprep.subr.bf16.mxu0 %v1957
      %2072 = vmatpush1.bf16.msra.mxu0 %v1956
      %2073 = vmatprep.subr.bf16.mxu0 %v1955
      %2074 = vmatpush1.bf16.msra.mxu0 %v1954
      %2075 = vmatprep.subr.bf16.mxu0 0
      %2076 = vmatpush2.bf16.msra.mxu0 0
      %2077 = vmatprep.subr.bf16.mxu0 0
      %2078 = vmatpush2.bf16.msra.mxu0 0
      %2079 = vmatprep.subr.bf16.mxu0 0
      %2080 = vmatpush2.bf16.msra.mxu0 0
      %2081 = vmatprep.subr.bf16.mxu0 0
      %2082 = vmatpush2.bf16.msra.mxu0 0
      %2083 = vmatprep.subr.bf16.mxu0 0
      %2084 = vmatpush2.bf16.msra.mxu0 0
      %2085 = vmatprep.subr.bf16.mxu0 0
      %2086 = vmatpush2.bf16.msra.mxu0 0
      %2087 = vmatprep.subr.bf16.mxu0 0
      %2088 = vmatpush2.bf16.msra.mxu0 0
      %2089 = vmatprep.subr.bf16.mxu0 0
      %2090 = vmatpush2.bf16.msra.mxu0 0
      %2091 = vmatprep.mubr.bf16.mxu0 0
      %2092 = vmatmul.mubr.bf16.gmra.mxu0 %v1774
      %v2093 = vpop.f32.mrf.mxu0
      %v2094 = vadd.f32 %v2053, %v2093
      %v2095 = vpop.f32.mrf.mxu0
      %v2096 = vadd.f32 %v2055, %v2095
      %v2097 = vpop.f32.mrf.mxu0
      %v2098 = vpop.f32.mrf.mxu0
      %2099 = vdwg.mxu0
      %v2102 = vunpack.c.l.b16 %v1662
      %v2103 = vunpack.c.h.b16 %v1662
      %v2104 = vunpack.c.l.b16 %v1663
      %v2105 = vpack.c.b16 %v2102, %v2102
      %v2106 = vpack.c.b16 %v2103, %v2103
      %v2107 = vpack.c.b16 %v2104, %v2104
      %v2109 = vshrl.u32 %v2105, 16
      %v2111 = vshll.u32 %v2105, 16
      %v2113 = vrot.slane %v2111, 1
      %v2114 = vor.u32 %v2109, %v2113
      %v2116 = vshrl.u32 %v2106, 16
      %v2118 = vshll.u32 %v2106, 16
      %v2120 = vrot.slane %v2118, 1
      %v2121 = vor.u32 %v2116, %v2120
      %v2123 = vshrl.u32 %v2107, 16
      %v2125 = vshll.u32 %v2107, 16
      %v2127 = vrot.slane %v2125, 1
      %v2128 = vor.u32 %v2123, %v2127
      %v2180 = vunpack.c.l.b16 %v1665
      %v2181 = vunpack.c.h.b16 %v1665
      %v2182 = vunpack.c.l.b16 %v1666
      %v2183 = vunpack.c.h.b16 %v1666
      %v2184 = vunpack.c.l.b16 %v1667
      %v2185 = vunpack.c.h.b16 %v1667
      %v2186 = vunpack.c.l.b16 %v1668
      %v2187 = vunpack.c.h.b16 %v1668
      %v2188 = vunpack.c.l.b16 %v1669
      %v2189 = vunpack.c.h.b16 %v1669
      %v2190 = vunpack.c.l.b16 %v1670
      %v2191 = vunpack.c.h.b16 %v1670
      %v2192 = vunpack.c.l.b16 %v1671
      %v2193 = vunpack.c.h.b16 %v1671
      %v2194 = vunpack.c.l.b16 %v1672
      %v2195 = vunpack.c.h.b16 %v1672
      %v2196 = vunpack.c.l.b16 %v1673
      %v2197 = vunpack.c.h.b16 %v1673
      %v2198 = vunpack.c.l.b16 %v1674
      %v2199 = vunpack.c.h.b16 %v1674
      %v2200 = vunpack.c.l.b16 %v1675
      %v2201 = vunpack.c.h.b16 %v1675
      %v2202 = vunpack.c.l.b16 %v1676
      %v2203 = vunpack.c.h.b16 %v1676
      %v2204 = vunpack.c.l.b16 %v1677
      %v2205 = vunpack.c.h.b16 %v1677
      %v2206 = vunpack.c.l.b16 %v1678
      %v2207 = vunpack.c.h.b16 %v1678
      %v2208 = vunpack.c.l.b16 %v1679
      %v2209 = vunpack.c.h.b16 %v1679
      %v2210 = vunpack.c.l.b16 %v1680
      %v2211 = vunpack.c.h.b16 %v1680
      %v2212 = vunpack.c.l.b16 %v1681
      %v2213 = vunpack.c.h.b16 %v1681
      %v2214 = vunpack.c.l.b16 %v1682
      %v2215 = vunpack.c.h.b16 %v1682
      %v2216 = vunpack.c.l.b16 %v1683
      %v2217 = vunpack.c.h.b16 %v1683
      %v2218 = vunpack.c.l.b16 %v1684
      %v2219 = vunpack.c.h.b16 %v1684
      %v2220 = vunpack.c.l.b16 %v1685
      %v2221 = vunpack.c.h.b16 %v1685
      %v2222 = vunpack.c.l.b16 %v1686
      %v2223 = vunpack.c.h.b16 %v1686
      %v2224 = vunpack.c.l.b16 %v1687
      %v2225 = vunpack.c.h.b16 %v1687
      %v2226 = vunpack.c.l.b16 %v1688
      %v2227 = vunpack.c.h.b16 %v1688
      %v2228 = vunpack.c.l.b16 %v1689
      %v2229 = vunpack.c.h.b16 %v1689
      %v2230 = vunpack.c.l.b16 %v1690
      %v2231 = vunpack.c.h.b16 %v1690
      %v2232 = vunpack.c.l.b16 %v1691
      %v2233 = vunpack.c.h.b16 %v1691
      %v2234 = vunpack.c.l.b16 %v1692
      %v2235 = vunpack.c.h.b16 %v1692
      %v2236 = vunpack.c.l.b16 %v1693
      %v2237 = vunpack.c.h.b16 %v1693
      %v2238 = vunpack.c.l.b16 %v1694
      %v2239 = vunpack.c.h.b16 %v1694
      %v2240 = vunpack.c.l.b16 %v1695
      %v2241 = vunpack.c.h.b16 %v1695
      %v2242 = vunpack.c.l.b16 %v1696
      %v2243 = vunpack.c.h.b16 %v1696
      %v2244 = vunpack.c.l.b16 %v1697
      %v2245 = vunpack.c.h.b16 %v1697
      %v2246 = vunpack.c.l.b16 %v1698
      %v2247 = vunpack.c.h.b16 %v1698
      %v2248 = vunpack.c.l.b16 %v1699
      %v2249 = vunpack.c.h.b16 %v1699
      %v2250 = vunpack.c.l.b16 %v1700
      %v2251 = vunpack.c.h.b16 %v1700
      %v2252 = vunpack.c.l.b16 %v1701
      %v2253 = vunpack.c.h.b16 %v1701
      %v2254 = vunpack.c.l.b16 %v1702
      %v2255 = vunpack.c.h.b16 %v1702
      %v2256 = vunpack.c.l.b16 %v1703
      %v2257 = vunpack.c.h.b16 %v1703
      %v2258 = vunpack.c.l.b16 %v1704
      %v2259 = vunpack.c.h.b16 %v1704
      %v2260 = vunpack.c.l.b16 %v1705
      %v2261 = vunpack.c.h.b16 %v1705
      %v2262 = vunpack.c.l.b16 %v1706
      %v2263 = vunpack.c.h.b16 %v1706
      %v2264 = vunpack.c.l.b16 %v1707
      %v2265 = vunpack.c.h.b16 %v1707
      %v2266 = vunpack.c.l.b16 %v1708
      %v2267 = vunpack.c.h.b16 %v1708
      %v2268 = vunpack.c.l.b16 %v1709
      %v2269 = vunpack.c.h.b16 %v1709
      %v2270 = vunpack.c.l.b16 %v1710
      %v2271 = vunpack.c.h.b16 %v1710
      %v2272 = vunpack.c.l.b16 %v1711
      %v2273 = vunpack.c.h.b16 %v1711
      %v2274 = vunpack.c.l.b16 %v1712
      %v2275 = vunpack.c.h.b16 %v1712
      %v2276 = vpack.c.b16 %v2182, %v2180
      %v2277 = vpack.c.b16 %v2183, %v2181
      %v2278 = vpack.c.b16 %v2186, %v2184
      %v2279 = vpack.c.b16 %v2187, %v2185
      %v2280 = vpack.c.b16 %v2190, %v2188
      %v2281 = vpack.c.b16 %v2191, %v2189
      %v2282 = vpack.c.b16 %v2194, %v2192
      %v2283 = vpack.c.b16 %v2195, %v2193
      %v2284 = vpack.c.b16 %v2198, %v2196
      %v2285 = vpack.c.b16 %v2199, %v2197
      %v2286 = vpack.c.b16 %v2202, %v2200
      %v2287 = vpack.c.b16 %v2203, %v2201
      %v2288 = vpack.c.b16 %v2206, %v2204
      %v2289 = vpack.c.b16 %v2207, %v2205
      %v2290 = vpack.c.b16 %v2210, %v2208
      %v2291 = vpack.c.b16 %v2211, %v2209
      %v2292 = vpack.c.b16 %v2214, %v2212
      %v2293 = vpack.c.b16 %v2215, %v2213
      %v2294 = vpack.c.b16 %v2218, %v2216
      %v2295 = vpack.c.b16 %v2219, %v2217
      %v2296 = vpack.c.b16 %v2222, %v2220
      %v2297 = vpack.c.b16 %v2223, %v2221
      %v2298 = vpack.c.b16 %v2226, %v2224
      %v2299 = vpack.c.b16 %v2227, %v2225
      %v2300 = vpack.c.b16 %v2230, %v2228
      %v2301 = vpack.c.b16 %v2231, %v2229
      %v2302 = vpack.c.b16 %v2234, %v2232
      %v2303 = vpack.c.b16 %v2235, %v2233
      %v2304 = vpack.c.b16 %v2238, %v2236
      %v2305 = vpack.c.b16 %v2239, %v2237
      %v2306 = vpack.c.b16 %v2242, %v2240
      %v2307 = vpack.c.b16 %v2243, %v2241
      %v2308 = vpack.c.b16 %v2246, %v2244
      %v2309 = vpack.c.b16 %v2247, %v2245
      %v2310 = vpack.c.b16 %v2250, %v2248
      %v2311 = vpack.c.b16 %v2251, %v2249
      %v2312 = vpack.c.b16 %v2254, %v2252
      %v2313 = vpack.c.b16 %v2255, %v2253
      %v2314 = vpack.c.b16 %v2258, %v2256
      %v2315 = vpack.c.b16 %v2259, %v2257
      %v2316 = vpack.c.b16 %v2262, %v2260
      %v2317 = vpack.c.b16 %v2263, %v2261
      %v2318 = vpack.c.b16 %v2266, %v2264
      %v2319 = vpack.c.b16 %v2267, %v2265
      %v2320 = vpack.c.b16 %v2270, %v2268
      %v2321 = vpack.c.b16 %v2271, %v2269
      %v2322 = vpack.c.b16 %v2274, %v2272
      %v2323 = vpack.c.b16 %v2275, %v2273
      %2372 = vmatprep.subr.bf16.mxu0 %v2291
      %2373 = vmatpush1.bf16.msra.mxu0 %v2290
      %2374 = vmatprep.subr.bf16.mxu0 %v2289
      %2375 = vmatpush1.bf16.msra.mxu0 %v2288
      %2376 = vmatprep.subr.bf16.mxu0 %v2287
      %2377 = vmatpush1.bf16.msra.mxu0 %v2286
      %2378 = vmatprep.subr.bf16.mxu0 %v2285
      %2379 = vmatpush1.bf16.msra.mxu0 %v2284
      %2380 = vmatprep.subr.bf16.mxu0 %v2283
      %2381 = vmatpush1.bf16.msra.mxu0 %v2282
      %2382 = vmatprep.subr.bf16.mxu0 %v2281
      %2383 = vmatpush1.bf16.msra.mxu0 %v2280
      %2384 = vmatprep.subr.bf16.mxu0 %v2279
      %2385 = vmatpush1.bf16.msra.mxu0 %v2278
      %2386 = vmatprep.subr.bf16.mxu0 %v2277
      %2387 = vmatpush1.bf16.msra.mxu0 %v2276
      %2388 = vmatprep.subr.bf16.mxu0 %v2307
      %2389 = vmatpush2.bf16.msra.mxu0 %v2306
      %2390 = vmatprep.subr.bf16.mxu0 %v2305
      %2391 = vmatpush2.bf16.msra.mxu0 %v2304
      %2392 = vmatprep.subr.bf16.mxu0 %v2303
      %2393 = vmatpush2.bf16.msra.mxu0 %v2302
      %2394 = vmatprep.subr.bf16.mxu0 %v2301
      %2395 = vmatpush2.bf16.msra.mxu0 %v2300
      %2396 = vmatprep.subr.bf16.mxu0 %v2299
      %2397 = vmatpush2.bf16.msra.mxu0 %v2298
      %2398 = vmatprep.subr.bf16.mxu0 %v2297
      %2399 = vmatpush2.bf16.msra.mxu0 %v2296
      %2400 = vmatprep.subr.bf16.mxu0 %v2295
      %2401 = vmatpush2.bf16.msra.mxu0 %v2294
      %2402 = vmatprep.subr.bf16.mxu0 %v2293
      %2403 = vmatpush2.bf16.msra.mxu0 %v2292
      %2404 = vmatprep.mubr.bf16.mxu0 %v2121
      %2405 = vmatmul.mubr.bf16.gmra.mxu0 %v2114
      %v2406 = vpop.f32.mrf.mxu0
      %v2407 = vadd.f32 %v2094, %v2406
      %v2408 = vpop.f32.mrf.mxu0
      %v2409 = vadd.f32 %v2096, %v2408
      %v2410 = vpop.f32.mrf.mxu0
      %v2411 = vpop.f32.mrf.mxu0
      %2412 = vdwg.mxu0
      %2413 = vmatprep.subr.bf16.mxu0 %v2323
      %2414 = vmatpush1.bf16.msra.mxu0 %v2322
      %2415 = vmatprep.subr.bf16.mxu0 %v2321
      %2416 = vmatpush1.bf16.msra.mxu0 %v2320
      %2417 = vmatprep.subr.bf16.mxu0 %v2319
      %2418 = vmatpush1.bf16.msra.mxu0 %v2318
      %2419 = vmatprep.subr.bf16.mxu0 %v2317
      %2420 = vmatpush1.bf16.msra.mxu0 %v2316
      %2421 = vmatprep.subr.bf16.mxu0 %v2315
      %2422 = vmatpush1.bf16.msra.mxu0 %v2314
      %2423 = vmatprep.subr.bf16.mxu0 %v2313
      %2424 = vmatpush1.bf16.msra.mxu0 %v2312
      %2425 = vmatprep.subr.bf16.mxu0 %v2311
      %2426 = vmatpush1.bf16.msra.mxu0 %v2310
      %2427 = vmatprep.subr.bf16.mxu0 %v2309
      %2428 = vmatpush1.bf16.msra.mxu0 %v2308
      %2429 = vmatprep.subr.bf16.mxu0 0
      %2430 = vmatpush2.bf16.msra.mxu0 0
      %2431 = vmatprep.subr.bf16.mxu0 0
      %2432 = vmatpush2.bf16.msra.mxu0 0
      %2433 = vmatprep.subr.bf16.mxu0 0
      %2434 = vmatpush2.bf16.msra.mxu0 0
      %2435 = vmatprep.subr.bf16.mxu0 0
      %2436 = vmatpush2.bf16.msra.mxu0 0
      %2437 = vmatprep.subr.bf16.mxu0 0
      %2438 = vmatpush2.bf16.msra.mxu0 0
      %2439 = vmatprep.subr.bf16.mxu0 0
      %2440 = vmatpush2.bf16.msra.mxu0 0
      %2441 = vmatprep.subr.bf16.mxu0 0
      %2442 = vmatpush2.bf16.msra.mxu0 0
      %2443 = vmatprep.subr.bf16.mxu0 0
      %2444 = vmatpush2.bf16.msra.mxu0 0
      %2445 = vmatprep.mubr.bf16.mxu0 0
      %2446 = vmatmul.mubr.bf16.gmra.mxu0 %v2128
      %v2447 = vpop.f32.mrf.mxu0
      %v2448 = vadd.f32 %v2407, %v2447
      %v2449 = vpop.f32.mrf.mxu0
      %v2450 = vadd.f32 %v2409, %v2449
      %v2451 = vpop.f32.mrf.mxu0
      %v2452 = vpop.f32.mrf.mxu0
      %2453 = vdwg.mxu0
      %v2454 = vld [vmem:[%s4] sm:$0x3]
      %v2456 = vlaneseq
      %v2457 = vshrl.u32 %v2456, 7
      %v2458 = vsub.s32 0, %v2457
      %v2459 = vrot.slane %v2454, %v2458
      %v2460 = vlaneseq
      %v2461 = vshrl.u32 %v2460, 7
      %v2462 = vsub.s32 1, %v2461
      %v2463 = vrot.slane %v2454, %v2462
      %v2466 = vadd.f32 %v2448, %v2459
      %v2467 = vadd.f32 %v2450, %v2463
      %v2468 = vmax.f32 %v2466, 0.0
      %v2469 = vmax.f32 %v2467, 0.0
      %v2470 = vpack.c.bf16 %v2468, %v2468
      %v2471 = vpack.c.bf16 %v2469, %v2469
      %v2474 = vunpack.c.l.b16 %v2470
      %v2475 = vunpack.c.l.b16 %v2471
      %v2476 = vpack.c.b16 %v2475, %v2474
      %v2477 = vrot.slane %v2476, 7
      %2478 = vrot.lane.b32.xlu0 %v2477, 32
      %v2479 = vpop.permute.xlu0 %2478
      %v2480 = vrot.slane %v2479, 4
      %v2481 = vsel %vm1586, %v2480, %v2479
      %vm2484 = vmand %vm1608, %vm701
      %vm2485 = vmor %vm705, %vm2484
      %v2486 = vld [vmem:[#allocation3] sm:$0x22]
      %v2487 = vsel %vm2485, %v2481, %v2486
      %2488 = vst [vmem:[#allocation3] sm:$0x22] %v2487
      %vm2489 = vmand %vm1614, %vm701
      %v2490 = vld [vmem:[#allocation3 + $0x8] sm:$0x2]
      %v2491 = vsel %vm2489, %v2480, %v2490
      %2492 = vst [vmem:[#allocation3 + $0x8] sm:$0x2] %v2491
      %v2494 = vshrl.u32 %v2476, 16
      %v2496 = vrot.slane %v2494, 6
      %2497 = vrot.lane.b32.xlu0 %v2496, 32
      %v2498 = vpop.permute.xlu0 %2497
      %v2499 = vrot.slane %v2498, 4
      %v2500 = vsel %vm1586, %v2499, %v2498
      %vm2503 = vmand %vm1626, %vm755
      %vm2504 = vmor %vm759, %vm2503
      %v2505 = vld [vmem:[#allocation3] sm:$0x44]
      %v2506 = vsel %vm2504, %v2500, %v2505
      %2507 = vst [vmem:[#allocation3] sm:$0x44] %v2506
      %vm2508 = vmand %vm1635, %vm755
      %v2509 = vld [vmem:[#allocation3 + $0x8] sm:$0x4]
      %v2510 = vsel %vm2508, %v2499, %v2509
      %2511 = vst [vmem:[#allocation3 + $0x8] sm:$0x4] %v2510
      %v2512 = vrot.slane %v2476, 6
      %2513 = vrot.lane.b32.xlu0 %v2512, 32
      %v2514 = vpop.permute.xlu0 %2513
      %v2515 = vrot.slane %v2514, 4
      %v2516 = vsel %vm1586, %v2515, %v2514
      %vm2519 = vsmask.f32 3328
      %vm2520 = vmand %vm1647, %vm2519
      %vm2521 = vsmask.f32 7424
      %vm2522 = vmand %vm1650, %vm2521
      %vm2523 = vmor %vm2522, %vm2520
      %v2524 = vld [vmem:[#allocation3] sm:$0x88]
      %v2525 = vsel %vm2523, %v2516, %v2524
      %2526 = vst [vmem:[#allocation3] sm:$0x88] %v2525
      %vm2527 = vmand %vm1657, %vm2519
      %v2528 = vld [vmem:[#allocation3 + $0x8] sm:$0x8]
      %v2529 = vsel %vm2527, %v2515, %v2528
      %2530 = vst [vmem:[#allocation3 + $0x8] sm:$0x8] %v2529
      %v2531 = vrot.slane %v2494, 5
      %v2532 = vrot.slane %v2531, 4
      %2533 = vrot.lane.b32.xlu0 %v2532, 32
      %v2534 = vpop.permute.xlu0 %2533
      %v2535 = vrot.slane %v2534, 4
      %v2536 = vsel %vm1586, %v2535, %v2534
      %vm2539 = vsmask.f32 256
      %vm2540 = vmand %vm1590, %vm2539
      %vm2541 = vsmask.f32 4352
      %vm2542 = vmand %vm676, %vm2541
      %vm2543 = vmor %vm2542, %vm2540
      %v2544 = vld [vmem:[#allocation3 + $0xc] sm:$0x11]
      %v2545 = vsel %vm2543, %v2536, %v2544
      %2546 = vst [vmem:[#allocation3 + $0xc] sm:$0x11] %v2545
      %vm2547 = vmand %vm1596, %vm2539
      %v2548 = vld [vmem:[#allocation3 + $0x14] sm:$0x1]
      %v2549 = vsel %vm2547, %v2535, %v2548
      %2550 = vst [vmem:[#allocation3 + $0x14] sm:$0x1] %v2549
      %v2551 = vld [vmem:[#allocation3] sm:$0xff]
      %v2552 = vld [vmem:[#allocation3 + $0x8] sm:$0xf]
      %v2553 = vld [vmem:[#allocation3 + $0xc] sm:$0x11]
      %v2554 = vld [vmem:[#allocation3 + $0x14] sm:$0x1]
      %v2555 = vld [vmem:[%s5] sm:$0xff]
      %v2556 = vld [vmem:[%s5 + $0x8] sm:$0xff]
      %v2557 = vld [vmem:[%s5 + $0x10] sm:$0xff]
      %v2558 = vld [vmem:[%s5 + $0x18] sm:$0xff]
      %v2559 = vld [vmem:[%s5 + $0x20] sm:$0xff]
      %v2560 = vld [vmem:[%s5 + $0x28] sm:$0xff]
      %v2561 = vld [vmem:[%s5 + $0x30] sm:$0xff]
      %v2562 = vld [vmem:[%s5 + $0x38] sm:$0xff]
      %v2563 = vld [vmem:[%s5 + $0x40] sm:$0xff]
      %v2564 = vld [vmem:[%s5 + $0x48] sm:$0xff]
      %v2565 = vld [vmem:[%s5 + $0x50] sm:$0xff]
      %v2566 = vld [vmem:[%s5 + $0x58] sm:$0xff]
      %v2567 = vld [vmem:[%s5 + $0x60] sm:$0xff]
      %v2568 = vld [vmem:[%s5 + $0x68] sm:$0xff]
      %v2569 = vld [vmem:[%s5 + $0x70] sm:$0xff]
      %v2570 = vld [vmem:[%s5 + $0x78] sm:$0xff]
      %v2571 = vld [vmem:[%s5 + $0x80] sm:$0xff]
      %v2572 = vld [vmem:[%s5 + $0x88] sm:$0xff]
      %v2573 = vld [vmem:[%s5 + $0x90] sm:$0xff]
      %v2574 = vld [vmem:[%s5 + $0x98] sm:$0xff]
      %v2575 = vld [vmem:[%s5 + $0xa0] sm:$0xff]
      %v2576 = vld [vmem:[%s5 + $0xa8] sm:$0xff]
      %v2577 = vld [vmem:[%s5 + $0xb0] sm:$0xff]
      %v2578 = vld [vmem:[%s5 + $0xb8] sm:$0xff]
      %v2579 = vld [vmem:[%s5 + $0xc0] sm:$0xff]
      %v2580 = vld [vmem:[%s5 + $0xc8] sm:$0xff]
      %v2581 = vld [vmem:[%s5 + $0xd0] sm:$0xff]
      %v2582 = vld [vmem:[%s5 + $0xd8] sm:$0xff]
      %v2583 = vld [vmem:[%s5 + $0xe0] sm:$0xff]
      %v2584 = vld [vmem:[%s5 + $0xe8] sm:$0xff]
      %v2585 = vld [vmem:[%s5 + $0xf0] sm:$0xff]
      %v2586 = vld [vmem:[%s5 + $0xf8] sm:$0xff]
      %v2587 = vld [vmem:[%s5 + $0x100] sm:$0xff]
      %v2588 = vld [vmem:[%s5 + $0x108] sm:$0xff]
      %v2589 = vld [vmem:[%s5 + $0x110] sm:$0xff]
      %v2590 = vld [vmem:[%s5 + $0x118] sm:$0xff]
      %v2591 = vld [vmem:[%s5 + $0x120] sm:$0xff]
      %v2592 = vld [vmem:[%s5 + $0x128] sm:$0xff]
      %v2593 = vld [vmem:[%s5 + $0x130] sm:$0xff]
      %v2594 = vld [vmem:[%s5 + $0x138] sm:$0xff]
      %s2595 = scalar_lea.vmem %s5, 320
      %v2596 = vld [vmem:[%s2595] sm:$0xff]
      %v2597 = vld [vmem:[%s2595 + $0x8] sm:$0xff]
      %v2598 = vld [vmem:[%s2595 + $0x10] sm:$0xff]
      %v2599 = vld [vmem:[%s2595 + $0x18] sm:$0xff]
      %v2600 = vld [vmem:[%s2595 + $0x20] sm:$0xff]
      %v2601 = vld [vmem:[%s2595 + $0x28] sm:$0xff]
      %v2602 = vld [vmem:[%s2595 + $0x30] sm:$0xff]
      %v2603 = vld [vmem:[%s2595 + $0x38] sm:$0xff]
      %v2604 = vld [vmem:[%s2595 + $0x40] sm:$0xff]
      %v2605 = vld [vmem:[%s2595 + $0x48] sm:$0xff]
      %v2606 = vld [vmem:[%s2595 + $0x50] sm:$0xff]
      %v2607 = vld [vmem:[%s2595 + $0x58] sm:$0xff]
      %v2608 = vld [vmem:[%s2595 + $0x60] sm:$0xff]
      %v2609 = vld [vmem:[%s2595 + $0x68] sm:$0xff]
      %v2610 = vld [vmem:[%s2595 + $0x70] sm:$0xff]
      %v2611 = vld [vmem:[%s2595 + $0x78] sm:$0xff]
      %v2612 = vld [vmem:[%s2595 + $0x80] sm:$0xff]
      %v2613 = vld [vmem:[%s2595 + $0x88] sm:$0xff]
      %v2614 = vld [vmem:[%s2595 + $0x90] sm:$0xff]
      %v2615 = vld [vmem:[%s2595 + $0x98] sm:$0xff]
      %v2616 = vld [vmem:[%s2595 + $0xa0] sm:$0xff]
      %v2617 = vld [vmem:[%s2595 + $0xa8] sm:$0xff]
      %v2618 = vld [vmem:[%s2595 + $0xb0] sm:$0xff]
      %v2619 = vld [vmem:[%s2595 + $0xb8] sm:$0xff]
      %v2620 = vld [vmem:[%s2595 + $0xc0] sm:$0xff]
      %v2621 = vld [vmem:[%s2595 + $0xc8] sm:$0xff]
      %v2622 = vld [vmem:[%s2595 + $0xd0] sm:$0xff]
      %v2623 = vld [vmem:[%s2595 + $0xd8] sm:$0xff]
      %v2624 = vld [vmem:[%s2595 + $0xe0] sm:$0xff]
      %v2625 = vld [vmem:[%s2595 + $0xe8] sm:$0xff]
      %v2626 = vld [vmem:[%s2595 + $0xf0] sm:$0xff]
      %v2627 = vld [vmem:[%s2595 + $0xf8] sm:$0xff]
      %v2628 = vld [vmem:[%s2595 + $0x100] sm:$0xff]
      %v2629 = vld [vmem:[%s2595 + $0x108] sm:$0xff]
      %v2630 = vld [vmem:[%s2595 + $0x110] sm:$0xff]
      %v2631 = vld [vmem:[%s2595 + $0x118] sm:$0xff]
      %v2632 = vld [vmem:[%s2595 + $0x120] sm:$0xff]
      %v2633 = vld [vmem:[%s2595 + $0x128] sm:$0xff]
      %v2634 = vld [vmem:[%s2595 + $0x130] sm:$0xff]
      %v2635 = vld [vmem:[%s2595 + $0x138] sm:$0xff]
      %v2638 = vunpack.c.l.b16 %v2551
      %v2639 = vunpack.c.h.b16 %v2551
      %v2640 = vunpack.c.l.b16 %v2552
      %v2641 = vpack.c.b16 %v2638, %v2638
      %v2642 = vpack.c.b16 %v2639, %v2639
      %v2643 = vpack.c.b16 %v2640, %v2640
      %v2686 = vunpack.c.l.b16 %v2596
      %v2687 = vunpack.c.h.b16 %v2596
      %v2688 = vunpack.c.l.b16 %v2597
      %v2689 = vunpack.c.h.b16 %v2597
      %v2690 = vunpack.c.l.b16 %v2598
      %v2691 = vunpack.c.h.b16 %v2598
      %v2692 = vunpack.c.l.b16 %v2599
      %v2693 = vunpack.c.h.b16 %v2599
      %v2694 = vunpack.c.l.b16 %v2600
      %v2695 = vunpack.c.h.b16 %v2600
      %v2696 = vunpack.c.l.b16 %v2601
      %v2697 = vunpack.c.h.b16 %v2601
      %v2698 = vunpack.c.l.b16 %v2602
      %v2699 = vunpack.c.h.b16 %v2602
      %v2700 = vunpack.c.l.b16 %v2603
      %v2701 = vunpack.c.h.b16 %v2603
      %v2702 = vunpack.c.l.b16 %v2604
      %v2703 = vunpack.c.h.b16 %v2604
      %v2704 = vunpack.c.l.b16 %v2605
      %v2705 = vunpack.c.h.b16 %v2605
      %v2706 = vunpack.c.l.b16 %v2606
      %v2707 = vunpack.c.h.b16 %v2606
      %v2708 = vunpack.c.l.b16 %v2607
      %v2709 = vunpack.c.h.b16 %v2607
      %v2710 = vunpack.c.l.b16 %v2608
      %v2711 = vunpack.c.h.b16 %v2608
      %v2712 = vunpack.c.l.b16 %v2609
      %v2713 = vunpack.c.h.b16 %v2609
      %v2714 = vunpack.c.l.b16 %v2610
      %v2715 = vunpack.c.h.b16 %v2610
      %v2716 = vunpack.c.l.b16 %v2611
      %v2717 = vunpack.c.h.b16 %v2611
      %v2718 = vunpack.c.l.b16 %v2612
      %v2719 = vunpack.c.h.b16 %v2612
      %v2720 = vunpack.c.l.b16 %v2613
      %v2721 = vunpack.c.h.b16 %v2613
      %v2722 = vunpack.c.l.b16 %v2614
      %v2723 = vunpack.c.h.b16 %v2614
      %v2724 = vunpack.c.l.b16 %v2615
      %v2725 = vunpack.c.h.b16 %v2615
      %v2726 = vunpack.c.l.b16 %v2616
      %v2727 = vunpack.c.h.b16 %v2616
      %v2728 = vunpack.c.l.b16 %v2617
      %v2729 = vunpack.c.h.b16 %v2617
      %v2730 = vunpack.c.l.b16 %v2618
      %v2731 = vunpack.c.h.b16 %v2618
      %v2732 = vunpack.c.l.b16 %v2619
      %v2733 = vunpack.c.h.b16 %v2619
      %v2734 = vunpack.c.l.b16 %v2620
      %v2735 = vunpack.c.h.b16 %v2620
      %v2736 = vunpack.c.l.b16 %v2621
      %v2737 = vunpack.c.h.b16 %v2621
      %v2738 = vunpack.c.l.b16 %v2622
      %v2739 = vunpack.c.h.b16 %v2622
      %v2740 = vunpack.c.l.b16 %v2623
      %v2741 = vunpack.c.h.b16 %v2623
      %v2742 = vunpack.c.l.b16 %v2624
      %v2743 = vunpack.c.h.b16 %v2624
      %v2744 = vunpack.c.l.b16 %v2625
      %v2745 = vunpack.c.h.b16 %v2625
      %v2746 = vunpack.c.l.b16 %v2626
      %v2747 = vunpack.c.h.b16 %v2626
      %v2748 = vunpack.c.l.b16 %v2627
      %v2749 = vunpack.c.h.b16 %v2627
      %v2750 = vunpack.c.l.b16 %v2628
      %v2751 = vunpack.c.h.b16 %v2628
      %v2752 = vunpack.c.l.b16 %v2629
      %v2753 = vunpack.c.h.b16 %v2629
      %v2754 = vunpack.c.l.b16 %v2630
      %v2755 = vunpack.c.h.b16 %v2630
      %v2756 = vunpack.c.l.b16 %v2631
      %v2757 = vunpack.c.h.b16 %v2631
      %v2758 = vunpack.c.l.b16 %v2632
      %v2759 = vunpack.c.h.b16 %v2632
      %v2760 = vunpack.c.l.b16 %v2633
      %v2761 = vunpack.c.h.b16 %v2633
      %v2762 = vunpack.c.l.b16 %v2634
      %v2763 = vunpack.c.h.b16 %v2634
      %v2764 = vunpack.c.l.b16 %v2635
      %v2765 = vunpack.c.h.b16 %v2635
      %v2766 = vpack.c.b16 %v2688, %v2686
      %v2767 = vpack.c.b16 %v2689, %v2687
      %v2768 = vpack.c.b16 %v2692, %v2690
      %v2769 = vpack.c.b16 %v2693, %v2691
      %v2770 = vpack.c.b16 %v2696, %v2694
      %v2771 = vpack.c.b16 %v2697, %v2695
      %v2772 = vpack.c.b16 %v2700, %v2698
      %v2773 = vpack.c.b16 %v2701, %v2699
      %v2774 = vpack.c.b16 %v2704, %v2702
      %v2775 = vpack.c.b16 %v2705, %v2703
      %v2776 = vpack.c.b16 %v2708, %v2706
      %v2777 = vpack.c.b16 %v2709, %v2707
      %v2778 = vpack.c.b16 %v2712, %v2710
      %v2779 = vpack.c.b16 %v2713, %v2711
      %v2780 = vpack.c.b16 %v2716, %v2714
      %v2781 = vpack.c.b16 %v2717, %v2715
      %v2782 = vpack.c.b16 %v2720, %v2718
      %v2783 = vpack.c.b16 %v2721, %v2719
      %v2784 = vpack.c.b16 %v2724, %v2722
      %v2785 = vpack.c.b16 %v2725, %v2723
      %v2786 = vpack.c.b16 %v2728, %v2726
      %v2787 = vpack.c.b16 %v2729, %v2727
      %v2788 = vpack.c.b16 %v2732, %v2730
      %v2789 = vpack.c.b16 %v2733, %v2731
      %v2790 = vpack.c.b16 %v2736, %v2734
      %v2791 = vpack.c.b16 %v2737, %v2735
      %v2792 = vpack.c.b16 %v2740, %v2738
      %v2793 = vpack.c.b16 %v2741, %v2739
      %v2794 = vpack.c.b16 %v2744, %v2742
      %v2795 = vpack.c.b16 %v2745, %v2743
      %v2796 = vpack.c.b16 %v2748, %v2746
      %v2797 = vpack.c.b16 %v2749, %v2747
      %v2798 = vpack.c.b16 %v2752, %v2750
      %v2799 = vpack.c.b16 %v2753, %v2751
      %v2800 = vpack.c.b16 %v2756, %v2754
      %v2801 = vpack.c.b16 %v2757, %v2755
      %v2802 = vpack.c.b16 %v2760, %v2758
      %v2803 = vpack.c.b16 %v2761, %v2759
      %v2804 = vpack.c.b16 %v2764, %v2762
      %v2805 = vpack.c.b16 %v2765, %v2763
      %vm2846 = vcmask 523264
      %v2848 = vsel %vm2846, %v2643, 0
      %2850 = vmatprep.subr.bf16.mxu0 %v2781
      %2851 = vmatpush1.bf16.msra.mxu0 %v2780
      %2852 = vmatprep.subr.bf16.mxu0 %v2779
      %2853 = vmatpush1.bf16.msra.mxu0 %v2778
      %2854 = vmatprep.subr.bf16.mxu0 %v2777
      %2855 = vmatpush1.bf16.msra.mxu0 %v2776
      %2856 = vmatprep.subr.bf16.mxu0 %v2775
      %2857 = vmatpush1.bf16.msra.mxu0 %v2774
      %2858 = vmatprep.subr.bf16.mxu0 %v2773
      %2859 = vmatpush1.bf16.msra.mxu0 %v2772
      %2860 = vmatprep.subr.bf16.mxu0 %v2771
      %2861 = vmatpush1.bf16.msra.mxu0 %v2770
      %2862 = vmatprep.subr.bf16.mxu0 %v2769
      %2863 = vmatpush1.bf16.msra.mxu0 %v2768
      %2864 = vmatprep.subr.bf16.mxu0 %v2767
      %2865 = vmatpush1.bf16.msra.mxu0 %v2766
      %2866 = vmatprep.subr.bf16.mxu0 %v2797
      %2867 = vmatpush2.bf16.msra.mxu0 %v2796
      %2868 = vmatprep.subr.bf16.mxu0 %v2795
      %2869 = vmatpush2.bf16.msra.mxu0 %v2794
      %2870 = vmatprep.subr.bf16.mxu0 %v2793
      %2871 = vmatpush2.bf16.msra.mxu0 %v2792
      %2872 = vmatprep.subr.bf16.mxu0 %v2791
      %2873 = vmatpush2.bf16.msra.mxu0 %v2790
      %2874 = vmatprep.subr.bf16.mxu0 %v2789
      %2875 = vmatpush2.bf16.msra.mxu0 %v2788
      %2876 = vmatprep.subr.bf16.mxu0 %v2787
      %2877 = vmatpush2.bf16.msra.mxu0 %v2786
      %2878 = vmatprep.subr.bf16.mxu0 %v2785
      %2879 = vmatpush2.bf16.msra.mxu0 %v2784
      %2880 = vmatprep.subr.bf16.mxu0 %v2783
      %2881 = vmatpush2.bf16.msra.mxu0 %v2782
      %2882 = vmatprep.mubr.bf16.mxu0 %v2642
      %2883 = vmatmul.mubr.bf16.gmra.mxu0 %v2641
      %v2884 = vpop.f32.mrf.mxu0
      %v2885 = vadd.f32 0.0, %v2884
      %v2886 = vpop.f32.mrf.mxu0
      %v2887 = vadd.f32 0.0, %v2886
      %v2888 = vpop.f32.mrf.mxu0
      %v2889 = vpop.f32.mrf.mxu0
      %2890 = vdwg.mxu0
      %2891 = vmatprep.subr.bf16.mxu0 0
      %2892 = vmatpush1.bf16.msra.mxu0 0
      %2893 = vmatprep.subr.bf16.mxu0 0
      %2894 = vmatpush1.bf16.msra.mxu0 0
      %2895 = vmatprep.subr.bf16.mxu0 0
      %2896 = vmatpush1.bf16.msra.mxu0 0
      %2897 = vmatprep.subr.bf16.mxu0 0
      %2898 = vmatpush1.bf16.msra.mxu0 0
      %2899 = vmatprep.subr.bf16.mxu0 %v2805
      %2900 = vmatpush1.bf16.msra.mxu0 %v2804
      %2901 = vmatprep.subr.bf16.mxu0 %v2803
      %2902 = vmatpush1.bf16.msra.mxu0 %v2802
      %2903 = vmatprep.subr.bf16.mxu0 %v2801
      %2904 = vmatpush1.bf16.msra.mxu0 %v2800
      %2905 = vmatprep.subr.bf16.mxu0 %v2799
      %2906 = vmatpush1.bf16.msra.mxu0 %v2798
      %2907 = vmatprep.subr.bf16.mxu0 0
      %2908 = vmatpush2.bf16.msra.mxu0 0
      %2909 = vmatprep.subr.bf16.mxu0 0
      %2910 = vmatpush2.bf16.msra.mxu0 0
      %2911 = vmatprep.subr.bf16.mxu0 0
      %2912 = vmatpush2.bf16.msra.mxu0 0
      %2913 = vmatprep.subr.bf16.mxu0 0
      %2914 = vmatpush2.bf16.msra.mxu0 0
      %2915 = vmatprep.subr.bf16.mxu0 0
      %2916 = vmatpush2.bf16.msra.mxu0 0
      %2917 = vmatprep.subr.bf16.mxu0 0
      %2918 = vmatpush2.bf16.msra.mxu0 0
      %2919 = vmatprep.subr.bf16.mxu0 0
      %2920 = vmatpush2.bf16.msra.mxu0 0
      %2921 = vmatprep.subr.bf16.mxu0 0
      %2922 = vmatpush2.bf16.msra.mxu0 0
      %2923 = vmatprep.mubr.bf16.mxu0 0
      %2924 = vmatmul.mubr.bf16.gmra.mxu0 %v2848
      %v2925 = vpop.f32.mrf.mxu0
      %v2926 = vadd.f32 %v2885, %v2925
      %v2927 = vpop.f32.mrf.mxu0
      %v2928 = vadd.f32 %v2887, %v2927
      %v2929 = vpop.f32.mrf.mxu0
      %v2930 = vpop.f32.mrf.mxu0
      %2931 = vdwg.mxu0
      %v2934 = vunpack.c.l.b16 %v2553
      %v2935 = vunpack.c.h.b16 %v2553
      %v2936 = vunpack.c.l.b16 %v2554
      %v2937 = vpack.c.b16 %v2934, %v2638
      %v2938 = vpack.c.b16 %v2935, %v2639
      %v2939 = vpack.c.b16 %v2936, %v2640
      %v2941 = vshrl.u32 %v2937, 16
      %v2943 = vshll.u32 %v2937, 16
      %v2945 = vrot.slane %v2943, 1
      %v2946 = vor.u32 %v2941, %v2945
      %v2948 = vshrl.u32 %v2938, 16
      %v2950 = vshll.u32 %v2938, 16
      %v2952 = vrot.slane %v2950, 1
      %v2953 = vor.u32 %v2948, %v2952
      %v2955 = vshrl.u32 %v2939, 16
      %v2957 = vshll.u32 %v2939, 16
      %v2959 = vrot.slane %v2957, 1
      %v2960 = vor.u32 %v2955, %v2959
      %v3003 = vunpack.c.l.b16 %v2555
      %v3004 = vunpack.c.h.b16 %v2555
      %v3005 = vunpack.c.l.b16 %v2556
      %v3006 = vunpack.c.h.b16 %v2556
      %v3007 = vunpack.c.l.b16 %v2557
      %v3008 = vunpack.c.h.b16 %v2557
      %v3009 = vunpack.c.l.b16 %v2558
      %v3010 = vunpack.c.h.b16 %v2558
      %v3011 = vunpack.c.l.b16 %v2559
      %v3012 = vunpack.c.h.b16 %v2559
      %v3013 = vunpack.c.l.b16 %v2560
      %v3014 = vunpack.c.h.b16 %v2560
      %v3015 = vunpack.c.l.b16 %v2561
      %v3016 = vunpack.c.h.b16 %v2561
      %v3017 = vunpack.c.l.b16 %v2562
      %v3018 = vunpack.c.h.b16 %v2562
      %v3019 = vunpack.c.l.b16 %v2563
      %v3020 = vunpack.c.h.b16 %v2563
      %v3021 = vunpack.c.l.b16 %v2564
      %v3022 = vunpack.c.h.b16 %v2564
      %v3023 = vunpack.c.l.b16 %v2565
      %v3024 = vunpack.c.h.b16 %v2565
      %v3025 = vunpack.c.l.b16 %v2566
      %v3026 = vunpack.c.h.b16 %v2566
      %v3027 = vunpack.c.l.b16 %v2567
      %v3028 = vunpack.c.h.b16 %v2567
      %v3029 = vunpack.c.l.b16 %v2568
      %v3030 = vunpack.c.h.b16 %v2568
      %v3031 = vunpack.c.l.b16 %v2569
      %v3032 = vunpack.c.h.b16 %v2569
      %v3033 = vunpack.c.l.b16 %v2570
      %v3034 = vunpack.c.h.b16 %v2570
      %v3035 = vunpack.c.l.b16 %v2571
      %v3036 = vunpack.c.h.b16 %v2571
      %v3037 = vunpack.c.l.b16 %v2572
      %v3038 = vunpack.c.h.b16 %v2572
      %v3039 = vunpack.c.l.b16 %v2573
      %v3040 = vunpack.c.h.b16 %v2573
      %v3041 = vunpack.c.l.b16 %v2574
      %v3042 = vunpack.c.h.b16 %v2574
      %v3043 = vunpack.c.l.b16 %v2575
      %v3044 = vunpack.c.h.b16 %v2575
      %v3045 = vunpack.c.l.b16 %v2576
      %v3046 = vunpack.c.h.b16 %v2576
      %v3047 = vunpack.c.l.b16 %v2577
      %v3048 = vunpack.c.h.b16 %v2577
      %v3049 = vunpack.c.l.b16 %v2578
      %v3050 = vunpack.c.h.b16 %v2578
      %v3051 = vunpack.c.l.b16 %v2579
      %v3052 = vunpack.c.h.b16 %v2579
      %v3053 = vunpack.c.l.b16 %v2580
      %v3054 = vunpack.c.h.b16 %v2580
      %v3055 = vunpack.c.l.b16 %v2581
      %v3056 = vunpack.c.h.b16 %v2581
      %v3057 = vunpack.c.l.b16 %v2582
      %v3058 = vunpack.c.h.b16 %v2582
      %v3059 = vunpack.c.l.b16 %v2583
      %v3060 = vunpack.c.h.b16 %v2583
      %v3061 = vunpack.c.l.b16 %v2584
      %v3062 = vunpack.c.h.b16 %v2584
      %v3063 = vunpack.c.l.b16 %v2585
      %v3064 = vunpack.c.h.b16 %v2585
      %v3065 = vunpack.c.l.b16 %v2586
      %v3066 = vunpack.c.h.b16 %v2586
      %v3067 = vunpack.c.l.b16 %v2587
      %v3068 = vunpack.c.h.b16 %v2587
      %v3069 = vunpack.c.l.b16 %v2588
      %v3070 = vunpack.c.h.b16 %v2588
      %v3071 = vunpack.c.l.b16 %v2589
      %v3072 = vunpack.c.h.b16 %v2589
      %v3073 = vunpack.c.l.b16 %v2590
      %v3074 = vunpack.c.h.b16 %v2590
      %v3075 = vunpack.c.l.b16 %v2591
      %v3076 = vunpack.c.h.b16 %v2591
      %v3077 = vunpack.c.l.b16 %v2592
      %v3078 = vunpack.c.h.b16 %v2592
      %v3079 = vunpack.c.l.b16 %v2593
      %v3080 = vunpack.c.h.b16 %v2593
      %v3081 = vunpack.c.l.b16 %v2594
      %v3082 = vunpack.c.h.b16 %v2594
      %v3083 = vpack.c.b16 %v3005, %v3003
      %v3084 = vpack.c.b16 %v3006, %v3004
      %v3085 = vpack.c.b16 %v3009, %v3007
      %v3086 = vpack.c.b16 %v3010, %v3008
      %v3087 = vpack.c.b16 %v3013, %v3011
      %v3088 = vpack.c.b16 %v3014, %v3012
      %v3089 = vpack.c.b16 %v3017, %v3015
      %v3090 = vpack.c.b16 %v3018, %v3016
      %v3091 = vpack.c.b16 %v3021, %v3019
      %v3092 = vpack.c.b16 %v3022, %v3020
      %v3093 = vpack.c.b16 %v3025, %v3023
      %v3094 = vpack.c.b16 %v3026, %v3024
      %v3095 = vpack.c.b16 %v3029, %v3027
      %v3096 = vpack.c.b16 %v3030, %v3028
      %v3097 = vpack.c.b16 %v3033, %v3031
      %v3098 = vpack.c.b16 %v3034, %v3032
      %v3099 = vpack.c.b16 %v3037, %v3035
      %v3100 = vpack.c.b16 %v3038, %v3036
      %v3101 = vpack.c.b16 %v3041, %v3039
      %v3102 = vpack.c.b16 %v3042, %v3040
      %v3103 = vpack.c.b16 %v3045, %v3043
      %v3104 = vpack.c.b16 %v3046, %v3044
      %v3105 = vpack.c.b16 %v3049, %v3047
      %v3106 = vpack.c.b16 %v3050, %v3048
      %v3107 = vpack.c.b16 %v3053, %v3051
      %v3108 = vpack.c.b16 %v3054, %v3052
      %v3109 = vpack.c.b16 %v3057, %v3055
      %v3110 = vpack.c.b16 %v3058, %v3056
      %v3111 = vpack.c.b16 %v3061, %v3059
      %v3112 = vpack.c.b16 %v3062, %v3060
      %v3113 = vpack.c.b16 %v3065, %v3063
      %v3114 = vpack.c.b16 %v3066, %v3064
      %v3115 = vpack.c.b16 %v3069, %v3067
      %v3116 = vpack.c.b16 %v3070, %v3068
      %v3117 = vpack.c.b16 %v3073, %v3071
      %v3118 = vpack.c.b16 %v3074, %v3072
      %v3119 = vpack.c.b16 %v3077, %v3075
      %v3120 = vpack.c.b16 %v3078, %v3076
      %v3121 = vpack.c.b16 %v3081, %v3079
      %v3122 = vpack.c.b16 %v3082, %v3080
      %v3164 = vsel %vm2846, %v2960, 0
      %3166 = vmatprep.subr.bf16.mxu0 %v3098
      %3167 = vmatpush1.bf16.msra.mxu0 %v3097
      %3168 = vmatprep.subr.bf16.mxu0 %v3096
      %3169 = vmatpush1.bf16.msra.mxu0 %v3095
      %3170 = vmatprep.subr.bf16.mxu0 %v3094
      %3171 = vmatpush1.bf16.msra.mxu0 %v3093
      %3172 = vmatprep.subr.bf16.mxu0 %v3092
      %3173 = vmatpush1.bf16.msra.mxu0 %v3091
      %3174 = vmatprep.subr.bf16.mxu0 %v3090
      %3175 = vmatpush1.bf16.msra.mxu0 %v3089
      %3176 = vmatprep.subr.bf16.mxu0 %v3088
      %3177 = vmatpush1.bf16.msra.mxu0 %v3087
      %3178 = vmatprep.subr.bf16.mxu0 %v3086
      %3179 = vmatpush1.bf16.msra.mxu0 %v3085
      %3180 = vmatprep.subr.bf16.mxu0 %v3084
      %3181 = vmatpush1.bf16.msra.mxu0 %v3083
      %3182 = vmatprep.subr.bf16.mxu0 %v3114
      %3183 = vmatpush2.bf16.msra.mxu0 %v3113
      %3184 = vmatprep.subr.bf16.mxu0 %v3112
      %3185 = vmatpush2.bf16.msra.mxu0 %v3111
      %3186 = vmatprep.subr.bf16.mxu0 %v3110
      %3187 = vmatpush2.bf16.msra.mxu0 %v3109
      %3188 = vmatprep.subr.bf16.mxu0 %v3108
      %3189 = vmatpush2.bf16.msra.mxu0 %v3107
      %3190 = vmatprep.subr.bf16.mxu0 %v3106
      %3191 = vmatpush2.bf16.msra.mxu0 %v3105
      %3192 = vmatprep.subr.bf16.mxu0 %v3104
      %3193 = vmatpush2.bf16.msra.mxu0 %v3103
      %3194 = vmatprep.subr.bf16.mxu0 %v3102
      %3195 = vmatpush2.bf16.msra.mxu0 %v3101
      %3196 = vmatprep.subr.bf16.mxu0 %v3100
      %3197 = vmatpush2.bf16.msra.mxu0 %v3099
      %3198 = vmatprep.mubr.bf16.mxu0 %v2953
      %3199 = vmatmul.mubr.bf16.gmra.mxu0 %v2946
      %v3200 = vpop.f32.mrf.mxu0
      %v3201 = vadd.f32 %v2926, %v3200
      %v3202 = vpop.f32.mrf.mxu0
      %v3203 = vadd.f32 %v2928, %v3202
      %v3204 = vpop.f32.mrf.mxu0
      %v3205 = vpop.f32.mrf.mxu0
      %3206 = vdwg.mxu0
      %3207 = vmatprep.subr.bf16.mxu0 0
      %3208 = vmatpush1.bf16.msra.mxu0 0
      %3209 = vmatprep.subr.bf16.mxu0 0
      %3210 = vmatpush1.bf16.msra.mxu0 0
      %3211 = vmatprep.subr.bf16.mxu0 0
      %3212 = vmatpush1.bf16.msra.mxu0 0
      %3213 = vmatprep.subr.bf16.mxu0 0
      %3214 = vmatpush1.bf16.msra.mxu0 0
      %3215 = vmatprep.subr.bf16.mxu0 %v3122
      %3216 = vmatpush1.bf16.msra.mxu0 %v3121
      %3217 = vmatprep.subr.bf16.mxu0 %v3120
      %3218 = vmatpush1.bf16.msra.mxu0 %v3119
      %3219 = vmatprep.subr.bf16.mxu0 %v3118
      %3220 = vmatpush1.bf16.msra.mxu0 %v3117
      %3221 = vmatprep.subr.bf16.mxu0 %v3116
      %3222 = vmatpush1.bf16.msra.mxu0 %v3115
      %3223 = vmatprep.subr.bf16.mxu0 0
      %3224 = vmatpush2.bf16.msra.mxu0 0
      %3225 = vmatprep.subr.bf16.mxu0 0
      %3226 = vmatpush2.bf16.msra.mxu0 0
      %3227 = vmatprep.subr.bf16.mxu0 0
      %3228 = vmatpush2.bf16.msra.mxu0 0
      %3229 = vmatprep.subr.bf16.mxu0 0
      %3230 = vmatpush2.bf16.msra.mxu0 0
      %3231 = vmatprep.subr.bf16.mxu0 0
      %3232 = vmatpush2.bf16.msra.mxu0 0
      %3233 = vmatprep.subr.bf16.mxu0 0
      %3234 = vmatpush2.bf16.msra.mxu0 0
      %3235 = vmatprep.subr.bf16.mxu0 0
      %3236 = vmatpush2.bf16.msra.mxu0 0
      %3237 = vmatprep.subr.bf16.mxu0 0
      %3238 = vmatpush2.bf16.msra.mxu0 0
      %3239 = vmatprep.mubr.bf16.mxu0 0
      %3240 = vmatmul.mubr.bf16.gmra.mxu0 %v3164
      %v3241 = vpop.f32.mrf.mxu0
      %v3242 = vadd.f32 %v3201, %v3241
      %v3243 = vpop.f32.mrf.mxu0
      %v3244 = vadd.f32 %v3203, %v3243
      %v3245 = vpop.f32.mrf.mxu0
      %v3246 = vpop.f32.mrf.mxu0
      %3247 = vdwg.mxu0
      %v3248 = vld [vmem:[%s6] sm:$0x3]
      %v3250 = vlaneseq
      %v3251 = vshrl.u32 %v3250, 7
      %v3252 = vsub.s32 0, %v3251
      %v3253 = vrot.slane %v3248, %v3252
      %v3254 = vlaneseq
      %v3255 = vshrl.u32 %v3254, 7
      %v3256 = vsub.s32 1, %v3255
      %v3257 = vrot.slane %v3248, %v3256
      %v3260 = vadd.f32 %v3242, %v3253
      %v3261 = vadd.f32 %v3244, %v3257
      %v3262 = vmax.f32 %v3260, 0.0
      %v3263 = vmax.f32 %v3261, 0.0
      %v3264 = vpack.c.bf16 %v3262, %v3262
      %v3265 = vpack.c.bf16 %v3263, %v3263
      %v3268 = vunpack.c.l.b16 %v3264
      %v3269 = vunpack.c.l.b16 %v3265
      %v3270 = vpack.c.b16 %v3269, %v3268
      %v3272 = vshll.u32 %v3270, 16
      %3274 = vrot.lane.b32.xlu0 %v3272, 16
      %v3275 = vpop.permute.xlu0 %3274
      %v3276 = vrot.slane %v3275, 4
      %vm3277 = vcmask 130048
      %v3278 = vsel %vm3277, %v3276, %v3275
      %vm3281 = vcmask 1040512
      %vm3282 = vmand %vm3281, %vm674
      %vm3283 = vmor %vm678, %vm3282
      %v3284 = vld [vmem:[#allocation4] sm:$0x11]
      %v3285 = vsel %vm3283, %v3278, %v3284
      %3286 = vst [vmem:[#allocation4] sm:$0x11] %v3285
      %vm3287 = vcmask 122880
      %vm3288 = vmand %vm3287, %vm674
      %v3289 = vld [vmem:[#allocation4 + $0x8] sm:$0x1]
      %v3290 = vsel %vm3288, %v3276, %v3289
      %3291 = vst [vmem:[#allocation4 + $0x8] sm:$0x1] %v3290
      %v3292 = vrot.slane %v3270, 7
      %3293 = vrot.lane.b32.xlu0 %v3292, 16
      %v3294 = vpop.permute.xlu0 %3293
      %v3295 = vrot.slane %v3294, 4
      %v3296 = vsel %vm3277, %v3295, %v3294
      %vm3299 = vcmask 1041537
      %vm3300 = vmand %vm3299, %vm730
      %vm3301 = vmor %vm733, %vm3300
      %v3302 = vld [vmem:[#allocation4] sm:$0x22]
      %v3303 = vsel %vm3301, %v3296, %v3302
      %3304 = vst [vmem:[#allocation4] sm:$0x22] %v3303
      %vm3305 = vcmask 123905
      %vm3306 = vmand %vm3305, %vm730
      %v3307 = vld [vmem:[#allocation4 + $0x8] sm:$0x2]
      %v3308 = vsel %vm3306, %v3295, %v3307
      %3309 = vst [vmem:[#allocation4 + $0x8] sm:$0x2] %v3308
      %v3310 = vrot.slane %v3272, 7
      %3311 = vrot.lane.b32.xlu0 %v3310, 16
      %v3312 = vpop.permute.xlu0 %3311
      %v3313 = vrot.slane %v3312, 4
      %v3314 = vsel %vm3277, %v3313, %v3312
      %vm3317 = vcmask 1042562
      %vm3318 = vmand %vm3317, %vm1627
      %vm3319 = vmor %vm1630, %vm3318
      %v3320 = vld [vmem:[#allocation4] sm:$0x44]
      %v3321 = vsel %vm3319, %v3314, %v3320
      %3322 = vst [vmem:[#allocation4] sm:$0x44] %v3321
      %vm3323 = vcmask 124930
      %vm3324 = vmand %vm3323, %vm1627
      %v3325 = vld [vmem:[#allocation4 + $0x8] sm:$0x4]
      %v3326 = vsel %vm3324, %v3313, %v3325
      %3327 = vst [vmem:[#allocation4 + $0x8] sm:$0x4] %v3326
      %v3328 = vrot.slane %v3270, 6
      %3329 = vrot.lane.b32.xlu0 %v3328, 16
      %v3330 = vpop.permute.xlu0 %3329
      %v3331 = vrot.slane %v3330, 4
      %v3332 = vsel %vm3277, %v3331, %v3330
      %vm3335 = vcmask 1043587
      %vm3336 = vmand %vm3335, %vm1648
      %vm3337 = vmor %vm1652, %vm3336
      %v3338 = vld [vmem:[#allocation4] sm:$0x88]
      %v3339 = vsel %vm3337, %v3332, %v3338
      %3340 = vst [vmem:[#allocation4] sm:$0x88] %v3339
      %vm3341 = vcmask 125955
      %vm3342 = vmand %vm3341, %vm1648
      %v3343 = vld [vmem:[#allocation4 + $0x8] sm:$0x8]
      %v3344 = vsel %vm3342, %v3331, %v3343
      %3345 = vst [vmem:[#allocation4 + $0x8] sm:$0x8] %v3344
      %v3346 = vrot.slane %v3272, 6
      %v3347 = vrot.slane %v3346, 4
      %3348 = vrot.lane.b32.xlu0 %v3347, 16
      %v3349 = vpop.permute.xlu0 %3348
      %v3350 = vrot.slane %v3349, 4
      %v3351 = vsel %vm3277, %v3350, %v3349
      %v3354 = vld [vmem:[#allocation4 + $0xc] sm:$0x11]
      %v3355 = vsel %vm3283, %v3351, %v3354
      %3356 = vst [vmem:[#allocation4 + $0xc] sm:$0x11] %v3355
      %v3357 = vld [vmem:[#allocation4 + $0x14] sm:$0x1]
      %v3358 = vsel %vm3288, %v3350, %v3357
      %3359 = vst [vmem:[#allocation4 + $0x14] sm:$0x1] %v3358
      %v3360 = vrot.slane %v3270, 5
      %v3361 = vrot.slane %v3360, 4
      %3362 = vrot.lane.b32.xlu0 %v3361, 16
      %v3363 = vpop.permute.xlu0 %3362
      %v3364 = vrot.slane %v3363, 4
      %v3365 = vsel %vm3277, %v3364, %v3363
      %v3368 = vld [vmem:[#allocation4 + $0xc] sm:$0x22]
      %v3369 = vsel %vm3301, %v3365, %v3368
      %3370 = vst [vmem:[#allocation4 + $0xc] sm:$0x22] %v3369
      %v3371 = vld [vmem:[#allocation4 + $0x14] sm:$0x2]
      %v3372 = vsel %vm3306, %v3364, %v3371
      %3373 = vst [vmem:[#allocation4 + $0x14] sm:$0x2] %v3372
      %v3374 = vrot.slane %v3272, 5
      %v3375 = vrot.slane %v3374, 4
      %3376 = vrot.lane.b32.xlu0 %v3375, 16
      %v3377 = vpop.permute.xlu0 %3376
      %v3378 = vrot.slane %v3377, 4
      %v3379 = vsel %vm3277, %v3378, %v3377
      %v3382 = vld [vmem:[#allocation4 + $0xc] sm:$0x44]
      %v3383 = vsel %vm3319, %v3379, %v3382
      %3384 = vst [vmem:[#allocation4 + $0xc] sm:$0x44] %v3383
      %v3385 = vld [vmem:[#allocation4 + $0x14] sm:$0x4]
      %v3386 = vsel %vm3324, %v3378, %v3385
      %3387 = vst [vmem:[#allocation4 + $0x14] sm:$0x4] %v3386
      %3388 = vrot.lane.b32.xlu0 %v3270, 16
      %v3389 = vpop.permute.xlu0 %3388
      %v3390 = vrot.slane %v3389, 4
      %v3391 = vsel %vm3277, %v3390, %v3389
      %v3394 = vld [vmem:[#allocation4 + $0xc] sm:$0x88]
      %v3395 = vsel %vm3337, %v3391, %v3394
      %3396 = vst [vmem:[#allocation4 + $0xc] sm:$0x88] %v3395
      %v3397 = vld [vmem:[#allocation4 + $0x14] sm:$0x8]
      %v3398 = vsel %vm3342, %v3390, %v3397
      %3399 = vst [vmem:[#allocation4 + $0x14] sm:$0x8] %v3398
      %v3400 = vld [vmem:[#allocation3] sm:$0xff]
      %v3401 = vld [vmem:[#allocation3 + $0x8] sm:$0xf]
      %v3402 = vld [vmem:[#allocation3 + $0xc] sm:$0x11]
      %v3403 = vld [vmem:[#allocation3 + $0x14] sm:$0x1]
      %s3404 = scalar_lea.vmem %s5, 640
      %v3405 = vld [vmem:[%s3404] sm:$0xff]
      %v3406 = vld [vmem:[%s3404 + $0x8] sm:$0xff]
      %v3407 = vld [vmem:[%s3404 + $0x10] sm:$0xff]
      %v3408 = vld [vmem:[%s3404 + $0x18] sm:$0xff]
      %v3409 = vld [vmem:[%s3404 + $0x20] sm:$0xff]
      %v3410 = vld [vmem:[%s3404 + $0x28] sm:$0xff]
      %v3411 = vld [vmem:[%s3404 + $0x30] sm:$0xff]
      %v3412 = vld [vmem:[%s3404 + $0x38] sm:$0xff]
      %v3413 = vld [vmem:[%s3404 + $0x40] sm:$0xff]
      %v3414 = vld [vmem:[%s3404 + $0x48] sm:$0xff]
      %v3415 = vld [vmem:[%s3404 + $0x50] sm:$0xff]
      %v3416 = vld [vmem:[%s3404 + $0x58] sm:$0xff]
      %v3417 = vld [vmem:[%s3404 + $0x60] sm:$0xff]
      %v3418 = vld [vmem:[%s3404 + $0x68] sm:$0xff]
      %v3419 = vld [vmem:[%s3404 + $0x70] sm:$0xff]
      %v3420 = vld [vmem:[%s3404 + $0x78] sm:$0xff]
      %v3421 = vld [vmem:[%s3404 + $0x80] sm:$0xff]
      %v3422 = vld [vmem:[%s3404 + $0x88] sm:$0xff]
      %v3423 = vld [vmem:[%s3404 + $0x90] sm:$0xff]
      %v3424 = vld [vmem:[%s3404 + $0x98] sm:$0xff]
      %v3425 = vld [vmem:[%s3404 + $0xa0] sm:$0xff]
      %v3426 = vld [vmem:[%s3404 + $0xa8] sm:$0xff]
      %v3427 = vld [vmem:[%s3404 + $0xb0] sm:$0xff]
      %v3428 = vld [vmem:[%s3404 + $0xb8] sm:$0xff]
      %v3429 = vld [vmem:[%s3404 + $0xc0] sm:$0xff]
      %v3430 = vld [vmem:[%s3404 + $0xc8] sm:$0xff]
      %v3431 = vld [vmem:[%s3404 + $0xd0] sm:$0xff]
      %v3432 = vld [vmem:[%s3404 + $0xd8] sm:$0xff]
      %v3433 = vld [vmem:[%s3404 + $0xe0] sm:$0xff]
      %v3434 = vld [vmem:[%s3404 + $0xe8] sm:$0xff]
      %v3435 = vld [vmem:[%s3404 + $0xf0] sm:$0xff]
      %v3436 = vld [vmem:[%s3404 + $0xf8] sm:$0xff]
      %v3437 = vld [vmem:[%s3404 + $0x100] sm:$0xff]
      %v3438 = vld [vmem:[%s3404 + $0x108] sm:$0xff]
      %v3439 = vld [vmem:[%s3404 + $0x110] sm:$0xff]
      %v3440 = vld [vmem:[%s3404 + $0x118] sm:$0xff]
      %v3441 = vld [vmem:[%s3404 + $0x120] sm:$0xff]
      %v3442 = vld [vmem:[%s3404 + $0x128] sm:$0xff]
      %v3443 = vld [vmem:[%s3404 + $0x130] sm:$0xff]
      %v3444 = vld [vmem:[%s3404 + $0x138] sm:$0xff]
      %v3445 = vld [vmem:[#allocation3] sm:$0xee]
      %v3446 = vld [vmem:[#allocation3 + $0x8] sm:$0xe]
      %s3447 = scalar_lea.vmem %s5, 960
      %v3448 = vld [vmem:[%s3447] sm:$0xff]
      %v3449 = vld [vmem:[%s3447 + $0x8] sm:$0xff]
      %v3450 = vld [vmem:[%s3447 + $0x10] sm:$0xff]
      %v3451 = vld [vmem:[%s3447 + $0x18] sm:$0xff]
      %v3452 = vld [vmem:[%s3447 + $0x20] sm:$0xff]
      %v3453 = vld [vmem:[%s3447 + $0x28] sm:$0xff]
      %v3454 = vld [vmem:[%s3447 + $0x30] sm:$0xff]
      %v3455 = vld [vmem:[%s3447 + $0x38] sm:$0xff]
      %v3456 = vld [vmem:[%s3447 + $0x40] sm:$0xff]
      %v3457 = vld [vmem:[%s3447 + $0x48] sm:$0xff]
      %v3458 = vld [vmem:[%s3447 + $0x50] sm:$0xff]
      %v3459 = vld [vmem:[%s3447 + $0x58] sm:$0xff]
      %v3460 = vld [vmem:[%s3447 + $0x60] sm:$0xff]
      %v3461 = vld [vmem:[%s3447 + $0x68] sm:$0xff]
      %v3462 = vld [vmem:[%s3447 + $0x70] sm:$0xff]
      %v3463 = vld [vmem:[%s3447 + $0x78] sm:$0xff]
      %v3464 = vld [vmem:[%s3447 + $0x80] sm:$0xff]
      %v3465 = vld [vmem:[%s3447 + $0x88] sm:$0xff]
      %v3466 = vld [vmem:[%s3447 + $0x90] sm:$0xff]
      %v3467 = vld [vmem:[%s3447 + $0x98] sm:$0xff]
      %v3468 = vld [vmem:[%s3447 + $0xa0] sm:$0xff]
      %v3469 = vld [vmem:[%s3447 + $0xa8] sm:$0xff]
      %v3470 = vld [vmem:[%s3447 + $0xb0] sm:$0xff]
      %v3471 = vld [vmem:[%s3447 + $0xb8] sm:$0xff]
      %v3472 = vld [vmem:[%s3447 + $0xc0] sm:$0xff]
      %v3473 = vld [vmem:[%s3447 + $0xc8] sm:$0xff]
      %v3474 = vld [vmem:[%s3447 + $0xd0] sm:$0xff]
      %v3475 = vld [vmem:[%s3447 + $0xd8] sm:$0xff]
      %v3476 = vld [vmem:[%s3447 + $0xe0] sm:$0xff]
      %v3477 = vld [vmem:[%s3447 + $0xe8] sm:$0xff]
      %v3478 = vld [vmem:[%s3447 + $0xf0] sm:$0xff]
      %v3479 = vld [vmem:[%s3447 + $0xf8] sm:$0xff]
      %v3480 = vld [vmem:[%s3447 + $0x100] sm:$0xff]
      %v3481 = vld [vmem:[%s3447 + $0x108] sm:$0xff]
      %v3482 = vld [vmem:[%s3447 + $0x110] sm:$0xff]
      %v3483 = vld [vmem:[%s3447 + $0x118] sm:$0xff]
      %v3484 = vld [vmem:[%s3447 + $0x120] sm:$0xff]
      %v3485 = vld [vmem:[%s3447 + $0x128] sm:$0xff]
      %v3486 = vld [vmem:[%s3447 + $0x130] sm:$0xff]
      %v3487 = vld [vmem:[%s3447 + $0x138] sm:$0xff]
      %v3492 = vunpack.c.l.b16 %v3445
      %v3493 = vunpack.c.h.b16 %v3445
      %v3494 = vunpack.c.l.b16 %v3446
      %v3495 = vunpack.c.l.b16 %v3402
      %v3496 = vunpack.c.h.b16 %v3402
      %v3497 = vunpack.c.l.b16 %v3403
      %v3498 = vpack.c.b16 %v3495, %v3492
      %v3499 = vpack.c.b16 %v3496, %v3493
      %v3500 = vpack.c.b16 %v3497, %v3494
      %v3501 = vrot.slane %v3498, 1
      %v3502 = vrot.slane %v3499, 1
      %v3503 = vrot.slane %v3500, 1
      %v3546 = vunpack.c.l.b16 %v3448
      %v3547 = vunpack.c.h.b16 %v3448
      %v3548 = vunpack.c.l.b16 %v3449
      %v3549 = vunpack.c.h.b16 %v3449
      %v3550 = vunpack.c.l.b16 %v3450
      %v3551 = vunpack.c.h.b16 %v3450
      %v3552 = vunpack.c.l.b16 %v3451
      %v3553 = vunpack.c.h.b16 %v3451
      %v3554 = vunpack.c.l.b16 %v3452
      %v3555 = vunpack.c.h.b16 %v3452
      %v3556 = vunpack.c.l.b16 %v3453
      %v3557 = vunpack.c.h.b16 %v3453
      %v3558 = vunpack.c.l.b16 %v3454
      %v3559 = vunpack.c.h.b16 %v3454
      %v3560 = vunpack.c.l.b16 %v3455
      %v3561 = vunpack.c.h.b16 %v3455
      %v3562 = vunpack.c.l.b16 %v3456
      %v3563 = vunpack.c.h.b16 %v3456
      %v3564 = vunpack.c.l.b16 %v3457
      %v3565 = vunpack.c.h.b16 %v3457
      %v3566 = vunpack.c.l.b16 %v3458
      %v3567 = vunpack.c.h.b16 %v3458
      %v3568 = vunpack.c.l.b16 %v3459
      %v3569 = vunpack.c.h.b16 %v3459
      %v3570 = vunpack.c.l.b16 %v3460
      %v3571 = vunpack.c.h.b16 %v3460
      %v3572 = vunpack.c.l.b16 %v3461
      %v3573 = vunpack.c.h.b16 %v3461
      %v3574 = vunpack.c.l.b16 %v3462
      %v3575 = vunpack.c.h.b16 %v3462
      %v3576 = vunpack.c.l.b16 %v3463
      %v3577 = vunpack.c.h.b16 %v3463
      %v3578 = vunpack.c.l.b16 %v3464
      %v3579 = vunpack.c.h.b16 %v3464
      %v3580 = vunpack.c.l.b16 %v3465
      %v3581 = vunpack.c.h.b16 %v3465
      %v3582 = vunpack.c.l.b16 %v3466
      %v3583 = vunpack.c.h.b16 %v3466
      %v3584 = vunpack.c.l.b16 %v3467
      %v3585 = vunpack.c.h.b16 %v3467
      %v3586 = vunpack.c.l.b16 %v3468
      %v3587 = vunpack.c.h.b16 %v3468
      %v3588 = vunpack.c.l.b16 %v3469
      %v3589 = vunpack.c.h.b16 %v3469
      %v3590 = vunpack.c.l.b16 %v3470
      %v3591 = vunpack.c.h.b16 %v3470
      %v3592 = vunpack.c.l.b16 %v3471
      %v3593 = vunpack.c.h.b16 %v3471
      %v3594 = vunpack.c.l.b16 %v3472
      %v3595 = vunpack.c.h.b16 %v3472
      %v3596 = vunpack.c.l.b16 %v3473
      %v3597 = vunpack.c.h.b16 %v3473
      %v3598 = vunpack.c.l.b16 %v3474
      %v3599 = vunpack.c.h.b16 %v3474
      %v3600 = vunpack.c.l.b16 %v3475
      %v3601 = vunpack.c.h.b16 %v3475
      %v3602 = vunpack.c.l.b16 %v3476
      %v3603 = vunpack.c.h.b16 %v3476
      %v3604 = vunpack.c.l.b16 %v3477
      %v3605 = vunpack.c.h.b16 %v3477
      %v3606 = vunpack.c.l.b16 %v3478
      %v3607 = vunpack.c.h.b16 %v3478
      %v3608 = vunpack.c.l.b16 %v3479
      %v3609 = vunpack.c.h.b16 %v3479
      %v3610 = vunpack.c.l.b16 %v3480
      %v3611 = vunpack.c.h.b16 %v3480
      %v3612 = vunpack.c.l.b16 %v3481
      %v3613 = vunpack.c.h.b16 %v3481
      %v3614 = vunpack.c.l.b16 %v3482
      %v3615 = vunpack.c.h.b16 %v3482
      %v3616 = vunpack.c.l.b16 %v3483
      %v3617 = vunpack.c.h.b16 %v3483
      %v3618 = vunpack.c.l.b16 %v3484
      %v3619 = vunpack.c.h.b16 %v3484
      %v3620 = vunpack.c.l.b16 %v3485
      %v3621 = vunpack.c.h.b16 %v3485
      %v3622 = vunpack.c.l.b16 %v3486
      %v3623 = vunpack.c.h.b16 %v3486
      %v3624 = vunpack.c.l.b16 %v3487
      %v3625 = vunpack.c.h.b16 %v3487
      %v3626 = vpack.c.b16 %v3548, %v3546
      %v3627 = vpack.c.b16 %v3549, %v3547
      %v3628 = vpack.c.b16 %v3552, %v3550
      %v3629 = vpack.c.b16 %v3553, %v3551
      %v3630 = vpack.c.b16 %v3556, %v3554
      %v3631 = vpack.c.b16 %v3557, %v3555
      %v3632 = vpack.c.b16 %v3560, %v3558
      %v3633 = vpack.c.b16 %v3561, %v3559
      %v3634 = vpack.c.b16 %v3564, %v3562
      %v3635 = vpack.c.b16 %v3565, %v3563
      %v3636 = vpack.c.b16 %v3568, %v3566
      %v3637 = vpack.c.b16 %v3569, %v3567
      %v3638 = vpack.c.b16 %v3572, %v3570
      %v3639 = vpack.c.b16 %v3573, %v3571
      %v3640 = vpack.c.b16 %v3576, %v3574
      %v3641 = vpack.c.b16 %v3577, %v3575
      %v3642 = vpack.c.b16 %v3580, %v3578
      %v3643 = vpack.c.b16 %v3581, %v3579
      %v3644 = vpack.c.b16 %v3584, %v3582
      %v3645 = vpack.c.b16 %v3585, %v3583
      %v3646 = vpack.c.b16 %v3588, %v3586
      %v3647 = vpack.c.b16 %v3589, %v3587
      %v3648 = vpack.c.b16 %v3592, %v3590
      %v3649 = vpack.c.b16 %v3593, %v3591
      %v3650 = vpack.c.b16 %v3596, %v3594
      %v3651 = vpack.c.b16 %v3597, %v3595
      %v3652 = vpack.c.b16 %v3600, %v3598
      %v3653 = vpack.c.b16 %v3601, %v3599
      %v3654 = vpack.c.b16 %v3604, %v3602
      %v3655 = vpack.c.b16 %v3605, %v3603
      %v3656 = vpack.c.b16 %v3608, %v3606
      %v3657 = vpack.c.b16 %v3609, %v3607
      %v3658 = vpack.c.b16 %v3612, %v3610
      %v3659 = vpack.c.b16 %v3613, %v3611
      %v3660 = vpack.c.b16 %v3616, %v3614
      %v3661 = vpack.c.b16 %v3617, %v3615
      %v3662 = vpack.c.b16 %v3620, %v3618
      %v3663 = vpack.c.b16 %v3621, %v3619
      %v3664 = vpack.c.b16 %v3624, %v3622
      %v3665 = vpack.c.b16 %v3625, %v3623
      %v3707 = vsel %vm2846, %v3503, 0
      %3709 = vmatprep.subr.bf16.mxu0 %v3641
      %3710 = vmatpush1.bf16.msra.mxu0 %v3640
      %3711 = vmatprep.subr.bf16.mxu0 %v3639
      %3712 = vmatpush1.bf16.msra.mxu0 %v3638
      %3713 = vmatprep.subr.bf16.mxu0 %v3637
      %3714 = vmatpush1.bf16.msra.mxu0 %v3636
      %3715 = vmatprep.subr.bf16.mxu0 %v3635
      %3716 = vmatpush1.bf16.msra.mxu0 %v3634
      %3717 = vmatprep.subr.bf16.mxu0 %v3633
      %3718 = vmatpush1.bf16.msra.mxu0 %v3632
      %3719 = vmatprep.subr.bf16.mxu0 %v3631
      %3720 = vmatpush1.bf16.msra.mxu0 %v3630
      %3721 = vmatprep.subr.bf16.mxu0 %v3629
      %3722 = vmatpush1.bf16.msra.mxu0 %v3628
      %3723 = vmatprep.subr.bf16.mxu0 %v3627
      %3724 = vmatpush1.bf16.msra.mxu0 %v3626
      %3725 = vmatprep.subr.bf16.mxu0 %v3657
      %3726 = vmatpush2.bf16.msra.mxu0 %v3656
      %3727 = vmatprep.subr.bf16.mxu0 %v3655
      %3728 = vmatpush2.bf16.msra.mxu0 %v3654
      %3729 = vmatprep.subr.bf16.mxu0 %v3653
      %3730 = vmatpush2.bf16.msra.mxu0 %v3652
      %3731 = vmatprep.subr.bf16.mxu0 %v3651
      %3732 = vmatpush2.bf16.msra.mxu0 %v3650
      %3733 = vmatprep.subr.bf16.mxu0 %v3649
      %3734 = vmatpush2.bf16.msra.mxu0 %v3648
      %3735 = vmatprep.subr.bf16.mxu0 %v3647
      %3736 = vmatpush2.bf16.msra.mxu0 %v3646
      %3737 = vmatprep.subr.bf16.mxu0 %v3645
      %3738 = vmatpush2.bf16.msra.mxu0 %v3644
      %3739 = vmatprep.subr.bf16.mxu0 %v3643
      %3740 = vmatpush2.bf16.msra.mxu0 %v3642
      %3741 = vmatprep.mubr.bf16.mxu0 %v3502
      %3742 = vmatmul.mubr.bf16.gmra.mxu0 %v3501
      %v3743 = vpop.f32.mrf.mxu0
      %v3744 = vadd.f32 0.0, %v3743
      %v3745 = vpop.f32.mrf.mxu0
      %v3746 = vadd.f32 0.0, %v3745
      %v3747 = vpop.f32.mrf.mxu0
      %v3748 = vpop.f32.mrf.mxu0
      %3749 = vdwg.mxu0
      %3750 = vmatprep.subr.bf16.mxu0 0
      %3751 = vmatpush1.bf16.msra.mxu0 0
      %3752 = vmatprep.subr.bf16.mxu0 0
      %3753 = vmatpush1.bf16.msra.mxu0 0
      %3754 = vmatprep.subr.bf16.mxu0 0
      %3755 = vmatpush1.bf16.msra.mxu0 0
      %3756 = vmatprep.subr.bf16.mxu0 0
      %3757 = vmatpush1.bf16.msra.mxu0 0
      %3758 = vmatprep.subr.bf16.mxu0 %v3665
      %3759 = vmatpush1.bf16.msra.mxu0 %v3664
      %3760 = vmatprep.subr.bf16.mxu0 %v3663
      %3761 = vmatpush1.bf16.msra.mxu0 %v3662
      %3762 = vmatprep.subr.bf16.mxu0 %v3661
      %3763 = vmatpush1.bf16.msra.mxu0 %v3660
      %3764 = vmatprep.subr.bf16.mxu0 %v3659
      %3765 = vmatpush1.bf16.msra.mxu0 %v3658
      %3766 = vmatprep.subr.bf16.mxu0 0
      %3767 = vmatpush2.bf16.msra.mxu0 0
      %3768 = vmatprep.subr.bf16.mxu0 0
      %3769 = vmatpush2.bf16.msra.mxu0 0
      %3770 = vmatprep.subr.bf16.mxu0 0
      %3771 = vmatpush2.bf16.msra.mxu0 0
      %3772 = vmatprep.subr.bf16.mxu0 0
      %3773 = vmatpush2.bf16.msra.mxu0 0
      %3774 = vmatprep.subr.bf16.mxu0 0
      %3775 = vmatpush2.bf16.msra.mxu0 0
      %3776 = vmatprep.subr.bf16.mxu0 0
      %3777 = vmatpush2.bf16.msra.mxu0 0
      %3778 = vmatprep.subr.bf16.mxu0 0
      %3779 = vmatpush2.bf16.msra.mxu0 0
      %3780 = vmatprep.subr.bf16.mxu0 0
      %3781 = vmatpush2.bf16.msra.mxu0 0
      %3782 = vmatprep.mubr.bf16.mxu0 0
      %3783 = vmatmul.mubr.bf16.gmra.mxu0 %v3707
      %v3784 = vpop.f32.mrf.mxu0
      %v3785 = vadd.f32 %v3744, %v3784
      %v3786 = vpop.f32.mrf.mxu0
      %v3787 = vadd.f32 %v3746, %v3786
      %v3788 = vpop.f32.mrf.mxu0
      %v3789 = vpop.f32.mrf.mxu0
      %3790 = vdwg.mxu0
      %v3793 = vunpack.c.l.b16 %v3400
      %v3794 = vunpack.c.h.b16 %v3400
      %v3795 = vunpack.c.l.b16 %v3401
      %v3796 = vpack.c.b16 %v3495, %v3793
      %v3797 = vpack.c.b16 %v3496, %v3794
      %v3798 = vpack.c.b16 %v3497, %v3795
      %v3800 = vshrl.u32 %v3796, 16
      %v3802 = vshll.u32 %v3796, 16
      %v3804 = vrot.slane %v3802, 1
      %v3805 = vor.u32 %v3800, %v3804
      %v3807 = vshrl.u32 %v3797, 16
      %v3809 = vshll.u32 %v3797, 16
      %v3811 = vrot.slane %v3809, 1
      %v3812 = vor.u32 %v3807, %v3811
      %v3814 = vshrl.u32 %v3798, 16
      %v3816 = vshll.u32 %v3798, 16
      %v3818 = vrot.slane %v3816, 1
      %v3819 = vor.u32 %v3814, %v3818
      %v3862 = vunpack.c.l.b16 %v3405
      %v3863 = vunpack.c.h.b16 %v3405
      %v3864 = vunpack.c.l.b16 %v3406
      %v3865 = vunpack.c.h.b16 %v3406
      %v3866 = vunpack.c.l.b16 %v3407
      %v3867 = vunpack.c.h.b16 %v3407
      %v3868 = vunpack.c.l.b16 %v3408
      %v3869 = vunpack.c.h.b16 %v3408
      %v3870 = vunpack.c.l.b16 %v3409
      %v3871 = vunpack.c.h.b16 %v3409
      %v3872 = vunpack.c.l.b16 %v3410
      %v3873 = vunpack.c.h.b16 %v3410
      %v3874 = vunpack.c.l.b16 %v3411
      %v3875 = vunpack.c.h.b16 %v3411
      %v3876 = vunpack.c.l.b16 %v3412
      %v3877 = vunpack.c.h.b16 %v3412
      %v3878 = vunpack.c.l.b16 %v3413
      %v3879 = vunpack.c.h.b16 %v3413
      %v3880 = vunpack.c.l.b16 %v3414
      %v3881 = vunpack.c.h.b16 %v3414
      %v3882 = vunpack.c.l.b16 %v3415
      %v3883 = vunpack.c.h.b16 %v3415
      %v3884 = vunpack.c.l.b16 %v3416
      %v3885 = vunpack.c.h.b16 %v3416
      %v3886 = vunpack.c.l.b16 %v3417
      %v3887 = vunpack.c.h.b16 %v3417
      %v3888 = vunpack.c.l.b16 %v3418
      %v3889 = vunpack.c.h.b16 %v3418
      %v3890 = vunpack.c.l.b16 %v3419
      %v3891 = vunpack.c.h.b16 %v3419
      %v3892 = vunpack.c.l.b16 %v3420
      %v3893 = vunpack.c.h.b16 %v3420
      %v3894 = vunpack.c.l.b16 %v3421
      %v3895 = vunpack.c.h.b16 %v3421
      %v3896 = vunpack.c.l.b16 %v3422
      %v3897 = vunpack.c.h.b16 %v3422
      %v3898 = vunpack.c.l.b16 %v3423
      %v3899 = vunpack.c.h.b16 %v3423
      %v3900 = vunpack.c.l.b16 %v3424
      %v3901 = vunpack.c.h.b16 %v3424
      %v3902 = vunpack.c.l.b16 %v3425
      %v3903 = vunpack.c.h.b16 %v3425
      %v3904 = vunpack.c.l.b16 %v3426
      %v3905 = vunpack.c.h.b16 %v3426
      %v3906 = vunpack.c.l.b16 %v3427
      %v3907 = vunpack.c.h.b16 %v3427
      %v3908 = vunpack.c.l.b16 %v3428
      %v3909 = vunpack.c.h.b16 %v3428
      %v3910 = vunpack.c.l.b16 %v3429
      %v3911 = vunpack.c.h.b16 %v3429
      %v3912 = vunpack.c.l.b16 %v3430
      %v3913 = vunpack.c.h.b16 %v3430
      %v3914 = vunpack.c.l.b16 %v3431
      %v3915 = vunpack.c.h.b16 %v3431
      %v3916 = vunpack.c.l.b16 %v3432
      %v3917 = vunpack.c.h.b16 %v3432
      %v3918 = vunpack.c.l.b16 %v3433
      %v3919 = vunpack.c.h.b16 %v3433
      %v3920 = vunpack.c.l.b16 %v3434
      %v3921 = vunpack.c.h.b16 %v3434
      %v3922 = vunpack.c.l.b16 %v3435
      %v3923 = vunpack.c.h.b16 %v3435
      %v3924 = vunpack.c.l.b16 %v3436
      %v3925 = vunpack.c.h.b16 %v3436
      %v3926 = vunpack.c.l.b16 %v3437
      %v3927 = vunpack.c.h.b16 %v3437
      %v3928 = vunpack.c.l.b16 %v3438
      %v3929 = vunpack.c.h.b16 %v3438
      %v3930 = vunpack.c.l.b16 %v3439
      %v3931 = vunpack.c.h.b16 %v3439
      %v3932 = vunpack.c.l.b16 %v3440
      %v3933 = vunpack.c.h.b16 %v3440
      %v3934 = vunpack.c.l.b16 %v3441
      %v3935 = vunpack.c.h.b16 %v3441
      %v3936 = vunpack.c.l.b16 %v3442
      %v3937 = vunpack.c.h.b16 %v3442
      %v3938 = vunpack.c.l.b16 %v3443
      %v3939 = vunpack.c.h.b16 %v3443
      %v3940 = vunpack.c.l.b16 %v3444
      %v3941 = vunpack.c.h.b16 %v3444
      %v3942 = vpack.c.b16 %v3864, %v3862
      %v3943 = vpack.c.b16 %v3865, %v3863
      %v3944 = vpack.c.b16 %v3868, %v3866
      %v3945 = vpack.c.b16 %v3869, %v3867
      %v3946 = vpack.c.b16 %v3872, %v3870
      %v3947 = vpack.c.b16 %v3873, %v3871
      %v3948 = vpack.c.b16 %v3876, %v3874
      %v3949 = vpack.c.b16 %v3877, %v3875
      %v3950 = vpack.c.b16 %v3880, %v3878
      %v3951 = vpack.c.b16 %v3881, %v3879
      %v3952 = vpack.c.b16 %v3884, %v3882
      %v3953 = vpack.c.b16 %v3885, %v3883
      %v3954 = vpack.c.b16 %v3888, %v3886
      %v3955 = vpack.c.b16 %v3889, %v3887
      %v3956 = vpack.c.b16 %v3892, %v3890
      %v3957 = vpack.c.b16 %v3893, %v3891
      %v3958 = vpack.c.b16 %v3896, %v3894
      %v3959 = vpack.c.b16 %v3897, %v3895
      %v3960 = vpack.c.b16 %v3900, %v3898
      %v3961 = vpack.c.b16 %v3901, %v3899
      %v3962 = vpack.c.b16 %v3904, %v3902
      %v3963 = vpack.c.b16 %v3905, %v3903
      %v3964 = vpack.c.b16 %v3908, %v3906
      %v3965 = vpack.c.b16 %v3909, %v3907
      %v3966 = vpack.c.b16 %v3912, %v3910
      %v3967 = vpack.c.b16 %v3913, %v3911
      %v3968 = vpack.c.b16 %v3916, %v3914
      %v3969 = vpack.c.b16 %v3917, %v3915
      %v3970 = vpack.c.b16 %v3920, %v3918
      %v3971 = vpack.c.b16 %v3921, %v3919
      %v3972 = vpack.c.b16 %v3924, %v3922
      %v3973 = vpack.c.b16 %v3925, %v3923
      %v3974 = vpack.c.b16 %v3928, %v3926
      %v3975 = vpack.c.b16 %v3929, %v3927
      %v3976 = vpack.c.b16 %v3932, %v3930
      %v3977 = vpack.c.b16 %v3933, %v3931
      %v3978 = vpack.c.b16 %v3936, %v3934
      %v3979 = vpack.c.b16 %v3937, %v3935
      %v3980 = vpack.c.b16 %v3940, %v3938
      %v3981 = vpack.c.b16 %v3941, %v3939
      %v4023 = vsel %vm2846, %v3819, 0
      %4025 = vmatprep.subr.bf16.mxu0 %v3957
      %4026 = vmatpush1.bf16.msra.mxu0 %v3956
      %4027 = vmatprep.subr.bf16.mxu0 %v3955
      %4028 = vmatpush1.bf16.msra.mxu0 %v3954
      %4029 = vmatprep.subr.bf16.mxu0 %v3953
      %4030 = vmatpush1.bf16.msra.mxu0 %v3952
      %4031 = vmatprep.subr.bf16.mxu0 %v3951
      %4032 = vmatpush1.bf16.msra.mxu0 %v3950
      %4033 = vmatprep.subr.bf16.mxu0 %v3949
      %4034 = vmatpush1.bf16.msra.mxu0 %v3948
      %4035 = vmatprep.subr.bf16.mxu0 %v3947
      %4036 = vmatpush1.bf16.msra.mxu0 %v3946
      %4037 = vmatprep.subr.bf16.mxu0 %v3945
      %4038 = vmatpush1.bf16.msra.mxu0 %v3944
      %4039 = vmatprep.subr.bf16.mxu0 %v3943
      %4040 = vmatpush1.bf16.msra.mxu0 %v3942
      %4041 = vmatprep.subr.bf16.mxu0 %v3973
      %4042 = vmatpush2.bf16.msra.mxu0 %v3972
      %4043 = vmatprep.subr.bf16.mxu0 %v3971
      %4044 = vmatpush2.bf16.msra.mxu0 %v3970
      %4045 = vmatprep.subr.bf16.mxu0 %v3969
      %4046 = vmatpush2.bf16.msra.mxu0 %v3968
      %4047 = vmatprep.subr.bf16.mxu0 %v3967
      %4048 = vmatpush2.bf16.msra.mxu0 %v3966
      %4049 = vmatprep.subr.bf16.mxu0 %v3965
      %4050 = vmatpush2.bf16.msra.mxu0 %v3964
      %4051 = vmatprep.subr.bf16.mxu0 %v3963
      %4052 = vmatpush2.bf16.msra.mxu0 %v3962
      %4053 = vmatprep.subr.bf16.mxu0 %v3961
      %4054 = vmatpush2.bf16.msra.mxu0 %v3960
      %4055 = vmatprep.subr.bf16.mxu0 %v3959
      %4056 = vmatpush2.bf16.msra.mxu0 %v3958
      %4057 = vmatprep.mubr.bf16.mxu0 %v3812
      %4058 = vmatmul.mubr.bf16.gmra.mxu0 %v3805
      %v4059 = vpop.f32.mrf.mxu0
      %v4060 = vadd.f32 %v3785, %v4059
      %v4061 = vpop.f32.mrf.mxu0
      %v4062 = vadd.f32 %v3787, %v4061
      %v4063 = vpop.f32.mrf.mxu0
      %v4064 = vpop.f32.mrf.mxu0
      %4065 = vdwg.mxu0
      %4066 = vmatprep.subr.bf16.mxu0 0
      %4067 = vmatpush1.bf16.msra.mxu0 0
      %4068 = vmatprep.subr.bf16.mxu0 0
      %4069 = vmatpush1.bf16.msra.mxu0 0
      %4070 = vmatprep.subr.bf16.mxu0 0
      %4071 = vmatpush1.bf16.msra.mxu0 0
      %4072 = vmatprep.subr.bf16.mxu0 0
      %4073 = vmatpush1.bf16.msra.mxu0 0
      %4074 = vmatprep.subr.bf16.mxu0 %v3981
      %4075 = vmatpush1.bf16.msra.mxu0 %v3980
      %4076 = vmatprep.subr.bf16.mxu0 %v3979
      %4077 = vmatpush1.bf16.msra.mxu0 %v3978
      %4078 = vmatprep.subr.bf16.mxu0 %v3977
      %4079 = vmatpush1.bf16.msra.mxu0 %v3976
      %4080 = vmatprep.subr.bf16.mxu0 %v3975
      %4081 = vmatpush1.bf16.msra.mxu0 %v3974
      %4082 = vmatprep.subr.bf16.mxu0 0
      %4083 = vmatpush2.bf16.msra.mxu0 0
      %4084 = vmatprep.subr.bf16.mxu0 0
      %4085 = vmatpush2.bf16.msra.mxu0 0
      %4086 = vmatprep.subr.bf16.mxu0 0
      %4087 = vmatpush2.bf16.msra.mxu0 0
      %4088 = vmatprep.subr.bf16.mxu0 0
      %4089 = vmatpush2.bf16.msra.mxu0 0
      %4090 = vmatprep.subr.bf16.mxu0 0
      %4091 = vmatpush2.bf16.msra.mxu0 0
      %4092 = vmatprep.subr.bf16.mxu0 0
      %4093 = vmatpush2.bf16.msra.mxu0 0
      %4094 = vmatprep.subr.bf16.mxu0 0
      %4095 = vmatpush2.bf16.msra.mxu0 0
      %4096 = vmatprep.subr.bf16.mxu0 0
      %4097 = vmatpush2.bf16.msra.mxu0 0
      %4098 = vmatprep.mubr.bf16.mxu0 0
      %4099 = vmatmul.mubr.bf16.gmra.mxu0 %v4023
      %v4100 = vpop.f32.mrf.mxu0
      %v4101 = vadd.f32 %v4060, %v4100
      %v4102 = vpop.f32.mrf.mxu0
      %v4103 = vadd.f32 %v4062, %v4102
      %v4104 = vpop.f32.mrf.mxu0
      %v4105 = vpop.f32.mrf.mxu0
      %4106 = vdwg.mxu0
      %v4107 = vld [vmem:[%s6] sm:$0x3]
      %v4109 = vlaneseq
      %v4110 = vshrl.u32 %v4109, 7
      %v4111 = vsub.s32 0, %v4110
      %v4112 = vrot.slane %v4107, %v4111
      %v4113 = vlaneseq
      %v4114 = vshrl.u32 %v4113, 7
      %v4115 = vsub.s32 1, %v4114
      %v4116 = vrot.slane %v4107, %v4115
      %v4119 = vadd.f32 %v4101, %v4112
      %v4120 = vadd.f32 %v4103, %v4116
      %v4121 = vmax.f32 %v4119, 0.0
      %v4122 = vmax.f32 %v4120, 0.0
      %v4123 = vpack.c.bf16 %v4121, %v4121
      %v4124 = vpack.c.bf16 %v4122, %v4122
      %v4127 = vunpack.c.l.b16 %v4123
      %v4128 = vunpack.c.l.b16 %v4124
      %v4129 = vpack.c.b16 %v4128, %v4127
      %v4130 = vrot.slane %v4129, 7
      %4131 = vrot.lane.b32.xlu0 %v4130, 16
      %v4132 = vpop.permute.xlu0 %4131
      %v4133 = vrot.slane %v4132, 4
      %v4134 = vsel %vm3277, %v4133, %v4132
      %vm4137 = vmand %vm3299, %vm701
      %vm4138 = vmor %vm705, %vm4137
      %v4139 = vld [vmem:[#allocation4] sm:$0x22]
      %v4140 = vsel %vm4138, %v4134, %v4139
      %4141 = vst [vmem:[#allocation4] sm:$0x22] %v4140
      %vm4142 = vmand %vm3305, %vm701
      %v4143 = vld [vmem:[#allocation4 + $0x8] sm:$0x2]
      %v4144 = vsel %vm4142, %v4133, %v4143
      %4145 = vst [vmem:[#allocation4 + $0x8] sm:$0x2] %v4144
      %v4147 = vshrl.u32 %v4129, 16
      %v4149 = vrot.slane %v4147, 6
      %4150 = vrot.lane.b32.xlu0 %v4149, 16
      %v4151 = vpop.permute.xlu0 %4150
      %v4152 = vrot.slane %v4151, 4
      %v4153 = vsel %vm3277, %v4152, %v4151
      %vm4156 = vmand %vm3317, %vm755
      %vm4157 = vmor %vm759, %vm4156
      %v4158 = vld [vmem:[#allocation4] sm:$0x44]
      %v4159 = vsel %vm4157, %v4153, %v4158
      %4160 = vst [vmem:[#allocation4] sm:$0x44] %v4159
      %vm4161 = vmand %vm3323, %vm755
      %v4162 = vld [vmem:[#allocation4 + $0x8] sm:$0x4]
      %v4163 = vsel %vm4161, %v4152, %v4162
      %4164 = vst [vmem:[#allocation4 + $0x8] sm:$0x4] %v4163
      %v4165 = vrot.slane %v4129, 6
      %4166 = vrot.lane.b32.xlu0 %v4165, 16
      %v4167 = vpop.permute.xlu0 %4166
      %v4168 = vrot.slane %v4167, 4
      %v4169 = vsel %vm3277, %v4168, %v4167
      %vm4172 = vmand %vm3335, %vm2519
      %vm4173 = vmor %vm2522, %vm4172
      %v4174 = vld [vmem:[#allocation4] sm:$0x88]
      %v4175 = vsel %vm4173, %v4169, %v4174
      %4176 = vst [vmem:[#allocation4] sm:$0x88] %v4175
      %vm4177 = vmand %vm3341, %vm2519
      %v4178 = vld [vmem:[#allocation4 + $0x8] sm:$0x8]
      %v4179 = vsel %vm4177, %v4168, %v4178
      %4180 = vst [vmem:[#allocation4 + $0x8] sm:$0x8] %v4179
      %v4181 = vrot.slane %v4147, 5
      %v4182 = vrot.slane %v4181, 4
      %4183 = vrot.lane.b32.xlu0 %v4182, 16
      %v4184 = vpop.permute.xlu0 %4183
      %v4185 = vrot.slane %v4184, 4
      %v4186 = vsel %vm3277, %v4185, %v4184
      %vm4189 = vmand %vm3281, %vm2539
      %vm4190 = vmor %vm2542, %vm4189
      %v4191 = vld [vmem:[#allocation4 + $0xc] sm:$0x11]
      %v4192 = vsel %vm4190, %v4186, %v4191
      %4193 = vst [vmem:[#allocation4 + $0xc] sm:$0x11] %v4192
      %vm4194 = vmand %vm3287, %vm2539
      %v4195 = vld [vmem:[#allocation4 + $0x14] sm:$0x1]
      %v4196 = vsel %vm4194, %v4185, %v4195
      %4197 = vst [vmem:[#allocation4 + $0x14] sm:$0x1] %v4196
      %v4198 = vrot.slane %v4129, 5
      %v4199 = vrot.slane %v4198, 4
      %4200 = vrot.lane.b32.xlu0 %v4199, 16
      %v4201 = vpop.permute.xlu0 %4200
      %v4202 = vrot.slane %v4201, 4
      %v4203 = vsel %vm3277, %v4202, %v4201
      %v4206 = vld [vmem:[#allocation4 + $0xc] sm:$0x22]
      %v4207 = vsel %vm4138, %v4203, %v4206
      %4208 = vst [vmem:[#allocation4 + $0xc] sm:$0x22] %v4207
      %v4209 = vld [vmem:[#allocation4 + $0x14] sm:$0x2]
      %v4210 = vsel %vm4142, %v4202, %v4209
      %4211 = vst [vmem:[#allocation4 + $0x14] sm:$0x2] %v4210
      %v4212 = vrot.slane %v4147, 4
      %v4213 = vrot.slane %v4212, 4
      %4214 = vrot.lane.b32.xlu0 %v4213, 16
      %v4215 = vpop.permute.xlu0 %4214
      %v4216 = vrot.slane %v4215, 4
      %v4217 = vsel %vm3277, %v4216, %v4215
      %v4220 = vld [vmem:[#allocation4 + $0xc] sm:$0x44]
      %v4221 = vsel %vm4157, %v4217, %v4220
      %4222 = vst [vmem:[#allocation4 + $0xc] sm:$0x44] %v4221
      %v4223 = vld [vmem:[#allocation4 + $0x14] sm:$0x4]
      %v4224 = vsel %vm4161, %v4216, %v4223
      %4225 = vst [vmem:[#allocation4 + $0x14] sm:$0x4] %v4224
      %4226 = vrot.lane.b32.xlu0 %v4129, 16
      %v4227 = vpop.permute.xlu0 %4226
      %v4228 = vrot.slane %v4227, 4
      %v4229 = vsel %vm3277, %v4228, %v4227
      %v4232 = vld [vmem:[#allocation4 + $0xc] sm:$0x88]
      %v4233 = vsel %vm4173, %v4229, %v4232
      %4234 = vst [vmem:[#allocation4 + $0xc] sm:$0x88] %v4233
      %v4235 = vld [vmem:[#allocation4 + $0x14] sm:$0x8]
      %v4236 = vsel %vm4177, %v4228, %v4235
      %4237 = vst [vmem:[#allocation4 + $0x14] sm:$0x8] %v4236
      %v4238 = vrot.slane %v4147, 7
      %v4239 = vrot.slane %v4238, 4
      %4240 = vrot.lane.b32.xlu0 %v4239, 16
      %v4241 = vpop.permute.xlu0 %4240
      %v4242 = vrot.slane %v4241, 4
      %v4243 = vsel %vm3277, %v4242, %v4241
      %v4246 = vld [vmem:[#allocation4 + $0x18] sm:$0x11]
      %v4247 = vsel %vm4190, %v4243, %v4246
      %4248 = vst [vmem:[#allocation4 + $0x18] sm:$0x11] %v4247
      %v4249 = vld [vmem:[#allocation4 + $0x20] sm:$0x1]
      %v4250 = vsel %vm4194, %v4242, %v4249
      %4251 = vst [vmem:[#allocation4 + $0x20] sm:$0x1] %v4250
      %v4252 = vld [vmem:[#allocation4] sm:$0xff]
      %v4253 = vld [vmem:[#allocation4 + $0x8] sm:$0xf]
      %v4254 = vld [vmem:[#allocation4 + $0xc] sm:$0xff]
      %v4255 = vld [vmem:[#allocation4 + $0x14] sm:$0xf]
      %v4256 = vld [vmem:[#allocation4 + $0x18] sm:$0x11]
      %v4257 = vld [vmem:[#allocation4 + $0x20] sm:$0x1]
      %v4258 = vld [vmem:[%s7] sm:$0xff]
      %v4259 = vld [vmem:[%s7 + $0x8] sm:$0xff]
      %v4260 = vld [vmem:[%s7 + $0x10] sm:$0xff]
      %v4261 = vld [vmem:[%s7 + $0x18] sm:$0xff]
      %v4262 = vld [vmem:[%s7 + $0x20] sm:$0xff]
      %v4263 = vld [vmem:[%s7 + $0x28] sm:$0xff]
      %v4264 = vld [vmem:[%s7 + $0x30] sm:$0xff]
      %v4265 = vld [vmem:[%s7 + $0x38] sm:$0xff]
      %v4266 = vld [vmem:[%s7 + $0x40] sm:$0xff]
      %v4267 = vld [vmem:[%s7 + $0x48] sm:$0xff]
      %v4268 = vld [vmem:[%s7 + $0x50] sm:$0xff]
      %v4269 = vld [vmem:[%s7 + $0x58] sm:$0xff]
      %v4270 = vld [vmem:[%s7 + $0x60] sm:$0xff]
      %v4271 = vld [vmem:[%s7 + $0x68] sm:$0xff]
      %v4272 = vld [vmem:[%s7 + $0x70] sm:$0xff]
      %v4273 = vld [vmem:[%s7 + $0x78] sm:$0xff]
      %v4274 = vld [vmem:[%s7 + $0x80] sm:$0xff]
      %v4275 = vld [vmem:[%s7 + $0x88] sm:$0xff]
      %v4276 = vld [vmem:[%s7 + $0x90] sm:$0xff]
      %v4277 = vld [vmem:[%s7 + $0x98] sm:$0xff]
      %v4278 = vld [vmem:[%s7 + $0xa0] sm:$0xff]
      %v4279 = vld [vmem:[%s7 + $0xa8] sm:$0xff]
      %v4280 = vld [vmem:[%s7 + $0xb0] sm:$0xff]
      %v4281 = vld [vmem:[%s7 + $0xb8] sm:$0xff]
      %v4282 = vld [vmem:[%s7 + $0xc0] sm:$0xff]
      %v4283 = vld [vmem:[%s7 + $0xc8] sm:$0xff]
      %v4284 = vld [vmem:[%s7 + $0xd0] sm:$0xff]
      %v4285 = vld [vmem:[%s7 + $0xd8] sm:$0xff]
      %v4286 = vld [vmem:[%s7 + $0xe0] sm:$0xff]
      %v4287 = vld [vmem:[%s7 + $0xe8] sm:$0xff]
      %v4288 = vld [vmem:[%s7 + $0xf0] sm:$0xff]
      %v4289 = vld [vmem:[%s7 + $0xf8] sm:$0xff]
      %v4290 = vld [vmem:[%s7 + $0x100] sm:$0xff]
      %v4291 = vld [vmem:[%s7 + $0x108] sm:$0xff]
      %v4292 = vld [vmem:[%s7 + $0x110] sm:$0xff]
      %v4293 = vld [vmem:[%s7 + $0x118] sm:$0xff]
      %s4294 = scalar_lea.vmem %s7, 288
      %v4295 = vld [vmem:[%s4294] sm:$0xff]
      %v4296 = vld [vmem:[%s4294 + $0x8] sm:$0xff]
      %v4297 = vld [vmem:[%s4294 + $0x10] sm:$0xff]
      %v4298 = vld [vmem:[%s4294 + $0x18] sm:$0xff]
      %v4299 = vld [vmem:[%s4294 + $0x20] sm:$0xff]
      %v4300 = vld [vmem:[%s4294 + $0x28] sm:$0xff]
      %v4301 = vld [vmem:[%s4294 + $0x30] sm:$0xff]
      %v4302 = vld [vmem:[%s4294 + $0x38] sm:$0xff]
      %v4303 = vld [vmem:[%s4294 + $0x40] sm:$0xff]
      %v4304 = vld [vmem:[%s4294 + $0x48] sm:$0xff]
      %v4305 = vld [vmem:[%s4294 + $0x50] sm:$0xff]
      %v4306 = vld [vmem:[%s4294 + $0x58] sm:$0xff]
      %v4307 = vld [vmem:[%s4294 + $0x60] sm:$0xff]
      %v4308 = vld [vmem:[%s4294 + $0x68] sm:$0xff]
      %v4309 = vld [vmem:[%s4294 + $0x70] sm:$0xff]
      %v4310 = vld [vmem:[%s4294 + $0x78] sm:$0xff]
      %v4311 = vld [vmem:[%s4294 + $0x80] sm:$0xff]
      %v4312 = vld [vmem:[%s4294 + $0x88] sm:$0xff]
      %v4313 = vld [vmem:[%s4294 + $0x90] sm:$0xff]
      %v4314 = vld [vmem:[%s4294 + $0x98] sm:$0xff]
      %v4315 = vld [vmem:[%s4294 + $0xa0] sm:$0xff]
      %v4316 = vld [vmem:[%s4294 + $0xa8] sm:$0xff]
      %v4317 = vld [vmem:[%s4294 + $0xb0] sm:$0xff]
      %v4318 = vld [vmem:[%s4294 + $0xb8] sm:$0xff]
      %v4319 = vld [vmem:[%s4294 + $0xc0] sm:$0xff]
      %v4320 = vld [vmem:[%s4294 + $0xc8] sm:$0xff]
      %v4321 = vld [vmem:[%s4294 + $0xd0] sm:$0xff]
      %v4322 = vld [vmem:[%s4294 + $0xd8] sm:$0xff]
      %v4323 = vld [vmem:[%s4294 + $0xe0] sm:$0xff]
      %v4324 = vld [vmem:[%s4294 + $0xe8] sm:$0xff]
      %v4325 = vld [vmem:[%s4294 + $0xf0] sm:$0xff]
      %v4326 = vld [vmem:[%s4294 + $0xf8] sm:$0xff]
      %v4327 = vld [vmem:[%s4294 + $0x100] sm:$0xff]
      %v4328 = vld [vmem:[%s4294 + $0x108] sm:$0xff]
      %v4329 = vld [vmem:[%s4294 + $0x110] sm:$0xff]
      %v4330 = vld [vmem:[%s4294 + $0x118] sm:$0xff]
      %v4335 = vunpack.c.l.b16 %v4252
      %v4336 = vunpack.c.h.b16 %v4252
      %v4337 = vunpack.c.l.b16 %v4253
      %v4338 = vunpack.c.l.b16 %v4254
      %v4339 = vunpack.c.h.b16 %v4254
      %v4340 = vunpack.c.l.b16 %v4255
      %v4341 = vpack.c.b16 %v4338, %v4335
      %v4342 = vpack.c.b16 %v4339, %v4336
      %v4343 = vpack.c.b16 %v4340, %v4337
      %v4382 = vunpack.c.l.b16 %v4295
      %v4383 = vunpack.c.h.b16 %v4295
      %v4384 = vunpack.c.l.b16 %v4296
      %v4385 = vunpack.c.h.b16 %v4296
      %v4386 = vunpack.c.l.b16 %v4297
      %v4387 = vunpack.c.h.b16 %v4297
      %v4388 = vunpack.c.l.b16 %v4298
      %v4389 = vunpack.c.h.b16 %v4298
      %v4390 = vunpack.c.l.b16 %v4299
      %v4391 = vunpack.c.h.b16 %v4299
      %v4392 = vunpack.c.l.b16 %v4300
      %v4393 = vunpack.c.h.b16 %v4300
      %v4394 = vunpack.c.l.b16 %v4301
      %v4395 = vunpack.c.h.b16 %v4301
      %v4396 = vunpack.c.l.b16 %v4302
      %v4397 = vunpack.c.h.b16 %v4302
      %v4398 = vunpack.c.l.b16 %v4303
      %v4399 = vunpack.c.h.b16 %v4303
      %v4400 = vunpack.c.l.b16 %v4304
      %v4401 = vunpack.c.h.b16 %v4304
      %v4402 = vunpack.c.l.b16 %v4305
      %v4403 = vunpack.c.h.b16 %v4305
      %v4404 = vunpack.c.l.b16 %v4306
      %v4405 = vunpack.c.h.b16 %v4306
      %v4406 = vunpack.c.l.b16 %v4307
      %v4407 = vunpack.c.h.b16 %v4307
      %v4408 = vunpack.c.l.b16 %v4308
      %v4409 = vunpack.c.h.b16 %v4308
      %v4410 = vunpack.c.l.b16 %v4309
      %v4411 = vunpack.c.h.b16 %v4309
      %v4412 = vunpack.c.l.b16 %v4310
      %v4413 = vunpack.c.h.b16 %v4310
      %v4414 = vunpack.c.l.b16 %v4311
      %v4415 = vunpack.c.h.b16 %v4311
      %v4416 = vunpack.c.l.b16 %v4312
      %v4417 = vunpack.c.h.b16 %v4312
      %v4418 = vunpack.c.l.b16 %v4313
      %v4419 = vunpack.c.h.b16 %v4313
      %v4420 = vunpack.c.l.b16 %v4314
      %v4421 = vunpack.c.h.b16 %v4314
      %v4422 = vunpack.c.l.b16 %v4315
      %v4423 = vunpack.c.h.b16 %v4315
      %v4424 = vunpack.c.l.b16 %v4316
      %v4425 = vunpack.c.h.b16 %v4316
      %v4426 = vunpack.c.l.b16 %v4317
      %v4427 = vunpack.c.h.b16 %v4317
      %v4428 = vunpack.c.l.b16 %v4318
      %v4429 = vunpack.c.h.b16 %v4318
      %v4430 = vunpack.c.l.b16 %v4319
      %v4431 = vunpack.c.h.b16 %v4319
      %v4432 = vunpack.c.l.b16 %v4320
      %v4433 = vunpack.c.h.b16 %v4320
      %v4434 = vunpack.c.l.b16 %v4321
      %v4435 = vunpack.c.h.b16 %v4321
      %v4436 = vunpack.c.l.b16 %v4322
      %v4437 = vunpack.c.h.b16 %v4322
      %v4438 = vunpack.c.l.b16 %v4323
      %v4439 = vunpack.c.h.b16 %v4323
      %v4440 = vunpack.c.l.b16 %v4324
      %v4441 = vunpack.c.h.b16 %v4324
      %v4442 = vunpack.c.l.b16 %v4325
      %v4443 = vunpack.c.h.b16 %v4325
      %v4444 = vunpack.c.l.b16 %v4326
      %v4445 = vunpack.c.h.b16 %v4326
      %v4446 = vunpack.c.l.b16 %v4327
      %v4447 = vunpack.c.h.b16 %v4327
      %v4448 = vunpack.c.l.b16 %v4328
      %v4449 = vunpack.c.h.b16 %v4328
      %v4450 = vunpack.c.l.b16 %v4329
      %v4451 = vunpack.c.h.b16 %v4329
      %v4452 = vunpack.c.l.b16 %v4330
      %v4453 = vunpack.c.h.b16 %v4330
      %v4454 = vpack.c.b16 %v4384, %v4382
      %v4455 = vpack.c.b16 %v4385, %v4383
      %v4456 = vpack.c.b16 %v4388, %v4386
      %v4457 = vpack.c.b16 %v4389, %v4387
      %v4458 = vpack.c.b16 %v4392, %v4390
      %v4459 = vpack.c.b16 %v4393, %v4391
      %v4460 = vpack.c.b16 %v4396, %v4394
      %v4461 = vpack.c.b16 %v4397, %v4395
      %v4462 = vpack.c.b16 %v4400, %v4398
      %v4463 = vpack.c.b16 %v4401, %v4399
      %v4464 = vpack.c.b16 %v4404, %v4402
      %v4465 = vpack.c.b16 %v4405, %v4403
      %v4466 = vpack.c.b16 %v4408, %v4406
      %v4467 = vpack.c.b16 %v4409, %v4407
      %v4468 = vpack.c.b16 %v4412, %v4410
      %v4469 = vpack.c.b16 %v4413, %v4411
      %v4470 = vpack.c.b16 %v4416, %v4414
      %v4471 = vpack.c.b16 %v4417, %v4415
      %v4472 = vpack.c.b16 %v4420, %v4418
      %v4473 = vpack.c.b16 %v4421, %v4419
      %v4474 = vpack.c.b16 %v4424, %v4422
      %v4475 = vpack.c.b16 %v4425, %v4423
      %v4476 = vpack.c.b16 %v4428, %v4426
      %v4477 = vpack.c.b16 %v4429, %v4427
      %v4478 = vpack.c.b16 %v4432, %v4430
      %v4479 = vpack.c.b16 %v4433, %v4431
      %v4480 = vpack.c.b16 %v4436, %v4434
      %v4481 = vpack.c.b16 %v4437, %v4435
      %v4482 = vpack.c.b16 %v4440, %v4438
      %v4483 = vpack.c.b16 %v4441, %v4439
      %v4484 = vpack.c.b16 %v4444, %v4442
      %v4485 = vpack.c.b16 %v4445, %v4443
      %v4486 = vpack.c.b16 %v4448, %v4446
      %v4487 = vpack.c.b16 %v4449, %v4447
      %v4488 = vpack.c.b16 %v4452, %v4450
      %v4489 = vpack.c.b16 %v4453, %v4451
      %vm4526 = vcmask 261120
      %v4528 = vsel %vm4526, %v4343, 0
      %4530 = vmatprep.subr.bf16.mxu0 %v4469
      %4531 = vmatpush1.bf16.msra.mxu0 %v4468
      %4532 = vmatprep.subr.bf16.mxu0 %v4467
      %4533 = vmatpush1.bf16.msra.mxu0 %v4466
      %4534 = vmatprep.subr.bf16.mxu0 %v4465
      %4535 = vmatpush1.bf16.msra.mxu0 %v4464
      %4536 = vmatprep.subr.bf16.mxu0 %v4463
      %4537 = vmatpush1.bf16.msra.mxu0 %v4462
      %4538 = vmatprep.subr.bf16.mxu0 %v4461
      %4539 = vmatpush1.bf16.msra.mxu0 %v4460
      %4540 = vmatprep.subr.bf16.mxu0 %v4459
      %4541 = vmatpush1.bf16.msra.mxu0 %v4458
      %4542 = vmatprep.subr.bf16.mxu0 %v4457
      %4543 = vmatpush1.bf16.msra.mxu0 %v4456
      %4544 = vmatprep.subr.bf16.mxu0 %v4455
      %4545 = vmatpush1.bf16.msra.mxu0 %v4454
      %4546 = vmatprep.subr.bf16.mxu0 %v4485
      %4547 = vmatpush2.bf16.msra.mxu0 %v4484
      %4548 = vmatprep.subr.bf16.mxu0 %v4483
      %4549 = vmatpush2.bf16.msra.mxu0 %v4482
      %4550 = vmatprep.subr.bf16.mxu0 %v4481
      %4551 = vmatpush2.bf16.msra.mxu0 %v4480
      %4552 = vmatprep.subr.bf16.mxu0 %v4479
      %4553 = vmatpush2.bf16.msra.mxu0 %v4478
      %4554 = vmatprep.subr.bf16.mxu0 %v4477
      %4555 = vmatpush2.bf16.msra.mxu0 %v4476
      %4556 = vmatprep.subr.bf16.mxu0 %v4475
      %4557 = vmatpush2.bf16.msra.mxu0 %v4474
      %4558 = vmatprep.subr.bf16.mxu0 %v4473
      %4559 = vmatpush2.bf16.msra.mxu0 %v4472
      %4560 = vmatprep.subr.bf16.mxu0 %v4471
      %4561 = vmatpush2.bf16.msra.mxu0 %v4470
      %4562 = vmatprep.mubr.bf16.mxu0 %v4342
      %4563 = vmatmul.mubr.bf16.gmra.mxu0 %v4341
      %v4564 = vpop.f32.mrf.mxu0
      %v4565 = vadd.f32 0.0, %v4564
      %v4566 = vpop.f32.mrf.mxu0
      %v4567 = vadd.f32 0.0, %v4566
      %v4568 = vpop.f32.mrf.mxu0
      %v4569 = vadd.f32 0.0, %v4568
      %v4570 = vpop.f32.mrf.mxu0
      %v4571 = vadd.f32 0.0, %v4570
      %4572 = vdwg.mxu0
      %4573 = vmatprep.subr.bf16.mxu0 0
      %4574 = vmatpush1.bf16.msra.mxu0 0
      %4575 = vmatprep.subr.bf16.mxu0 0
      %4576 = vmatpush1.bf16.msra.mxu0 0
      %4577 = vmatprep.subr.bf16.mxu0 0
      %4578 = vmatpush1.bf16.msra.mxu0 0
      %4579 = vmatprep.subr.bf16.mxu0 0
      %4580 = vmatpush1.bf16.msra.mxu0 0
      %4581 = vmatprep.subr.bf16.mxu0 0
      %4582 = vmatpush1.bf16.msra.mxu0 0
      %4583 = vmatprep.subr.bf16.mxu0 0
      %4584 = vmatpush1.bf16.msra.mxu0 0
      %4585 = vmatprep.subr.bf16.mxu0 %v4489
      %4586 = vmatpush1.bf16.msra.mxu0 %v4488
      %4587 = vmatprep.subr.bf16.mxu0 %v4487
      %4588 = vmatpush1.bf16.msra.mxu0 %v4486
      %4589 = vmatprep.subr.bf16.mxu0 0
      %4590 = vmatpush2.bf16.msra.mxu0 0
      %4591 = vmatprep.subr.bf16.mxu0 0
      %4592 = vmatpush2.bf16.msra.mxu0 0
      %4593 = vmatprep.subr.bf16.mxu0 0
      %4594 = vmatpush2.bf16.msra.mxu0 0
      %4595 = vmatprep.subr.bf16.mxu0 0
      %4596 = vmatpush2.bf16.msra.mxu0 0
      %4597 = vmatprep.subr.bf16.mxu0 0
      %4598 = vmatpush2.bf16.msra.mxu0 0
      %4599 = vmatprep.subr.bf16.mxu0 0
      %4600 = vmatpush2.bf16.msra.mxu0 0
      %4601 = vmatprep.subr.bf16.mxu0 0
      %4602 = vmatpush2.bf16.msra.mxu0 0
      %4603 = vmatprep.subr.bf16.mxu0 0
      %4604 = vmatpush2.bf16.msra.mxu0 0
      %4605 = vmatprep.mubr.bf16.mxu0 0
      %4606 = vmatmul.mubr.bf16.gmra.mxu0 %v4528
      %v4607 = vpop.f32.mrf.mxu0
      %v4608 = vadd.f32 %v4565, %v4607
      %v4609 = vpop.f32.mrf.mxu0
      %v4610 = vadd.f32 %v4567, %v4609
      %v4611 = vpop.f32.mrf.mxu0
      %v4612 = vadd.f32 %v4569, %v4611
      %v4613 = vpop.f32.mrf.mxu0
      %v4614 = vadd.f32 %v4571, %v4613
      %4615 = vdwg.mxu0
      %v4618 = vunpack.c.l.b16 %v4256
      %v4619 = vunpack.c.h.b16 %v4256
      %v4620 = vunpack.c.l.b16 %v4257
      %v4621 = vpack.c.b16 %v4618, %v4618
      %v4622 = vpack.c.b16 %v4619, %v4619
      %v4623 = vpack.c.b16 %v4620, %v4620
      %v4625 = vshrl.u32 %v4341, 16
      %v4627 = vshll.u32 %v4341, 16
      %v4629 = vrot.slane %v4627, 1
      %v4630 = vor.u32 %v4625, %v4629
      %v4632 = vshll.u32 %v4621, 16
      %v4634 = vrot.slane %v4632, 1
      %v4635 = vsel %vm2521, %v4630, %v4634
      %v4637 = vshrl.u32 %v4342, 16
      %v4639 = vshll.u32 %v4342, 16
      %v4641 = vrot.slane %v4639, 1
      %v4642 = vor.u32 %v4637, %v4641
      %v4644 = vshll.u32 %v4622, 16
      %v4646 = vrot.slane %v4644, 1
      %v4647 = vsel %vm2521, %v4642, %v4646
      %v4648 = vshrl.u32 %v4343, 16
      %v4650 = vshll.u32 %v4343, 16
      %v4652 = vrot.slane %v4650, 1
      %v4653 = vor.u32 %v4648, %v4652
      %v4655 = vshll.u32 %v4623, 16
      %v4657 = vrot.slane %v4655, 1
      %v4658 = vsel %vm2521, %v4653, %v4657
      %v4697 = vunpack.c.l.b16 %v4258
      %v4698 = vunpack.c.h.b16 %v4258
      %v4699 = vunpack.c.l.b16 %v4259
      %v4700 = vunpack.c.h.b16 %v4259
      %v4701 = vunpack.c.l.b16 %v4260
      %v4702 = vunpack.c.h.b16 %v4260
      %v4703 = vunpack.c.l.b16 %v4261
      %v4704 = vunpack.c.h.b16 %v4261
      %v4705 = vunpack.c.l.b16 %v4262
      %v4706 = vunpack.c.h.b16 %v4262
      %v4707 = vunpack.c.l.b16 %v4263
      %v4708 = vunpack.c.h.b16 %v4263
      %v4709 = vunpack.c.l.b16 %v4264
      %v4710 = vunpack.c.h.b16 %v4264
      %v4711 = vunpack.c.l.b16 %v4265
      %v4712 = vunpack.c.h.b16 %v4265
      %v4713 = vunpack.c.l.b16 %v4266
      %v4714 = vunpack.c.h.b16 %v4266
      %v4715 = vunpack.c.l.b16 %v4267
      %v4716 = vunpack.c.h.b16 %v4267
      %v4717 = vunpack.c.l.b16 %v4268
      %v4718 = vunpack.c.h.b16 %v4268
      %v4719 = vunpack.c.l.b16 %v4269
      %v4720 = vunpack.c.h.b16 %v4269
      %v4721 = vunpack.c.l.b16 %v4270
      %v4722 = vunpack.c.h.b16 %v4270
      %v4723 = vunpack.c.l.b16 %v4271
      %v4724 = vunpack.c.h.b16 %v4271
      %v4725 = vunpack.c.l.b16 %v4272
      %v4726 = vunpack.c.h.b16 %v4272
      %v4727 = vunpack.c.l.b16 %v4273
      %v4728 = vunpack.c.h.b16 %v4273
      %v4729 = vunpack.c.l.b16 %v4274
      %v4730 = vunpack.c.h.b16 %v4274
      %v4731 = vunpack.c.l.b16 %v4275
      %v4732 = vunpack.c.h.b16 %v4275
      %v4733 = vunpack.c.l.b16 %v4276
      %v4734 = vunpack.c.h.b16 %v4276
      %v4735 = vunpack.c.l.b16 %v4277
      %v4736 = vunpack.c.h.b16 %v4277
      %v4737 = vunpack.c.l.b16 %v4278
      %v4738 = vunpack.c.h.b16 %v4278
      %v4739 = vunpack.c.l.b16 %v4279
      %v4740 = vunpack.c.h.b16 %v4279
      %v4741 = vunpack.c.l.b16 %v4280
      %v4742 = vunpack.c.h.b16 %v4280
      %v4743 = vunpack.c.l.b16 %v4281
      %v4744 = vunpack.c.h.b16 %v4281
      %v4745 = vunpack.c.l.b16 %v4282
      %v4746 = vunpack.c.h.b16 %v4282
      %v4747 = vunpack.c.l.b16 %v4283
      %v4748 = vunpack.c.h.b16 %v4283
      %v4749 = vunpack.c.l.b16 %v4284
      %v4750 = vunpack.c.h.b16 %v4284
      %v4751 = vunpack.c.l.b16 %v4285
      %v4752 = vunpack.c.h.b16 %v4285
      %v4753 = vunpack.c.l.b16 %v4286
      %v4754 = vunpack.c.h.b16 %v4286
      %v4755 = vunpack.c.l.b16 %v4287
      %v4756 = vunpack.c.h.b16 %v4287
      %v4757 = vunpack.c.l.b16 %v4288
      %v4758 = vunpack.c.h.b16 %v4288
      %v4759 = vunpack.c.l.b16 %v4289
      %v4760 = vunpack.c.h.b16 %v4289
      %v4761 = vunpack.c.l.b16 %v4290
      %v4762 = vunpack.c.h.b16 %v4290
      %v4763 = vunpack.c.l.b16 %v4291
      %v4764 = vunpack.c.h.b16 %v4291
      %v4765 = vunpack.c.l.b16 %v4292
      %v4766 = vunpack.c.h.b16 %v4292
      %v4767 = vunpack.c.l.b16 %v4293
      %v4768 = vunpack.c.h.b16 %v4293
      %v4769 = vpack.c.b16 %v4699, %v4697
      %v4770 = vpack.c.b16 %v4700, %v4698
      %v4771 = vpack.c.b16 %v4703, %v4701
      %v4772 = vpack.c.b16 %v4704, %v4702
      %v4773 = vpack.c.b16 %v4707, %v4705
      %v4774 = vpack.c.b16 %v4708, %v4706
      %v4775 = vpack.c.b16 %v4711, %v4709
      %v4776 = vpack.c.b16 %v4712, %v4710
      %v4777 = vpack.c.b16 %v4715, %v4713
      %v4778 = vpack.c.b16 %v4716, %v4714
      %v4779 = vpack.c.b16 %v4719, %v4717
      %v4780 = vpack.c.b16 %v4720, %v4718
      %v4781 = vpack.c.b16 %v4723, %v4721
      %v4782 = vpack.c.b16 %v4724, %v4722
      %v4783 = vpack.c.b16 %v4727, %v4725
      %v4784 = vpack.c.b16 %v4728, %v4726
      %v4785 = vpack.c.b16 %v4731, %v4729
      %v4786 = vpack.c.b16 %v4732, %v4730
      %v4787 = vpack.c.b16 %v4735, %v4733
      %v4788 = vpack.c.b16 %v4736, %v4734
      %v4789 = vpack.c.b16 %v4739, %v4737
      %v4790 = vpack.c.b16 %v4740, %v4738
      %v4791 = vpack.c.b16 %v4743, %v4741
      %v4792 = vpack.c.b16 %v4744, %v4742
      %v4793 = vpack.c.b16 %v4747, %v4745
      %v4794 = vpack.c.b16 %v4748, %v4746
      %v4795 = vpack.c.b16 %v4751, %v4749
      %v4796 = vpack.c.b16 %v4752, %v4750
      %v4797 = vpack.c.b16 %v4755, %v4753
      %v4798 = vpack.c.b16 %v4756, %v4754
      %v4799 = vpack.c.b16 %v4759, %v4757
      %v4800 = vpack.c.b16 %v4760, %v4758
      %v4801 = vpack.c.b16 %v4763, %v4761
      %v4802 = vpack.c.b16 %v4764, %v4762
      %v4803 = vpack.c.b16 %v4767, %v4765
      %v4804 = vpack.c.b16 %v4768, %v4766
      %v4842 = vsel %vm4526, %v4658, 0
      %4844 = vmatprep.subr.bf16.mxu0 %v4784
      %4845 = vmatpush1.bf16.msra.mxu0 %v4783
      %4846 = vmatprep.subr.bf16.mxu0 %v4782
      %4847 = vmatpush1.bf16.msra.mxu0 %v4781
      %4848 = vmatprep.subr.bf16.mxu0 %v4780
      %4849 = vmatpush1.bf16.msra.mxu0 %v4779
      %4850 = vmatprep.subr.bf16.mxu0 %v4778
      %4851 = vmatpush1.bf16.msra.mxu0 %v4777
      %4852 = vmatprep.subr.bf16.mxu0 %v4776
      %4853 = vmatpush1.bf16.msra.mxu0 %v4775
      %4854 = vmatprep.subr.bf16.mxu0 %v4774
      %4855 = vmatpush1.bf16.msra.mxu0 %v4773
      %4856 = vmatprep.subr.bf16.mxu0 %v4772
      %4857 = vmatpush1.bf16.msra.mxu0 %v4771
      %4858 = vmatprep.subr.bf16.mxu0 %v4770
      %4859 = vmatpush1.bf16.msra.mxu0 %v4769
      %4860 = vmatprep.subr.bf16.mxu0 %v4800
      %4861 = vmatpush2.bf16.msra.mxu0 %v4799
      %4862 = vmatprep.subr.bf16.mxu0 %v4798
      %4863 = vmatpush2.bf16.msra.mxu0 %v4797
      %4864 = vmatprep.subr.bf16.mxu0 %v4796
      %4865 = vmatpush2.bf16.msra.mxu0 %v4795
      %4866 = vmatprep.subr.bf16.mxu0 %v4794
      %4867 = vmatpush2.bf16.msra.mxu0 %v4793
      %4868 = vmatprep.subr.bf16.mxu0 %v4792
      %4869 = vmatpush2.bf16.msra.mxu0 %v4791
      %4870 = vmatprep.subr.bf16.mxu0 %v4790
      %4871 = vmatpush2.bf16.msra.mxu0 %v4789
      %4872 = vmatprep.subr.bf16.mxu0 %v4788
      %4873 = vmatpush2.bf16.msra.mxu0 %v4787
      %4874 = vmatprep.subr.bf16.mxu0 %v4786
      %4875 = vmatpush2.bf16.msra.mxu0 %v4785
      %4876 = vmatprep.mubr.bf16.mxu0 %v4647
      %4877 = vmatmul.mubr.bf16.gmra.mxu0 %v4635
      %v4878 = vpop.f32.mrf.mxu0
      %v4879 = vadd.f32 %v4608, %v4878
      %v4880 = vpop.f32.mrf.mxu0
      %v4881 = vadd.f32 %v4610, %v4880
      %v4882 = vpop.f32.mrf.mxu0
      %v4883 = vadd.f32 %v4612, %v4882
      %v4884 = vpop.f32.mrf.mxu0
      %v4885 = vadd.f32 %v4614, %v4884
      %4886 = vdwg.mxu0
      %4887 = vmatprep.subr.bf16.mxu0 0
      %4888 = vmatpush1.bf16.msra.mxu0 0
      %4889 = vmatprep.subr.bf16.mxu0 0
      %4890 = vmatpush1.bf16.msra.mxu0 0
      %4891 = vmatprep.subr.bf16.mxu0 0
      %4892 = vmatpush1.bf16.msra.mxu0 0
      %4893 = vmatprep.subr.bf16.mxu0 0
      %4894 = vmatpush1.bf16.msra.mxu0 0
      %4895 = vmatprep.subr.bf16.mxu0 0
      %4896 = vmatpush1.bf16.msra.mxu0 0
      %4897 = vmatprep.subr.bf16.mxu0 0
      %4898 = vmatpush1.bf16.msra.mxu0 0
      %4899 = vmatprep.subr.bf16.mxu0 %v4804
      %4900 = vmatpush1.bf16.msra.mxu0 %v4803
      %4901 = vmatprep.subr.bf16.mxu0 %v4802
      %4902 = vmatpush1.bf16.msra.mxu0 %v4801
      %4903 = vmatprep.subr.bf16.mxu0 0
      %4904 = vmatpush2.bf16.msra.mxu0 0
      %4905 = vmatprep.subr.bf16.mxu0 0
      %4906 = vmatpush2.bf16.msra.mxu0 0
      %4907 = vmatprep.subr.bf16.mxu0 0
      %4908 = vmatpush2.bf16.msra.mxu0 0
      %4909 = vmatprep.subr.bf16.mxu0 0
      %4910 = vmatpush2.bf16.msra.mxu0 0
      %4911 = vmatprep.subr.bf16.mxu0 0
      %4912 = vmatpush2.bf16.msra.mxu0 0
      %4913 = vmatprep.subr.bf16.mxu0 0
      %4914 = vmatpush2.bf16.msra.mxu0 0
      %4915 = vmatprep.subr.bf16.mxu0 0
      %4916 = vmatpush2.bf16.msra.mxu0 0
      %4917 = vmatprep.subr.bf16.mxu0 0
      %4918 = vmatpush2.bf16.msra.mxu0 0
      %4919 = vmatprep.mubr.bf16.mxu0 0
      %4920 = vmatmul.mubr.bf16.gmra.mxu0 %v4842
      %v4921 = vpop.f32.mrf.mxu0
      %v4922 = vadd.f32 %v4879, %v4921
      %v4923 = vpop.f32.mrf.mxu0
      %v4924 = vadd.f32 %v4881, %v4923
      %v4925 = vpop.f32.mrf.mxu0
      %v4926 = vadd.f32 %v4883, %v4925
      %v4927 = vpop.f32.mrf.mxu0
      %v4928 = vadd.f32 %v4885, %v4927
      %4929 = vdwg.mxu0
      %v4930 = vld [vmem:[%s8] sm:$0x3]
      %v4932 = vlaneseq
      %v4933 = vshrl.u32 %v4932, 7
      %v4934 = vsub.s32 0, %v4933
      %v4935 = vrot.slane %v4930, %v4934
      %v4936 = vlaneseq
      %v4937 = vshrl.u32 %v4936, 7
      %v4938 = vsub.s32 1, %v4937
      %v4939 = vrot.slane %v4930, %v4938
      %v4942 = vadd.f32 %v4922, %v4935
      %v4943 = vadd.f32 %v4924, %v4939
      %v4944 = vadd.f32 %v4926, %v4935
      %v4945 = vadd.f32 %v4928, %v4939
      %v4946 = vmax.f32 %v4942, 0.0
      %v4947 = vmax.f32 %v4943, 0.0
      %v4948 = vmax.f32 %v4944, 0.0
      %v4949 = vmax.f32 %v4945, 0.0
      %v4950 = vpack.c.bf16 %v4948, %v4946
      %v4951 = vpack.c.bf16 %v4949, %v4947
      %v4954 = vunpack.c.l.b16 %v4950
      %v4955 = vunpack.c.l.b16 %v4951
      %v4956 = vpack.c.b16 %v4955, %v4954
      %v4958 = vshll.u32 %v4956, 16
      %4960 = vrot.lane.b32.xlu0 %v4958, 8
      %v4961 = vpop.permute.xlu0 %4960
      %v4962 = vrot.slane %v4961, 4
      %vm4963 = vcmask 64512
      %v4964 = vsel %vm4963, %v4962, %v4961
      %vm4967 = vcmask 1040448
      %vm4968 = vmand %vm4967, %vm674
      %vm4969 = vmor %vm678, %vm4968
      %v4970 = vld [vmem:[#allocation5] sm:$0x11]
      %v4971 = vsel %vm4969, %v4964, %v4970
      %4972 = vst [vmem:[#allocation5] sm:$0x11] %v4971
      %vm4973 = vcmask 57344
      %vm4974 = vmand %vm4973, %vm674
      %v4975 = vld [vmem:[#allocation5 + $0x8] sm:$0x1]
      %v4976 = vsel %vm4974, %v4962, %v4975
      %4977 = vst [vmem:[#allocation5 + $0x8] sm:$0x1] %v4976
      %v4978 = vrot.slane %v4956, 7
      %4979 = vrot.lane.b32.xlu0 %v4978, 8
      %v4980 = vpop.permute.xlu0 %4979
      %v4981 = vrot.slane %v4980, 4
      %v4982 = vsel %vm4963, %v4981, %v4980
      %vm4985 = vcmask 1041473
      %vm4986 = vmand %vm4985, %vm730
      %vm4987 = vmor %vm733, %vm4986
      %v4988 = vld [vmem:[#allocation5] sm:$0x22]
      %v4989 = vsel %vm4987, %v4982, %v4988
      %4990 = vst [vmem:[#allocation5] sm:$0x22] %v4989
      %vm4991 = vcmask 58369
      %vm4992 = vmand %vm4991, %vm730
      %v4993 = vld [vmem:[#allocation5 + $0x8] sm:$0x2]
      %v4994 = vsel %vm4992, %v4981, %v4993
      %4995 = vst [vmem:[#allocation5 + $0x8] sm:$0x2] %v4994
      %v4996 = vrot.slane %v4958, 7
      %4997 = vrot.lane.b32.xlu0 %v4996, 8
      %v4998 = vpop.permute.xlu0 %4997
      %v4999 = vrot.slane %v4998, 4
      %v5000 = vsel %vm4963, %v4999, %v4998
      %vm5003 = vcmask 1042498
      %vm5004 = vmand %vm5003, %vm1627
      %vm5005 = vmor %vm1630, %vm5004
      %v5006 = vld [vmem:[#allocation5] sm:$0x44]
      %v5007 = vsel %vm5005, %v5000, %v5006
      %5008 = vst [vmem:[#allocation5] sm:$0x44] %v5007
      %vm5009 = vcmask 59394
      %vm5010 = vmand %vm5009, %vm1627
      %v5011 = vld [vmem:[#allocation5 + $0x8] sm:$0x4]
      %v5012 = vsel %vm5010, %v4999, %v5011
      %5013 = vst [vmem:[#allocation5 + $0x8] sm:$0x4] %v5012
      %v5014 = vrot.slane %v4956, 6
      %5015 = vrot.lane.b32.xlu0 %v5014, 8
      %v5016 = vpop.permute.xlu0 %5015
      %v5017 = vrot.slane %v5016, 4
      %v5018 = vsel %vm4963, %v5017, %v5016
      %vm5021 = vcmask 1043523
      %vm5022 = vmand %vm5021, %vm1648
      %vm5023 = vmor %vm1652, %vm5022
      %v5024 = vld [vmem:[#allocation5] sm:$0x88]
      %v5025 = vsel %vm5023, %v5018, %v5024
      %5026 = vst [vmem:[#allocation5] sm:$0x88] %v5025
      %vm5027 = vcmask 60419
      %vm5028 = vmand %vm5027, %vm1648
      %v5029 = vld [vmem:[#allocation5 + $0x8] sm:$0x8]
      %v5030 = vsel %vm5028, %v5017, %v5029
      %5031 = vst [vmem:[#allocation5 + $0x8] sm:$0x8] %v5030
      %v5032 = vrot.slane %v4958, 6
      %v5033 = vrot.slane %v5032, 4
      %5034 = vrot.lane.b32.xlu0 %v5033, 8
      %v5035 = vpop.permute.xlu0 %5034
      %v5036 = vrot.slane %v5035, 4
      %v5037 = vsel %vm4963, %v5036, %v5035
      %v5040 = vld [vmem:[#allocation5 + $0xc] sm:$0x11]
      %v5041 = vsel %vm4969, %v5037, %v5040
      %5042 = vst [vmem:[#allocation5 + $0xc] sm:$0x11] %v5041
      %v5043 = vld [vmem:[#allocation5 + $0x14] sm:$0x1]
      %v5044 = vsel %vm4974, %v5036, %v5043
      %5045 = vst [vmem:[#allocation5 + $0x14] sm:$0x1] %v5044
      %v5046 = vrot.slane %v4956, 5
      %v5047 = vrot.slane %v5046, 4
      %5048 = vrot.lane.b32.xlu0 %v5047, 8
      %v5049 = vpop.permute.xlu0 %5048
      %v5050 = vrot.slane %v5049, 4
      %v5051 = vsel %vm4963, %v5050, %v5049
      %v5054 = vld [vmem:[#allocation5 + $0xc] sm:$0x22]
      %v5055 = vsel %vm4987, %v5051, %v5054
      %5056 = vst [vmem:[#allocation5 + $0xc] sm:$0x22] %v5055
      %v5057 = vld [vmem:[#allocation5 + $0x14] sm:$0x2]
      %v5058 = vsel %vm4992, %v5050, %v5057
      %5059 = vst [vmem:[#allocation5 + $0x14] sm:$0x2] %v5058
      %v5060 = vrot.slane %v4958, 5
      %v5061 = vrot.slane %v5060, 4
      %5062 = vrot.lane.b32.xlu0 %v5061, 8
      %v5063 = vpop.permute.xlu0 %5062
      %v5064 = vrot.slane %v5063, 4
      %v5065 = vsel %vm4963, %v5064, %v5063
      %v5068 = vld [vmem:[#allocation5 + $0xc] sm:$0x44]
      %v5069 = vsel %vm5005, %v5065, %v5068
      %5070 = vst [vmem:[#allocation5 + $0xc] sm:$0x44] %v5069
      %v5071 = vld [vmem:[#allocation5 + $0x14] sm:$0x4]
      %v5072 = vsel %vm5010, %v5064, %v5071
      %5073 = vst [vmem:[#allocation5 + $0x14] sm:$0x4] %v5072
      %5074 = vrot.lane.b32.xlu0 %v4956, 8
      %v5075 = vpop.permute.xlu0 %5074
      %v5076 = vrot.slane %v5075, 4
      %v5077 = vsel %vm4963, %v5076, %v5075
      %v5080 = vld [vmem:[#allocation5 + $0xc] sm:$0x88]
      %v5081 = vsel %vm5023, %v5077, %v5080
      %5082 = vst [vmem:[#allocation5 + $0xc] sm:$0x88] %v5081
      %v5083 = vld [vmem:[#allocation5 + $0x14] sm:$0x8]
      %v5084 = vsel %vm5028, %v5076, %v5083
      %5085 = vst [vmem:[#allocation5 + $0x14] sm:$0x8] %v5084
      %v5086 = vunpack.c.h.b16 %v4950
      %v5087 = vunpack.c.h.b16 %v4951
      %v5088 = vpack.c.b16 %v5087, %v5086
      %v5090 = vshll.u32 %v5088, 16
      %5092 = vrot.lane.b32.xlu0 %v5090, 8
      %v5093 = vpop.permute.xlu0 %5092
      %v5094 = vrot.slane %v5093, 4
      %v5095 = vsel %vm4963, %v5094, %v5093
      %v5098 = vld [vmem:[#allocation5 + $0x18] sm:$0x11]
      %v5099 = vsel %vm4969, %v5095, %v5098
      %5100 = vst [vmem:[#allocation5 + $0x18] sm:$0x11] %v5099
      %v5101 = vld [vmem:[#allocation5 + $0x20] sm:$0x1]
      %v5102 = vsel %vm4974, %v5094, %v5101
      %5103 = vst [vmem:[#allocation5 + $0x20] sm:$0x1] %v5102
      %v5104 = vrot.slane %v5088, 7
      %5105 = vrot.lane.b32.xlu0 %v5104, 8
      %v5106 = vpop.permute.xlu0 %5105
      %v5107 = vrot.slane %v5106, 4
      %v5108 = vsel %vm4963, %v5107, %v5106
      %v5111 = vld [vmem:[#allocation5 + $0x18] sm:$0x22]
      %v5112 = vsel %vm4987, %v5108, %v5111
      %5113 = vst [vmem:[#allocation5 + $0x18] sm:$0x22] %v5112
      %v5114 = vld [vmem:[#allocation5 + $0x20] sm:$0x2]
      %v5115 = vsel %vm4992, %v5107, %v5114
      %5116 = vst [vmem:[#allocation5 + $0x20] sm:$0x2] %v5115
      %v5117 = vrot.slane %v5090, 7
      %5118 = vrot.lane.b32.xlu0 %v5117, 8
      %v5119 = vpop.permute.xlu0 %5118
      %v5120 = vrot.slane %v5119, 4
      %v5121 = vsel %vm4963, %v5120, %v5119
      %v5124 = vld [vmem:[#allocation5 + $0x18] sm:$0x44]
      %v5125 = vsel %vm5005, %v5121, %v5124
      %5126 = vst [vmem:[#allocation5 + $0x18] sm:$0x44] %v5125
      %v5127 = vld [vmem:[#allocation5 + $0x20] sm:$0x4]
      %v5128 = vsel %vm5010, %v5120, %v5127
      %5129 = vst [vmem:[#allocation5 + $0x20] sm:$0x4] %v5128
      %v5130 = vrot.slane %v5088, 6
      %5131 = vrot.lane.b32.xlu0 %v5130, 8
      %v5132 = vpop.permute.xlu0 %5131
      %v5133 = vrot.slane %v5132, 4
      %v5134 = vsel %vm4963, %v5133, %v5132
      %v5137 = vld [vmem:[#allocation5 + $0x18] sm:$0x88]
      %v5138 = vsel %vm5023, %v5134, %v5137
      %5139 = vst [vmem:[#allocation5 + $0x18] sm:$0x88] %v5138
      %v5140 = vld [vmem:[#allocation5 + $0x20] sm:$0x8]
      %v5141 = vsel %vm5028, %v5133, %v5140
      %5142 = vst [vmem:[#allocation5 + $0x20] sm:$0x8] %v5141
      %v5143 = vrot.slane %v5090, 6
      %v5144 = vrot.slane %v5143, 4
      %5145 = vrot.lane.b32.xlu0 %v5144, 8
      %v5146 = vpop.permute.xlu0 %5145
      %v5147 = vrot.slane %v5146, 4
      %v5148 = vsel %vm4963, %v5147, %v5146
      %v5151 = vld [vmem:[#allocation5 + $0x24] sm:$0x11]
      %v5152 = vsel %vm4969, %v5148, %v5151
      %5153 = vst [vmem:[#allocation5 + $0x24] sm:$0x11] %v5152
      %v5154 = vld [vmem:[#allocation5 + $0x2c] sm:$0x1]
      %v5155 = vsel %vm4974, %v5147, %v5154
      %5156 = vst [vmem:[#allocation5 + $0x2c] sm:$0x1] %v5155
      %v5157 = vrot.slane %v5088, 5
      %v5158 = vrot.slane %v5157, 4
      %5159 = vrot.lane.b32.xlu0 %v5158, 8
      %v5160 = vpop.permute.xlu0 %5159
      %v5161 = vrot.slane %v5160, 4
      %v5162 = vsel %vm4963, %v5161, %v5160
      %v5165 = vld [vmem:[#allocation5 + $0x24] sm:$0x22]
      %v5166 = vsel %vm4987, %v5162, %v5165
      %5167 = vst [vmem:[#allocation5 + $0x24] sm:$0x22] %v5166
      %v5168 = vld [vmem:[#allocation5 + $0x2c] sm:$0x2]
      %v5169 = vsel %vm4992, %v5161, %v5168
      %5170 = vst [vmem:[#allocation5 + $0x2c] sm:$0x2] %v5169
      %v5171 = vrot.slane %v5090, 5
      %v5172 = vrot.slane %v5171, 4
      %5173 = vrot.lane.b32.xlu0 %v5172, 8
      %v5174 = vpop.permute.xlu0 %5173
      %v5175 = vrot.slane %v5174, 4
      %v5176 = vsel %vm4963, %v5175, %v5174
      %v5179 = vld [vmem:[#allocation5 + $0x24] sm:$0x44]
      %v5180 = vsel %vm5005, %v5176, %v5179
      %5181 = vst [vmem:[#allocation5 + $0x24] sm:$0x44] %v5180
      %v5182 = vld [vmem:[#allocation5 + $0x2c] sm:$0x4]
      %v5183 = vsel %vm5010, %v5175, %v5182
      %5184 = vst [vmem:[#allocation5 + $0x2c] sm:$0x4] %v5183
      %5185 = vrot.lane.b32.xlu0 %v5088, 8
      %v5186 = vpop.permute.xlu0 %5185
      %v5187 = vrot.slane %v5186, 4
      %v5188 = vsel %vm4963, %v5187, %v5186
      %v5191 = vld [vmem:[#allocation5 + $0x24] sm:$0x88]
      %v5192 = vsel %vm5023, %v5188, %v5191
      %5193 = vst [vmem:[#allocation5 + $0x24] sm:$0x88] %v5192
      %v5194 = vld [vmem:[#allocation5 + $0x2c] sm:$0x8]
      %v5195 = vsel %vm5028, %v5187, %v5194
      %5196 = vst [vmem:[#allocation5 + $0x2c] sm:$0x8] %v5195
      %v5197 = vld [vmem:[#allocation4] sm:$0xff]
      %v5198 = vld [vmem:[#allocation4 + $0x8] sm:$0xf]
      %v5199 = vld [vmem:[#allocation4 + $0xc] sm:$0xff]
      %v5200 = vld [vmem:[#allocation4 + $0x14] sm:$0xf]
      %v5201 = vld [vmem:[#allocation4 + $0x18] sm:$0x11]
      %v5202 = vld [vmem:[#allocation4 + $0x20] sm:$0x1]
      %s5203 = scalar_lea.vmem %s7, 576
      %v5204 = vld [vmem:[%s5203] sm:$0xff]
      %v5205 = vld [vmem:[%s5203 + $0x8] sm:$0xff]
      %v5206 = vld [vmem:[%s5203 + $0x10] sm:$0xff]
      %v5207 = vld [vmem:[%s5203 + $0x18] sm:$0xff]
      %v5208 = vld [vmem:[%s5203 + $0x20] sm:$0xff]
      %v5209 = vld [vmem:[%s5203 + $0x28] sm:$0xff]
      %v5210 = vld [vmem:[%s5203 + $0x30] sm:$0xff]
      %v5211 = vld [vmem:[%s5203 + $0x38] sm:$0xff]
      %v5212 = vld [vmem:[%s5203 + $0x40] sm:$0xff]
      %v5213 = vld [vmem:[%s5203 + $0x48] sm:$0xff]
      %v5214 = vld [vmem:[%s5203 + $0x50] sm:$0xff]
      %v5215 = vld [vmem:[%s5203 + $0x58] sm:$0xff]
      %v5216 = vld [vmem:[%s5203 + $0x60] sm:$0xff]
      %v5217 = vld [vmem:[%s5203 + $0x68] sm:$0xff]
      %v5218 = vld [vmem:[%s5203 + $0x70] sm:$0xff]
      %v5219 = vld [vmem:[%s5203 + $0x78] sm:$0xff]
      %v5220 = vld [vmem:[%s5203 + $0x80] sm:$0xff]
      %v5221 = vld [vmem:[%s5203 + $0x88] sm:$0xff]
      %v5222 = vld [vmem:[%s5203 + $0x90] sm:$0xff]
      %v5223 = vld [vmem:[%s5203 + $0x98] sm:$0xff]
      %v5224 = vld [vmem:[%s5203 + $0xa0] sm:$0xff]
      %v5225 = vld [vmem:[%s5203 + $0xa8] sm:$0xff]
      %v5226 = vld [vmem:[%s5203 + $0xb0] sm:$0xff]
      %v5227 = vld [vmem:[%s5203 + $0xb8] sm:$0xff]
      %v5228 = vld [vmem:[%s5203 + $0xc0] sm:$0xff]
      %v5229 = vld [vmem:[%s5203 + $0xc8] sm:$0xff]
      %v5230 = vld [vmem:[%s5203 + $0xd0] sm:$0xff]
      %v5231 = vld [vmem:[%s5203 + $0xd8] sm:$0xff]
      %v5232 = vld [vmem:[%s5203 + $0xe0] sm:$0xff]
      %v5233 = vld [vmem:[%s5203 + $0xe8] sm:$0xff]
      %v5234 = vld [vmem:[%s5203 + $0xf0] sm:$0xff]
      %v5235 = vld [vmem:[%s5203 + $0xf8] sm:$0xff]
      %v5236 = vld [vmem:[%s5203 + $0x100] sm:$0xff]
      %v5237 = vld [vmem:[%s5203 + $0x108] sm:$0xff]
      %v5238 = vld [vmem:[%s5203 + $0x110] sm:$0xff]
      %v5239 = vld [vmem:[%s5203 + $0x118] sm:$0xff]
      %v5240 = vld [vmem:[#allocation4] sm:$0xee]
      %v5241 = vld [vmem:[#allocation4 + $0x8] sm:$0xe]
      %s5242 = scalar_lea.vmem %s7, 864
      %v5243 = vld [vmem:[%s5242] sm:$0xff]
      %v5244 = vld [vmem:[%s5242 + $0x8] sm:$0xff]
      %v5245 = vld [vmem:[%s5242 + $0x10] sm:$0xff]
      %v5246 = vld [vmem:[%s5242 + $0x18] sm:$0xff]
      %v5247 = vld [vmem:[%s5242 + $0x20] sm:$0xff]
      %v5248 = vld [vmem:[%s5242 + $0x28] sm:$0xff]
      %v5249 = vld [vmem:[%s5242 + $0x30] sm:$0xff]
      %v5250 = vld [vmem:[%s5242 + $0x38] sm:$0xff]
      %v5251 = vld [vmem:[%s5242 + $0x40] sm:$0xff]
      %v5252 = vld [vmem:[%s5242 + $0x48] sm:$0xff]
      %v5253 = vld [vmem:[%s5242 + $0x50] sm:$0xff]
      %v5254 = vld [vmem:[%s5242 + $0x58] sm:$0xff]
      %v5255 = vld [vmem:[%s5242 + $0x60] sm:$0xff]
      %v5256 = vld [vmem:[%s5242 + $0x68] sm:$0xff]
      %v5257 = vld [vmem:[%s5242 + $0x70] sm:$0xff]
      %v5258 = vld [vmem:[%s5242 + $0x78] sm:$0xff]
      %v5259 = vld [vmem:[%s5242 + $0x80] sm:$0xff]
      %v5260 = vld [vmem:[%s5242 + $0x88] sm:$0xff]
      %v5261 = vld [vmem:[%s5242 + $0x90] sm:$0xff]
      %v5262 = vld [vmem:[%s5242 + $0x98] sm:$0xff]
      %v5263 = vld [vmem:[%s5242 + $0xa0] sm:$0xff]
      %v5264 = vld [vmem:[%s5242 + $0xa8] sm:$0xff]
      %v5265 = vld [vmem:[%s5242 + $0xb0] sm:$0xff]
      %v5266 = vld [vmem:[%s5242 + $0xb8] sm:$0xff]
      %v5267 = vld [vmem:[%s5242 + $0xc0] sm:$0xff]
      %v5268 = vld [vmem:[%s5242 + $0xc8] sm:$0xff]
      %v5269 = vld [vmem:[%s5242 + $0xd0] sm:$0xff]
      %v5270 = vld [vmem:[%s5242 + $0xd8] sm:$0xff]
      %v5271 = vld [vmem:[%s5242 + $0xe0] sm:$0xff]
      %v5272 = vld [vmem:[%s5242 + $0xe8] sm:$0xff]
      %v5273 = vld [vmem:[%s5242 + $0xf0] sm:$0xff]
      %v5274 = vld [vmem:[%s5242 + $0xf8] sm:$0xff]
      %v5275 = vld [vmem:[%s5242 + $0x100] sm:$0xff]
      %v5276 = vld [vmem:[%s5242 + $0x108] sm:$0xff]
      %v5277 = vld [vmem:[%s5242 + $0x110] sm:$0xff]
      %v5278 = vld [vmem:[%s5242 + $0x118] sm:$0xff]
      %v5285 = vunpack.c.l.b16 %v5240
      %v5286 = vunpack.c.h.b16 %v5240
      %v5287 = vunpack.c.l.b16 %v5241
      %v5288 = vunpack.c.l.b16 %v5199
      %v5289 = vunpack.c.h.b16 %v5199
      %v5290 = vunpack.c.l.b16 %v5200
      %v5291 = vunpack.c.l.b16 %v5201
      %v5292 = vunpack.c.h.b16 %v5201
      %v5293 = vunpack.c.l.b16 %v5202
      %v5294 = vpack.c.b16 %v5288, %v5285
      %v5295 = vpack.c.b16 %v5289, %v5286
      %v5296 = vpack.c.b16 %v5290, %v5287
      %v5297 = vpack.c.b16 %v5291, %v5291
      %v5298 = vpack.c.b16 %v5292, %v5292
      %v5299 = vpack.c.b16 %v5293, %v5293
      %vm5300 = vcmask 1046528
      %v5301 = vrot.slane %v5294, 1
      %v5302 = vrot.slane %v5297, 1
      %v5303 = vsel %vm5300, %v5301, %v5302
      %v5304 = vrot.slane %v5295, 1
      %v5305 = vrot.slane %v5298, 1
      %v5306 = vsel %vm5300, %v5304, %v5305
      %v5307 = vrot.slane %v5296, 1
      %v5308 = vrot.slane %v5299, 1
      %v5309 = vsel %vm5300, %v5307, %v5308
      %v5348 = vunpack.c.l.b16 %v5243
      %v5349 = vunpack.c.h.b16 %v5243
      %v5350 = vunpack.c.l.b16 %v5244
      %v5351 = vunpack.c.h.b16 %v5244
      %v5352 = vunpack.c.l.b16 %v5245
      %v5353 = vunpack.c.h.b16 %v5245
      %v5354 = vunpack.c.l.b16 %v5246
      %v5355 = vunpack.c.h.b16 %v5246
      %v5356 = vunpack.c.l.b16 %v5247
      %v5357 = vunpack.c.h.b16 %v5247
      %v5358 = vunpack.c.l.b16 %v5248
      %v5359 = vunpack.c.h.b16 %v5248
      %v5360 = vunpack.c.l.b16 %v5249
      %v5361 = vunpack.c.h.b16 %v5249
      %v5362 = vunpack.c.l.b16 %v5250
      %v5363 = vunpack.c.h.b16 %v5250
      %v5364 = vunpack.c.l.b16 %v5251
      %v5365 = vunpack.c.h.b16 %v5251
      %v5366 = vunpack.c.l.b16 %v5252
      %v5367 = vunpack.c.h.b16 %v5252
      %v5368 = vunpack.c.l.b16 %v5253
      %v5369 = vunpack.c.h.b16 %v5253
      %v5370 = vunpack.c.l.b16 %v5254
      %v5371 = vunpack.c.h.b16 %v5254
      %v5372 = vunpack.c.l.b16 %v5255
      %v5373 = vunpack.c.h.b16 %v5255
      %v5374 = vunpack.c.l.b16 %v5256
      %v5375 = vunpack.c.h.b16 %v5256
      %v5376 = vunpack.c.l.b16 %v5257
      %v5377 = vunpack.c.h.b16 %v5257
      %v5378 = vunpack.c.l.b16 %v5258
      %v5379 = vunpack.c.h.b16 %v5258
      %v5380 = vunpack.c.l.b16 %v5259
      %v5381 = vunpack.c.h.b16 %v5259
      %v5382 = vunpack.c.l.b16 %v5260
      %v5383 = vunpack.c.h.b16 %v5260
      %v5384 = vunpack.c.l.b16 %v5261
      %v5385 = vunpack.c.h.b16 %v5261
      %v5386 = vunpack.c.l.b16 %v5262
      %v5387 = vunpack.c.h.b16 %v5262
      %v5388 = vunpack.c.l.b16 %v5263
      %v5389 = vunpack.c.h.b16 %v5263
      %v5390 = vunpack.c.l.b16 %v5264
      %v5391 = vunpack.c.h.b16 %v5264
      %v5392 = vunpack.c.l.b16 %v5265
      %v5393 = vunpack.c.h.b16 %v5265
      %v5394 = vunpack.c.l.b16 %v5266
      %v5395 = vunpack.c.h.b16 %v5266
      %v5396 = vunpack.c.l.b16 %v5267
      %v5397 = vunpack.c.h.b16 %v5267
      %v5398 = vunpack.c.l.b16 %v5268
      %v5399 = vunpack.c.h.b16 %v5268
      %v5400 = vunpack.c.l.b16 %v5269
      %v5401 = vunpack.c.h.b16 %v5269
      %v5402 = vunpack.c.l.b16 %v5270
      %v5403 = vunpack.c.h.b16 %v5270
      %v5404 = vunpack.c.l.b16 %v5271
      %v5405 = vunpack.c.h.b16 %v5271
      %v5406 = vunpack.c.l.b16 %v5272
      %v5407 = vunpack.c.h.b16 %v5272
      %v5408 = vunpack.c.l.b16 %v5273
      %v5409 = vunpack.c.h.b16 %v5273
      %v5410 = vunpack.c.l.b16 %v5274
      %v5411 = vunpack.c.h.b16 %v5274
      %v5412 = vunpack.c.l.b16 %v5275
      %v5413 = vunpack.c.h.b16 %v5275
      %v5414 = vunpack.c.l.b16 %v5276
      %v5415 = vunpack.c.h.b16 %v5276
      %v5416 = vunpack.c.l.b16 %v5277
      %v5417 = vunpack.c.h.b16 %v5277
      %v5418 = vunpack.c.l.b16 %v5278
      %v5419 = vunpack.c.h.b16 %v5278
      %v5420 = vpack.c.b16 %v5350, %v5348
      %v5421 = vpack.c.b16 %v5351, %v5349
      %v5422 = vpack.c.b16 %v5354, %v5352
      %v5423 = vpack.c.b16 %v5355, %v5353
      %v5424 = vpack.c.b16 %v5358, %v5356
      %v5425 = vpack.c.b16 %v5359, %v5357
      %v5426 = vpack.c.b16 %v5362, %v5360
      %v5427 = vpack.c.b16 %v5363, %v5361
      %v5428 = vpack.c.b16 %v5366, %v5364
      %v5429 = vpack.c.b16 %v5367, %v5365
      %v5430 = vpack.c.b16 %v5370, %v5368
      %v5431 = vpack.c.b16 %v5371, %v5369
      %v5432 = vpack.c.b16 %v5374, %v5372
      %v5433 = vpack.c.b16 %v5375, %v5373
      %v5434 = vpack.c.b16 %v5378, %v5376
      %v5435 = vpack.c.b16 %v5379, %v5377
      %v5436 = vpack.c.b16 %v5382, %v5380
      %v5437 = vpack.c.b16 %v5383, %v5381
      %v5438 = vpack.c.b16 %v5386, %v5384
      %v5439 = vpack.c.b16 %v5387, %v5385
      %v5440 = vpack.c.b16 %v5390, %v5388
      %v5441 = vpack.c.b16 %v5391, %v5389
      %v5442 = vpack.c.b16 %v5394, %v5392
      %v5443 = vpack.c.b16 %v5395, %v5393
      %v5444 = vpack.c.b16 %v5398, %v5396
      %v5445 = vpack.c.b16 %v5399, %v5397
      %v5446 = vpack.c.b16 %v5402, %v5400
      %v5447 = vpack.c.b16 %v5403, %v5401
      %v5448 = vpack.c.b16 %v5406, %v5404
      %v5449 = vpack.c.b16 %v5407, %v5405
      %v5450 = vpack.c.b16 %v5410, %v5408
      %v5451 = vpack.c.b16 %v5411, %v5409
      %v5452 = vpack.c.b16 %v5414, %v5412
      %v5453 = vpack.c.b16 %v5415, %v5413
      %v5454 = vpack.c.b16 %v5418, %v5416
      %v5455 = vpack.c.b16 %v5419, %v5417
      %v5493 = vsel %vm4526, %v5309, 0
      %5495 = vmatprep.subr.bf16.mxu0 %v5435
      %5496 = vmatpush1.bf16.msra.mxu0 %v5434
      %5497 = vmatprep.subr.bf16.mxu0 %v5433
      %5498 = vmatpush1.bf16.msra.mxu0 %v5432
      %5499 = vmatprep.subr.bf16.mxu0 %v5431
      %5500 = vmatpush1.bf16.msra.mxu0 %v5430
      %5501 = vmatprep.subr.bf16.mxu0 %v5429
      %5502 = vmatpush1.bf16.msra.mxu0 %v5428
      %5503 = vmatprep.subr.bf16.mxu0 %v5427
      %5504 = vmatpush1.bf16.msra.mxu0 %v5426
      %5505 = vmatprep.subr.bf16.mxu0 %v5425
      %5506 = vmatpush1.bf16.msra.mxu0 %v5424
      %5507 = vmatprep.subr.bf16.mxu0 %v5423
      %5508 = vmatpush1.bf16.msra.mxu0 %v5422
      %5509 = vmatprep.subr.bf16.mxu0 %v5421
      %5510 = vmatpush1.bf16.msra.mxu0 %v5420
      %5511 = vmatprep.subr.bf16.mxu0 %v5451
      %5512 = vmatpush2.bf16.msra.mxu0 %v5450
      %5513 = vmatprep.subr.bf16.mxu0 %v5449
      %5514 = vmatpush2.bf16.msra.mxu0 %v5448
      %5515 = vmatprep.subr.bf16.mxu0 %v5447
      %5516 = vmatpush2.bf16.msra.mxu0 %v5446
      %5517 = vmatprep.subr.bf16.mxu0 %v5445
      %5518 = vmatpush2.bf16.msra.mxu0 %v5444
      %5519 = vmatprep.subr.bf16.mxu0 %v5443
      %5520 = vmatpush2.bf16.msra.mxu0 %v5442
      %5521 = vmatprep.subr.bf16.mxu0 %v5441
      %5522 = vmatpush2.bf16.msra.mxu0 %v5440
      %5523 = vmatprep.subr.bf16.mxu0 %v5439
      %5524 = vmatpush2.bf16.msra.mxu0 %v5438
      %5525 = vmatprep.subr.bf16.mxu0 %v5437
      %5526 = vmatpush2.bf16.msra.mxu0 %v5436
      %5527 = vmatprep.mubr.bf16.mxu0 %v5306
      %5528 = vmatmul.mubr.bf16.gmra.mxu0 %v5303
      %v5529 = vpop.f32.mrf.mxu0
      %v5530 = vadd.f32 0.0, %v5529
      %v5531 = vpop.f32.mrf.mxu0
      %v5532 = vadd.f32 0.0, %v5531
      %v5533 = vpop.f32.mrf.mxu0
      %v5534 = vadd.f32 0.0, %v5533
      %v5535 = vpop.f32.mrf.mxu0
      %v5536 = vadd.f32 0.0, %v5535
      %5537 = vdwg.mxu0
      %5538 = vmatprep.subr.bf16.mxu0 0
      %5539 = vmatpush1.bf16.msra.mxu0 0
      %5540 = vmatprep.subr.bf16.mxu0 0
      %5541 = vmatpush1.bf16.msra.mxu0 0
      %5542 = vmatprep.subr.bf16.mxu0 0
      %5543 = vmatpush1.bf16.msra.mxu0 0
      %5544 = vmatprep.subr.bf16.mxu0 0
      %5545 = vmatpush1.bf16.msra.mxu0 0
      %5546 = vmatprep.subr.bf16.mxu0 0
      %5547 = vmatpush1.bf16.msra.mxu0 0
      %5548 = vmatprep.subr.bf16.mxu0 0
      %5549 = vmatpush1.bf16.msra.mxu0 0
      %5550 = vmatprep.subr.bf16.mxu0 %v5455
      %5551 = vmatpush1.bf16.msra.mxu0 %v5454
      %5552 = vmatprep.subr.bf16.mxu0 %v5453
      %5553 = vmatpush1.bf16.msra.mxu0 %v5452
      %5554 = vmatprep.subr.bf16.mxu0 0
      %5555 = vmatpush2.bf16.msra.mxu0 0
      %5556 = vmatprep.subr.bf16.mxu0 0
      %5557 = vmatpush2.bf16.msra.mxu0 0
      %5558 = vmatprep.subr.bf16.mxu0 0
      %5559 = vmatpush2.bf16.msra.mxu0 0
      %5560 = vmatprep.subr.bf16.mxu0 0
      %5561 = vmatpush2.bf16.msra.mxu0 0
      %5562 = vmatprep.subr.bf16.mxu0 0
      %5563 = vmatpush2.bf16.msra.mxu0 0
      %5564 = vmatprep.subr.bf16.mxu0 0
      %5565 = vmatpush2.bf16.msra.mxu0 0
      %5566 = vmatprep.subr.bf16.mxu0 0
      %5567 = vmatpush2.bf16.msra.mxu0 0
      %5568 = vmatprep.subr.bf16.mxu0 0
      %5569 = vmatpush2.bf16.msra.mxu0 0
      %5570 = vmatprep.mubr.bf16.mxu0 0
      %5571 = vmatmul.mubr.bf16.gmra.mxu0 %v5493
      %v5572 = vpop.f32.mrf.mxu0
      %v5573 = vadd.f32 %v5530, %v5572
      %v5574 = vpop.f32.mrf.mxu0
      %v5575 = vadd.f32 %v5532, %v5574
      %v5576 = vpop.f32.mrf.mxu0
      %v5577 = vadd.f32 %v5534, %v5576
      %v5578 = vpop.f32.mrf.mxu0
      %v5579 = vadd.f32 %v5536, %v5578
      %5580 = vdwg.mxu0
      %v5583 = vunpack.c.l.b16 %v5197
      %v5584 = vunpack.c.h.b16 %v5197
      %v5585 = vunpack.c.l.b16 %v5198
      %v5586 = vpack.c.b16 %v5288, %v5583
      %v5587 = vpack.c.b16 %v5289, %v5584
      %v5588 = vpack.c.b16 %v5290, %v5585
      %v5590 = vshrl.u32 %v5586, 16
      %v5592 = vshll.u32 %v5586, 16
      %v5594 = vrot.slane %v5592, 1
      %v5595 = vor.u32 %v5590, %v5594
      %v5597 = vshll.u32 %v5297, 16
      %v5599 = vrot.slane %v5597, 1
      %v5600 = vsel %vm2521, %v5595, %v5599
      %v5602 = vshrl.u32 %v5587, 16
      %v5604 = vshll.u32 %v5587, 16
      %v5606 = vrot.slane %v5604, 1
      %v5607 = vor.u32 %v5602, %v5606
      %v5609 = vshll.u32 %v5298, 16
      %v5611 = vrot.slane %v5609, 1
      %v5612 = vsel %vm2521, %v5607, %v5611
      %v5614 = vshrl.u32 %v5588, 16
      %v5616 = vshll.u32 %v5588, 16
      %v5618 = vrot.slane %v5616, 1
      %v5619 = vor.u32 %v5614, %v5618
      %v5621 = vshll.u32 %v5299, 16
      %v5623 = vrot.slane %v5621, 1
      %v5624 = vsel %vm2521, %v5619, %v5623
      %v5663 = vunpack.c.l.b16 %v5204
      %v5664 = vunpack.c.h.b16 %v5204
      %v5665 = vunpack.c.l.b16 %v5205
      %v5666 = vunpack.c.h.b16 %v5205
      %v5667 = vunpack.c.l.b16 %v5206
      %v5668 = vunpack.c.h.b16 %v5206
      %v5669 = vunpack.c.l.b16 %v5207
      %v5670 = vunpack.c.h.b16 %v5207
      %v5671 = vunpack.c.l.b16 %v5208
      %v5672 = vunpack.c.h.b16 %v5208
      %v5673 = vunpack.c.l.b16 %v5209
      %v5674 = vunpack.c.h.b16 %v5209
      %v5675 = vunpack.c.l.b16 %v5210
      %v5676 = vunpack.c.h.b16 %v5210
      %v5677 = vunpack.c.l.b16 %v5211
      %v5678 = vunpack.c.h.b16 %v5211
      %v5679 = vunpack.c.l.b16 %v5212
      %v5680 = vunpack.c.h.b16 %v5212
      %v5681 = vunpack.c.l.b16 %v5213
      %v5682 = vunpack.c.h.b16 %v5213
      %v5683 = vunpack.c.l.b16 %v5214
      %v5684 = vunpack.c.h.b16 %v5214
      %v5685 = vunpack.c.l.b16 %v5215
      %v5686 = vunpack.c.h.b16 %v5215
      %v5687 = vunpack.c.l.b16 %v5216
      %v5688 = vunpack.c.h.b16 %v5216
      %v5689 = vunpack.c.l.b16 %v5217
      %v5690 = vunpack.c.h.b16 %v5217
      %v5691 = vunpack.c.l.b16 %v5218
      %v5692 = vunpack.c.h.b16 %v5218
      %v5693 = vunpack.c.l.b16 %v5219
      %v5694 = vunpack.c.h.b16 %v5219
      %v5695 = vunpack.c.l.b16 %v5220
      %v5696 = vunpack.c.h.b16 %v5220
      %v5697 = vunpack.c.l.b16 %v5221
      %v5698 = vunpack.c.h.b16 %v5221
      %v5699 = vunpack.c.l.b16 %v5222
      %v5700 = vunpack.c.h.b16 %v5222
      %v5701 = vunpack.c.l.b16 %v5223
      %v5702 = vunpack.c.h.b16 %v5223
      %v5703 = vunpack.c.l.b16 %v5224
      %v5704 = vunpack.c.h.b16 %v5224
      %v5705 = vunpack.c.l.b16 %v5225
      %v5706 = vunpack.c.h.b16 %v5225
      %v5707 = vunpack.c.l.b16 %v5226
      %v5708 = vunpack.c.h.b16 %v5226
      %v5709 = vunpack.c.l.b16 %v5227
      %v5710 = vunpack.c.h.b16 %v5227
      %v5711 = vunpack.c.l.b16 %v5228
      %v5712 = vunpack.c.h.b16 %v5228
      %v5713 = vunpack.c.l.b16 %v5229
      %v5714 = vunpack.c.h.b16 %v5229
      %v5715 = vunpack.c.l.b16 %v5230
      %v5716 = vunpack.c.h.b16 %v5230
      %v5717 = vunpack.c.l.b16 %v5231
      %v5718 = vunpack.c.h.b16 %v5231
      %v5719 = vunpack.c.l.b16 %v5232
      %v5720 = vunpack.c.h.b16 %v5232
      %v5721 = vunpack.c.l.b16 %v5233
      %v5722 = vunpack.c.h.b16 %v5233
      %v5723 = vunpack.c.l.b16 %v5234
      %v5724 = vunpack.c.h.b16 %v5234
      %v5725 = vunpack.c.l.b16 %v5235
      %v5726 = vunpack.c.h.b16 %v5235
      %v5727 = vunpack.c.l.b16 %v5236
      %v5728 = vunpack.c.h.b16 %v5236
      %v5729 = vunpack.c.l.b16 %v5237
      %v5730 = vunpack.c.h.b16 %v5237
      %v5731 = vunpack.c.l.b16 %v5238
      %v5732 = vunpack.c.h.b16 %v5238
      %v5733 = vunpack.c.l.b16 %v5239
      %v5734 = vunpack.c.h.b16 %v5239
      %v5735 = vpack.c.b16 %v5665, %v5663
      %v5736 = vpack.c.b16 %v5666, %v5664
      %v5737 = vpack.c.b16 %v5669, %v5667
      %v5738 = vpack.c.b16 %v5670, %v5668
      %v5739 = vpack.c.b16 %v5673, %v5671
      %v5740 = vpack.c.b16 %v5674, %v5672
      %v5741 = vpack.c.b16 %v5677, %v5675
      %v5742 = vpack.c.b16 %v5678, %v5676
      %v5743 = vpack.c.b16 %v5681, %v5679
      %v5744 = vpack.c.b16 %v5682, %v5680
      %v5745 = vpack.c.b16 %v5685, %v5683
      %v5746 = vpack.c.b16 %v5686, %v5684
      %v5747 = vpack.c.b16 %v5689, %v5687
      %v5748 = vpack.c.b16 %v5690, %v5688
      %v5749 = vpack.c.b16 %v5693, %v5691
      %v5750 = vpack.c.b16 %v5694, %v5692
      %v5751 = vpack.c.b16 %v5697, %v5695
      %v5752 = vpack.c.b16 %v5698, %v5696
      %v5753 = vpack.c.b16 %v5701, %v5699
      %v5754 = vpack.c.b16 %v5702, %v5700
      %v5755 = vpack.c.b16 %v5705, %v5703
      %v5756 = vpack.c.b16 %v5706, %v5704
      %v5757 = vpack.c.b16 %v5709, %v5707
      %v5758 = vpack.c.b16 %v5710, %v5708
      %v5759 = vpack.c.b16 %v5713, %v5711
      %v5760 = vpack.c.b16 %v5714, %v5712
      %v5761 = vpack.c.b16 %v5717, %v5715
      %v5762 = vpack.c.b16 %v5718, %v5716
      %v5763 = vpack.c.b16 %v5721, %v5719
      %v5764 = vpack.c.b16 %v5722, %v5720
      %v5765 = vpack.c.b16 %v5725, %v5723
      %v5766 = vpack.c.b16 %v5726, %v5724
      %v5767 = vpack.c.b16 %v5729, %v5727
      %v5768 = vpack.c.b16 %v5730, %v5728
      %v5769 = vpack.c.b16 %v5733, %v5731
      %v5770 = vpack.c.b16 %v5734, %v5732
      %v5808 = vsel %vm4526, %v5624, 0
      %5810 = vmatprep.subr.bf16.mxu0 %v5750
      %5811 = vmatpush1.bf16.msra.mxu0 %v5749
      %5812 = vmatprep.subr.bf16.mxu0 %v5748
      %5813 = vmatpush1.bf16.msra.mxu0 %v5747
      %5814 = vmatprep.subr.bf16.mxu0 %v5746
      %5815 = vmatpush1.bf16.msra.mxu0 %v5745
      %5816 = vmatprep.subr.bf16.mxu0 %v5744
      %5817 = vmatpush1.bf16.msra.mxu0 %v5743
      %5818 = vmatprep.subr.bf16.mxu0 %v5742
      %5819 = vmatpush1.bf16.msra.mxu0 %v5741
      %5820 = vmatprep.subr.bf16.mxu0 %v5740
      %5821 = vmatpush1.bf16.msra.mxu0 %v5739
      %5822 = vmatprep.subr.bf16.mxu0 %v5738
      %5823 = vmatpush1.bf16.msra.mxu0 %v5737
      %5824 = vmatprep.subr.bf16.mxu0 %v5736
      %5825 = vmatpush1.bf16.msra.mxu0 %v5735
      %5826 = vmatprep.subr.bf16.mxu0 %v5766
      %5827 = vmatpush2.bf16.msra.mxu0 %v5765
      %5828 = vmatprep.subr.bf16.mxu0 %v5764
      %5829 = vmatpush2.bf16.msra.mxu0 %v5763
      %5830 = vmatprep.subr.bf16.mxu0 %v5762
      %5831 = vmatpush2.bf16.msra.mxu0 %v5761
      %5832 = vmatprep.subr.bf16.mxu0 %v5760
      %5833 = vmatpush2.bf16.msra.mxu0 %v5759
      %5834 = vmatprep.subr.bf16.mxu0 %v5758
      %5835 = vmatpush2.bf16.msra.mxu0 %v5757
      %5836 = vmatprep.subr.bf16.mxu0 %v5756
      %5837 = vmatpush2.bf16.msra.mxu0 %v5755
      %5838 = vmatprep.subr.bf16.mxu0 %v5754
      %5839 = vmatpush2.bf16.msra.mxu0 %v5753
      %5840 = vmatprep.subr.bf16.mxu0 %v5752
      %5841 = vmatpush2.bf16.msra.mxu0 %v5751
      %5842 = vmatprep.mubr.bf16.mxu0 %v5612
      %5843 = vmatmul.mubr.bf16.gmra.mxu0 %v5600
      %v5844 = vpop.f32.mrf.mxu0
      %v5845 = vadd.f32 %v5573, %v5844
      %v5846 = vpop.f32.mrf.mxu0
      %v5847 = vadd.f32 %v5575, %v5846
      %v5848 = vpop.f32.mrf.mxu0
      %v5849 = vadd.f32 %v5577, %v5848
      %v5850 = vpop.f32.mrf.mxu0
      %v5851 = vadd.f32 %v5579, %v5850
      %5852 = vdwg.mxu0
      %5853 = vmatprep.subr.bf16.mxu0 0
      %5854 = vmatpush1.bf16.msra.mxu0 0
      %5855 = vmatprep.subr.bf16.mxu0 0
      %5856 = vmatpush1.bf16.msra.mxu0 0
      %5857 = vmatprep.subr.bf16.mxu0 0
      %5858 = vmatpush1.bf16.msra.mxu0 0
      %5859 = vmatprep.subr.bf16.mxu0 0
      %5860 = vmatpush1.bf16.msra.mxu0 0
      %5861 = vmatprep.subr.bf16.mxu0 0
      %5862 = vmatpush1.bf16.msra.mxu0 0
      %5863 = vmatprep.subr.bf16.mxu0 0
      %5864 = vmatpush1.bf16.msra.mxu0 0
      %5865 = vmatprep.subr.bf16.mxu0 %v5770
      %5866 = vmatpush1.bf16.msra.mxu0 %v5769
      %5867 = vmatprep.subr.bf16.mxu0 %v5768
      %5868 = vmatpush1.bf16.msra.mxu0 %v5767
      %5869 = vmatprep.subr.bf16.mxu0 0
      %5870 = vmatpush2.bf16.msra.mxu0 0
      %5871 = vmatprep.subr.bf16.mxu0 0
      %5872 = vmatpush2.bf16.msra.mxu0 0
      %5873 = vmatprep.subr.bf16.mxu0 0
      %5874 = vmatpush2.bf16.msra.mxu0 0
      %5875 = vmatprep.subr.bf16.mxu0 0
      %5876 = vmatpush2.bf16.msra.mxu0 0
      %5877 = vmatprep.subr.bf16.mxu0 0
      %5878 = vmatpush2.bf16.msra.mxu0 0
      %5879 = vmatprep.subr.bf16.mxu0 0
      %5880 = vmatpush2.bf16.msra.mxu0 0
      %5881 = vmatprep.subr.bf16.mxu0 0
      %5882 = vmatpush2.bf16.msra.mxu0 0
      %5883 = vmatprep.subr.bf16.mxu0 0
      %5884 = vmatpush2.bf16.msra.mxu0 0
      %5885 = vmatprep.mubr.bf16.mxu0 0
      %5886 = vmatmul.mubr.bf16.gmra.mxu0 %v5808
      %v5887 = vpop.f32.mrf.mxu0
      %v5888 = vadd.f32 %v5845, %v5887
      %v5889 = vpop.f32.mrf.mxu0
      %v5890 = vadd.f32 %v5847, %v5889
      %v5891 = vpop.f32.mrf.mxu0
      %v5892 = vadd.f32 %v5849, %v5891
      %v5893 = vpop.f32.mrf.mxu0
      %v5894 = vadd.f32 %v5851, %v5893
      %5895 = vdwg.mxu0
      %v5896 = vld [vmem:[%s8] sm:$0x3]
      %v5898 = vlaneseq
      %v5899 = vshrl.u32 %v5898, 7
      %v5900 = vsub.s32 0, %v5899
      %v5901 = vrot.slane %v5896, %v5900
      %v5902 = vlaneseq
      %v5903 = vshrl.u32 %v5902, 7
      %v5904 = vsub.s32 1, %v5903
      %v5905 = vrot.slane %v5896, %v5904
      %v5908 = vadd.f32 %v5888, %v5901
      %v5909 = vadd.f32 %v5890, %v5905
      %v5910 = vadd.f32 %v5892, %v5901
      %v5911 = vadd.f32 %v5894, %v5905
      %v5912 = vmax.f32 %v5908, 0.0
      %v5913 = vmax.f32 %v5909, 0.0
      %v5914 = vmax.f32 %v5910, 0.0
      %v5915 = vmax.f32 %v5911, 0.0
      %v5916 = vpack.c.bf16 %v5914, %v5912
      %v5917 = vpack.c.bf16 %v5915, %v5913
      %v5920 = vunpack.c.l.b16 %v5916
      %v5921 = vunpack.c.l.b16 %v5917
      %v5922 = vpack.c.b16 %v5921, %v5920
      %v5923 = vrot.slane %v5922, 7
      %5924 = vrot.lane.b32.xlu0 %v5923, 8
      %v5925 = vpop.permute.xlu0 %5924
      %v5926 = vrot.slane %v5925, 4
      %v5927 = vsel %vm4963, %v5926, %v5925
      %vm5930 = vmand %vm4985, %vm701
      %vm5931 = vmor %vm705, %vm5930
      %v5932 = vld [vmem:[#allocation5] sm:$0x22]
      %v5933 = vsel %vm5931, %v5927, %v5932
      %5934 = vst [vmem:[#allocation5] sm:$0x22] %v5933
      %vm5935 = vmand %vm4991, %vm701
      %v5936 = vld [vmem:[#allocation5 + $0x8] sm:$0x2]
      %v5937 = vsel %vm5935, %v5926, %v5936
      %5938 = vst [vmem:[#allocation5 + $0x8] sm:$0x2] %v5937
      %v5940 = vshrl.u32 %v5922, 16
      %v5942 = vrot.slane %v5940, 6
      %5943 = vrot.lane.b32.xlu0 %v5942, 8
      %v5944 = vpop.permute.xlu0 %5943
      %v5945 = vrot.slane %v5944, 4
      %v5946 = vsel %vm4963, %v5945, %v5944
      %vm5949 = vmand %vm5003, %vm755
      %vm5950 = vmor %vm759, %vm5949
      %v5951 = vld [vmem:[#allocation5] sm:$0x44]
      %v5952 = vsel %vm5950, %v5946, %v5951
      %5953 = vst [vmem:[#allocation5] sm:$0x44] %v5952
      %vm5954 = vmand %vm5009, %vm755
      %v5955 = vld [vmem:[#allocation5 + $0x8] sm:$0x4]
      %v5956 = vsel %vm5954, %v5945, %v5955
      %5957 = vst [vmem:[#allocation5 + $0x8] sm:$0x4] %v5956
      %v5958 = vrot.slane %v5922, 6
      %5959 = vrot.lane.b32.xlu0 %v5958, 8
      %v5960 = vpop.permute.xlu0 %5959
      %v5961 = vrot.slane %v5960, 4
      %v5962 = vsel %vm4963, %v5961, %v5960
      %vm5965 = vmand %vm5021, %vm2519
      %vm5966 = vmor %vm2522, %vm5965
      %v5967 = vld [vmem:[#allocation5] sm:$0x88]
      %v5968 = vsel %vm5966, %v5962, %v5967
      %5969 = vst [vmem:[#allocation5] sm:$0x88] %v5968
      %vm5970 = vmand %vm5027, %vm2519
      %v5971 = vld [vmem:[#allocation5 + $0x8] sm:$0x8]
      %v5972 = vsel %vm5970, %v5961, %v5971
      %5973 = vst [vmem:[#allocation5 + $0x8] sm:$0x8] %v5972
      %v5974 = vrot.slane %v5940, 5
      %v5975 = vrot.slane %v5974, 4
      %5976 = vrot.lane.b32.xlu0 %v5975, 8
      %v5977 = vpop.permute.xlu0 %5976
      %v5978 = vrot.slane %v5977, 4
      %v5979 = vsel %vm4963, %v5978, %v5977
      %vm5982 = vmand %vm4967, %vm2539
      %vm5983 = vmor %vm2542, %vm5982
      %v5984 = vld [vmem:[#allocation5 + $0xc] sm:$0x11]
      %v5985 = vsel %vm5983, %v5979, %v5984
      %5986 = vst [vmem:[#allocation5 + $0xc] sm:$0x11] %v5985
      %vm5987 = vmand %vm4973, %vm2539
      %v5988 = vld [vmem:[#allocation5 + $0x14] sm:$0x1]
      %v5989 = vsel %vm5987, %v5978, %v5988
      %5990 = vst [vmem:[#allocation5 + $0x14] sm:$0x1] %v5989
      %v5991 = vrot.slane %v5922, 5
      %v5992 = vrot.slane %v5991, 4
      %5993 = vrot.lane.b32.xlu0 %v5992, 8
      %v5994 = vpop.permute.xlu0 %5993
      %v5995 = vrot.slane %v5994, 4
      %v5996 = vsel %vm4963, %v5995, %v5994
      %v5999 = vld [vmem:[#allocation5 + $0xc] sm:$0x22]
      %v6000 = vsel %vm5931, %v5996, %v5999
      %6001 = vst [vmem:[#allocation5 + $0xc] sm:$0x22] %v6000
      %v6002 = vld [vmem:[#allocation5 + $0x14] sm:$0x2]
      %v6003 = vsel %vm5935, %v5995, %v6002
      %6004 = vst [vmem:[#allocation5 + $0x14] sm:$0x2] %v6003
      %v6005 = vrot.slane %v5940, 4
      %v6006 = vrot.slane %v6005, 4
      %6007 = vrot.lane.b32.xlu0 %v6006, 8
      %v6008 = vpop.permute.xlu0 %6007
      %v6009 = vrot.slane %v6008, 4
      %v6010 = vsel %vm4963, %v6009, %v6008
      %v6013 = vld [vmem:[#allocation5 + $0xc] sm:$0x44]
      %v6014 = vsel %vm5950, %v6010, %v6013
      %6015 = vst [vmem:[#allocation5 + $0xc] sm:$0x44] %v6014
      %v6016 = vld [vmem:[#allocation5 + $0x14] sm:$0x4]
      %v6017 = vsel %vm5954, %v6009, %v6016
      %6018 = vst [vmem:[#allocation5 + $0x14] sm:$0x4] %v6017
      %6019 = vrot.lane.b32.xlu0 %v5922, 8
      %v6020 = vpop.permute.xlu0 %6019
      %v6021 = vrot.slane %v6020, 4
      %v6022 = vsel %vm4963, %v6021, %v6020
      %v6025 = vld [vmem:[#allocation5 + $0xc] sm:$0x88]
      %v6026 = vsel %vm5966, %v6022, %v6025
      %6027 = vst [vmem:[#allocation5 + $0xc] sm:$0x88] %v6026
      %v6028 = vld [vmem:[#allocation5 + $0x14] sm:$0x8]
      %v6029 = vsel %vm5970, %v6021, %v6028
      %6030 = vst [vmem:[#allocation5 + $0x14] sm:$0x8] %v6029
      %v6031 = vrot.slane %v5940, 7
      %v6032 = vrot.slane %v6031, 4
      %6033 = vrot.lane.b32.xlu0 %v6032, 8
      %v6034 = vpop.permute.xlu0 %6033
      %v6035 = vrot.slane %v6034, 4
      %v6036 = vsel %vm4963, %v6035, %v6034
      %v6039 = vld [vmem:[#allocation5 + $0x18] sm:$0x11]
      %v6040 = vsel %vm5983, %v6036, %v6039
      %6041 = vst [vmem:[#allocation5 + $0x18] sm:$0x11] %v6040
      %v6042 = vld [vmem:[#allocation5 + $0x20] sm:$0x1]
      %v6043 = vsel %vm5987, %v6035, %v6042
      %6044 = vst [vmem:[#allocation5 + $0x20] sm:$0x1] %v6043
      %v6045 = vunpack.c.h.b16 %v5916
      %v6046 = vunpack.c.h.b16 %v5917
      %v6047 = vpack.c.b16 %v6046, %v6045
      %v6048 = vrot.slane %v6047, 7
      %6049 = vrot.lane.b32.xlu0 %v6048, 8
      %v6050 = vpop.permute.xlu0 %6049
      %v6051 = vrot.slane %v6050, 4
      %v6052 = vsel %vm4963, %v6051, %v6050
      %v6055 = vld [vmem:[#allocation5 + $0x18] sm:$0x22]
      %v6056 = vsel %vm5931, %v6052, %v6055
      %6057 = vst [vmem:[#allocation5 + $0x18] sm:$0x22] %v6056
      %v6058 = vld [vmem:[#allocation5 + $0x20] sm:$0x2]
      %v6059 = vsel %vm5935, %v6051, %v6058
      %6060 = vst [vmem:[#allocation5 + $0x20] sm:$0x2] %v6059
      %v6062 = vshrl.u32 %v6047, 16
      %v6064 = vrot.slane %v6062, 6
      %6065 = vrot.lane.b32.xlu0 %v6064, 8
      %v6066 = vpop.permute.xlu0 %6065
      %v6067 = vrot.slane %v6066, 4
      %v6068 = vsel %vm4963, %v6067, %v6066
      %v6071 = vld [vmem:[#allocation5 + $0x18] sm:$0x44]
      %v6072 = vsel %vm5950, %v6068, %v6071
      %6073 = vst [vmem:[#allocation5 + $0x18] sm:$0x44] %v6072
      %v6074 = vld [vmem:[#allocation5 + $0x20] sm:$0x4]
      %v6075 = vsel %vm5954, %v6067, %v6074
      %6076 = vst [vmem:[#allocation5 + $0x20] sm:$0x4] %v6075
      %v6077 = vrot.slane %v6047, 6
      %6078 = vrot.lane.b32.xlu0 %v6077, 8
      %v6079 = vpop.permute.xlu0 %6078
      %v6080 = vrot.slane %v6079, 4
      %v6081 = vsel %vm4963, %v6080, %v6079
      %v6084 = vld [vmem:[#allocation5 + $0x18] sm:$0x88]
      %v6085 = vsel %vm5966, %v6081, %v6084
      %6086 = vst [vmem:[#allocation5 + $0x18] sm:$0x88] %v6085
      %v6087 = vld [vmem:[#allocation5 + $0x20] sm:$0x8]
      %v6088 = vsel %vm5970, %v6080, %v6087
      %6089 = vst [vmem:[#allocation5 + $0x20] sm:$0x8] %v6088
      %v6090 = vrot.slane %v6062, 5
      %v6091 = vrot.slane %v6090, 4
      %6092 = vrot.lane.b32.xlu0 %v6091, 8
      %v6093 = vpop.permute.xlu0 %6092
      %v6094 = vrot.slane %v6093, 4
      %v6095 = vsel %vm4963, %v6094, %v6093
      %v6098 = vld [vmem:[#allocation5 + $0x24] sm:$0x11]
      %v6099 = vsel %vm5983, %v6095, %v6098
      %6100 = vst [vmem:[#allocation5 + $0x24] sm:$0x11] %v6099
      %v6101 = vld [vmem:[#allocation5 + $0x2c] sm:$0x1]
      %v6102 = vsel %vm5987, %v6094, %v6101
      %6103 = vst [vmem:[#allocation5 + $0x2c] sm:$0x1] %v6102
      %v6104 = vrot.slane %v6047, 5
      %v6105 = vrot.slane %v6104, 4
      %6106 = vrot.lane.b32.xlu0 %v6105, 8
      %v6107 = vpop.permute.xlu0 %6106
      %v6108 = vrot.slane %v6107, 4
      %v6109 = vsel %vm4963, %v6108, %v6107
      %v6112 = vld [vmem:[#allocation5 + $0x24] sm:$0x22]
      %v6113 = vsel %vm5931, %v6109, %v6112
      %6114 = vst [vmem:[#allocation5 + $0x24] sm:$0x22] %v6113
      %v6115 = vld [vmem:[#allocation5 + $0x2c] sm:$0x2]
      %v6116 = vsel %vm5935, %v6108, %v6115
      %6117 = vst [vmem:[#allocation5 + $0x2c] sm:$0x2] %v6116
      %v6118 = vrot.slane %v6062, 4
      %v6119 = vrot.slane %v6118, 4
      %6120 = vrot.lane.b32.xlu0 %v6119, 8
      %v6121 = vpop.permute.xlu0 %6120
      %v6122 = vrot.slane %v6121, 4
      %v6123 = vsel %vm4963, %v6122, %v6121
      %v6126 = vld [vmem:[#allocation5 + $0x24] sm:$0x44]
      %v6127 = vsel %vm5950, %v6123, %v6126
      %6128 = vst [vmem:[#allocation5 + $0x24] sm:$0x44] %v6127
      %v6129 = vld [vmem:[#allocation5 + $0x2c] sm:$0x4]
      %v6130 = vsel %vm5954, %v6122, %v6129
      %6131 = vst [vmem:[#allocation5 + $0x2c] sm:$0x4] %v6130
      %6132 = vrot.lane.b32.xlu0 %v6047, 8
      %v6133 = vpop.permute.xlu0 %6132
      %v6134 = vrot.slane %v6133, 4
      %v6135 = vsel %vm4963, %v6134, %v6133
      %v6138 = vld [vmem:[#allocation5 + $0x24] sm:$0x88]
      %v6139 = vsel %vm5966, %v6135, %v6138
      %6140 = vst [vmem:[#allocation5 + $0x24] sm:$0x88] %v6139
      %v6141 = vld [vmem:[#allocation5 + $0x2c] sm:$0x8]
      %v6142 = vsel %vm5970, %v6134, %v6141
      %6143 = vst [vmem:[#allocation5 + $0x2c] sm:$0x8] %v6142
      %v6144 = vrot.slane %v6062, 7
      %v6145 = vrot.slane %v6144, 4
      %6146 = vrot.lane.b32.xlu0 %v6145, 8
      %v6147 = vpop.permute.xlu0 %6146
      %v6148 = vrot.slane %v6147, 4
      %v6149 = vsel %vm4963, %v6148, %v6147
      %v6152 = vld [vmem:[#allocation5 + $0x30] sm:$0x11]
      %v6153 = vsel %vm5983, %v6149, %v6152
      %6154 = vst [vmem:[#allocation5 + $0x30] sm:$0x11] %v6153
      %v6155 = vld [vmem:[#allocation5 + $0x38] sm:$0x1]
      %v6156 = vsel %vm5987, %v6148, %v6155
      %6157 = vst [vmem:[#allocation5 + $0x38] sm:$0x1] %v6156
      %v6158 = vld [vmem:[#allocation5] sm:$0xff]
      %v6159 = vld [vmem:[#allocation5 + $0x8] sm:$0xf]
      %v6160 = vld [vmem:[#allocation5 + $0xc] sm:$0xff]
      %v6161 = vld [vmem:[#allocation5 + $0x14] sm:$0xf]
      %v6162 = vld [vmem:[#allocation5 + $0x18] sm:$0xff]
      %v6163 = vld [vmem:[#allocation5 + $0x20] sm:$0xf]
      %v6164 = vld [vmem:[#allocation5 + $0x24] sm:$0xff]
      %v6165 = vld [vmem:[#allocation5 + $0x2c] sm:$0xf]
      %v6166 = vld [vmem:[#allocation5 + $0x30] sm:$0x11]
      %v6167 = vld [vmem:[#allocation5 + $0x38] sm:$0x1]
      %v6168 = vld [vmem:[%s9] sm:$0xff]
      %v6169 = vld [vmem:[%s9 + $0x8] sm:$0xff]
      %v6170 = vld [vmem:[%s9 + $0x10] sm:$0xff]
      %v6171 = vld [vmem:[%s9 + $0x18] sm:$0xff]
      %v6172 = vld [vmem:[%s9 + $0x20] sm:$0xff]
      %v6173 = vld [vmem:[%s9 + $0x28] sm:$0xff]
      %v6174 = vld [vmem:[%s9 + $0x30] sm:$0xff]
      %v6175 = vld [vmem:[%s9 + $0x38] sm:$0xff]
      %v6176 = vld [vmem:[%s9 + $0x40] sm:$0xff]
      %v6177 = vld [vmem:[%s9 + $0x48] sm:$0xff]
      %v6178 = vld [vmem:[%s9 + $0x50] sm:$0xff]
      %v6179 = vld [vmem:[%s9 + $0x58] sm:$0xff]
      %v6180 = vld [vmem:[%s9 + $0x60] sm:$0xff]
      %v6181 = vld [vmem:[%s9 + $0x68] sm:$0xff]
      %v6182 = vld [vmem:[%s9 + $0x70] sm:$0xff]
      %v6183 = vld [vmem:[%s9 + $0x78] sm:$0xff]
      %v6184 = vld [vmem:[%s9 + $0x80] sm:$0xff]
      %v6185 = vld [vmem:[%s9 + $0x88] sm:$0xff]
      %v6186 = vld [vmem:[%s9 + $0x90] sm:$0xff]
      %v6187 = vld [vmem:[%s9 + $0x98] sm:$0xff]
      %v6188 = vld [vmem:[%s9 + $0xa0] sm:$0xff]
      %v6189 = vld [vmem:[%s9 + $0xa8] sm:$0xff]
      %v6190 = vld [vmem:[%s9 + $0xb0] sm:$0xff]
      %v6191 = vld [vmem:[%s9 + $0xb8] sm:$0xff]
      %v6192 = vld [vmem:[%s9 + $0xc0] sm:$0xff]
      %v6193 = vld [vmem:[%s9 + $0xc8] sm:$0xff]
      %v6194 = vld [vmem:[%s9 + $0xd0] sm:$0xff]
      %v6195 = vld [vmem:[%s9 + $0xd8] sm:$0xff]
      %v6196 = vld [vmem:[%s9 + $0xe0] sm:$0xff]
      %v6197 = vld [vmem:[%s9 + $0xe8] sm:$0xff]
      %v6198 = vld [vmem:[%s9 + $0xf0] sm:$0xff]
      %v6199 = vld [vmem:[%s9 + $0xf8] sm:$0xff]
      %v6200 = vld [vmem:[%s9 + $0x100] sm:$0xff]
      %v6201 = vld [vmem:[%s9 + $0x108] sm:$0xff]
      %s6202 = scalar_lea.vmem %s9, 272
      %v6203 = vld [vmem:[%s6202] sm:$0xff]
      %v6204 = vld [vmem:[%s6202 + $0x8] sm:$0xff]
      %v6205 = vld [vmem:[%s6202 + $0x10] sm:$0xff]
      %v6206 = vld [vmem:[%s6202 + $0x18] sm:$0xff]
      %v6207 = vld [vmem:[%s6202 + $0x20] sm:$0xff]
      %v6208 = vld [vmem:[%s6202 + $0x28] sm:$0xff]
      %v6209 = vld [vmem:[%s6202 + $0x30] sm:$0xff]
      %v6210 = vld [vmem:[%s6202 + $0x38] sm:$0xff]
      %v6211 = vld [vmem:[%s6202 + $0x40] sm:$0xff]
      %v6212 = vld [vmem:[%s6202 + $0x48] sm:$0xff]
      %v6213 = vld [vmem:[%s6202 + $0x50] sm:$0xff]
      %v6214 = vld [vmem:[%s6202 + $0x58] sm:$0xff]
      %v6215 = vld [vmem:[%s6202 + $0x60] sm:$0xff]
      %v6216 = vld [vmem:[%s6202 + $0x68] sm:$0xff]
      %v6217 = vld [vmem:[%s6202 + $0x70] sm:$0xff]
      %v6218 = vld [vmem:[%s6202 + $0x78] sm:$0xff]
      %v6219 = vld [vmem:[%s6202 + $0x80] sm:$0xff]
      %v6220 = vld [vmem:[%s6202 + $0x88] sm:$0xff]
      %v6221 = vld [vmem:[%s6202 + $0x90] sm:$0xff]
      %v6222 = vld [vmem:[%s6202 + $0x98] sm:$0xff]
      %v6223 = vld [vmem:[%s6202 + $0xa0] sm:$0xff]
      %v6224 = vld [vmem:[%s6202 + $0xa8] sm:$0xff]
      %v6225 = vld [vmem:[%s6202 + $0xb0] sm:$0xff]
      %v6226 = vld [vmem:[%s6202 + $0xb8] sm:$0xff]
      %v6227 = vld [vmem:[%s6202 + $0xc0] sm:$0xff]
      %v6228 = vld [vmem:[%s6202 + $0xc8] sm:$0xff]
      %v6229 = vld [vmem:[%s6202 + $0xd0] sm:$0xff]
      %v6230 = vld [vmem:[%s6202 + $0xd8] sm:$0xff]
      %v6231 = vld [vmem:[%s6202 + $0xe0] sm:$0xff]
      %v6232 = vld [vmem:[%s6202 + $0xe8] sm:$0xff]
      %v6233 = vld [vmem:[%s6202 + $0xf0] sm:$0xff]
      %v6234 = vld [vmem:[%s6202 + $0xf8] sm:$0xff]
      %v6235 = vld [vmem:[%s6202 + $0x100] sm:$0xff]
      %v6236 = vld [vmem:[%s6202 + $0x108] sm:$0xff]
      %v6245 = vunpack.c.l.b16 %v6158
      %v6246 = vunpack.c.h.b16 %v6158
      %v6247 = vunpack.c.l.b16 %v6159
      %v6248 = vunpack.c.l.b16 %v6160
      %v6249 = vunpack.c.h.b16 %v6160
      %v6250 = vunpack.c.l.b16 %v6161
      %v6251 = vunpack.c.l.b16 %v6162
      %v6252 = vunpack.c.h.b16 %v6162
      %v6253 = vunpack.c.l.b16 %v6163
      %v6254 = vunpack.c.l.b16 %v6164
      %v6255 = vunpack.c.h.b16 %v6164
      %v6256 = vunpack.c.l.b16 %v6165
      %v6257 = vpack.c.b16 %v6248, %v6245
      %v6258 = vpack.c.b16 %v6249, %v6246
      %v6259 = vpack.c.b16 %v6250, %v6247
      %v6260 = vpack.c.b16 %v6254, %v6251
      %v6261 = vpack.c.b16 %v6255, %v6252
      %v6262 = vpack.c.b16 %v6256, %v6253
      %v6301 = vunpack.c.l.b16 %v6203
      %v6302 = vunpack.c.h.b16 %v6203
      %v6303 = vunpack.c.l.b16 %v6204
      %v6304 = vunpack.c.h.b16 %v6204
      %v6305 = vunpack.c.l.b16 %v6205
      %v6306 = vunpack.c.h.b16 %v6205
      %v6307 = vunpack.c.l.b16 %v6206
      %v6308 = vunpack.c.h.b16 %v6206
      %v6309 = vunpack.c.l.b16 %v6207
      %v6310 = vunpack.c.h.b16 %v6207
      %v6311 = vunpack.c.l.b16 %v6208
      %v6312 = vunpack.c.h.b16 %v6208
      %v6313 = vunpack.c.l.b16 %v6209
      %v6314 = vunpack.c.h.b16 %v6209
      %v6315 = vunpack.c.l.b16 %v6210
      %v6316 = vunpack.c.h.b16 %v6210
      %v6317 = vunpack.c.l.b16 %v6211
      %v6318 = vunpack.c.h.b16 %v6211
      %v6319 = vunpack.c.l.b16 %v6212
      %v6320 = vunpack.c.h.b16 %v6212
      %v6321 = vunpack.c.l.b16 %v6213
      %v6322 = vunpack.c.h.b16 %v6213
      %v6323 = vunpack.c.l.b16 %v6214
      %v6324 = vunpack.c.h.b16 %v6214
      %v6325 = vunpack.c.l.b16 %v6215
      %v6326 = vunpack.c.h.b16 %v6215
      %v6327 = vunpack.c.l.b16 %v6216
      %v6328 = vunpack.c.h.b16 %v6216
      %v6329 = vunpack.c.l.b16 %v6217
      %v6330 = vunpack.c.h.b16 %v6217
      %v6331 = vunpack.c.l.b16 %v6218
      %v6332 = vunpack.c.h.b16 %v6218
      %v6333 = vunpack.c.l.b16 %v6219
      %v6334 = vunpack.c.h.b16 %v6219
      %v6335 = vunpack.c.l.b16 %v6220
      %v6336 = vunpack.c.h.b16 %v6220
      %v6337 = vunpack.c.l.b16 %v6221
      %v6338 = vunpack.c.h.b16 %v6221
      %v6339 = vunpack.c.l.b16 %v6222
      %v6340 = vunpack.c.h.b16 %v6222
      %v6341 = vunpack.c.l.b16 %v6223
      %v6342 = vunpack.c.h.b16 %v6223
      %v6343 = vunpack.c.l.b16 %v6224
      %v6344 = vunpack.c.h.b16 %v6224
      %v6345 = vunpack.c.l.b16 %v6225
      %v6346 = vunpack.c.h.b16 %v6225
      %v6347 = vunpack.c.l.b16 %v6226
      %v6348 = vunpack.c.h.b16 %v6226
      %v6349 = vunpack.c.l.b16 %v6227
      %v6350 = vunpack.c.h.b16 %v6227
      %v6351 = vunpack.c.l.b16 %v6228
      %v6352 = vunpack.c.h.b16 %v6228
      %v6353 = vunpack.c.l.b16 %v6229
      %v6354 = vunpack.c.h.b16 %v6229
      %v6355 = vunpack.c.l.b16 %v6230
      %v6356 = vunpack.c.h.b16 %v6230
      %v6357 = vunpack.c.l.b16 %v6231
      %v6358 = vunpack.c.h.b16 %v6231
      %v6359 = vunpack.c.l.b16 %v6232
      %v6360 = vunpack.c.h.b16 %v6232
      %v6361 = vunpack.c.l.b16 %v6233
      %v6362 = vunpack.c.h.b16 %v6233
      %v6363 = vunpack.c.l.b16 %v6234
      %v6364 = vunpack.c.h.b16 %v6234
      %v6365 = vunpack.c.l.b16 %v6235
      %v6366 = vunpack.c.h.b16 %v6235
      %v6367 = vunpack.c.l.b16 %v6236
      %v6368 = vunpack.c.h.b16 %v6236
      %v6369 = vpack.c.b16 %v6303, %v6301
      %v6370 = vpack.c.b16 %v6304, %v6302
      %v6371 = vpack.c.b16 %v6307, %v6305
      %v6372 = vpack.c.b16 %v6308, %v6306
      %v6373 = vpack.c.b16 %v6311, %v6309
      %v6374 = vpack.c.b16 %v6312, %v6310
      %v6375 = vpack.c.b16 %v6315, %v6313
      %v6376 = vpack.c.b16 %v6316, %v6314
      %v6377 = vpack.c.b16 %v6319, %v6317
      %v6378 = vpack.c.b16 %v6320, %v6318
      %v6379 = vpack.c.b16 %v6323, %v6321
      %v6380 = vpack.c.b16 %v6324, %v6322
      %v6381 = vpack.c.b16 %v6327, %v6325
      %v6382 = vpack.c.b16 %v6328, %v6326
      %v6383 = vpack.c.b16 %v6331, %v6329
      %v6384 = vpack.c.b16 %v6332, %v6330
      %v6385 = vpack.c.b16 %v6335, %v6333
      %v6386 = vpack.c.b16 %v6336, %v6334
      %v6387 = vpack.c.b16 %v6339, %v6337
      %v6388 = vpack.c.b16 %v6340, %v6338
      %v6389 = vpack.c.b16 %v6343, %v6341
      %v6390 = vpack.c.b16 %v6344, %v6342
      %v6391 = vpack.c.b16 %v6347, %v6345
      %v6392 = vpack.c.b16 %v6348, %v6346
      %v6393 = vpack.c.b16 %v6351, %v6349
      %v6394 = vpack.c.b16 %v6352, %v6350
      %v6395 = vpack.c.b16 %v6355, %v6353
      %v6396 = vpack.c.b16 %v6356, %v6354
      %v6397 = vpack.c.b16 %v6359, %v6357
      %v6398 = vpack.c.b16 %v6360, %v6358
      %v6399 = vpack.c.b16 %v6363, %v6361
      %v6400 = vpack.c.b16 %v6364, %v6362
      %v6401 = vpack.c.b16 %v6367, %v6365
      %v6402 = vpack.c.b16 %v6368, %v6366
      %v6438 = vsel %vm474, %v6259, 0
      %v6441 = vsel %vm474, %v6262, 0
      %6443 = vmatprep.subr.bf16.mxu0 %v6384
      %6444 = vmatpush1.bf16.msra.mxu0 %v6383
      %6445 = vmatprep.subr.bf16.mxu0 %v6382
      %6446 = vmatpush1.bf16.msra.mxu0 %v6381
      %6447 = vmatprep.subr.bf16.mxu0 %v6380
      %6448 = vmatpush1.bf16.msra.mxu0 %v6379
      %6449 = vmatprep.subr.bf16.mxu0 %v6378
      %6450 = vmatpush1.bf16.msra.mxu0 %v6377
      %6451 = vmatprep.subr.bf16.mxu0 %v6376
      %6452 = vmatpush1.bf16.msra.mxu0 %v6375
      %6453 = vmatprep.subr.bf16.mxu0 %v6374
      %6454 = vmatpush1.bf16.msra.mxu0 %v6373
      %6455 = vmatprep.subr.bf16.mxu0 %v6372
      %6456 = vmatpush1.bf16.msra.mxu0 %v6371
      %6457 = vmatprep.subr.bf16.mxu0 %v6370
      %6458 = vmatpush1.bf16.msra.mxu0 %v6369
      %6459 = vmatprep.subr.bf16.mxu0 %v6400
      %6460 = vmatpush2.bf16.msra.mxu0 %v6399
      %6461 = vmatprep.subr.bf16.mxu0 %v6398
      %6462 = vmatpush2.bf16.msra.mxu0 %v6397
      %6463 = vmatprep.subr.bf16.mxu0 %v6396
      %6464 = vmatpush2.bf16.msra.mxu0 %v6395
      %6465 = vmatprep.subr.bf16.mxu0 %v6394
      %6466 = vmatpush2.bf16.msra.mxu0 %v6393
      %6467 = vmatprep.subr.bf16.mxu0 %v6392
      %6468 = vmatpush2.bf16.msra.mxu0 %v6391
      %6469 = vmatprep.subr.bf16.mxu0 %v6390
      %6470 = vmatpush2.bf16.msra.mxu0 %v6389
      %6471 = vmatprep.subr.bf16.mxu0 %v6388
      %6472 = vmatpush2.bf16.msra.mxu0 %v6387
      %6473 = vmatprep.subr.bf16.mxu0 %v6386
      %6474 = vmatpush2.bf16.msra.mxu0 %v6385
      %6475 = vmatprep.mubr.bf16.mxu0 %v6258
      %6476 = vmatmul.mubr.bf16.gmra.mxu0 %v6257
      %v6477 = vpop.f32.mrf.mxu0
      %v6478 = vadd.f32 0.0, %v6477
      %v6479 = vpop.f32.mrf.mxu0
      %v6480 = vadd.f32 0.0, %v6479
      %v6481 = vpop.f32.mrf.mxu0
      %v6482 = vadd.f32 0.0, %v6481
      %v6483 = vpop.f32.mrf.mxu0
      %v6484 = vadd.f32 0.0, %v6483
      %6485 = vmatprep.mubr.bf16.mxu0 %v6261
      %6486 = vmatmul.mubr.bf16.gmra.mxu0 %v6260
      %v6487 = vpop.f32.mrf.mxu0
      %v6488 = vadd.f32 0.0, %v6487
      %v6489 = vpop.f32.mrf.mxu0
      %v6490 = vadd.f32 0.0, %v6489
      %v6491 = vpop.f32.mrf.mxu0
      %v6492 = vadd.f32 0.0, %v6491
      %v6493 = vpop.f32.mrf.mxu0
      %v6494 = vadd.f32 0.0, %v6493
      %6495 = vdwg.mxu0
      %6496 = vmatprep.subr.bf16.mxu0 0
      %6497 = vmatpush1.bf16.msra.mxu0 0
      %6498 = vmatprep.subr.bf16.mxu0 0
      %6499 = vmatpush1.bf16.msra.mxu0 0
      %6500 = vmatprep.subr.bf16.mxu0 0
      %6501 = vmatpush1.bf16.msra.mxu0 0
      %6502 = vmatprep.subr.bf16.mxu0 0
      %6503 = vmatpush1.bf16.msra.mxu0 0
      %6504 = vmatprep.subr.bf16.mxu0 0
      %6505 = vmatpush1.bf16.msra.mxu0 0
      %6506 = vmatprep.subr.bf16.mxu0 0
      %6507 = vmatpush1.bf16.msra.mxu0 0
      %6508 = vmatprep.subr.bf16.mxu0 0
      %6509 = vmatpush1.bf16.msra.mxu0 0
      %6510 = vmatprep.subr.bf16.mxu0 %v6402
      %6511 = vmatpush1.bf16.msra.mxu0 %v6401
      %6512 = vmatprep.subr.bf16.mxu0 0
      %6513 = vmatpush2.bf16.msra.mxu0 0
      %6514 = vmatprep.subr.bf16.mxu0 0
      %6515 = vmatpush2.bf16.msra.mxu0 0
      %6516 = vmatprep.subr.bf16.mxu0 0
      %6517 = vmatpush2.bf16.msra.mxu0 0
      %6518 = vmatprep.subr.bf16.mxu0 0
      %6519 = vmatpush2.bf16.msra.mxu0 0
      %6520 = vmatprep.subr.bf16.mxu0 0
      %6521 = vmatpush2.bf16.msra.mxu0 0
      %6522 = vmatprep.subr.bf16.mxu0 0
      %6523 = vmatpush2.bf16.msra.mxu0 0
      %6524 = vmatprep.subr.bf16.mxu0 0
      %6525 = vmatpush2.bf16.msra.mxu0 0
      %6526 = vmatprep.subr.bf16.mxu0 0
      %6527 = vmatpush2.bf16.msra.mxu0 0
      %6528 = vmatprep.mubr.bf16.mxu0 0
      %6529 = vmatmul.mubr.bf16.gmra.mxu0 %v6438
      %v6530 = vpop.f32.mrf.mxu0
      %v6531 = vadd.f32 %v6478, %v6530
      %v6532 = vpop.f32.mrf.mxu0
      %v6533 = vadd.f32 %v6480, %v6532
      %v6534 = vpop.f32.mrf.mxu0
      %v6535 = vadd.f32 %v6482, %v6534
      %v6536 = vpop.f32.mrf.mxu0
      %v6537 = vadd.f32 %v6484, %v6536
      %6538 = vmatprep.mubr.bf16.mxu0 0
      %6539 = vmatmul.mubr.bf16.gmra.mxu0 %v6441
      %v6540 = vpop.f32.mrf.mxu0
      %v6541 = vadd.f32 %v6488, %v6540
      %v6542 = vpop.f32.mrf.mxu0
      %v6543 = vadd.f32 %v6490, %v6542
      %v6544 = vpop.f32.mrf.mxu0
      %v6545 = vadd.f32 %v6492, %v6544
      %v6546 = vpop.f32.mrf.mxu0
      %v6547 = vadd.f32 %v6494, %v6546
      %6548 = vdwg.mxu0
      %v6551 = vunpack.c.l.b16 %v6166
      %v6552 = vunpack.c.h.b16 %v6166
      %v6553 = vunpack.c.l.b16 %v6167
      %v6554 = vpack.c.b16 %v6551, %v6551
      %v6555 = vpack.c.b16 %v6552, %v6552
      %v6556 = vpack.c.b16 %v6553, %v6553
      %v6558 = vshrl.u32 %v6257, 16
      %v6560 = vshll.u32 %v6257, 16
      %v6562 = vrot.slane %v6560, 1
      %v6563 = vor.u32 %v6558, %v6562
      %v6565 = vshll.u32 %v6260, 16
      %v6567 = vrot.slane %v6565, 1
      %v6568 = vsel %vm2521, %v6563, %v6567
      %v6570 = vshrl.u32 %v6258, 16
      %v6572 = vshll.u32 %v6258, 16
      %v6574 = vrot.slane %v6572, 1
      %v6575 = vor.u32 %v6570, %v6574
      %v6577 = vshll.u32 %v6261, 16
      %v6579 = vrot.slane %v6577, 1
      %v6580 = vsel %vm2521, %v6575, %v6579
      %v6581 = vshrl.u32 %v6259, 16
      %v6583 = vshll.u32 %v6259, 16
      %v6585 = vrot.slane %v6583, 1
      %v6586 = vor.u32 %v6581, %v6585
      %v6587 = vshll.u32 %v6262, 16
      %v6589 = vrot.slane %v6587, 1
      %v6590 = vsel %vm2521, %v6586, %v6589
      %v6591 = vshrl.u32 %v6260, 16
      %v6593 = vor.u32 %v6591, %v6567
      %v6595 = vshll.u32 %v6554, 16
      %v6597 = vrot.slane %v6595, 1
      %v6598 = vsel %vm2521, %v6593, %v6597
      %v6599 = vshrl.u32 %v6261, 16
      %v6601 = vor.u32 %v6599, %v6579
      %v6603 = vshll.u32 %v6555, 16
      %v6605 = vrot.slane %v6603, 1
      %v6606 = vsel %vm2521, %v6601, %v6605
      %v6607 = vshrl.u32 %v6262, 16
      %v6609 = vor.u32 %v6607, %v6589
      %v6611 = vshll.u32 %v6556, 16
      %v6613 = vrot.slane %v6611, 1
      %v6614 = vsel %vm2521, %v6609, %v6613
      %v6653 = vunpack.c.l.b16 %v6168
      %v6654 = vunpack.c.h.b16 %v6168
      %v6655 = vunpack.c.l.b16 %v6169
      %v6656 = vunpack.c.h.b16 %v6169
      %v6657 = vunpack.c.l.b16 %v6170
      %v6658 = vunpack.c.h.b16 %v6170
      %v6659 = vunpack.c.l.b16 %v6171
      %v6660 = vunpack.c.h.b16 %v6171
      %v6661 = vunpack.c.l.b16 %v6172
      %v6662 = vunpack.c.h.b16 %v6172
      %v6663 = vunpack.c.l.b16 %v6173
      %v6664 = vunpack.c.h.b16 %v6173
      %v6665 = vunpack.c.l.b16 %v6174
      %v6666 = vunpack.c.h.b16 %v6174
      %v6667 = vunpack.c.l.b16 %v6175
      %v6668 = vunpack.c.h.b16 %v6175
      %v6669 = vunpack.c.l.b16 %v6176
      %v6670 = vunpack.c.h.b16 %v6176
      %v6671 = vunpack.c.l.b16 %v6177
      %v6672 = vunpack.c.h.b16 %v6177
      %v6673 = vunpack.c.l.b16 %v6178
      %v6674 = vunpack.c.h.b16 %v6178
      %v6675 = vunpack.c.l.b16 %v6179
      %v6676 = vunpack.c.h.b16 %v6179
      %v6677 = vunpack.c.l.b16 %v6180
      %v6678 = vunpack.c.h.b16 %v6180
      %v6679 = vunpack.c.l.b16 %v6181
      %v6680 = vunpack.c.h.b16 %v6181
      %v6681 = vunpack.c.l.b16 %v6182
      %v6682 = vunpack.c.h.b16 %v6182
      %v6683 = vunpack.c.l.b16 %v6183
      %v6684 = vunpack.c.h.b16 %v6183
      %v6685 = vunpack.c.l.b16 %v6184
      %v6686 = vunpack.c.h.b16 %v6184
      %v6687 = vunpack.c.l.b16 %v6185
      %v6688 = vunpack.c.h.b16 %v6185
      %v6689 = vunpack.c.l.b16 %v6186
      %v6690 = vunpack.c.h.b16 %v6186
      %v6691 = vunpack.c.l.b16 %v6187
      %v6692 = vunpack.c.h.b16 %v6187
      %v6693 = vunpack.c.l.b16 %v6188
      %v6694 = vunpack.c.h.b16 %v6188
      %v6695 = vunpack.c.l.b16 %v6189
      %v6696 = vunpack.c.h.b16 %v6189
      %v6697 = vunpack.c.l.b16 %v6190
      %v6698 = vunpack.c.h.b16 %v6190
      %v6699 = vunpack.c.l.b16 %v6191
      %v6700 = vunpack.c.h.b16 %v6191
      %v6701 = vunpack.c.l.b16 %v6192
      %v6702 = vunpack.c.h.b16 %v6192
      %v6703 = vunpack.c.l.b16 %v6193
      %v6704 = vunpack.c.h.b16 %v6193
      %v6705 = vunpack.c.l.b16 %v6194
      %v6706 = vunpack.c.h.b16 %v6194
      %v6707 = vunpack.c.l.b16 %v6195
      %v6708 = vunpack.c.h.b16 %v6195
      %v6709 = vunpack.c.l.b16 %v6196
      %v6710 = vunpack.c.h.b16 %v6196
      %v6711 = vunpack.c.l.b16 %v6197
      %v6712 = vunpack.c.h.b16 %v6197
      %v6713 = vunpack.c.l.b16 %v6198
      %v6714 = vunpack.c.h.b16 %v6198
      %v6715 = vunpack.c.l.b16 %v6199
      %v6716 = vunpack.c.h.b16 %v6199
      %v6717 = vunpack.c.l.b16 %v6200
      %v6718 = vunpack.c.h.b16 %v6200
      %v6719 = vunpack.c.l.b16 %v6201
      %v6720 = vunpack.c.h.b16 %v6201
      %v6721 = vpack.c.b16 %v6655, %v6653
      %v6722 = vpack.c.b16 %v6656, %v6654
      %v6723 = vpack.c.b16 %v6659, %v6657
      %v6724 = vpack.c.b16 %v6660, %v6658
      %v6725 = vpack.c.b16 %v6663, %v6661
      %v6726 = vpack.c.b16 %v6664, %v6662
      %v6727 = vpack.c.b16 %v6667, %v6665
      %v6728 = vpack.c.b16 %v6668, %v6666
      %v6729 = vpack.c.b16 %v6671, %v6669
      %v6730 = vpack.c.b16 %v6672, %v6670
      %v6731 = vpack.c.b16 %v6675, %v6673
      %v6732 = vpack.c.b16 %v6676, %v6674
      %v6733 = vpack.c.b16 %v6679, %v6677
      %v6734 = vpack.c.b16 %v6680, %v6678
      %v6735 = vpack.c.b16 %v6683, %v6681
      %v6736 = vpack.c.b16 %v6684, %v6682
      %v6737 = vpack.c.b16 %v6687, %v6685
      %v6738 = vpack.c.b16 %v6688, %v6686
      %v6739 = vpack.c.b16 %v6691, %v6689
      %v6740 = vpack.c.b16 %v6692, %v6690
      %v6741 = vpack.c.b16 %v6695, %v6693
      %v6742 = vpack.c.b16 %v6696, %v6694
      %v6743 = vpack.c.b16 %v6699, %v6697
      %v6744 = vpack.c.b16 %v6700, %v6698
      %v6745 = vpack.c.b16 %v6703, %v6701
      %v6746 = vpack.c.b16 %v6704, %v6702
      %v6747 = vpack.c.b16 %v6707, %v6705
      %v6748 = vpack.c.b16 %v6708, %v6706
      %v6749 = vpack.c.b16 %v6711, %v6709
      %v6750 = vpack.c.b16 %v6712, %v6710
      %v6751 = vpack.c.b16 %v6715, %v6713
      %v6752 = vpack.c.b16 %v6716, %v6714
      %v6753 = vpack.c.b16 %v6719, %v6717
      %v6754 = vpack.c.b16 %v6720, %v6718
      %v6790 = vsel %vm474, %v6590, 0
      %v6793 = vsel %vm474, %v6614, 0
      %6795 = vmatprep.subr.bf16.mxu0 %v6736
      %6796 = vmatpush1.bf16.msra.mxu0 %v6735
      %6797 = vmatprep.subr.bf16.mxu0 %v6734
      %6798 = vmatpush1.bf16.msra.mxu0 %v6733
      %6799 = vmatprep.subr.bf16.mxu0 %v6732
      %6800 = vmatpush1.bf16.msra.mxu0 %v6731
      %6801 = vmatprep.subr.bf16.mxu0 %v6730
      %6802 = vmatpush1.bf16.msra.mxu0 %v6729
      %6803 = vmatprep.subr.bf16.mxu0 %v6728
      %6804 = vmatpush1.bf16.msra.mxu0 %v6727
      %6805 = vmatprep.subr.bf16.mxu0 %v6726
      %6806 = vmatpush1.bf16.msra.mxu0 %v6725
      %6807 = vmatprep.subr.bf16.mxu0 %v6724
      %6808 = vmatpush1.bf16.msra.mxu0 %v6723
      %6809 = vmatprep.subr.bf16.mxu0 %v6722
      %6810 = vmatpush1.bf16.msra.mxu0 %v6721
      %6811 = vmatprep.subr.bf16.mxu0 %v6752
      %6812 = vmatpush2.bf16.msra.mxu0 %v6751
      %6813 = vmatprep.subr.bf16.mxu0 %v6750
      %6814 = vmatpush2.bf16.msra.mxu0 %v6749
      %6815 = vmatprep.subr.bf16.mxu0 %v6748
      %6816 = vmatpush2.bf16.msra.mxu0 %v6747
      %6817 = vmatprep.subr.bf16.mxu0 %v6746
      %6818 = vmatpush2.bf16.msra.mxu0 %v6745
      %6819 = vmatprep.subr.bf16.mxu0 %v6744
      %6820 = vmatpush2.bf16.msra.mxu0 %v6743
      %6821 = vmatprep.subr.bf16.mxu0 %v6742
      %6822 = vmatpush2.bf16.msra.mxu0 %v6741
      %6823 = vmatprep.subr.bf16.mxu0 %v6740
      %6824 = vmatpush2.bf16.msra.mxu0 %v6739
      %6825 = vmatprep.subr.bf16.mxu0 %v6738
      %6826 = vmatpush2.bf16.msra.mxu0 %v6737
      %6827 = vmatprep.mubr.bf16.mxu0 %v6580
      %6828 = vmatmul.mubr.bf16.gmra.mxu0 %v6568
      %v6829 = vpop.f32.mrf.mxu0
      %v6830 = vadd.f32 %v6531, %v6829
      %v6831 = vpop.f32.mrf.mxu0
      %v6832 = vadd.f32 %v6533, %v6831
      %v6833 = vpop.f32.mrf.mxu0
      %v6834 = vadd.f32 %v6535, %v6833
      %v6835 = vpop.f32.mrf.mxu0
      %v6836 = vadd.f32 %v6537, %v6835
      %6837 = vmatprep.mubr.bf16.mxu0 %v6606
      %6838 = vmatmul.mubr.bf16.gmra.mxu0 %v6598
      %v6839 = vpop.f32.mrf.mxu0
      %v6840 = vadd.f32 %v6541, %v6839
      %v6841 = vpop.f32.mrf.mxu0
      %v6842 = vadd.f32 %v6543, %v6841
      %v6843 = vpop.f32.mrf.mxu0
      %v6844 = vadd.f32 %v6545, %v6843
      %v6845 = vpop.f32.mrf.mxu0
      %v6846 = vadd.f32 %v6547, %v6845
      %6847 = vdwg.mxu0
      %6848 = vmatprep.subr.bf16.mxu0 0
      %6849 = vmatpush1.bf16.msra.mxu0 0
      %6850 = vmatprep.subr.bf16.mxu0 0
      %6851 = vmatpush1.bf16.msra.mxu0 0
      %6852 = vmatprep.subr.bf16.mxu0 0
      %6853 = vmatpush1.bf16.msra.mxu0 0
      %6854 = vmatprep.subr.bf16.mxu0 0
      %6855 = vmatpush1.bf16.msra.mxu0 0
      %6856 = vmatprep.subr.bf16.mxu0 0
      %6857 = vmatpush1.bf16.msra.mxu0 0
      %6858 = vmatprep.subr.bf16.mxu0 0
      %6859 = vmatpush1.bf16.msra.mxu0 0
      %6860 = vmatprep.subr.bf16.mxu0 0
      %6861 = vmatpush1.bf16.msra.mxu0 0
      %6862 = vmatprep.subr.bf16.mxu0 %v6754
      %6863 = vmatpush1.bf16.msra.mxu0 %v6753
      %6864 = vmatprep.subr.bf16.mxu0 0
      %6865 = vmatpush2.bf16.msra.mxu0 0
      %6866 = vmatprep.subr.bf16.mxu0 0
      %6867 = vmatpush2.bf16.msra.mxu0 0
      %6868 = vmatprep.subr.bf16.mxu0 0
      %6869 = vmatpush2.bf16.msra.mxu0 0
      %6870 = vmatprep.subr.bf16.mxu0 0
      %6871 = vmatpush2.bf16.msra.mxu0 0
      %6872 = vmatprep.subr.bf16.mxu0 0
      %6873 = vmatpush2.bf16.msra.mxu0 0
      %6874 = vmatprep.subr.bf16.mxu0 0
      %6875 = vmatpush2.bf16.msra.mxu0 0
      %6876 = vmatprep.subr.bf16.mxu0 0
      %6877 = vmatpush2.bf16.msra.mxu0 0
      %6878 = vmatprep.subr.bf16.mxu0 0
      %6879 = vmatpush2.bf16.msra.mxu0 0
      %6880 = vmatprep.mubr.bf16.mxu0 0
      %6881 = vmatmul.mubr.bf16.gmra.mxu0 %v6790
      %v6882 = vpop.f32.mrf.mxu0
      %v6883 = vadd.f32 %v6830, %v6882
      %v6884 = vpop.f32.mrf.mxu0
      %v6885 = vadd.f32 %v6832, %v6884
      %v6886 = vpop.f32.mrf.mxu0
      %v6887 = vadd.f32 %v6834, %v6886
      %v6888 = vpop.f32.mrf.mxu0
      %v6889 = vadd.f32 %v6836, %v6888
      %6890 = vmatprep.mubr.bf16.mxu0 0
      %6891 = vmatmul.mubr.bf16.gmra.mxu0 %v6793
      %v6892 = vpop.f32.mrf.mxu0
      %v6893 = vadd.f32 %v6840, %v6892
      %v6894 = vpop.f32.mrf.mxu0
      %v6895 = vadd.f32 %v6842, %v6894
      %v6896 = vpop.f32.mrf.mxu0
      %v6897 = vadd.f32 %v6844, %v6896
      %v6898 = vpop.f32.mrf.mxu0
      %v6899 = vadd.f32 %v6846, %v6898
      %6900 = vdwg.mxu0
      %v6901 = vtanh.pop %v6883
      %v6902 = vtanh.pop %v6885
      %v6903 = vtanh.pop %v6887
      %v6904 = vtanh.pop %v6889
      %v6905 = vtanh.pop %v6893
      %v6906 = vtanh.pop %v6895
      %v6907 = vtanh.pop %v6897
      %v6908 = vtanh.pop %v6899
      %6909 = vst [vmem:[%s353] sm:$0xff] %v6901
      %6910 = vst.msk [vmem:[%s353 + $0x8] sm:$0xff] %vm2846, %v6902
      %6911 = vst [vmem:[%s353 + $0x10] sm:$0xff] %v6903
      %6912 = vst.msk [vmem:[%s353 + $0x18] sm:$0xff] %vm2846, %v6904
      %6913 = vst [vmem:[%s353 + $0x20] sm:$0xff] %v6905
      %6914 = vst.msk [vmem:[%s353 + $0x28] sm:$0xff] %vm2846, %v6906
      %6915 = vst [vmem:[%s353 + $0x30] sm:$0xff] %v6907
      %6916 = vst.msk [vmem:[%s353 + $0x38] sm:$0xff] %vm2846, %v6908
      %v6917 = vld [vmem:[#allocation5] sm:$0xff]
      %v6918 = vld [vmem:[#allocation5 + $0x8] sm:$0xf]
      %v6919 = vld [vmem:[#allocation5 + $0xc] sm:$0xff]
      %v6920 = vld [vmem:[#allocation5 + $0x14] sm:$0xf]
      %v6921 = vld [vmem:[#allocation5 + $0x18] sm:$0xff]
      %v6922 = vld [vmem:[#allocation5 + $0x20] sm:$0xf]
      %v6923 = vld [vmem:[#allocation5 + $0x24] sm:$0xff]
      %v6924 = vld [vmem:[#allocation5 + $0x2c] sm:$0xf]
      %v6925 = vld [vmem:[#allocation5 + $0x30] sm:$0x11]
      %v6926 = vld [vmem:[#allocation5 + $0x38] sm:$0x1]
      %s6927 = scalar_lea.vmem %s9, 544
      %v6928 = vld [vmem:[%s6927] sm:$0xff]
      %v6929 = vld [vmem:[%s6927 + $0x8] sm:$0xff]
      %v6930 = vld [vmem:[%s6927 + $0x10] sm:$0xff]
      %v6931 = vld [vmem:[%s6927 + $0x18] sm:$0xff]
      %v6932 = vld [vmem:[%s6927 + $0x20] sm:$0xff]
      %v6933 = vld [vmem:[%s6927 + $0x28] sm:$0xff]
      %v6934 = vld [vmem:[%s6927 + $0x30] sm:$0xff]
      %v6935 = vld [vmem:[%s6927 + $0x38] sm:$0xff]
      %v6936 = vld [vmem:[%s6927 + $0x40] sm:$0xff]
      %v6937 = vld [vmem:[%s6927 + $0x48] sm:$0xff]
      %v6938 = vld [vmem:[%s6927 + $0x50] sm:$0xff]
      %v6939 = vld [vmem:[%s6927 + $0x58] sm:$0xff]
      %v6940 = vld [vmem:[%s6927 + $0x60] sm:$0xff]
      %v6941 = vld [vmem:[%s6927 + $0x68] sm:$0xff]
      %v6942 = vld [vmem:[%s6927 + $0x70] sm:$0xff]
      %v6943 = vld [vmem:[%s6927 + $0x78] sm:$0xff]
      %v6944 = vld [vmem:[%s6927 + $0x80] sm:$0xff]
      %v6945 = vld [vmem:[%s6927 + $0x88] sm:$0xff]
      %v6946 = vld [vmem:[%s6927 + $0x90] sm:$0xff]
      %v6947 = vld [vmem:[%s6927 + $0x98] sm:$0xff]
      %v6948 = vld [vmem:[%s6927 + $0xa0] sm:$0xff]
      %v6949 = vld [vmem:[%s6927 + $0xa8] sm:$0xff]
      %v6950 = vld [vmem:[%s6927 + $0xb0] sm:$0xff]
      %v6951 = vld [vmem:[%s6927 + $0xb8] sm:$0xff]
      %v6952 = vld [vmem:[%s6927 + $0xc0] sm:$0xff]
      %v6953 = vld [vmem:[%s6927 + $0xc8] sm:$0xff]
      %v6954 = vld [vmem:[%s6927 + $0xd0] sm:$0xff]
      %v6955 = vld [vmem:[%s6927 + $0xd8] sm:$0xff]
      %v6956 = vld [vmem:[%s6927 + $0xe0] sm:$0xff]
      %v6957 = vld [vmem:[%s6927 + $0xe8] sm:$0xff]
      %v6958 = vld [vmem:[%s6927 + $0xf0] sm:$0xff]
      %v6959 = vld [vmem:[%s6927 + $0xf8] sm:$0xff]
      %v6960 = vld [vmem:[%s6927 + $0x100] sm:$0xff]
      %v6961 = vld [vmem:[%s6927 + $0x108] sm:$0xff]
      %v6962 = vld [vmem:[#allocation5] sm:$0xee]
      %v6963 = vld [vmem:[#allocation5 + $0x8] sm:$0xe]
      %s6964 = scalar_lea.vmem %s9, 816
      %v6965 = vld [vmem:[%s6964] sm:$0xff]
      %v6966 = vld [vmem:[%s6964 + $0x8] sm:$0xff]
      %v6967 = vld [vmem:[%s6964 + $0x10] sm:$0xff]
      %v6968 = vld [vmem:[%s6964 + $0x18] sm:$0xff]
      %v6969 = vld [vmem:[%s6964 + $0x20] sm:$0xff]
      %v6970 = vld [vmem:[%s6964 + $0x28] sm:$0xff]
      %v6971 = vld [vmem:[%s6964 + $0x30] sm:$0xff]
      %v6972 = vld [vmem:[%s6964 + $0x38] sm:$0xff]
      %v6973 = vld [vmem:[%s6964 + $0x40] sm:$0xff]
      %v6974 = vld [vmem:[%s6964 + $0x48] sm:$0xff]
      %v6975 = vld [vmem:[%s6964 + $0x50] sm:$0xff]
      %v6976 = vld [vmem:[%s6964 + $0x58] sm:$0xff]
      %v6977 = vld [vmem:[%s6964 + $0x60] sm:$0xff]
      %v6978 = vld [vmem:[%s6964 + $0x68] sm:$0xff]
      %v6979 = vld [vmem:[%s6964 + $0x70] sm:$0xff]
      %v6980 = vld [vmem:[%s6964 + $0x78] sm:$0xff]
      %v6981 = vld [vmem:[%s6964 + $0x80] sm:$0xff]
      %v6982 = vld [vmem:[%s6964 + $0x88] sm:$0xff]
      %v6983 = vld [vmem:[%s6964 + $0x90] sm:$0xff]
      %v6984 = vld [vmem:[%s6964 + $0x98] sm:$0xff]
      %v6985 = vld [vmem:[%s6964 + $0xa0] sm:$0xff]
      %v6986 = vld [vmem:[%s6964 + $0xa8] sm:$0xff]
      %v6987 = vld [vmem:[%s6964 + $0xb0] sm:$0xff]
      %v6988 = vld [vmem:[%s6964 + $0xb8] sm:$0xff]
      %v6989 = vld [vmem:[%s6964 + $0xc0] sm:$0xff]
      %v6990 = vld [vmem:[%s6964 + $0xc8] sm:$0xff]
      %v6991 = vld [vmem:[%s6964 + $0xd0] sm:$0xff]
      %v6992 = vld [vmem:[%s6964 + $0xd8] sm:$0xff]
      %v6993 = vld [vmem:[%s6964 + $0xe0] sm:$0xff]
      %v6994 = vld [vmem:[%s6964 + $0xe8] sm:$0xff]
      %v6995 = vld [vmem:[%s6964 + $0xf0] sm:$0xff]
      %v6996 = vld [vmem:[%s6964 + $0xf8] sm:$0xff]
      %v6997 = vld [vmem:[%s6964 + $0x100] sm:$0xff]
      %v6998 = vld [vmem:[%s6964 + $0x108] sm:$0xff]
      %v7009 = vunpack.c.l.b16 %v6962
      %v7010 = vunpack.c.h.b16 %v6962
      %v7011 = vunpack.c.l.b16 %v6963
      %v7012 = vunpack.c.l.b16 %v6919
      %v7013 = vunpack.c.h.b16 %v6919
      %v7014 = vunpack.c.l.b16 %v6920
      %v7015 = vunpack.c.l.b16 %v6921
      %v7016 = vunpack.c.h.b16 %v6921
      %v7017 = vunpack.c.l.b16 %v6922
      %v7018 = vunpack.c.l.b16 %v6923
      %v7019 = vunpack.c.h.b16 %v6923
      %v7020 = vunpack.c.l.b16 %v6924
      %v7021 = vunpack.c.l.b16 %v6925
      %v7022 = vunpack.c.h.b16 %v6925
      %v7023 = vunpack.c.l.b16 %v6926
      %v7024 = vpack.c.b16 %v7012, %v7009
      %v7025 = vpack.c.b16 %v7013, %v7010
      %v7026 = vpack.c.b16 %v7014, %v7011
      %v7027 = vpack.c.b16 %v7018, %v7015
      %v7028 = vpack.c.b16 %v7019, %v7016
      %v7029 = vpack.c.b16 %v7020, %v7017
      %v7030 = vpack.c.b16 %v7021, %v7021
      %v7031 = vpack.c.b16 %v7022, %v7022
      %v7032 = vpack.c.b16 %v7023, %v7023
      %v7033 = vrot.slane %v7024, 1
      %v7034 = vrot.slane %v7027, 1
      %v7035 = vsel %vm5300, %v7033, %v7034
      %v7036 = vrot.slane %v7025, 1
      %v7037 = vrot.slane %v7028, 1
      %v7038 = vsel %vm5300, %v7036, %v7037
      %v7039 = vrot.slane %v7026, 1
      %v7040 = vrot.slane %v7029, 1
      %v7041 = vsel %vm5300, %v7039, %v7040
      %v7042 = vrot.slane %v7030, 1
      %v7043 = vsel %vm5300, %v7034, %v7042
      %v7044 = vrot.slane %v7031, 1
      %v7045 = vsel %vm5300, %v7037, %v7044
      %v7046 = vrot.slane %v7032, 1
      %v7047 = vsel %vm5300, %v7040, %v7046
      %v7086 = vunpack.c.l.b16 %v6965
      %v7087 = vunpack.c.h.b16 %v6965
      %v7088 = vunpack.c.l.b16 %v6966
      %v7089 = vunpack.c.h.b16 %v6966
      %v7090 = vunpack.c.l.b16 %v6967
      %v7091 = vunpack.c.h.b16 %v6967
      %v7092 = vunpack.c.l.b16 %v6968
      %v7093 = vunpack.c.h.b16 %v6968
      %v7094 = vunpack.c.l.b16 %v6969
      %v7095 = vunpack.c.h.b16 %v6969
      %v7096 = vunpack.c.l.b16 %v6970
      %v7097 = vunpack.c.h.b16 %v6970
      %v7098 = vunpack.c.l.b16 %v6971
      %v7099 = vunpack.c.h.b16 %v6971
      %v7100 = vunpack.c.l.b16 %v6972
      %v7101 = vunpack.c.h.b16 %v6972
      %v7102 = vunpack.c.l.b16 %v6973
      %v7103 = vunpack.c.h.b16 %v6973
      %v7104 = vunpack.c.l.b16 %v6974
      %v7105 = vunpack.c.h.b16 %v6974
      %v7106 = vunpack.c.l.b16 %v6975
      %v7107 = vunpack.c.h.b16 %v6975
      %v7108 = vunpack.c.l.b16 %v6976
      %v7109 = vunpack.c.h.b16 %v6976
      %v7110 = vunpack.c.l.b16 %v6977
      %v7111 = vunpack.c.h.b16 %v6977
      %v7112 = vunpack.c.l.b16 %v6978
      %v7113 = vunpack.c.h.b16 %v6978
      %v7114 = vunpack.c.l.b16 %v6979
      %v7115 = vunpack.c.h.b16 %v6979
      %v7116 = vunpack.c.l.b16 %v6980
      %v7117 = vunpack.c.h.b16 %v6980
      %v7118 = vunpack.c.l.b16 %v6981
      %v7119 = vunpack.c.h.b16 %v6981
      %v7120 = vunpack.c.l.b16 %v6982
      %v7121 = vunpack.c.h.b16 %v6982
      %v7122 = vunpack.c.l.b16 %v6983
      %v7123 = vunpack.c.h.b16 %v6983
      %v7124 = vunpack.c.l.b16 %v6984
      %v7125 = vunpack.c.h.b16 %v6984
      %v7126 = vunpack.c.l.b16 %v6985
      %v7127 = vunpack.c.h.b16 %v6985
      %v7128 = vunpack.c.l.b16 %v6986
      %v7129 = vunpack.c.h.b16 %v6986
      %v7130 = vunpack.c.l.b16 %v6987
      %v7131 = vunpack.c.h.b16 %v6987
      %v7132 = vunpack.c.l.b16 %v6988
      %v7133 = vunpack.c.h.b16 %v6988
      %v7134 = vunpack.c.l.b16 %v6989
      %v7135 = vunpack.c.h.b16 %v6989
      %v7136 = vunpack.c.l.b16 %v6990
      %v7137 = vunpack.c.h.b16 %v6990
      %v7138 = vunpack.c.l.b16 %v6991
      %v7139 = vunpack.c.h.b16 %v6991
      %v7140 = vunpack.c.l.b16 %v6992
      %v7141 = vunpack.c.h.b16 %v6992
      %v7142 = vunpack.c.l.b16 %v6993
      %v7143 = vunpack.c.h.b16 %v6993
      %v7144 = vunpack.c.l.b16 %v6994
      %v7145 = vunpack.c.h.b16 %v6994
      %v7146 = vunpack.c.l.b16 %v6995
      %v7147 = vunpack.c.h.b16 %v6995
      %v7148 = vunpack.c.l.b16 %v6996
      %v7149 = vunpack.c.h.b16 %v6996
      %v7150 = vunpack.c.l.b16 %v6997
      %v7151 = vunpack.c.h.b16 %v6997
      %v7152 = vunpack.c.l.b16 %v6998
      %v7153 = vunpack.c.h.b16 %v6998
      %v7154 = vpack.c.b16 %v7088, %v7086
      %v7155 = vpack.c.b16 %v7089, %v7087
      %v7156 = vpack.c.b16 %v7092, %v7090
      %v7157 = vpack.c.b16 %v7093, %v7091
      %v7158 = vpack.c.b16 %v7096, %v7094
      %v7159 = vpack.c.b16 %v7097, %v7095
      %v7160 = vpack.c.b16 %v7100, %v7098
      %v7161 = vpack.c.b16 %v7101, %v7099
      %v7162 = vpack.c.b16 %v7104, %v7102
      %v7163 = vpack.c.b16 %v7105, %v7103
      %v7164 = vpack.c.b16 %v7108, %v7106
      %v7165 = vpack.c.b16 %v7109, %v7107
      %v7166 = vpack.c.b16 %v7112, %v7110
      %v7167 = vpack.c.b16 %v7113, %v7111
      %v7168 = vpack.c.b16 %v7116, %v7114
      %v7169 = vpack.c.b16 %v7117, %v7115
      %v7170 = vpack.c.b16 %v7120, %v7118
      %v7171 = vpack.c.b16 %v7121, %v7119
      %v7172 = vpack.c.b16 %v7124, %v7122
      %v7173 = vpack.c.b16 %v7125, %v7123
      %v7174 = vpack.c.b16 %v7128, %v7126
      %v7175 = vpack.c.b16 %v7129, %v7127
      %v7176 = vpack.c.b16 %v7132, %v7130
      %v7177 = vpack.c.b16 %v7133, %v7131
      %v7178 = vpack.c.b16 %v7136, %v7134
      %v7179 = vpack.c.b16 %v7137, %v7135
      %v7180 = vpack.c.b16 %v7140, %v7138
      %v7181 = vpack.c.b16 %v7141, %v7139
      %v7182 = vpack.c.b16 %v7144, %v7142
      %v7183 = vpack.c.b16 %v7145, %v7143
      %v7184 = vpack.c.b16 %v7148, %v7146
      %v7185 = vpack.c.b16 %v7149, %v7147
      %v7186 = vpack.c.b16 %v7152, %v7150
      %v7187 = vpack.c.b16 %v7153, %v7151
      %v7223 = vsel %vm474, %v7041, 0
      %v7226 = vsel %vm474, %v7047, 0
      %7228 = vmatprep.subr.bf16.mxu0 %v7169
      %7229 = vmatpush1.bf16.msra.mxu0 %v7168
      %7230 = vmatprep.subr.bf16.mxu0 %v7167
      %7231 = vmatpush1.bf16.msra.mxu0 %v7166
      %7232 = vmatprep.subr.bf16.mxu0 %v7165
      %7233 = vmatpush1.bf16.msra.mxu0 %v7164
      %7234 = vmatprep.subr.bf16.mxu0 %v7163
      %7235 = vmatpush1.bf16.msra.mxu0 %v7162
      %7236 = vmatprep.subr.bf16.mxu0 %v7161
      %7237 = vmatpush1.bf16.msra.mxu0 %v7160
      %7238 = vmatprep.subr.bf16.mxu0 %v7159
      %7239 = vmatpush1.bf16.msra.mxu0 %v7158
      %7240 = vmatprep.subr.bf16.mxu0 %v7157
      %7241 = vmatpush1.bf16.msra.mxu0 %v7156
      %7242 = vmatprep.subr.bf16.mxu0 %v7155
      %7243 = vmatpush1.bf16.msra.mxu0 %v7154
      %7244 = vmatprep.subr.bf16.mxu0 %v7185
      %7245 = vmatpush2.bf16.msra.mxu0 %v7184
      %7246 = vmatprep.subr.bf16.mxu0 %v7183
      %7247 = vmatpush2.bf16.msra.mxu0 %v7182
      %7248 = vmatprep.subr.bf16.mxu0 %v7181
      %7249 = vmatpush2.bf16.msra.mxu0 %v7180
      %7250 = vmatprep.subr.bf16.mxu0 %v7179
      %7251 = vmatpush2.bf16.msra.mxu0 %v7178
      %7252 = vmatprep.subr.bf16.mxu0 %v7177
      %7253 = vmatpush2.bf16.msra.mxu0 %v7176
      %7254 = vmatprep.subr.bf16.mxu0 %v7175
      %7255 = vmatpush2.bf16.msra.mxu0 %v7174
      %7256 = vmatprep.subr.bf16.mxu0 %v7173
      %7257 = vmatpush2.bf16.msra.mxu0 %v7172
      %7258 = vmatprep.subr.bf16.mxu0 %v7171
      %7259 = vmatpush2.bf16.msra.mxu0 %v7170
      %7260 = vmatprep.mubr.bf16.mxu0 %v7038
      %7261 = vmatmul.mubr.bf16.gmra.mxu0 %v7035
      %v7262 = vpop.f32.mrf.mxu0
      %v7263 = vadd.f32 0.0, %v7262
      %v7264 = vpop.f32.mrf.mxu0
      %v7265 = vadd.f32 0.0, %v7264
      %v7266 = vpop.f32.mrf.mxu0
      %v7267 = vadd.f32 0.0, %v7266
      %v7268 = vpop.f32.mrf.mxu0
      %v7269 = vadd.f32 0.0, %v7268
      %7270 = vmatprep.mubr.bf16.mxu0 %v7045
      %7271 = vmatmul.mubr.bf16.gmra.mxu0 %v7043
      %v7272 = vpop.f32.mrf.mxu0
      %v7273 = vadd.f32 0.0, %v7272
      %v7274 = vpop.f32.mrf.mxu0
      %v7275 = vadd.f32 0.0, %v7274
      %v7276 = vpop.f32.mrf.mxu0
      %v7277 = vadd.f32 0.0, %v7276
      %v7278 = vpop.f32.mrf.mxu0
      %v7279 = vadd.f32 0.0, %v7278
      %7280 = vdwg.mxu0
      %7281 = vmatprep.subr.bf16.mxu0 0
      %7282 = vmatpush1.bf16.msra.mxu0 0
      %7283 = vmatprep.subr.bf16.mxu0 0
      %7284 = vmatpush1.bf16.msra.mxu0 0
      %7285 = vmatprep.subr.bf16.mxu0 0
      %7286 = vmatpush1.bf16.msra.mxu0 0
      %7287 = vmatprep.subr.bf16.mxu0 0
      %7288 = vmatpush1.bf16.msra.mxu0 0
      %7289 = vmatprep.subr.bf16.mxu0 0
      %7290 = vmatpush1.bf16.msra.mxu0 0
      %7291 = vmatprep.subr.bf16.mxu0 0
      %7292 = vmatpush1.bf16.msra.mxu0 0
      %7293 = vmatprep.subr.bf16.mxu0 0
      %7294 = vmatpush1.bf16.msra.mxu0 0
      %7295 = vmatprep.subr.bf16.mxu0 %v7187
      %7296 = vmatpush1.bf16.msra.mxu0 %v7186
      %7297 = vmatprep.subr.bf16.mxu0 0
      %7298 = vmatpush2.bf16.msra.mxu0 0
      %7299 = vmatprep.subr.bf16.mxu0 0
      %7300 = vmatpush2.bf16.msra.mxu0 0
      %7301 = vmatprep.subr.bf16.mxu0 0
      %7302 = vmatpush2.bf16.msra.mxu0 0
      %7303 = vmatprep.subr.bf16.mxu0 0
      %7304 = vmatpush2.bf16.msra.mxu0 0
      %7305 = vmatprep.subr.bf16.mxu0 0
      %7306 = vmatpush2.bf16.msra.mxu0 0
      %7307 = vmatprep.subr.bf16.mxu0 0
      %7308 = vmatpush2.bf16.msra.mxu0 0
      %7309 = vmatprep.subr.bf16.mxu0 0
      %7310 = vmatpush2.bf16.msra.mxu0 0
      %7311 = vmatprep.subr.bf16.mxu0 0
      %7312 = vmatpush2.bf16.msra.mxu0 0
      %7313 = vmatprep.mubr.bf16.mxu0 0
      %7314 = vmatmul.mubr.bf16.gmra.mxu0 %v7223
      %v7315 = vpop.f32.mrf.mxu0
      %v7316 = vadd.f32 %v7263, %v7315
      %v7317 = vpop.f32.mrf.mxu0
      %v7318 = vadd.f32 %v7265, %v7317
      %v7319 = vpop.f32.mrf.mxu0
      %v7320 = vadd.f32 %v7267, %v7319
      %v7321 = vpop.f32.mrf.mxu0
      %v7322 = vadd.f32 %v7269, %v7321
      %7323 = vmatprep.mubr.bf16.mxu0 0
      %7324 = vmatmul.mubr.bf16.gmra.mxu0 %v7226
      %v7325 = vpop.f32.mrf.mxu0
      %v7326 = vadd.f32 %v7273, %v7325
      %v7327 = vpop.f32.mrf.mxu0
      %v7328 = vadd.f32 %v7275, %v7327
      %v7329 = vpop.f32.mrf.mxu0
      %v7330 = vadd.f32 %v7277, %v7329
      %v7331 = vpop.f32.mrf.mxu0
      %v7332 = vadd.f32 %v7279, %v7331
      %7333 = vdwg.mxu0
      %v7336 = vunpack.c.l.b16 %v6917
      %v7337 = vunpack.c.h.b16 %v6917
      %v7338 = vunpack.c.l.b16 %v6918
      %v7339 = vpack.c.b16 %v7012, %v7336
      %v7340 = vpack.c.b16 %v7013, %v7337
      %v7341 = vpack.c.b16 %v7014, %v7338
      %v7343 = vshrl.u32 %v7339, 16
      %v7345 = vshll.u32 %v7339, 16
      %v7347 = vrot.slane %v7345, 1
      %v7348 = vor.u32 %v7343, %v7347
      %v7350 = vshll.u32 %v7027, 16
      %v7352 = vrot.slane %v7350, 1
      %v7353 = vsel %vm2521, %v7348, %v7352
      %v7355 = vshrl.u32 %v7340, 16
      %v7357 = vshll.u32 %v7340, 16
      %v7359 = vrot.slane %v7357, 1
      %v7360 = vor.u32 %v7355, %v7359
      %v7362 = vshll.u32 %v7028, 16
      %v7364 = vrot.slane %v7362, 1
      %v7365 = vsel %vm2521, %v7360, %v7364
      %v7367 = vshrl.u32 %v7341, 16
      %v7369 = vshll.u32 %v7341, 16
      %v7371 = vrot.slane %v7369, 1
      %v7372 = vor.u32 %v7367, %v7371
      %v7374 = vshll.u32 %v7029, 16
      %v7376 = vrot.slane %v7374, 1
      %v7377 = vsel %vm2521, %v7372, %v7376
      %v7378 = vshrl.u32 %v7027, 16
      %v7380 = vor.u32 %v7378, %v7352
      %v7382 = vshll.u32 %v7030, 16
      %v7384 = vrot.slane %v7382, 1
      %v7385 = vsel %vm2521, %v7380, %v7384
      %v7386 = vshrl.u32 %v7028, 16
      %v7388 = vor.u32 %v7386, %v7364
      %v7390 = vshll.u32 %v7031, 16
      %v7392 = vrot.slane %v7390, 1
      %v7393 = vsel %vm2521, %v7388, %v7392
      %v7394 = vshrl.u32 %v7029, 16
      %v7396 = vor.u32 %v7394, %v7376
      %v7398 = vshll.u32 %v7032, 16
      %v7400 = vrot.slane %v7398, 1
      %v7401 = vsel %vm2521, %v7396, %v7400
      %v7440 = vunpack.c.l.b16 %v6928
      %v7441 = vunpack.c.h.b16 %v6928
      %v7442 = vunpack.c.l.b16 %v6929
      %v7443 = vunpack.c.h.b16 %v6929
      %v7444 = vunpack.c.l.b16 %v6930
      %v7445 = vunpack.c.h.b16 %v6930
      %v7446 = vunpack.c.l.b16 %v6931
      %v7447 = vunpack.c.h.b16 %v6931
      %v7448 = vunpack.c.l.b16 %v6932
      %v7449 = vunpack.c.h.b16 %v6932
      %v7450 = vunpack.c.l.b16 %v6933
      %v7451 = vunpack.c.h.b16 %v6933
      %v7452 = vunpack.c.l.b16 %v6934
      %v7453 = vunpack.c.h.b16 %v6934
      %v7454 = vunpack.c.l.b16 %v6935
      %v7455 = vunpack.c.h.b16 %v6935
      %v7456 = vunpack.c.l.b16 %v6936
      %v7457 = vunpack.c.h.b16 %v6936
      %v7458 = vunpack.c.l.b16 %v6937
      %v7459 = vunpack.c.h.b16 %v6937
      %v7460 = vunpack.c.l.b16 %v6938
      %v7461 = vunpack.c.h.b16 %v6938
      %v7462 = vunpack.c.l.b16 %v6939
      %v7463 = vunpack.c.h.b16 %v6939
      %v7464 = vunpack.c.l.b16 %v6940
      %v7465 = vunpack.c.h.b16 %v6940
      %v7466 = vunpack.c.l.b16 %v6941
      %v7467 = vunpack.c.h.b16 %v6941
      %v7468 = vunpack.c.l.b16 %v6942
      %v7469 = vunpack.c.h.b16 %v6942
      %v7470 = vunpack.c.l.b16 %v6943
      %v7471 = vunpack.c.h.b16 %v6943
      %v7472 = vunpack.c.l.b16 %v6944
      %v7473 = vunpack.c.h.b16 %v6944
      %v7474 = vunpack.c.l.b16 %v6945
      %v7475 = vunpack.c.h.b16 %v6945
      %v7476 = vunpack.c.l.b16 %v6946
      %v7477 = vunpack.c.h.b16 %v6946
      %v7478 = vunpack.c.l.b16 %v6947
      %v7479 = vunpack.c.h.b16 %v6947
      %v7480 = vunpack.c.l.b16 %v6948
      %v7481 = vunpack.c.h.b16 %v6948
      %v7482 = vunpack.c.l.b16 %v6949
      %v7483 = vunpack.c.h.b16 %v6949
      %v7484 = vunpack.c.l.b16 %v6950
      %v7485 = vunpack.c.h.b16 %v6950
      %v7486 = vunpack.c.l.b16 %v6951
      %v7487 = vunpack.c.h.b16 %v6951
      %v7488 = vunpack.c.l.b16 %v6952
      %v7489 = vunpack.c.h.b16 %v6952
      %v7490 = vunpack.c.l.b16 %v6953
      %v7491 = vunpack.c.h.b16 %v6953
      %v7492 = vunpack.c.l.b16 %v6954
      %v7493 = vunpack.c.h.b16 %v6954
      %v7494 = vunpack.c.l.b16 %v6955
      %v7495 = vunpack.c.h.b16 %v6955
      %v7496 = vunpack.c.l.b16 %v6956
      %v7497 = vunpack.c.h.b16 %v6956
      %v7498 = vunpack.c.l.b16 %v6957
      %v7499 = vunpack.c.h.b16 %v6957
      %v7500 = vunpack.c.l.b16 %v6958
      %v7501 = vunpack.c.h.b16 %v6958
      %v7502 = vunpack.c.l.b16 %v6959
      %v7503 = vunpack.c.h.b16 %v6959
      %v7504 = vunpack.c.l.b16 %v6960
      %v7505 = vunpack.c.h.b16 %v6960
      %v7506 = vunpack.c.l.b16 %v6961
      %v7507 = vunpack.c.h.b16 %v6961
      %v7508 = vpack.c.b16 %v7442, %v7440
      %v7509 = vpack.c.b16 %v7443, %v7441
      %v7510 = vpack.c.b16 %v7446, %v7444
      %v7511 = vpack.c.b16 %v7447, %v7445
      %v7512 = vpack.c.b16 %v7450, %v7448
      %v7513 = vpack.c.b16 %v7451, %v7449
      %v7514 = vpack.c.b16 %v7454, %v7452
      %v7515 = vpack.c.b16 %v7455, %v7453
      %v7516 = vpack.c.b16 %v7458, %v7456
      %v7517 = vpack.c.b16 %v7459, %v7457
      %v7518 = vpack.c.b16 %v7462, %v7460
      %v7519 = vpack.c.b16 %v7463, %v7461
      %v7520 = vpack.c.b16 %v7466, %v7464
      %v7521 = vpack.c.b16 %v7467, %v7465
      %v7522 = vpack.c.b16 %v7470, %v7468
      %v7523 = vpack.c.b16 %v7471, %v7469
      %v7524 = vpack.c.b16 %v7474, %v7472
      %v7525 = vpack.c.b16 %v7475, %v7473
      %v7526 = vpack.c.b16 %v7478, %v7476
      %v7527 = vpack.c.b16 %v7479, %v7477
      %v7528 = vpack.c.b16 %v7482, %v7480
      %v7529 = vpack.c.b16 %v7483, %v7481
      %v7530 = vpack.c.b16 %v7486, %v7484
      %v7531 = vpack.c.b16 %v7487, %v7485
      %v7532 = vpack.c.b16 %v7490, %v7488
      %v7533 = vpack.c.b16 %v7491, %v7489
      %v7534 = vpack.c.b16 %v7494, %v7492
      %v7535 = vpack.c.b16 %v7495, %v7493
      %v7536 = vpack.c.b16 %v7498, %v7496
      %v7537 = vpack.c.b16 %v7499, %v7497
      %v7538 = vpack.c.b16 %v7502, %v7500
      %v7539 = vpack.c.b16 %v7503, %v7501
      %v7540 = vpack.c.b16 %v7506, %v7504
      %v7541 = vpack.c.b16 %v7507, %v7505
      %v7577 = vsel %vm474, %v7377, 0
      %v7580 = vsel %vm474, %v7401, 0
      %7582 = vmatprep.subr.bf16.mxu0 %v7523
      %7583 = vmatpush1.bf16.msra.mxu0 %v7522
      %7584 = vmatprep.subr.bf16.mxu0 %v7521
      %7585 = vmatpush1.bf16.msra.mxu0 %v7520
      %7586 = vmatprep.subr.bf16.mxu0 %v7519
      %7587 = vmatpush1.bf16.msra.mxu0 %v7518
      %7588 = vmatprep.subr.bf16.mxu0 %v7517
      %7589 = vmatpush1.bf16.msra.mxu0 %v7516
      %7590 = vmatprep.subr.bf16.mxu0 %v7515
      %7591 = vmatpush1.bf16.msra.mxu0 %v7514
      %7592 = vmatprep.subr.bf16.mxu0 %v7513
      %7593 = vmatpush1.bf16.msra.mxu0 %v7512
      %7594 = vmatprep.subr.bf16.mxu0 %v7511
      %7595 = vmatpush1.bf16.msra.mxu0 %v7510
      %7596 = vmatprep.subr.bf16.mxu0 %v7509
      %7597 = vmatpush1.bf16.msra.mxu0 %v7508
      %7598 = vmatprep.subr.bf16.mxu0 %v7539
      %7599 = vmatpush2.bf16.msra.mxu0 %v7538
      %7600 = vmatprep.subr.bf16.mxu0 %v7537
      %7601 = vmatpush2.bf16.msra.mxu0 %v7536
      %7602 = vmatprep.subr.bf16.mxu0 %v7535
      %7603 = vmatpush2.bf16.msra.mxu0 %v7534
      %7604 = vmatprep.subr.bf16.mxu0 %v7533
      %7605 = vmatpush2.bf16.msra.mxu0 %v7532
      %7606 = vmatprep.subr.bf16.mxu0 %v7531
      %7607 = vmatpush2.bf16.msra.mxu0 %v7530
      %7608 = vmatprep.subr.bf16.mxu0 %v7529
      %7609 = vmatpush2.bf16.msra.mxu0 %v7528
      %7610 = vmatprep.subr.bf16.mxu0 %v7527
      %7611 = vmatpush2.bf16.msra.mxu0 %v7526
      %7612 = vmatprep.subr.bf16.mxu0 %v7525
      %7613 = vmatpush2.bf16.msra.mxu0 %v7524
      %7614 = vmatprep.mubr.bf16.mxu0 %v7365
      %7615 = vmatmul.mubr.bf16.gmra.mxu0 %v7353
      %v7616 = vpop.f32.mrf.mxu0
      %v7617 = vadd.f32 %v7316, %v7616
      %v7618 = vpop.f32.mrf.mxu0
      %v7619 = vadd.f32 %v7318, %v7618
      %v7620 = vpop.f32.mrf.mxu0
      %v7621 = vadd.f32 %v7320, %v7620
      %v7622 = vpop.f32.mrf.mxu0
      %v7623 = vadd.f32 %v7322, %v7622
      %7624 = vmatprep.mubr.bf16.mxu0 %v7393
      %7625 = vmatmul.mubr.bf16.gmra.mxu0 %v7385
      %v7626 = vpop.f32.mrf.mxu0
      %v7627 = vadd.f32 %v7326, %v7626
      %v7628 = vpop.f32.mrf.mxu0
      %v7629 = vadd.f32 %v7328, %v7628
      %v7630 = vpop.f32.mrf.mxu0
      %v7631 = vadd.f32 %v7330, %v7630
      %v7632 = vpop.f32.mrf.mxu0
      %v7633 = vadd.f32 %v7332, %v7632
      %7634 = vdwg.mxu0
      %7635 = vmatprep.subr.bf16.mxu0 0
      %7636 = vmatpush1.bf16.msra.mxu0 0
      %7637 = vmatprep.subr.bf16.mxu0 0
      %7638 = vmatpush1.bf16.msra.mxu0 0
      %7639 = vmatprep.subr.bf16.mxu0 0
      %7640 = vmatpush1.bf16.msra.mxu0 0
      %7641 = vmatprep.subr.bf16.mxu0 0
      %7642 = vmatpush1.bf16.msra.mxu0 0
      %7643 = vmatprep.subr.bf16.mxu0 0
      %7644 = vmatpush1.bf16.msra.mxu0 0
      %7645 = vmatprep.subr.bf16.mxu0 0
      %7646 = vmatpush1.bf16.msra.mxu0 0
      %7647 = vmatprep.subr.bf16.mxu0 0
      %7648 = vmatpush1.bf16.msra.mxu0 0
      %7649 = vmatprep.subr.bf16.mxu0 %v7541
      %7650 = vmatpush1.bf16.msra.mxu0 %v7540
      %7651 = vmatprep.subr.bf16.mxu0 0
      %7652 = vmatpush2.bf16.msra.mxu0 0
      %7653 = vmatprep.subr.bf16.mxu0 0
      %7654 = vmatpush2.bf16.msra.mxu0 0
      %7655 = vmatprep.subr.bf16.mxu0 0
      %7656 = vmatpush2.bf16.msra.mxu0 0
      %7657 = vmatprep.subr.bf16.mxu0 0
      %7658 = vmatpush2.bf16.msra.mxu0 0
      %7659 = vmatprep.subr.bf16.mxu0 0
      %7660 = vmatpush2.bf16.msra.mxu0 0
      %7661 = vmatprep.subr.bf16.mxu0 0
      %7662 = vmatpush2.bf16.msra.mxu0 0
      %7663 = vmatprep.subr.bf16.mxu0 0
      %7664 = vmatpush2.bf16.msra.mxu0 0
      %7665 = vmatprep.subr.bf16.mxu0 0
      %7666 = vmatpush2.bf16.msra.mxu0 0
      %7667 = vmatprep.mubr.bf16.mxu0 0
      %7668 = vmatmul.mubr.bf16.gmra.mxu0 %v7577
      %v7669 = vpop.f32.mrf.mxu0
      %v7670 = vadd.f32 %v7617, %v7669
      %v7671 = vpop.f32.mrf.mxu0
      %v7672 = vadd.f32 %v7619, %v7671
      %v7673 = vpop.f32.mrf.mxu0
      %v7674 = vadd.f32 %v7621, %v7673
      %v7675 = vpop.f32.mrf.mxu0
      %v7676 = vadd.f32 %v7623, %v7675
      %7677 = vmatprep.mubr.bf16.mxu0 0
      %7678 = vmatmul.mubr.bf16.gmra.mxu0 %v7580
      %v7679 = vpop.f32.mrf.mxu0
      %v7680 = vadd.f32 %v7627, %v7679
      %v7681 = vpop.f32.mrf.mxu0
      %v7682 = vadd.f32 %v7629, %v7681
      %v7683 = vpop.f32.mrf.mxu0
      %v7684 = vadd.f32 %v7631, %v7683
      %v7685 = vpop.f32.mrf.mxu0
      %v7686 = vadd.f32 %v7633, %v7685
      %7687 = vdwg.mxu0
      %v7688 = vtanh.pop %v7670
      %v7689 = vtanh.pop %v7672
      %v7690 = vtanh.pop %v7674
      %v7691 = vtanh.pop %v7676
      %v7692 = vtanh.pop %v7680
      %v7693 = vtanh.pop %v7682
      %v7694 = vtanh.pop %v7684
      %v7695 = vtanh.pop %v7686
      %s7696 = scalar_lea.vmem %s353, 64
      %7697 = vst [vmem:[%s7696] sm:$0xff] %v7688
      %7698 = vst.msk [vmem:[%s7696 + $0x8] sm:$0xff] %vm2846, %v7689
      %7699 = vst [vmem:[%s7696 + $0x10] sm:$0xff] %v7690
      %7700 = vst.msk [vmem:[%s7696 + $0x18] sm:$0xff] %vm2846, %v7691
      %7701 = vst [vmem:[%s7696 + $0x20] sm:$0xff] %v7692
      %7702 = vst.msk [vmem:[%s7696 + $0x28] sm:$0xff] %vm2846, %v7693
      %7703 = vst [vmem:[%s7696 + $0x30] sm:$0xff] %v7694
      %7704 = vst.msk [vmem:[%s7696 + $0x38] sm:$0xff] %vm2846, %v7695
      %p7705 = scmp.lt.s32.totalorder %s21, 1
      %s7706 = scalar_select %p7705, %s21, 1
      %s7707 = smul.addr %s7706, 16
      %s7708 = smul.addr %s7707, 8
      %s7709 = scalar_lea.vmem %s10, %s7708
      // Predicated region
      $region61: #{generator_dcgan_forward.1} parent=59 // pred_check
        %p7710 = pneg %p254
      $region62: #{generator_dcgan_forward.1} parent=59 // pred_check_branch
        %7712 = sbr.rel (%p7710) target = $region64
      $region63: #{generator_dcgan_forward.1} parent=59 // pred_region
        _
      $region64: #{generator_dcgan_forward.1} parent=59 // pred_fallthru
        _
    $region60: #{generator_dcgan_forward.1} parent=5 // pred_fallthru
      _
    %p7713 = scmp.le.s32.totalorder 2, %s16
    // Predicated region
    $region65: #{generator_dcgan_forward.1} parent=5 // pred_check
      %p7714 = pneg %p7713
    $region66: #{generator_dcgan_forward.1} parent=5 // pred_check_branch
      %7716 = sbr.rel (%p7714) target = $region68
    $region67: #{generator_dcgan_forward.1} parent=5 // pred_region
      %s7717 = ssub.s32 %s16, 2
      // Predicated region
      $region69: #{generator_dcgan_forward.1} parent=67 // pred_check
        %p7718 = pneg %p260
      $region70: #{generator_dcgan_forward.1} parent=67 // pred_check_branch
        %7720 = sbr.rel (%p7718) target = $region72
      $region71: #{generator_dcgan_forward.1} parent=67 // pred_region
        %p7721 = scmp.lt.s32.totalorder %s22, 1
        %s7722 = scalar_select %p7721, %s22, 1
        %s7723 = smul.addr %s7722, 16
        %s7724 = smul.addr %s7723, 8
        %s7725 = scalar_lea.vmem %s10, %s7724
      $region72: #{generator_dcgan_forward.1} parent=67 // pred_fallthru
        _
    $region68: #{generator_dcgan_forward.1} parent=5 // pred_fallthru
      _
  $region6: #{generator_dcgan_forward.1} parent=0 // loop_footer
    %s20 = sadd.s32 1, %s16
  $region7: #{generator_dcgan_forward.1} parent=0 // loop_footer_branch
    %15 = sbr.rel target = $region3
  $region8: #{generator_dcgan_forward.1} parent=0 // loop_exit
    _

</llo_original>
